<compile_context>
chip_gen: v6e
topology: v6e:2x2x1
jax: 0.10.0
libtpu: 0.0.40
codegen_flags: <defaults>
</compile_context>

<pallas_src>
import functools

import jax
import jax.numpy as jnp
from jax import lax
from jax.experimental import pallas as pl
from jax.experimental.pallas import tpu as pltpu

BN_EPS = 1e-5
_VMEM_LIMIT = 64 * 1024 * 1024


def _round_up(x, m):
    return ((x + m - 1) // m) * m


def _pick_tn(cp):
    for cand in (512, 256, 128):
        if cp % cand == 0:
            return cand
    return cp


# ---------------------------------------------------------------------------
# Kernel 1: multi-input 1x1-conv matmul  (sum_i X_i @ W_i) + bias -> SiLU
# ---------------------------------------------------------------------------
def _make_mm_bias_silu_kernel(n_in):
    def kernel(*refs):
        xs = refs[:n_in]
        ws = refs[n_in:2 * n_in]
        bias_ref = refs[2 * n_in]
        o_ref = refs[2 * n_in + 1]
        acc = jnp.dot(xs[0][...], ws[0][...], preferred_element_type=jnp.float32)
        for i in range(1, n_in):
            acc = acc + jnp.dot(xs[i][...], ws[i][...],
                                preferred_element_type=jnp.float32)
        y = acc + bias_ref[...]                                   # f32 epilogue
        o_ref[...] = (y * jax.nn.sigmoid(y)).astype(o_ref.dtype)  # SiLU
    return kernel


def _fused_mm_bias_silu(xs, ws, bias, out_dtype=jnp.bfloat16):
    """xs: list of (M, K_i); ws: list of (K_i, Cout) (BN scale folded in);
    bias: (Cout,).  Returns (M, Cout) in out_dtype.  Padding is zeros and is
    sliced off before returning, so the math is unchanged."""
    n_in = len(xs)
    M = xs[0].shape[0]
    Cout = ws[0].shape[1]

    TM = 512 if M >= 512 else _round_up(M, 8)
    Mp = _round_up(M, TM)
    Cp = _round_up(Cout, 128)
    TN = _pick_tn(Cp)

    xbs, wbs = [], []
    for x, w in zip(xs, ws):
        K = x.shape[1]
        Kp = _round_up(K, 8)
        xb = x.astype(jnp.bfloat16)
        if (Mp - M) or (Kp - K):
            xb = jnp.pad(xb, ((0, Mp - M), (0, Kp - K)))
        wb = w.astype(jnp.bfloat16)
        if (Kp - K) or (Cp - Cout):
            wb = jnp.pad(wb, ((0, Kp - K), (0, Cp - Cout)))
        xbs.append(xb)
        wbs.append(wb)
    bias2 = jnp.pad(bias.astype(jnp.float32), (0, Cp - Cout)).reshape(1, Cp)

    grid = (Mp // TM, Cp // TN)

    in_specs = (
        [pl.BlockSpec((TM, xb.shape[1]), lambda i, j: (i, 0)) for xb in xbs]
        + [pl.BlockSpec((wb.shape[0], TN), lambda i, j: (0, j)) for wb in wbs]
        + [pl.BlockSpec((1, TN), lambda i, j: (0, j))]
    )

    cost = pl.CostEstimate(
        flops=2 * Mp * sum(xb.shape[1] for xb in xbs) * Cp,
        transcendentals=Mp * Cp,
        bytes_accessed=(sum(xb.size * 2 for xb in xbs)
                        + sum(wb.size * 2 for wb in wbs)
                        + Cp * 4
                        + Mp * Cp * jnp.dtype(out_dtype).itemsize),
    )

    yp = pl.pallas_call(
        _make_mm_bias_silu_kernel(n_in),
        out_shape=jax.ShapeDtypeStruct((Mp, Cp), out_dtype),
        grid=grid,
        in_specs=in_specs,
        out_specs=pl.BlockSpec((TM, TN), lambda i, j: (i, j)),
        compiler_params=pltpu.CompilerParams(
            dimension_semantics=("parallel", "parallel"),
            vmem_limit_bytes=_VMEM_LIMIT,
        ),
        cost_estimate=cost,
    )(*xbs, *wbs, bias2)

    return yp[:M, :Cout]


# ---------------------------------------------------------------------------
# Kernel 2: fused 3x3 conv (stride 1, pad 1) + bias + SiLU, no im2col in HBM
# ---------------------------------------------------------------------------
def _conv3x3_kernel(x_ref, w_ref, bias_ref, o_ref, *, tap_offsets, mi):
    # x_ref: (1, Hp*Ws, Cin) bf16 flattened padded image (row stride Ws)
    # w_ref: (9, Cin, TN) bf16, bias_ref: (1, TN) f32, o_ref: (1, mi, TN)
    acc = None
    for t, off in enumerate(tap_offsets):           # static unroll over 9 taps
        xt = x_ref[0, pl.ds(off, mi), :]            # shifted contiguous rows
        d = jnp.dot(xt, w_ref[t], preferred_element_type=jnp.float32)
        acc = d if acc is None else acc + d
    y = acc + bias_ref[...]
    o_ref[0] = (y * jax.nn.sigmoid(y)).astype(o_ref.dtype)


def _convblock_3x3(x_nhwc, p, out_dtype=jnp.bfloat16):
    """3x3 conv (stride 1, pad 1) + BN(eval) + SiLU.  p['w']: (3,3,Cin,Cout)."""
    N, H, W, Cin = x_nhwc.shape
    Cout = p["w"].shape[3]
    w2d, bias = _fold_bn_into_weights(p["w"].reshape(9 * Cin, Cout), p)

    Cinp = _round_up(Cin, 8)
    Cp = _round_up(Cout, 128)
    w9 = w2d.reshape(9, Cin, Cout).astype(jnp.bfloat16)
    w9 = jnp.pad(w9, ((0, 0), (0, Cinp - Cin), (0, Cp - Cout)))
    bias2 = jnp.pad(bias.astype(jnp.float32), (0, Cp - Cout)).reshape(1, Cp)

    # Shared row stride Ws (multiple of 8, >= W+2) for padded input AND output,
    # so tap (dy, dx) is a constant row offset dy*Ws + dx in the flat buffer.
    Ws = _round_up(W + 2, 8)
    Hp = H + 3                    # 1 top pad, 1 bottom pad, +1 overrun guard row
    xp = jnp.pad(x_nhwc.astype(jnp.bfloat16),
                 ((0, 0), (1, 2), (1, Ws - W - 1), (0, Cinp - Cin)))
    xflat = xp.reshape(N, Hp * Ws, Cinp)
    mi = H * Ws                   # flat output rows per image (extra cols sliced off)

    TN = _pick_tn(Cp)
    grid = (N, Cp // TN)
    taps = tuple(dy * Ws + dx for dy in range(3) for dx in range(3))

    cost = pl.CostEstimate(
        flops=2 * N * mi * 9 * Cinp * Cp,
        transcendentals=N * mi * Cp,
        bytes_accessed=(xflat.size * 2 + w9.size * 2 + Cp * 4
                        + N * mi * Cp * jnp.dtype(out_dtype).itemsize),
    )

    yp = pl.pallas_call(
        functools.partial(_conv3x3_kernel, tap_offsets=taps, mi=mi),
        out_shape=jax.ShapeDtypeStruct((N, mi, Cp), out_dtype),
        grid=grid,
        in_specs=[
            pl.BlockSpec((1, Hp * Ws, Cinp), lambda n, j: (n, 0, 0)),
            pl.BlockSpec((9, Cinp, TN), lambda n, j: (0, 0, j)),
            pl.BlockSpec((1, TN), lambda n, j: (0, j)),
        ],
        out_specs=pl.BlockSpec((1, mi, TN), lambda n, j: (n, 0, j)),
        compiler_params=pltpu.CompilerParams(
            dimension_semantics=("parallel", "parallel"),
            vmem_limit_bytes=_VMEM_LIMIT,
        ),
        cost_estimate=cost,
    )(xflat, w9, bias2)

    # Drop the padded columns/channels (pure layout glue).
    return yp.reshape(N, H, Ws, Cp)[:, :, :W, :Cout]


# ---------------------------------------------------------------------------
# BN folding (eval mode)
# ---------------------------------------------------------------------------
def _fold_bn_into_weights(w2d, p):
    """Fold eval-mode BN: W' = W * scale (per output column), bias = beta - mean*scale."""
    scale = p["gamma"] * lax.rsqrt(p["var"] + BN_EPS)
    bias = p["beta"] - p["mean"] * scale
    return w2d * scale[None, :], bias


# ---------------------------------------------------------------------------
# Parameter init (deterministic, synthetic; matches the PyTorch module layout)
# ---------------------------------------------------------------------------
def _init_convblock(key, cin, cout, ksize):
    kw, kg, kb, km, kv = jax.random.split(key, 5)
    if ksize == 1:
        w = 0.1 * jax.random.normal(kw, (cin, cout), jnp.float32)
    else:
        w = 0.1 * jax.random.normal(kw, (ksize, ksize, cin, cout), jnp.float32)
    return {
        "w": w,
        "gamma": 1.0 + 0.1 * jax.random.normal(kg, (cout,), jnp.float32),
        "beta": 0.1 * jax.random.normal(kb, (cout,), jnp.float32),
        "mean": 0.05 * jax.random.normal(km, (cout,), jnp.float32),
        "var": 0.5 + 0.25 * jax.random.uniform(kv, (cout,), jnp.float32),
    }


def init_elan_params(key, in_channels, out_channels):
    keys = jax.random.split(key, 7)
    return {
        "conv1": _init_convblock(keys[0], in_channels, out_channels, 1),
        "conv2": _init_convblock(keys[1], in_channels, out_channels, 1),
        "conv3": _init_convblock(keys[2], out_channels, out_channels, 3),
        "conv4": _init_convblock(keys[3], out_channels, out_channels, 3),
        "conv5": _init_convblock(keys[4], out_channels, out_channels, 3),
        "conv6": _init_convblock(keys[5], out_channels, out_channels, 3),
        "conv7": _init_convblock(keys[6], out_channels * 4, out_channels * 4, 1),
    }


# ---------------------------------------------------------------------------
# ELAN forward (NCHW in / NCHW out, matching the PyTorch module)
# ---------------------------------------------------------------------------
@jax.jit
def elan_forward(x_nchw, params):
    x = jnp.transpose(x_nchw, (0, 2, 3, 1)).astype(jnp.bfloat16)   # NCHW -> NHWC
    N, H, W, Cin = x.shape
    C = params["conv1"]["w"].shape[1]
    M = N * H * W
    x2d = x.reshape(M, Cin)

    # conv1 + conv2 share the input -> one matmul with Cout doubled.
    w1, b1 = _fold_bn_into_weights(params["conv1"]["w"], params["conv1"])
    w2, b2 = _fold_bn_into_weights(params["conv2"]["w"], params["conv2"])
    w12 = jnp.concatenate([w1, w2], axis=1)                        # (Cin, 2C)
    b12 = jnp.concatenate([b1, b2], axis=0)
    y12 = _fused_mm_bias_silu([x2d], [w12], b12)                   # (M, 2C) = [out1|out2]
    out2 = y12[:, C:].reshape(N, H, W, C)

    out3 = _convblock_3x3(out2, params["conv3"])
    out4 = _convblock_3x3(out3, params["conv4"])
    out5 = _convblock_3x3(out4, params["conv5"])
    out6 = _convblock_3x3(out5, params["conv6"])

    # conv7 on concat(out1, out2, out4, out6): the concat is fused into the
    # kernel by splitting the weight rows; y12 already holds [out1|out2].
    w7, b7 = _fold_bn_into_weights(params["conv7"]["w"], params["conv7"])  # (4C, 4C)
    out = _fused_mm_bias_silu(
        [y12, out4.reshape(M, C), out6.reshape(M, C)],
        [w7[: 2 * C], w7[2 * C: 3 * C], w7[3 * C:]],
        b7, out_dtype=jnp.float32)
    out = out.reshape(N, H, W, 4 * C)
    return jnp.transpose(out, (0, 3, 1, 2))                        # NHWC -> NCHW


# ---------------------------------------------------------------------------
# Pure-JAX f32 reference (for correctness check only)
# ---------------------------------------------------------------------------
def _ref_convblock(x_nhwc, p, ksize):
    scale = p["gamma"] / jnp.sqrt(p["var"] + BN_EPS)
    bias = p["beta"] - p["mean"] * scale
    w = p["w"] if ksize == 3 else p["w"].reshape(1, 1, *p["w"].shape)
    y = lax.conv_general_dilated(
        x_nhwc, w, window_strides=(1, 1),
        padding="SAME" if ksize == 3 else "VALID",
        dimension_numbers=("NHWC", "HWIO", "NHWC"))
    y = y * scale + bias
    return y * jax.nn.sigmoid(y)


def elan_reference(x_nchw, params):
    x = jnp.transpose(x_nchw, (0, 2, 3, 1)).astype(jnp.float32)
    out1 = _ref_convblock(x, params["conv1"], 1)
    out2 = _ref_convblock(x, params["conv2"], 1)
    out3 = _ref_convblock(out2, params["conv3"], 3)
    out4 = _ref_convblock(out3, params["conv4"], 3)
    out5 = _ref_convblock(out4, params["conv5"], 3)
    out6 = _ref_convblock(out5, params["conv6"], 3)
    cat = jnp.concatenate((out1, out2, out4, out6), axis=-1)
    out = _ref_convblock(cat, params["conv7"], 1)
    return jnp.transpose(out, (0, 3, 1, 2))


if __name__ == "__main__":
    key = jax.random.PRNGKey(0)
    k_x, k_p = jax.random.split(key)

    in_channels, out_channels = 4, 8
    N, H, W = 2, 16, 16

    x = jax.random.normal(k_x, (N, in_channels, H, W), jnp.float32)
    params = init_elan_params(k_p, in_channels, out_channels)

    y = elan_forward(x, params)
    jax.block_until_ready(y)

    assert y.shape == (N, out_channels * 4, H, W), y.shape
    assert bool(jnp.all(jnp.isfinite(y)))

    # bf16-tolerance check against the f32 reference
    y_ref = elan_reference(x, params)
    max_err = float(jnp.max(jnp.abs(y.astype(jnp.float32) - y_ref)))
    assert max_err < 5e-2, f"max abs error vs reference too large: {max_err}"

    print("KERNEL_OK")
</pallas_src>

<mosaic_0001>
module attributes {stable_mosaic.version = 11 : i64} {
  func.func @kernel(%arg0: i32, %arg1: i32, %arg2: memref<512x8xbf16, #tpu.memory_space<vmem>>, %arg3: memref<8x128xbf16, #tpu.memory_space<vmem>>, %arg4: memref<1x128xf32, #tpu.memory_space<vmem>>, %arg5: memref<512x128xbf16, #tpu.memory_space<vmem>>) attributes {dimension_semantics = [#tpu.dimension_semantics<parallel>, #tpu.dimension_semantics<parallel>], iteration_bounds = array<i64: 1, 1>, scalar_prefetch = 0 : i64, scratch_operands = 0 : i64, tpu.core_type = #tpu.core_type<tc>, window_params = [{transform_indices = @transform_0, window_bounds = array<i64: 512, 8>}, {transform_indices = @transform_1, window_bounds = array<i64: 8, 128>}, {transform_indices = @transform_2, window_bounds = array<i64: 1, 128>}, {transform_indices = @transform_3, window_bounds = array<i64: 512, 128>}]} {
    %c0 = arith.constant 0 : index
    %c0_0 = arith.constant 0 : index
    %0 = vector.load %arg2[%c0, %c0_0] : memref<512x8xbf16, #tpu.memory_space<vmem>>, vector<512x8xbf16>
    %c0_1 = arith.constant 0 : index
    %c0_2 = arith.constant 0 : index
    %1 = vector.load %arg3[%c0_1, %c0_2] : memref<8x128xbf16, #tpu.memory_space<vmem>>, vector<8x128xbf16>
    %cst = arith.constant dense<0.000000e+00> : vector<512x128xf32>
    %2 = tpu.matmul %0, %1, %cst {dimension_numbers = #tpu.dot_dimension_numbers<[1], [0], [0], [1], [0, 0, 1, 1], [], []>} : vector<512x8xbf16>, vector<8x128xbf16>, vector<512x128xf32> -> vector<512x128xf32>
    %c0_3 = arith.constant 0 : index
    %c0_4 = arith.constant 0 : index
    %3 = vector.load %arg4[%c0_3, %c0_4] : memref<1x128xf32, #tpu.memory_space<vmem>>, vector<1x128xf32>
    %4 = vector.broadcast %3 : vector<1x128xf32> to vector<512x128xf32>
    %5 = arith.addf %2, %4 : vector<512x128xf32>
    %6 = arith.negf %5 : vector<512x128xf32>
    %7 = math.exp %6 : vector<512x128xf32>
    %cst_5 = arith.constant 1.000000e+00 : f32
    %8 = vector.broadcast %cst_5 : f32 to vector<512x128xf32>
    %9 = arith.addf %8, %7 : vector<512x128xf32>
    %10 = arith.divf %8, %9 : vector<512x128xf32>
    %11 = arith.mulf %5, %10 : vector<512x128xf32>
    %12 = arith.truncf %11 : vector<512x128xf32> to vector<512x128xbf16>
    %c0_6 = arith.constant 0 : index
    %c0_7 = arith.constant 0 : index
    %13 = vector.load %arg5[%c0_6, %c0_7] : memref<512x128xbf16, #tpu.memory_space<vmem>>, vector<512x128xbf16>
    tpu.vector_store %arg5[%c0_6, %c0_7], %12 {strides = array<i32>} : memref<512x128xbf16, #tpu.memory_space<vmem>>, vector<512x128xbf16>,
    return
  }
  func.func @transform_0(%arg0: i32, %arg1: i32) -> (i32, i32) {
    %c0_i32 = arith.constant 0 : i32
    %c0_i32_0 = arith.constant 0 : i32
    return %arg0, %c0_i32 : i32, i32
  }
  func.func @transform_1(%arg0: i32, %arg1: i32) -> (i32, i32) {
    %c0_i32 = arith.constant 0 : i32
    %c0_i32_0 = arith.constant 0 : i32
    return %c0_i32, %arg1 : i32, i32
  }
  func.func @transform_2(%arg0: i32, %arg1: i32) -> (i32, i32) {
    %c0_i32 = arith.constant 0 : i32
    %c0_i32_0 = arith.constant 0 : i32
    return %c0_i32, %arg1 : i32, i32
  }
  func.func @transform_3(%arg0: i32, %arg1: i32) -> (i32, i32) {
    %c0_i32 = arith.constant 0 : i32
    return %arg0, %arg1 : i32, i32
  }
}

module attributes {stable_mosaic.version = 11 : i64} {
  func.func @_conv3x3_kernel(%arg0: i32, %arg1: i32, %arg2: memref<1x456x8xbf16, #tpu.memory_space<vmem>>, %arg3: memref<9x8x128xbf16, #tpu.memory_space<vmem>>, %arg4: memref<1x128xf32, #tpu.memory_space<vmem>>, %arg5: memref<1x384x128xbf16, #tpu.memory_space<vmem>>) attributes {dimension_semantics = [#tpu.dimension_semantics<parallel>, #tpu.dimension_semantics<parallel>], iteration_bounds = array<i64: 2, 1>, scalar_prefetch = 0 : i64, scratch_operands = 0 : i64, tpu.core_type = #tpu.core_type<tc>, window_params = [{transform_indices = @transform_0, window_bounds = array<i64: 1, 456, 8>}, {transform_indices = @transform_1, window_bounds = array<i64: 9, 8, 128>}, {transform_indices = @transform_2, window_bounds = array<i64: 1, 128>}, {transform_indices = @transform_3, window_bounds = array<i64: 1, 384, 128>}]} {
    %c0 = arith.constant 0 : index
    %c0_0 = arith.constant 0 : index
    %c0_1 = arith.constant 0 : index
    %0 = vector.load %arg2[%c0, %c0_0, %c0_1] : memref<1x456x8xbf16, #tpu.memory_space<vmem>>, vector<1x384x8xbf16>
    %1 = vector.shape_cast %0 : vector<1x384x8xbf16> to vector<384x8xbf16>
    %c0_2 = arith.constant 0 : index
    %c0_3 = arith.constant 0 : index
    %c0_4 = arith.constant 0 : index
    %2 = vector.load %arg3[%c0_2, %c0_3, %c0_4] : memref<9x8x128xbf16, #tpu.memory_space<vmem>>, vector<1x8x128xbf16>
    %3 = vector.shape_cast %2 : vector<1x8x128xbf16> to vector<8x128xbf16>
    %cst = arith.constant dense<0.000000e+00> : vector<384x128xf32>
    %4 = tpu.matmul %1, %3, %cst {dimension_numbers = #tpu.dot_dimension_numbers<[1], [0], [0], [1], [0, 0, 1, 1], [], []>} : vector<384x8xbf16>, vector<8x128xbf16>, vector<384x128xf32> -> vector<384x128xf32>
    %c0_5 = arith.constant 0 : index
    %c1 = arith.constant 1 : index
    %c0_6 = arith.constant 0 : index
    %5 = vector.load %arg2[%c0_5, %c1, %c0_6] : memref<1x456x8xbf16, #tpu.memory_space<vmem>>, vector<1x384x8xbf16>
    %6 = vector.shape_cast %5 : vector<1x384x8xbf16> to vector<384x8xbf16>
    %c1_7 = arith.constant 1 : index
    %c0_8 = arith.constant 0 : index
    %c0_9 = arith.constant 0 : index
    %7 = vector.load %arg3[%c1_7, %c0_8, %c0_9] : memref<9x8x128xbf16, #tpu.memory_space<vmem>>, vector<1x8x128xbf16>
    %8 = vector.shape_cast %7 : vector<1x8x128xbf16> to vector<8x128xbf16>
    %cst_10 = arith.constant dense<0.000000e+00> : vector<384x128xf32>
    %9 = tpu.matmul %6, %8, %cst_10 {dimension_numbers = #tpu.dot_dimension_numbers<[1], [0], [0], [1], [0, 0, 1, 1], [], []>} : vector<384x8xbf16>, vector<8x128xbf16>, vector<384x128xf32> -> vector<384x128xf32>
    %10 = arith.addf %4, %9 : vector<384x128xf32>
    %c0_11 = arith.constant 0 : index
    %c2 = arith.constant 2 : index
    %c0_12 = arith.constant 0 : index
    %11 = vector.load %arg2[%c0_11, %c2, %c0_12] : memref<1x456x8xbf16, #tpu.memory_space<vmem>>, vector<1x384x8xbf16>
    %12 = vector.shape_cast %11 : vector<1x384x8xbf16> to vector<384x8xbf16>
    %c2_13 = arith.constant 2 : index
    %c0_14 = arith.constant 0 : index
    %c0_15 = arith.constant 0 : index
    %13 = vector.load %arg3[%c2_13, %c0_14, %c0_15] : memref<9x8x128xbf16, #tpu.memory_space<vmem>>, vector<1x8x128xbf16>
    %14 = vector.shape_cast %13 : vector<1x8x128xbf16> to vector<8x128xbf16>
    %cst_16 = arith.constant dense<0.000000e+00> : vector<384x128xf32>
    %15 = tpu.matmul %12, %14, %cst_16 {dimension_numbers = #tpu.dot_dimension_numbers<[1], [0], [0], [1], [0, 0, 1, 1], [], []>} : vector<384x8xbf16>, vector<8x128xbf16>, vector<384x128xf32> -> vector<384x128xf32>
    %16 = arith.addf %10, %15 : vector<384x128xf32>
    %c0_17 = arith.constant 0 : index
    %c24 = arith.constant 24 : index
    %c0_18 = arith.constant 0 : index
    %17 = vector.load %arg2[%c0_17, %c24, %c0_18] : memref<1x456x8xbf16, #tpu.memory_space<vmem>>, vector<1x384x8xbf16>
    %18 = vector.shape_cast %17 : vector<1x384x8xbf16> to vector<384x8xbf16>
    %c3 = arith.constant 3 : index
    %c0_19 = arith.constant 0 : index
    %c0_20 = arith.constant 0 : index
    %19 = vector.load %arg3[%c3, %c0_19, %c0_20] : memref<9x8x128xbf16, #tpu.memory_space<vmem>>, vector<1x8x128xbf16>
    %20 = vector.shape_cast %19 : vector<1x8x128xbf16> to vector<8x128xbf16>
    %cst_21 = arith.constant dense<0.000000e+00> : vector<384x128xf32>
    %21 = tpu.matmul %18, %20, %cst_21 {dimension_numbers = #tpu.dot_dimension_numbers<[1], [0], [0], [1], [0, 0, 1, 1], [], []>} : vector<384x8xbf16>, vector<8x128xbf16>, vector<384x128xf32> -> vector<384x128xf32>
    %22 = arith.addf %16, %21 : vector<384x128xf32>
    %c0_22 = arith.constant 0 : index
    %c25 = arith.constant 25 : index
    %c0_23 = arith.constant 0 : index
    %23 = vector.load %arg2[%c0_22, %c25, %c0_23] : memref<1x456x8xbf16, #tpu.memory_space<vmem>>, vector<1x384x8xbf16>
    %24 = vector.shape_cast %23 : vector<1x384x8xbf16> to vector<384x8xbf16>
    %c4 = arith.constant 4 : index
    %c0_24 = arith.constant 0 : index
    %c0_25 = arith.constant 0 : index
    %25 = vector.load %arg3[%c4, %c0_24, %c0_25] : memref<9x8x128xbf16, #tpu.memory_space<vmem>>, vector<1x8x128xbf16>
    %26 = vector.shape_cast %25 : vector<1x8x128xbf16> to vector<8x128xbf16>
    %cst_26 = arith.constant dense<0.000000e+00> : vector<384x128xf32>
    %27 = tpu.matmul %24, %26, %cst_26 {dimension_numbers = #tpu.dot_dimension_numbers<[1], [0], [0], [1], [0, 0, 1, 1], [], []>} : vector<384x8xbf16>, vector<8x128xbf16>, vector<384x128xf32> -> vector<384x128xf32>
    %28 = arith.addf %22, %27 : vector<384x128xf32>
    %c0_27 = arith.constant 0 : index
    %c26 = arith.constant 26 : index
    %c0_28 = arith.constant 0 : index
    %29 = vector.load %arg2[%c0_27, %c26, %c0_28] : memref<1x456x8xbf16, #tpu.memory_space<vmem>>, vector<1x384x8xbf16>
    %30 = vector.shape_cast %29 : vector<1x384x8xbf16> to vector<384x8xbf16>
    %c5 = arith.constant 5 : index
    %c0_29 = arith.constant 0 : index
    %c0_30 = arith.constant 0 : index
    %31 = vector.load %arg3[%c5, %c0_29, %c0_30] : memref<9x8x128xbf16, #tpu.memory_space<vmem>>, vector<1x8x128xbf16>
    %32 = vector.shape_cast %31 : vector<1x8x128xbf16> to vector<8x128xbf16>
    %cst_31 = arith.constant dense<0.000000e+00> : vector<384x128xf32>
    %33 = tpu.matmul %30, %32, %cst_31 {dimension_numbers = #tpu.dot_dimension_numbers<[1], [0], [0], [1], [0, 0, 1, 1], [], []>} : vector<384x8xbf16>, vector<8x128xbf16>, vector<384x128xf32> -> vector<384x128xf32>
    %34 = arith.addf %28, %33 : vector<384x128xf32>
    %c0_32 = arith.constant 0 : index
    %c48 = arith.constant 48 : index
    %c0_33 = arith.constant 0 : index
    %35 = vector.load %arg2[%c0_32, %c48, %c0_33] : memref<1x456x8xbf16, #tpu.memory_space<vmem>>, vector<1x384x8xbf16>
    %36 = vector.shape_cast %35 : vector<1x384x8xbf16> to vector<384x8xbf16>
    %c6 = arith.constant 6 : index
    %c0_34 = arith.constant 0 : index
    %c0_35 = arith.constant 0 : index
    %37 = vector.load %arg3[%c6, %c0_34, %c0_35] : memref<9x8x128xbf16, #tpu.memory_space<vmem>>, vector<1x8x128xbf16>
    %38 = vector.shape_cast %37 : vector<1x8x128xbf16> to vector<8x128xbf16>
    %cst_36 = arith.constant dense<0.000000e+00> : vector<384x128xf32>
    %39 = tpu.matmul %36, %38, %cst_36 {dimension_numbers = #tpu.dot_dimension_numbers<[1], [0], [0], [1], [0, 0, 1, 1], [], []>} : vector<384x8xbf16>, vector<8x128xbf16>, vector<384x128xf32> -> vector<384x128xf32>
    %40 = arith.addf %34, %39 : vector<384x128xf32>
    %c0_37 = arith.constant 0 : index
    %c49 = arith.constant 49 : index
    %c0_38 = arith.constant 0 : index
    %41 = vector.load %arg2[%c0_37, %c49, %c0_38] : memref<1x456x8xbf16, #tpu.memory_space<vmem>>, vector<1x384x8xbf16>
    %42 = vector.shape_cast %41 : vector<1x384x8xbf16> to vector<384x8xbf16>
    %c7 = arith.constant 7 : index
    %c0_39 = arith.constant 0 : index
    %c0_40 = arith.constant 0 : index
    %43 = vector.load %arg3[%c7, %c0_39, %c0_40] : memref<9x8x128xbf16, #tpu.memory_space<vmem>>, vector<1x8x128xbf16>
    %44 = vector.shape_cast %43 : vector<1x8x128xbf16> to vector<8x128xbf16>
    %cst_41 = arith.constant dense<0.000000e+00> : vector<384x128xf32>
    %45 = tpu.matmul %42, %44, %cst_41 {dimension_numbers = #tpu.dot_dimension_numbers<[1], [0], [0], [1], [0, 0, 1, 1], [], []>} : vector<384x8xbf16>, vector<8x128xbf16>, vector<384x128xf32> -> vector<384x128xf32>
    %46 = arith.addf %40, %45 : vector<384x128xf32>
    %c0_42 = arith.constant 0 : index
    %c50 = arith.constant 50 : index
    %c0_43 = arith.constant 0 : index
    %47 = vector.load %arg2[%c0_42, %c50, %c0_43] : memref<1x456x8xbf16, #tpu.memory_space<vmem>>, vector<1x384x8xbf16>
    %48 = vector.shape_cast %47 : vector<1x384x8xbf16> to vector<384x8xbf16>
    %c8 = arith.constant 8 : index
    %c0_44 = arith.constant 0 : index
    %c0_45 = arith.constant 0 : index
    %49 = vector.load %arg3[%c8, %c0_44, %c0_45] : memref<9x8x128xbf16, #tpu.memory_space<vmem>>, vector<1x8x128xbf16>
    %50 = vector.shape_cast %49 : vector<1x8x128xbf16> to vector<8x128xbf16>
    %cst_46 = arith.constant dense<0.000000e+00> : vector<384x128xf32>
    %51 = tpu.matmul %48, %50, %cst_46 {dimension_numbers = #tpu.dot_dimension_numbers<[1], [0], [0], [1], [0, 0, 1, 1], [], []>} : vector<384x8xbf16>, vector<8x128xbf16>, vector<384x128xf32> -> vector<384x128xf32>
    %52 = arith.addf %46, %51 : vector<384x128xf32>
    %c0_47 = arith.constant 0 : index
    %c0_48 = arith.constant 0 : index
    %53 = vector.load %arg4[%c0_47, %c0_48] : memref<1x128xf32, #tpu.memory_space<vmem>>, vector<1x128xf32>
    %54 = vector.broadcast %53 : vector<1x128xf32> to vector<384x128xf32>
    %55 = arith.addf %52, %54 : vector<384x128xf32>
    %56 = arith.negf %55 : vector<384x128xf32>
    %57 = math.exp %56 : vector<384x128xf32>
    %cst_49 = arith.constant 1.000000e+00 : f32
    %58 = vector.broadcast %cst_49 : f32 to vector<384x128xf32>
    %59 = arith.addf %58, %57 : vector<384x128xf32>
    %60 = arith.divf %58, %59 : vector<384x128xf32>
    %61 = arith.mulf %55, %60 : vector<384x128xf32>
    %62 = arith.truncf %61 : vector<384x128xf32> to vector<384x128xbf16>
    %c0_50 = arith.constant 0 : index
    %c0_51 = arith.constant 0 : index
    %c0_52 = arith.constant 0 : index
    %63 = vector.load %arg5[%c0_50, %c0_51, %c0_52] : memref<1x384x128xbf16, #tpu.memory_space<vmem>>, vector<1x384x128xbf16>
    %64 = vector.shape_cast %63 : vector<1x384x128xbf16> to vector<384x128xbf16>
    %65 = vector.shape_cast %62 : vector<384x128xbf16> to vector<1x384x128xbf16>
    tpu.vector_store %arg5[%c0_50, %c0_51, %c0_52], %65 {strides = array<i32>} : memref<1x384x128xbf16, #tpu.memory_space<vmem>>, vector<1x384x128xbf16>,
    return
  }
  func.func @transform_0(%arg0: i32, %arg1: i32) -> (i32, i32, i32) {
    %c0_i32 = arith.constant 0 : i32
    %c0_i32_0 = arith.constant 0 : i32
    %c0_i32_1 = arith.constant 0 : i32
    return %arg0, %c0_i32, %c0_i32_0 : i32, i32, i32
  }
  func.func @transform_1(%arg0: i32, %arg1: i32) -> (i32, i32, i32) {
    %c0_i32 = arith.constant 0 : i32
    %c0_i32_0 = arith.constant 0 : i32
    %c0_i32_1 = arith.constant 0 : i32
    return %c0_i32, %c0_i32_0, %arg1 : i32, i32, i32
  }
  func.func @transform_2(%arg0: i32, %arg1: i32) -> (i32, i32) {
    %c0_i32 = arith.constant 0 : i32
    %c0_i32_0 = arith.constant 0 : i32
    return %c0_i32, %arg1 : i32, i32
  }
  func.func @transform_3(%arg0: i32, %arg1: i32) -> (i32, i32, i32) {
    %c0_i32 = arith.constant 0 : i32
    %c0_i32_0 = arith.constant 0 : i32
    return %arg0, %c0_i32, %arg1 : i32, i32, i32
  }
}

module attributes {stable_mosaic.version = 11 : i64} {
  func.func @kernel(%arg0: i32, %arg1: i32, %arg2: memref<512x16xbf16, #tpu.memory_space<vmem>>, %arg3: memref<512x8xbf16, #tpu.memory_space<vmem>>, %arg4: memref<512x8xbf16, #tpu.memory_space<vmem>>, %arg5: memref<16x128xbf16, #tpu.memory_space<vmem>>, %arg6: memref<8x128xbf16, #tpu.memory_space<vmem>>, %arg7: memref<8x128xbf16, #tpu.memory_space<vmem>>, %arg8: memref<1x128xf32, #tpu.memory_space<vmem>>, %arg9: memref<512x128xf32, #tpu.memory_space<vmem>>) attributes {dimension_semantics = [#tpu.dimension_semantics<parallel>, #tpu.dimension_semantics<parallel>], iteration_bounds = array<i64: 1, 1>, scalar_prefetch = 0 : i64, scratch_operands = 0 : i64, tpu.core_type = #tpu.core_type<tc>, window_params = [{transform_indices = @transform_0, window_bounds = array<i64: 512, 16>}, {transform_indices = @transform_1, window_bounds = array<i64: 512, 8>}, {transform_indices = @transform_2, window_bounds = array<i64: 512, 8>}, {transform_indices = @transform_3, window_bounds = array<i64: 16, 128>}, {transform_indices = @transform_4, window_bounds = array<i64: 8, 128>}, {transform_indices = @transform_5, window_bounds = array<i64: 8, 128>}, {transform_indices = @transform_6, window_bounds = array<i64: 1, 128>}, {transform_indices = @transform_7, window_bounds = array<i64: 512, 128>}]} {
    %c0 = arith.constant 0 : index
    %c0_0 = arith.constant 0 : index
    %0 = vector.load %arg2[%c0, %c0_0] : memref<512x16xbf16, #tpu.memory_space<vmem>>, vector<512x16xbf16>
    %c0_1 = arith.constant 0 : index
    %c0_2 = arith.constant 0 : index
    %1 = vector.load %arg5[%c0_1, %c0_2] : memref<16x128xbf16, #tpu.memory_space<vmem>>, vector<16x128xbf16>
    %cst = arith.constant dense<0.000000e+00> : vector<512x128xf32>
    %2 = tpu.matmul %0, %1, %cst {dimension_numbers = #tpu.dot_dimension_numbers<[1], [0], [0], [1], [0, 0, 1, 1], [], []>} : vector<512x16xbf16>, vector<16x128xbf16>, vector<512x128xf32> -> vector<512x128xf32>
    %c0_3 = arith.constant 0 : index
    %c0_4 = arith.constant 0 : index
    %3 = vector.load %arg3[%c0_3, %c0_4] : memref<512x8xbf16, #tpu.memory_space<vmem>>, vector<512x8xbf16>
    %c0_5 = arith.constant 0 : index
    %c0_6 = arith.constant 0 : index
    %4 = vector.load %arg6[%c0_5, %c0_6] : memref<8x128xbf16, #tpu.memory_space<vmem>>, vector<8x128xbf16>
    %cst_7 = arith.constant dense<0.000000e+00> : vector<512x128xf32>
    %5 = tpu.matmul %3, %4, %cst_7 {dimension_numbers = #tpu.dot_dimension_numbers<[1], [0], [0], [1], [0, 0, 1, 1], [], []>} : vector<512x8xbf16>, vector<8x128xbf16>, vector<512x128xf32> -> vector<512x128xf32>
    %6 = arith.addf %2, %5 : vector<512x128xf32>
    %c0_8 = arith.constant 0 : index
    %c0_9 = arith.constant 0 : index
    %7 = vector.load %arg4[%c0_8, %c0_9] : memref<512x8xbf16, #tpu.memory_space<vmem>>, vector<512x8xbf16>
    %c0_10 = arith.constant 0 : index
    %c0_11 = arith.constant 0 : index
    %8 = vector.load %arg7[%c0_10, %c0_11] : memref<8x128xbf16, #tpu.memory_space<vmem>>, vector<8x128xbf16>
    %cst_12 = arith.constant dense<0.000000e+00> : vector<512x128xf32>
    %9 = tpu.matmul %7, %8, %cst_12 {dimension_numbers = #tpu.dot_dimension_numbers<[1], [0], [0], [1], [0, 0, 1, 1], [], []>} : vector<512x8xbf16>, vector<8x128xbf16>, vector<512x128xf32> -> vector<512x128xf32>
    %10 = arith.addf %6, %9 : vector<512x128xf32>
    %c0_13 = arith.constant 0 : index
    %c0_14 = arith.constant 0 : index
    %11 = vector.load %arg8[%c0_13, %c0_14] : memref<1x128xf32, #tpu.memory_space<vmem>>, vector<1x128xf32>
    %12 = vector.broadcast %11 : vector<1x128xf32> to vector<512x128xf32>
    %13 = arith.addf %10, %12 : vector<512x128xf32>
    %14 = arith.negf %13 : vector<512x128xf32>
    %15 = math.exp %14 : vector<512x128xf32>
    %cst_15 = arith.constant 1.000000e+00 : f32
    %16 = vector.broadcast %cst_15 : f32 to vector<512x128xf32>
    %17 = arith.addf %16, %15 : vector<512x128xf32>
    %18 = arith.divf %16, %17 : vector<512x128xf32>
    %19 = arith.mulf %13, %18 : vector<512x128xf32>
    %c0_16 = arith.constant 0 : index
    %c0_17 = arith.constant 0 : index
    %20 = vector.load %arg9[%c0_16, %c0_17] : memref<512x128xf32, #tpu.memory_space<vmem>>, vector<512x128xf32>
    tpu.vector_store %arg9[%c0_16, %c0_17], %19 {strides = array<i32>} : memref<512x128xf32, #tpu.memory_space<vmem>>, vector<512x128xf32>,
    return
  }
  func.func @transform_0(%arg0: i32, %arg1: i32) -> (i32, i32) {
    %c0_i32 = arith.constant 0 : i32
    %c0_i32_0 = arith.constant 0 : i32
    return %arg0, %c0_i32 : i32, i32
  }
  func.func @transform_1(%arg0: i32, %arg1: i32) -> (i32, i32) {
    %c0_i32 = arith.constant 0 : i32
    %c0_i32_0 = arith.constant 0 : i32
    return %arg0, %c0_i32 : i32, i32
  }
  func.func @transform_2(%arg0: i32, %arg1: i32) -> (i32, i32) {
    %c0_i32 = arith.constant 0 : i32
    %c0_i32_0 = arith.constant 0 : i32
    return %arg0, %c0_i32 : i32, i32
  }
  func.func @transform_3(%arg0: i32, %arg1: i32) -> (i32, i32) {
    %c0_i32 = arith.constant 0 : i32
    %c0_i32_0 = arith.constant 0 : i32
    return %c0_i32, %arg1 : i32, i32
  }
  func.func @transform_4(%arg0: i32, %arg1: i32) -> (i32, i32) {
    %c0_i32 = arith.constant 0 : i32
    %c0_i32_0 = arith.constant 0 : i32
    return %c0_i32, %arg1 : i32, i32
  }
  func.func @transform_5(%arg0: i32, %arg1: i32) -> (i32, i32) {
    %c0_i32 = arith.constant 0 : i32
    %c0_i32_0 = arith.constant 0 : i32
    return %c0_i32, %arg1 : i32, i32
  }
  func.func @transform_6(%arg0: i32, %arg1: i32) -> (i32, i32) {
    %c0_i32 = arith.constant 0 : i32
    %c0_i32_0 = arith.constant 0 : i32
    return %c0_i32, %arg1 : i32, i32
  }
  func.func @transform_7(%arg0: i32, %arg1: i32) -> (i32, i32) {
    %c0_i32 = arith.constant 0 : i32
    return %arg0, %arg1 : i32, i32
  }
}

</mosaic_0001>

<llo_original>
// kernel: elan_forward.6
$region0: #{elan_forward.6}
  #allocation0 [shape = 'u32[]', space=smem, size = 0x4, offset = 0x4, fixed_abs, tag = 'smem constant byte address 0x4 - core index']
  #allocation1 [shape = 'u32[144,128]{1,0:T(1,128)}', space=vmem, size = 0x12000, scoped, tag = 'internal scratch']
  %s0 = inlined_call_operand.vmem [shape: bf16[512,8], index: 0, kind: input, shape index: {}]
  %s1 = inlined_call_operand.vmem [shape: bf16[8,128], index: 1, kind: input, shape index: {}]
  %s2 = inlined_call_operand.vmem [shape: f32[1,128], index: 2, kind: input, shape index: {}]
  %s3 = inlined_call_operand.vmem [shape: bf16[512,128], index: 3, kind: output, shape index: {}]
  %s4 = sld [smem:[#allocation0]]
  $region22: #{elan_forward.6} parent=0
    _
  %s6 = ssub.s32 1, %s4
  %s7 = scalar_select 0, %s6, %s4
  // Predicated region
  $region2: #{elan_forward.6} parent=0 // pred_check
    _
  $region3: #{elan_forward.6} parent=0 // pred_check_branch
    %9 = sbr.rel (0) target = $region5
  $region4: #{elan_forward.6} parent=0 // pred_region
    _
  $region5: #{elan_forward.6} parent=0 // pred_fallthru
    _
  // Predicated region
  $region6: #{elan_forward.6} parent=0 // pred_check
    _
  $region7: #{elan_forward.6} parent=0 // pred_check_branch
    %11 = sbr.rel (0) target = $region9
  $region8: #{elan_forward.6} parent=0 // pred_region
    _
  $region9: #{elan_forward.6} parent=0 // pred_fallthru
    _
  // Predicated region
  $region10: #{elan_forward.6} parent=0 // pred_check
    _
  $region11: #{elan_forward.6} parent=0 // pred_check_branch
    %13 = sbr.rel (0) target = $region13
  $region12: #{elan_forward.6} parent=0 // pred_region
    _
  $region13: #{elan_forward.6} parent=0 // pred_fallthru
    _
  %v15 = vld [vmem:[%s0] sm:$0xf]
  %v16 = vld [vmem:[%s0 + $0x4] sm:$0xf]
  %v17 = vld [vmem:[%s0 + $0x8] sm:$0xf]
  %v18 = vld [vmem:[%s0 + $0xc] sm:$0xf]
  %v19 = vld [vmem:[%s0 + $0x10] sm:$0xf]
  %v20 = vld [vmem:[%s0 + $0x14] sm:$0xf]
  %v21 = vld [vmem:[%s0 + $0x18] sm:$0xf]
  %v22 = vld [vmem:[%s0 + $0x1c] sm:$0xf]
  %v23 = vld [vmem:[%s0 + $0x20] sm:$0xf]
  %v24 = vld [vmem:[%s0 + $0x24] sm:$0xf]
  %v25 = vld [vmem:[%s0 + $0x28] sm:$0xf]
  %v26 = vld [vmem:[%s0 + $0x2c] sm:$0xf]
  %v27 = vld [vmem:[%s0 + $0x30] sm:$0xf]
  %v28 = vld [vmem:[%s0 + $0x34] sm:$0xf]
  %v29 = vld [vmem:[%s0 + $0x38] sm:$0xf]
  %v30 = vld [vmem:[%s0 + $0x3c] sm:$0xf]
  %v31 = vld [vmem:[%s0 + $0x40] sm:$0xf]
  %v32 = vld [vmem:[%s0 + $0x44] sm:$0xf]
  %v33 = vld [vmem:[%s0 + $0x48] sm:$0xf]
  %v34 = vld [vmem:[%s0 + $0x4c] sm:$0xf]
  %v35 = vld [vmem:[%s0 + $0x50] sm:$0xf]
  %v36 = vld [vmem:[%s0 + $0x54] sm:$0xf]
  %v37 = vld [vmem:[%s0 + $0x58] sm:$0xf]
  %v38 = vld [vmem:[%s0 + $0x5c] sm:$0xf]
  %v39 = vld [vmem:[%s0 + $0x60] sm:$0xf]
  %v40 = vld [vmem:[%s0 + $0x64] sm:$0xf]
  %v41 = vld [vmem:[%s0 + $0x68] sm:$0xf]
  %v42 = vld [vmem:[%s0 + $0x6c] sm:$0xf]
  %v43 = vld [vmem:[%s0 + $0x70] sm:$0xf]
  %v44 = vld [vmem:[%s0 + $0x74] sm:$0xf]
  %v45 = vld [vmem:[%s0 + $0x78] sm:$0xf]
  %v46 = vld [vmem:[%s0 + $0x7c] sm:$0xf]
  %v47 = vld [vmem:[%s0 + $0x80] sm:$0xf]
  %v48 = vld [vmem:[%s0 + $0x84] sm:$0xf]
  %v49 = vld [vmem:[%s0 + $0x88] sm:$0xf]
  %v50 = vld [vmem:[%s0 + $0x8c] sm:$0xf]
  %v51 = vld [vmem:[%s0 + $0x90] sm:$0xf]
  %v52 = vld [vmem:[%s0 + $0x94] sm:$0xf]
  %v53 = vld [vmem:[%s0 + $0x98] sm:$0xf]
  %v54 = vld [vmem:[%s0 + $0x9c] sm:$0xf]
  %v55 = vld [vmem:[%s0 + $0xa0] sm:$0xf]
  %v56 = vld [vmem:[%s0 + $0xa4] sm:$0xf]
  %v57 = vld [vmem:[%s0 + $0xa8] sm:$0xf]
  %v58 = vld [vmem:[%s0 + $0xac] sm:$0xf]
  %v59 = vld [vmem:[%s0 + $0xb0] sm:$0xf]
  %v60 = vld [vmem:[%s0 + $0xb4] sm:$0xf]
  %v61 = vld [vmem:[%s0 + $0xb8] sm:$0xf]
  %v62 = vld [vmem:[%s0 + $0xbc] sm:$0xf]
  %v63 = vld [vmem:[%s0 + $0xc0] sm:$0xf]
  %v64 = vld [vmem:[%s0 + $0xc4] sm:$0xf]
  %v65 = vld [vmem:[%s0 + $0xc8] sm:$0xf]
  %v66 = vld [vmem:[%s0 + $0xcc] sm:$0xf]
  %v67 = vld [vmem:[%s0 + $0xd0] sm:$0xf]
  %v68 = vld [vmem:[%s0 + $0xd4] sm:$0xf]
  %v69 = vld [vmem:[%s0 + $0xd8] sm:$0xf]
  %v70 = vld [vmem:[%s0 + $0xdc] sm:$0xf]
  %v71 = vld [vmem:[%s0 + $0xe0] sm:$0xf]
  %v72 = vld [vmem:[%s0 + $0xe4] sm:$0xf]
  %v73 = vld [vmem:[%s0 + $0xe8] sm:$0xf]
  %v74 = vld [vmem:[%s0 + $0xec] sm:$0xf]
  %v75 = vld [vmem:[%s0 + $0xf0] sm:$0xf]
  %v76 = vld [vmem:[%s0 + $0xf4] sm:$0xf]
  %v77 = vld [vmem:[%s0 + $0xf8] sm:$0xf]
  %v78 = vld [vmem:[%s0 + $0xfc] sm:$0xf]
  %v79 = vld [vmem:[%s1] sm:$0xf]
  %v80 = vld [vmem:[%s2] sm:$0x1]
  %v82 = vlaneseq
  %v83 = vshrl.u32 %v82, 7
  %v84 = vsub.s32 0, %v83
  %v85 = vrot.slane %v80, %v84
  %v151 = vunpack.c.l.b16 %v15
  %v152 = vunpack.c.l.b16 %v16
  %v153 = vunpack.c.l.b16 %v17
  %v154 = vunpack.c.l.b16 %v18
  %v155 = vunpack.c.l.b16 %v19
  %v156 = vunpack.c.l.b16 %v20
  %v157 = vunpack.c.l.b16 %v21
  %v158 = vunpack.c.l.b16 %v22
  %v159 = vunpack.c.l.b16 %v23
  %v160 = vunpack.c.l.b16 %v24
  %v161 = vunpack.c.l.b16 %v25
  %v162 = vunpack.c.l.b16 %v26
  %v163 = vunpack.c.l.b16 %v27
  %v164 = vunpack.c.l.b16 %v28
  %v165 = vunpack.c.l.b16 %v29
  %v166 = vunpack.c.l.b16 %v30
  %v167 = vunpack.c.l.b16 %v31
  %v168 = vunpack.c.l.b16 %v32
  %v169 = vunpack.c.l.b16 %v33
  %v170 = vunpack.c.l.b16 %v34
  %v171 = vunpack.c.l.b16 %v35
  %v172 = vunpack.c.l.b16 %v36
  %v173 = vunpack.c.l.b16 %v37
  %v174 = vunpack.c.l.b16 %v38
  %v175 = vunpack.c.l.b16 %v39
  %v176 = vunpack.c.l.b16 %v40
  %v177 = vunpack.c.l.b16 %v41
  %v178 = vunpack.c.l.b16 %v42
  %v179 = vunpack.c.l.b16 %v43
  %v180 = vunpack.c.l.b16 %v44
  %v181 = vunpack.c.l.b16 %v45
  %v182 = vunpack.c.l.b16 %v46
  %v183 = vunpack.c.l.b16 %v47
  %v184 = vunpack.c.l.b16 %v48
  %v185 = vunpack.c.l.b16 %v49
  %v186 = vunpack.c.l.b16 %v50
  %v187 = vunpack.c.l.b16 %v51
  %v188 = vunpack.c.l.b16 %v52
  %v189 = vunpack.c.l.b16 %v53
  %v190 = vunpack.c.l.b16 %v54
  %v191 = vunpack.c.l.b16 %v55
  %v192 = vunpack.c.l.b16 %v56
  %v193 = vunpack.c.l.b16 %v57
  %v194 = vunpack.c.l.b16 %v58
  %v195 = vunpack.c.l.b16 %v59
  %v196 = vunpack.c.l.b16 %v60
  %v197 = vunpack.c.l.b16 %v61
  %v198 = vunpack.c.l.b16 %v62
  %v199 = vunpack.c.l.b16 %v63
  %v200 = vunpack.c.l.b16 %v64
  %v201 = vunpack.c.l.b16 %v65
  %v202 = vunpack.c.l.b16 %v66
  %v203 = vunpack.c.l.b16 %v67
  %v204 = vunpack.c.l.b16 %v68
  %v205 = vunpack.c.l.b16 %v69
  %v206 = vunpack.c.l.b16 %v70
  %v207 = vunpack.c.l.b16 %v71
  %v208 = vunpack.c.l.b16 %v72
  %v209 = vunpack.c.l.b16 %v73
  %v210 = vunpack.c.l.b16 %v74
  %v211 = vunpack.c.l.b16 %v75
  %v212 = vunpack.c.l.b16 %v76
  %v213 = vunpack.c.l.b16 %v77
  %v214 = vunpack.c.l.b16 %v78
  %v215 = vpack.c.b16 %v152, %v151
  %v216 = vpack.c.b16 %v154, %v153
  %v217 = vpack.c.b16 %v156, %v155
  %v218 = vpack.c.b16 %v158, %v157
  %v219 = vpack.c.b16 %v160, %v159
  %v220 = vpack.c.b16 %v162, %v161
  %v221 = vpack.c.b16 %v164, %v163
  %v222 = vpack.c.b16 %v166, %v165
  %v223 = vpack.c.b16 %v168, %v167
  %v224 = vpack.c.b16 %v170, %v169
  %v225 = vpack.c.b16 %v172, %v171
  %v226 = vpack.c.b16 %v174, %v173
  %v227 = vpack.c.b16 %v176, %v175
  %v228 = vpack.c.b16 %v178, %v177
  %v229 = vpack.c.b16 %v180, %v179
  %v230 = vpack.c.b16 %v182, %v181
  %v231 = vpack.c.b16 %v184, %v183
  %v232 = vpack.c.b16 %v186, %v185
  %v233 = vpack.c.b16 %v188, %v187
  %v234 = vpack.c.b16 %v190, %v189
  %v235 = vpack.c.b16 %v192, %v191
  %v236 = vpack.c.b16 %v194, %v193
  %v237 = vpack.c.b16 %v196, %v195
  %v238 = vpack.c.b16 %v198, %v197
  %v239 = vpack.c.b16 %v200, %v199
  %v240 = vpack.c.b16 %v202, %v201
  %v241 = vpack.c.b16 %v204, %v203
  %v242 = vpack.c.b16 %v206, %v205
  %v243 = vpack.c.b16 %v208, %v207
  %v244 = vpack.c.b16 %v210, %v209
  %v245 = vpack.c.b16 %v212, %v211
  %v246 = vpack.c.b16 %v214, %v213
  %vm247 = vcmask 64512
  %v249 = vsel %vm247, %v215, 0
  %v252 = vsel %vm247, %v216, 0
  %v255 = vsel %vm247, %v217, 0
  %v258 = vsel %vm247, %v218, 0
  %v261 = vsel %vm247, %v219, 0
  %v264 = vsel %vm247, %v220, 0
  %v267 = vsel %vm247, %v221, 0
  %v270 = vsel %vm247, %v222, 0
  %v273 = vsel %vm247, %v223, 0
  %v276 = vsel %vm247, %v224, 0
  %v279 = vsel %vm247, %v225, 0
  %v282 = vsel %vm247, %v226, 0
  %v285 = vsel %vm247, %v227, 0
  %v288 = vsel %vm247, %v228, 0
  %v291 = vsel %vm247, %v229, 0
  %v294 = vsel %vm247, %v230, 0
  %v297 = vsel %vm247, %v231, 0
  %v300 = vsel %vm247, %v232, 0
  %v303 = vsel %vm247, %v233, 0
  %v306 = vsel %vm247, %v234, 0
  %v309 = vsel %vm247, %v235, 0
  %v312 = vsel %vm247, %v236, 0
  %v315 = vsel %vm247, %v237, 0
  %v318 = vsel %vm247, %v238, 0
  %v321 = vsel %vm247, %v239, 0
  %v324 = vsel %vm247, %v240, 0
  %v327 = vsel %vm247, %v241, 0
  %v330 = vsel %vm247, %v242, 0
  %v333 = vsel %vm247, %v243, 0
  %v336 = vsel %vm247, %v244, 0
  %v339 = vsel %vm247, %v245, 0
  %v342 = vsel %vm247, %v246, 0
  %vm344 = vcmask 1043456
  %v346 = vsel %vm344, %v79, 0
  %348 = vmatprep.subr.bf16.mxu0 0
  %349 = vmatpush1.bf16.msra.mxu0 0
  %350 = vmatprep.subr.bf16.mxu0 0
  %351 = vmatpush1.bf16.msra.mxu0 0
  %352 = vmatprep.subr.bf16.mxu0 0
  %353 = vmatpush1.bf16.msra.mxu0 0
  %354 = vmatprep.subr.bf16.mxu0 0
  %355 = vmatpush1.bf16.msra.mxu0 0
  %356 = vmatprep.subr.bf16.mxu0 0
  %357 = vmatpush1.bf16.msra.mxu0 0
  %358 = vmatprep.subr.bf16.mxu0 0
  %359 = vmatpush1.bf16.msra.mxu0 0
  %360 = vmatprep.subr.bf16.mxu0 0
  %361 = vmatpush1.bf16.msra.mxu0 0
  %362 = vmatprep.subr.bf16.mxu0 0
  %363 = vmatpush1.bf16.msra.mxu0 %v346
  %364 = vmatprep.subr.bf16.mxu0 0
  %365 = vmatpush2.bf16.msra.mxu0 0
  %366 = vmatprep.subr.bf16.mxu0 0
  %367 = vmatpush2.bf16.msra.mxu0 0
  %368 = vmatprep.subr.bf16.mxu0 0
  %369 = vmatpush2.bf16.msra.mxu0 0
  %370 = vmatprep.subr.bf16.mxu0 0
  %371 = vmatpush2.bf16.msra.mxu0 0
  %372 = vmatprep.subr.bf16.mxu0 0
  %373 = vmatpush2.bf16.msra.mxu0 0
  %374 = vmatprep.subr.bf16.mxu0 0
  %375 = vmatpush2.bf16.msra.mxu0 0
  %376 = vmatprep.subr.bf16.mxu0 0
  %377 = vmatpush2.bf16.msra.mxu0 0
  %378 = vmatprep.subr.bf16.mxu0 0
  %379 = vmatpush2.bf16.msra.mxu0 0
  %380 = vmatprep.mubr.bf16.mxu0 0
  %381 = vmatmul.mubr.bf16.gmra.mxu0 %v249
  %v382 = vpop.f32.mrf.mxu0
  %v383 = vadd.f32 %v85, %v382
  %v384 = vpop.f32.mrf.mxu0
  %v385 = vpop.f32.mrf.mxu0
  %v386 = vadd.f32 %v85, %v385
  %v387 = vpop.f32.mrf.mxu0
  %388 = vmatprep.mubr.bf16.mxu0 0
  %389 = vmatmul.mubr.bf16.gmra.mxu0 %v252
  %v390 = vpop.f32.mrf.mxu0
  %v391 = vadd.f32 %v85, %v390
  %v392 = vpop.f32.mrf.mxu0
  %v393 = vpop.f32.mrf.mxu0
  %v394 = vadd.f32 %v85, %v393
  %v395 = vpop.f32.mrf.mxu0
  %396 = vmatprep.mubr.bf16.mxu0 0
  %397 = vmatmul.mubr.bf16.gmra.mxu0 %v255
  %v398 = vpop.f32.mrf.mxu0
  %v399 = vadd.f32 %v85, %v398
  %v400 = vpop.f32.mrf.mxu0
  %v401 = vpop.f32.mrf.mxu0
  %v402 = vadd.f32 %v85, %v401
  %v403 = vpop.f32.mrf.mxu0
  %404 = vmatprep.mubr.bf16.mxu0 0
  %405 = vmatmul.mubr.bf16.gmra.mxu0 %v258
  %v406 = vpop.f32.mrf.mxu0
  %v407 = vadd.f32 %v85, %v406
  %v408 = vpop.f32.mrf.mxu0
  %v409 = vpop.f32.mrf.mxu0
  %v410 = vadd.f32 %v85, %v409
  %v411 = vpop.f32.mrf.mxu0
  %412 = vmatprep.mubr.bf16.mxu0 0
  %413 = vmatmul.mubr.bf16.gmra.mxu0 %v261
  %v414 = vpop.f32.mrf.mxu0
  %v415 = vadd.f32 %v85, %v414
  %v416 = vpop.f32.mrf.mxu0
  %v417 = vpop.f32.mrf.mxu0
  %v418 = vadd.f32 %v85, %v417
  %v419 = vpop.f32.mrf.mxu0
  %420 = vmatprep.mubr.bf16.mxu0 0
  %421 = vmatmul.mubr.bf16.gmra.mxu0 %v264
  %v422 = vpop.f32.mrf.mxu0
  %v423 = vadd.f32 %v85, %v422
  %v424 = vpop.f32.mrf.mxu0
  %v425 = vpop.f32.mrf.mxu0
  %v426 = vadd.f32 %v85, %v425
  %v427 = vpop.f32.mrf.mxu0
  %428 = vmatprep.mubr.bf16.mxu0 0
  %429 = vmatmul.mubr.bf16.gmra.mxu0 %v267
  %v430 = vpop.f32.mrf.mxu0
  %v431 = vadd.f32 %v85, %v430
  %v432 = vpop.f32.mrf.mxu0
  %v433 = vpop.f32.mrf.mxu0
  %v434 = vadd.f32 %v85, %v433
  %v435 = vpop.f32.mrf.mxu0
  %436 = vmatprep.mubr.bf16.mxu0 0
  %437 = vmatmul.mubr.bf16.gmra.mxu0 %v270
  %v438 = vpop.f32.mrf.mxu0
  %v439 = vadd.f32 %v85, %v438
  %v440 = vpop.f32.mrf.mxu0
  %v441 = vpop.f32.mrf.mxu0
  %v442 = vadd.f32 %v85, %v441
  %v443 = vpop.f32.mrf.mxu0
  %444 = vmatprep.mubr.bf16.mxu0 0
  %445 = vmatmul.mubr.bf16.gmra.mxu0 %v273
  %v446 = vpop.f32.mrf.mxu0
  %v447 = vadd.f32 %v85, %v446
  %v448 = vpop.f32.mrf.mxu0
  %v449 = vpop.f32.mrf.mxu0
  %v450 = vadd.f32 %v85, %v449
  %v451 = vpop.f32.mrf.mxu0
  %452 = vmatprep.mubr.bf16.mxu0 0
  %453 = vmatmul.mubr.bf16.gmra.mxu0 %v276
  %v454 = vpop.f32.mrf.mxu0
  %v455 = vadd.f32 %v85, %v454
  %v456 = vpop.f32.mrf.mxu0
  %v457 = vpop.f32.mrf.mxu0
  %v458 = vadd.f32 %v85, %v457
  %v459 = vpop.f32.mrf.mxu0
  %460 = vmatprep.mubr.bf16.mxu0 0
  %461 = vmatmul.mubr.bf16.gmra.mxu0 %v279
  %v462 = vpop.f32.mrf.mxu0
  %v463 = vadd.f32 %v85, %v462
  %v464 = vpop.f32.mrf.mxu0
  %v465 = vpop.f32.mrf.mxu0
  %v466 = vadd.f32 %v85, %v465
  %v467 = vpop.f32.mrf.mxu0
  %468 = vmatprep.mubr.bf16.mxu0 0
  %469 = vmatmul.mubr.bf16.gmra.mxu0 %v282
  %v470 = vpop.f32.mrf.mxu0
  %v471 = vadd.f32 %v85, %v470
  %v472 = vpop.f32.mrf.mxu0
  %v473 = vpop.f32.mrf.mxu0
  %v474 = vadd.f32 %v85, %v473
  %v475 = vpop.f32.mrf.mxu0
  %476 = vmatprep.mubr.bf16.mxu0 0
  %477 = vmatmul.mubr.bf16.gmra.mxu0 %v285
  %v478 = vpop.f32.mrf.mxu0
  %v479 = vadd.f32 %v85, %v478
  %v480 = vpop.f32.mrf.mxu0
  %v481 = vpop.f32.mrf.mxu0
  %v482 = vadd.f32 %v85, %v481
  %v483 = vpop.f32.mrf.mxu0
  %484 = vmatprep.mubr.bf16.mxu0 0
  %485 = vmatmul.mubr.bf16.gmra.mxu0 %v288
  %v486 = vpop.f32.mrf.mxu0
  %v487 = vadd.f32 %v85, %v486
  %v488 = vpop.f32.mrf.mxu0
  %v489 = vpop.f32.mrf.mxu0
  %v490 = vadd.f32 %v85, %v489
  %v491 = vpop.f32.mrf.mxu0
  %492 = vmatprep.mubr.bf16.mxu0 0
  %493 = vmatmul.mubr.bf16.gmra.mxu0 %v291
  %v494 = vpop.f32.mrf.mxu0
  %v495 = vadd.f32 %v85, %v494
  %v496 = vpop.f32.mrf.mxu0
  %v497 = vpop.f32.mrf.mxu0
  %v498 = vadd.f32 %v85, %v497
  %v499 = vpop.f32.mrf.mxu0
  %500 = vmatprep.mubr.bf16.mxu0 0
  %501 = vmatmul.mubr.bf16.gmra.mxu0 %v294
  %v502 = vpop.f32.mrf.mxu0
  %v503 = vadd.f32 %v85, %v502
  %v504 = vpop.f32.mrf.mxu0
  %v505 = vpop.f32.mrf.mxu0
  %v506 = vadd.f32 %v85, %v505
  %v507 = vpop.f32.mrf.mxu0
  %508 = vmatprep.mubr.bf16.mxu0 0
  %509 = vmatmul.mubr.bf16.gmra.mxu0 %v297
  %v510 = vpop.f32.mrf.mxu0
  %v511 = vadd.f32 %v85, %v510
  %v512 = vpop.f32.mrf.mxu0
  %v513 = vpop.f32.mrf.mxu0
  %v514 = vadd.f32 %v85, %v513
  %v515 = vpop.f32.mrf.mxu0
  %516 = vmatprep.mubr.bf16.mxu0 0
  %517 = vmatmul.mubr.bf16.gmra.mxu0 %v300
  %v518 = vpop.f32.mrf.mxu0
  %v519 = vadd.f32 %v85, %v518
  %v520 = vpop.f32.mrf.mxu0
  %v521 = vpop.f32.mrf.mxu0
  %v522 = vadd.f32 %v85, %v521
  %v523 = vpop.f32.mrf.mxu0
  %524 = vmatprep.mubr.bf16.mxu0 0
  %525 = vmatmul.mubr.bf16.gmra.mxu0 %v303
  %v526 = vpop.f32.mrf.mxu0
  %v527 = vadd.f32 %v85, %v526
  %v528 = vpop.f32.mrf.mxu0
  %v529 = vpop.f32.mrf.mxu0
  %v530 = vadd.f32 %v85, %v529
  %v531 = vpop.f32.mrf.mxu0
  %532 = vmatprep.mubr.bf16.mxu0 0
  %533 = vmatmul.mubr.bf16.gmra.mxu0 %v306
  %v534 = vpop.f32.mrf.mxu0
  %v535 = vadd.f32 %v85, %v534
  %v536 = vpop.f32.mrf.mxu0
  %v537 = vpop.f32.mrf.mxu0
  %v538 = vadd.f32 %v85, %v537
  %v539 = vpop.f32.mrf.mxu0
  %540 = vmatprep.mubr.bf16.mxu0 0
  %541 = vmatmul.mubr.bf16.gmra.mxu0 %v309
  %v542 = vpop.f32.mrf.mxu0
  %v543 = vadd.f32 %v85, %v542
  %v544 = vpop.f32.mrf.mxu0
  %v545 = vpop.f32.mrf.mxu0
  %v546 = vadd.f32 %v85, %v545
  %v547 = vpop.f32.mrf.mxu0
  %548 = vmatprep.mubr.bf16.mxu0 0
  %549 = vmatmul.mubr.bf16.gmra.mxu0 %v312
  %v550 = vpop.f32.mrf.mxu0
  %v551 = vadd.f32 %v85, %v550
  %v552 = vpop.f32.mrf.mxu0
  %v553 = vpop.f32.mrf.mxu0
  %v554 = vadd.f32 %v85, %v553
  %v555 = vpop.f32.mrf.mxu0
  %556 = vmatprep.mubr.bf16.mxu0 0
  %557 = vmatmul.mubr.bf16.gmra.mxu0 %v315
  %v558 = vpop.f32.mrf.mxu0
  %v559 = vadd.f32 %v85, %v558
  %v560 = vpop.f32.mrf.mxu0
  %v561 = vpop.f32.mrf.mxu0
  %v562 = vadd.f32 %v85, %v561
  %v563 = vpop.f32.mrf.mxu0
  %564 = vmatprep.mubr.bf16.mxu0 0
  %565 = vmatmul.mubr.bf16.gmra.mxu0 %v318
  %v566 = vpop.f32.mrf.mxu0
  %v567 = vadd.f32 %v85, %v566
  %v568 = vpop.f32.mrf.mxu0
  %v569 = vpop.f32.mrf.mxu0
  %v570 = vadd.f32 %v85, %v569
  %v571 = vpop.f32.mrf.mxu0
  %572 = vmatprep.mubr.bf16.mxu0 0
  %573 = vmatmul.mubr.bf16.gmra.mxu0 %v321
  %v574 = vpop.f32.mrf.mxu0
  %v575 = vadd.f32 %v85, %v574
  %v576 = vpop.f32.mrf.mxu0
  %v577 = vpop.f32.mrf.mxu0
  %v578 = vadd.f32 %v85, %v577
  %v579 = vpop.f32.mrf.mxu0
  %580 = vmatprep.mubr.bf16.mxu0 0
  %581 = vmatmul.mubr.bf16.gmra.mxu0 %v324
  %v582 = vpop.f32.mrf.mxu0
  %v583 = vadd.f32 %v85, %v582
  %v584 = vpop.f32.mrf.mxu0
  %v585 = vpop.f32.mrf.mxu0
  %v586 = vadd.f32 %v85, %v585
  %v587 = vpop.f32.mrf.mxu0
  %588 = vmatprep.mubr.bf16.mxu0 0
  %589 = vmatmul.mubr.bf16.gmra.mxu0 %v327
  %v590 = vpop.f32.mrf.mxu0
  %v591 = vadd.f32 %v85, %v590
  %v592 = vpop.f32.mrf.mxu0
  %v593 = vpop.f32.mrf.mxu0
  %v594 = vadd.f32 %v85, %v593
  %v595 = vpop.f32.mrf.mxu0
  %596 = vmatprep.mubr.bf16.mxu0 0
  %597 = vmatmul.mubr.bf16.gmra.mxu0 %v330
  %v598 = vpop.f32.mrf.mxu0
  %v599 = vadd.f32 %v85, %v598
  %v600 = vpop.f32.mrf.mxu0
  %v601 = vpop.f32.mrf.mxu0
  %v602 = vadd.f32 %v85, %v601
  %v603 = vpop.f32.mrf.mxu0
  %604 = vmatprep.mubr.bf16.mxu0 0
  %605 = vmatmul.mubr.bf16.gmra.mxu0 %v333
  %v606 = vpop.f32.mrf.mxu0
  %v607 = vadd.f32 %v85, %v606
  %v608 = vpop.f32.mrf.mxu0
  %v609 = vpop.f32.mrf.mxu0
  %v610 = vadd.f32 %v85, %v609
  %v611 = vpop.f32.mrf.mxu0
  %612 = vmatprep.mubr.bf16.mxu0 0
  %613 = vmatmul.mubr.bf16.gmra.mxu0 %v336
  %v614 = vpop.f32.mrf.mxu0
  %v615 = vadd.f32 %v85, %v614
  %v616 = vpop.f32.mrf.mxu0
  %v617 = vpop.f32.mrf.mxu0
  %v618 = vadd.f32 %v85, %v617
  %v619 = vpop.f32.mrf.mxu0
  %620 = vmatprep.mubr.bf16.mxu0 0
  %621 = vmatmul.mubr.bf16.gmra.mxu0 %v339
  %v622 = vpop.f32.mrf.mxu0
  %v623 = vadd.f32 %v85, %v622
  %v624 = vpop.f32.mrf.mxu0
  %v625 = vpop.f32.mrf.mxu0
  %v626 = vadd.f32 %v85, %v625
  %v627 = vpop.f32.mrf.mxu0
  %628 = vmatprep.mubr.bf16.mxu0 0
  %629 = vmatmul.mubr.bf16.gmra.mxu0 %v342
  %v630 = vpop.f32.mrf.mxu0
  %v631 = vadd.f32 %v85, %v630
  %v632 = vpop.f32.mrf.mxu0
  %v633 = vpop.f32.mrf.mxu0
  %v634 = vadd.f32 %v85, %v633
  %v635 = vpop.f32.mrf.mxu0
  %636 = vdwg.mxu0
  %v637 = vxor.u32 %v383, 2147483648
  %v638 = vxor.u32 %v386, 2147483648
  %v639 = vxor.u32 %v391, 2147483648
  %v640 = vxor.u32 %v394, 2147483648
  %v641 = vxor.u32 %v399, 2147483648
  %v642 = vxor.u32 %v402, 2147483648
  %v643 = vxor.u32 %v407, 2147483648
  %v644 = vxor.u32 %v410, 2147483648
  %v645 = vxor.u32 %v415, 2147483648
  %v646 = vxor.u32 %v418, 2147483648
  %v647 = vxor.u32 %v423, 2147483648
  %v648 = vxor.u32 %v426, 2147483648
  %v649 = vxor.u32 %v431, 2147483648
  %v650 = vxor.u32 %v434, 2147483648
  %v651 = vxor.u32 %v439, 2147483648
  %v652 = vxor.u32 %v442, 2147483648
  %v653 = vxor.u32 %v447, 2147483648
  %v654 = vxor.u32 %v450, 2147483648
  %v655 = vxor.u32 %v455, 2147483648
  %v656 = vxor.u32 %v458, 2147483648
  %v657 = vxor.u32 %v463, 2147483648
  %v658 = vxor.u32 %v466, 2147483648
  %v659 = vxor.u32 %v471, 2147483648
  %v660 = vxor.u32 %v474, 2147483648
  %v661 = vxor.u32 %v479, 2147483648
  %v662 = vxor.u32 %v482, 2147483648
  %v663 = vxor.u32 %v487, 2147483648
  %v664 = vxor.u32 %v490, 2147483648
  %v665 = vxor.u32 %v495, 2147483648
  %v666 = vxor.u32 %v498, 2147483648
  %v667 = vxor.u32 %v503, 2147483648
  %v668 = vxor.u32 %v506, 2147483648
  %v669 = vxor.u32 %v511, 2147483648
  %v670 = vxor.u32 %v514, 2147483648
  %v671 = vxor.u32 %v519, 2147483648
  %v672 = vxor.u32 %v522, 2147483648
  %v673 = vxor.u32 %v527, 2147483648
  %v674 = vxor.u32 %v530, 2147483648
  %v675 = vxor.u32 %v535, 2147483648
  %v676 = vxor.u32 %v538, 2147483648
  %v677 = vxor.u32 %v543, 2147483648
  %v678 = vxor.u32 %v546, 2147483648
  %v679 = vxor.u32 %v551, 2147483648
  %v680 = vxor.u32 %v554, 2147483648
  %v681 = vxor.u32 %v559, 2147483648
  %v682 = vxor.u32 %v562, 2147483648
  %v683 = vxor.u32 %v567, 2147483648
  %v684 = vxor.u32 %v570, 2147483648
  %v685 = vxor.u32 %v575, 2147483648
  %v686 = vxor.u32 %v578, 2147483648
  %v687 = vxor.u32 %v583, 2147483648
  %v688 = vxor.u32 %v586, 2147483648
  %v689 = vxor.u32 %v591, 2147483648
  %v690 = vxor.u32 %v594, 2147483648
  %v691 = vxor.u32 %v599, 2147483648
  %v692 = vxor.u32 %v602, 2147483648
  %v693 = vxor.u32 %v607, 2147483648
  %v694 = vxor.u32 %v610, 2147483648
  %v695 = vxor.u32 %v615, 2147483648
  %v696 = vxor.u32 %v618, 2147483648
  %v697 = vxor.u32 %v623, 2147483648
  %v698 = vxor.u32 %v626, 2147483648
  %v699 = vxor.u32 %v631, 2147483648
  %v700 = vxor.u32 %v634, 2147483648
  %v701 = vmul.f32 %v637, 1.442695
  %v702 = vpow.pop %v701
  %v703 = vmul.f32 %v638, 1.442695
  %v704 = vpow.pop %v703
  %v705 = vmul.f32 %v639, 1.442695
  %v706 = vpow.pop %v705
  %v707 = vmul.f32 %v640, 1.442695
  %v708 = vpow.pop %v707
  %v709 = vmul.f32 %v641, 1.442695
  %v710 = vpow.pop %v709
  %v711 = vmul.f32 %v642, 1.442695
  %v712 = vpow.pop %v711
  %v713 = vmul.f32 %v643, 1.442695
  %v714 = vpow.pop %v713
  %v715 = vmul.f32 %v644, 1.442695
  %v716 = vpow.pop %v715
  %v717 = vmul.f32 %v645, 1.442695
  %v718 = vpow.pop %v717
  %v719 = vmul.f32 %v646, 1.442695
  %v720 = vpow.pop %v719
  %v721 = vmul.f32 %v647, 1.442695
  %v722 = vpow.pop %v721
  %v723 = vmul.f32 %v648, 1.442695
  %v724 = vpow.pop %v723
  %v725 = vmul.f32 %v649, 1.442695
  %v726 = vpow.pop %v725
  %v727 = vmul.f32 %v650, 1.442695
  %v728 = vpow.pop %v727
  %v729 = vmul.f32 %v651, 1.442695
  %v730 = vpow.pop %v729
  %v731 = vmul.f32 %v652, 1.442695
  %v732 = vpow.pop %v731
  %v733 = vmul.f32 %v653, 1.442695
  %v734 = vpow.pop %v733
  %v735 = vmul.f32 %v654, 1.442695
  %v736 = vpow.pop %v735
  %v737 = vmul.f32 %v655, 1.442695
  %v738 = vpow.pop %v737
  %v739 = vmul.f32 %v656, 1.442695
  %v740 = vpow.pop %v739
  %v741 = vmul.f32 %v657, 1.442695
  %v742 = vpow.pop %v741
  %v743 = vmul.f32 %v658, 1.442695
  %v744 = vpow.pop %v743
  %v745 = vmul.f32 %v659, 1.442695
  %v746 = vpow.pop %v745
  %v747 = vmul.f32 %v660, 1.442695
  %v748 = vpow.pop %v747
  %v749 = vmul.f32 %v661, 1.442695
  %v750 = vpow.pop %v749
  %v751 = vmul.f32 %v662, 1.442695
  %v752 = vpow.pop %v751
  %v753 = vmul.f32 %v663, 1.442695
  %v754 = vpow.pop %v753
  %v755 = vmul.f32 %v664, 1.442695
  %v756 = vpow.pop %v755
  %v757 = vmul.f32 %v665, 1.442695
  %v758 = vpow.pop %v757
  %v759 = vmul.f32 %v666, 1.442695
  %v760 = vpow.pop %v759
  %v761 = vmul.f32 %v667, 1.442695
  %v762 = vpow.pop %v761
  %v763 = vmul.f32 %v668, 1.442695
  %v764 = vpow.pop %v763
  %v765 = vmul.f32 %v669, 1.442695
  %v766 = vpow.pop %v765
  %v767 = vmul.f32 %v670, 1.442695
  %v768 = vpow.pop %v767
  %v769 = vmul.f32 %v671, 1.442695
  %v770 = vpow.pop %v769
  %v771 = vmul.f32 %v672, 1.442695
  %v772 = vpow.pop %v771
  %v773 = vmul.f32 %v673, 1.442695
  %v774 = vpow.pop %v773
  %v775 = vmul.f32 %v674, 1.442695
  %v776 = vpow.pop %v775
  %v777 = vmul.f32 %v675, 1.442695
  %v778 = vpow.pop %v777
  %v779 = vmul.f32 %v676, 1.442695
  %v780 = vpow.pop %v779
  %v781 = vmul.f32 %v677, 1.442695
  %v782 = vpow.pop %v781
  %v783 = vmul.f32 %v678, 1.442695
  %v784 = vpow.pop %v783
  %v785 = vmul.f32 %v679, 1.442695
  %v786 = vpow.pop %v785
  %v787 = vmul.f32 %v680, 1.442695
  %v788 = vpow.pop %v787
  %v789 = vmul.f32 %v681, 1.442695
  %v790 = vpow.pop %v789
  %v791 = vmul.f32 %v682, 1.442695
  %v792 = vpow.pop %v791
  %v793 = vmul.f32 %v683, 1.442695
  %v794 = vpow.pop %v793
  %v795 = vmul.f32 %v684, 1.442695
  %v796 = vpow.pop %v795
  %v797 = vmul.f32 %v685, 1.442695
  %v798 = vpow.pop %v797
  %v799 = vmul.f32 %v686, 1.442695
  %v800 = vpow.pop %v799
  %v801 = vmul.f32 %v687, 1.442695
  %v802 = vpow.pop %v801
  %v803 = vmul.f32 %v688, 1.442695
  %v804 = vpow.pop %v803
  %v805 = vmul.f32 %v689, 1.442695
  %v806 = vpow.pop %v805
  %v807 = vmul.f32 %v690, 1.442695
  %v808 = vpow.pop %v807
  %v809 = vmul.f32 %v691, 1.442695
  %v810 = vpow.pop %v809
  %v811 = vmul.f32 %v692, 1.442695
  %v812 = vpow.pop %v811
  %v813 = vmul.f32 %v693, 1.442695
  %v814 = vpow.pop %v813
  %v815 = vmul.f32 %v694, 1.442695
  %v816 = vpow.pop %v815
  %v817 = vmul.f32 %v695, 1.442695
  %v818 = vpow.pop %v817
  %v819 = vmul.f32 %v696, 1.442695
  %v820 = vpow.pop %v819
  %v821 = vmul.f32 %v697, 1.442695
  %v822 = vpow.pop %v821
  %v823 = vmul.f32 %v698, 1.442695
  %v824 = vpow.pop %v823
  %v825 = vmul.f32 %v699, 1.442695
  %v826 = vpow.pop %v825
  %v827 = vmul.f32 %v700, 1.442695
  %v828 = vpow.pop %v827
  %v829 = vadd.f32 %v702, 1.0
  %v830 = vadd.f32 %v704, 1.0
  %v831 = vadd.f32 %v706, 1.0
  %v832 = vadd.f32 %v708, 1.0
  %v833 = vadd.f32 %v710, 1.0
  %v834 = vadd.f32 %v712, 1.0
  %v835 = vadd.f32 %v714, 1.0
  %v836 = vadd.f32 %v716, 1.0
  %v837 = vadd.f32 %v718, 1.0
  %v838 = vadd.f32 %v720, 1.0
  %v839 = vadd.f32 %v722, 1.0
  %v840 = vadd.f32 %v724, 1.0
  %v841 = vadd.f32 %v726, 1.0
  %v842 = vadd.f32 %v728, 1.0
  %v843 = vadd.f32 %v730, 1.0
  %v844 = vadd.f32 %v732, 1.0
  %v845 = vadd.f32 %v734, 1.0
  %v846 = vadd.f32 %v736, 1.0
  %v847 = vadd.f32 %v738, 1.0
  %v848 = vadd.f32 %v740, 1.0
  %v849 = vadd.f32 %v742, 1.0
  %v850 = vadd.f32 %v744, 1.0
  %v851 = vadd.f32 %v746, 1.0
  %v852 = vadd.f32 %v748, 1.0
  %v853 = vadd.f32 %v750, 1.0
  %v854 = vadd.f32 %v752, 1.0
  %v855 = vadd.f32 %v754, 1.0
  %v856 = vadd.f32 %v756, 1.0
  %v857 = vadd.f32 %v758, 1.0
  %v858 = vadd.f32 %v760, 1.0
  %v859 = vadd.f32 %v762, 1.0
  %v860 = vadd.f32 %v764, 1.0
  %v861 = vadd.f32 %v766, 1.0
  %v862 = vadd.f32 %v768, 1.0
  %v863 = vadd.f32 %v770, 1.0
  %v864 = vadd.f32 %v772, 1.0
  %v865 = vadd.f32 %v774, 1.0
  %v866 = vadd.f32 %v776, 1.0
  %v867 = vadd.f32 %v778, 1.0
  %v868 = vadd.f32 %v780, 1.0
  %v869 = vadd.f32 %v782, 1.0
  %v870 = vadd.f32 %v784, 1.0
  %v871 = vadd.f32 %v786, 1.0
  %v872 = vadd.f32 %v788, 1.0
  %v873 = vadd.f32 %v790, 1.0
  %v874 = vadd.f32 %v792, 1.0
  %v875 = vadd.f32 %v794, 1.0
  %v876 = vadd.f32 %v796, 1.0
  %v877 = vadd.f32 %v798, 1.0
  %v878 = vadd.f32 %v800, 1.0
  %v879 = vadd.f32 %v802, 1.0
  %v880 = vadd.f32 %v804, 1.0
  %v881 = vadd.f32 %v806, 1.0
  %v882 = vadd.f32 %v808, 1.0
  %v883 = vadd.f32 %v810, 1.0
  %v884 = vadd.f32 %v812, 1.0
  %v885 = vadd.f32 %v814, 1.0
  %v886 = vadd.f32 %v816, 1.0
  %v887 = vadd.f32 %v818, 1.0
  %v888 = vadd.f32 %v820, 1.0
  %v889 = vadd.f32 %v822, 1.0
  %v890 = vadd.f32 %v824, 1.0
  %v891 = vadd.f32 %v826, 1.0
  %v892 = vadd.f32 %v828, 1.0
  %v893 = vrcp.pop %v829
  %v894 = vmul.f32 1.0, %v893
  %v895 = vrcp.pop %v830
  %v896 = vmul.f32 1.0, %v895
  %v897 = vrcp.pop %v831
  %v898 = vmul.f32 1.0, %v897
  %v899 = vrcp.pop %v832
  %v900 = vmul.f32 1.0, %v899
  %v901 = vrcp.pop %v833
  %v902 = vmul.f32 1.0, %v901
  %v903 = vrcp.pop %v834
  %v904 = vmul.f32 1.0, %v903
  %v905 = vrcp.pop %v835
  %v906 = vmul.f32 1.0, %v905
  %v907 = vrcp.pop %v836
  %v908 = vmul.f32 1.0, %v907
  %v909 = vrcp.pop %v837
  %v910 = vmul.f32 1.0, %v909
  %v911 = vrcp.pop %v838
  %v912 = vmul.f32 1.0, %v911
  %v913 = vrcp.pop %v839
  %v914 = vmul.f32 1.0, %v913
  %v915 = vrcp.pop %v840
  %v916 = vmul.f32 1.0, %v915
  %v917 = vrcp.pop %v841
  %v918 = vmul.f32 1.0, %v917
  %v919 = vrcp.pop %v842
  %v920 = vmul.f32 1.0, %v919
  %v921 = vrcp.pop %v843
  %v922 = vmul.f32 1.0, %v921
  %v923 = vrcp.pop %v844
  %v924 = vmul.f32 1.0, %v923
  %v925 = vrcp.pop %v845
  %v926 = vmul.f32 1.0, %v925
  %v927 = vrcp.pop %v846
  %v928 = vmul.f32 1.0, %v927
  %v929 = vrcp.pop %v847
  %v930 = vmul.f32 1.0, %v929
  %v931 = vrcp.pop %v848
  %v932 = vmul.f32 1.0, %v931
  %v933 = vrcp.pop %v849
  %v934 = vmul.f32 1.0, %v933
  %v935 = vrcp.pop %v850
  %v936 = vmul.f32 1.0, %v935
  %v937 = vrcp.pop %v851
  %v938 = vmul.f32 1.0, %v937
  %v939 = vrcp.pop %v852
  %v940 = vmul.f32 1.0, %v939
  %v941 = vrcp.pop %v853
  %v942 = vmul.f32 1.0, %v941
  %v943 = vrcp.pop %v854
  %v944 = vmul.f32 1.0, %v943
  %v945 = vrcp.pop %v855
  %v946 = vmul.f32 1.0, %v945
  %v947 = vrcp.pop %v856
  %v948 = vmul.f32 1.0, %v947
  %v949 = vrcp.pop %v857
  %v950 = vmul.f32 1.0, %v949
  %v951 = vrcp.pop %v858
  %v952 = vmul.f32 1.0, %v951
  %v953 = vrcp.pop %v859
  %v954 = vmul.f32 1.0, %v953
  %v955 = vrcp.pop %v860
  %v956 = vmul.f32 1.0, %v955
  %v957 = vrcp.pop %v861
  %v958 = vmul.f32 1.0, %v957
  %v959 = vrcp.pop %v862
  %v960 = vmul.f32 1.0, %v959
  %v961 = vrcp.pop %v863
  %v962 = vmul.f32 1.0, %v961
  %v963 = vrcp.pop %v864
  %v964 = vmul.f32 1.0, %v963
  %v965 = vrcp.pop %v865
  %v966 = vmul.f32 1.0, %v965
  %v967 = vrcp.pop %v866
  %v968 = vmul.f32 1.0, %v967
  %v969 = vrcp.pop %v867
  %v970 = vmul.f32 1.0, %v969
  %v971 = vrcp.pop %v868
  %v972 = vmul.f32 1.0, %v971
  %v973 = vrcp.pop %v869
  %v974 = vmul.f32 1.0, %v973
  %v975 = vrcp.pop %v870
  %v976 = vmul.f32 1.0, %v975
  %v977 = vrcp.pop %v871
  %v978 = vmul.f32 1.0, %v977
  %v979 = vrcp.pop %v872
  %v980 = vmul.f32 1.0, %v979
  %v981 = vrcp.pop %v873
  %v982 = vmul.f32 1.0, %v981
  %v983 = vrcp.pop %v874
  %v984 = vmul.f32 1.0, %v983
  %v985 = vrcp.pop %v875
  %v986 = vmul.f32 1.0, %v985
  %v987 = vrcp.pop %v876
  %v988 = vmul.f32 1.0, %v987
  %v989 = vrcp.pop %v877
  %v990 = vmul.f32 1.0, %v989
  %v991 = vrcp.pop %v878
  %v992 = vmul.f32 1.0, %v991
  %v993 = vrcp.pop %v879
  %v994 = vmul.f32 1.0, %v993
  %v995 = vrcp.pop %v880
  %v996 = vmul.f32 1.0, %v995
  %v997 = vrcp.pop %v881
  %v998 = vmul.f32 1.0, %v997
  %v999 = vrcp.pop %v882
  %v1000 = vmul.f32 1.0, %v999
  %v1001 = vrcp.pop %v883
  %v1002 = vmul.f32 1.0, %v1001
  %v1003 = vrcp.pop %v884
  %v1004 = vmul.f32 1.0, %v1003
  %v1005 = vrcp.pop %v885
  %v1006 = vmul.f32 1.0, %v1005
  %v1007 = vrcp.pop %v886
  %v1008 = vmul.f32 1.0, %v1007
  %v1009 = vrcp.pop %v887
  %v1010 = vmul.f32 1.0, %v1009
  %v1011 = vrcp.pop %v888
  %v1012 = vmul.f32 1.0, %v1011
  %v1013 = vrcp.pop %v889
  %v1014 = vmul.f32 1.0, %v1013
  %v1015 = vrcp.pop %v890
  %v1016 = vmul.f32 1.0, %v1015
  %v1017 = vrcp.pop %v891
  %v1018 = vmul.f32 1.0, %v1017
  %v1019 = vrcp.pop %v892
  %v1020 = vmul.f32 1.0, %v1019
  %v1021 = vmul.f32 %v383, %v894
  %v1022 = vmul.f32 %v386, %v896
  %v1023 = vmul.f32 %v391, %v898
  %v1024 = vmul.f32 %v394, %v900
  %v1025 = vmul.f32 %v399, %v902
  %v1026 = vmul.f32 %v402, %v904
  %v1027 = vmul.f32 %v407, %v906
  %v1028 = vmul.f32 %v410, %v908
  %v1029 = vmul.f32 %v415, %v910
  %v1030 = vmul.f32 %v418, %v912
  %v1031 = vmul.f32 %v423, %v914
  %v1032 = vmul.f32 %v426, %v916
  %v1033 = vmul.f32 %v431, %v918
  %v1034 = vmul.f32 %v434, %v920
  %v1035 = vmul.f32 %v439, %v922
  %v1036 = vmul.f32 %v442, %v924
  %v1037 = vmul.f32 %v447, %v926
  %v1038 = vmul.f32 %v450, %v928
  %v1039 = vmul.f32 %v455, %v930
  %v1040 = vmul.f32 %v458, %v932
  %v1041 = vmul.f32 %v463, %v934
  %v1042 = vmul.f32 %v466, %v936
  %v1043 = vmul.f32 %v471, %v938
  %v1044 = vmul.f32 %v474, %v940
  %v1045 = vmul.f32 %v479, %v942
  %v1046 = vmul.f32 %v482, %v944
  %v1047 = vmul.f32 %v487, %v946
  %v1048 = vmul.f32 %v490, %v948
  %v1049 = vmul.f32 %v495, %v950
  %v1050 = vmul.f32 %v498, %v952
  %v1051 = vmul.f32 %v503, %v954
  %v1052 = vmul.f32 %v506, %v956
  %v1053 = vmul.f32 %v511, %v958
  %v1054 = vmul.f32 %v514, %v960
  %v1055 = vmul.f32 %v519, %v962
  %v1056 = vmul.f32 %v522, %v964
  %v1057 = vmul.f32 %v527, %v966
  %v1058 = vmul.f32 %v530, %v968
  %v1059 = vmul.f32 %v535, %v970
  %v1060 = vmul.f32 %v538, %v972
  %v1061 = vmul.f32 %v543, %v974
  %v1062 = vmul.f32 %v546, %v976
  %v1063 = vmul.f32 %v551, %v978
  %v1064 = vmul.f32 %v554, %v980
  %v1065 = vmul.f32 %v559, %v982
  %v1066 = vmul.f32 %v562, %v984
  %v1067 = vmul.f32 %v567, %v986
  %v1068 = vmul.f32 %v570, %v988
  %v1069 = vmul.f32 %v575, %v990
  %v1070 = vmul.f32 %v578, %v992
  %v1071 = vmul.f32 %v583, %v994
  %v1072 = vmul.f32 %v586, %v996
  %v1073 = vmul.f32 %v591, %v998
  %v1074 = vmul.f32 %v594, %v1000
  %v1075 = vmul.f32 %v599, %v1002
  %v1076 = vmul.f32 %v602, %v1004
  %v1077 = vmul.f32 %v607, %v1006
  %v1078 = vmul.f32 %v610, %v1008
  %v1079 = vmul.f32 %v615, %v1010
  %v1080 = vmul.f32 %v618, %v1012
  %v1081 = vmul.f32 %v623, %v1014
  %v1082 = vmul.f32 %v626, %v1016
  %v1083 = vmul.f32 %v631, %v1018
  %v1084 = vmul.f32 %v634, %v1020
  %v1085 = vpack.c.bf16 %v1022, %v1021
  %v1086 = vpack.c.bf16 %v1024, %v1023
  %v1087 = vpack.c.bf16 %v1026, %v1025
  %v1088 = vpack.c.bf16 %v1028, %v1027
  %v1089 = vpack.c.bf16 %v1030, %v1029
  %v1090 = vpack.c.bf16 %v1032, %v1031
  %v1091 = vpack.c.bf16 %v1034, %v1033
  %v1092 = vpack.c.bf16 %v1036, %v1035
  %v1093 = vpack.c.bf16 %v1038, %v1037
  %v1094 = vpack.c.bf16 %v1040, %v1039
  %v1095 = vpack.c.bf16 %v1042, %v1041
  %v1096 = vpack.c.bf16 %v1044, %v1043
  %v1097 = vpack.c.bf16 %v1046, %v1045
  %v1098 = vpack.c.bf16 %v1048, %v1047
  %v1099 = vpack.c.bf16 %v1050, %v1049
  %v1100 = vpack.c.bf16 %v1052, %v1051
  %v1101 = vpack.c.bf16 %v1054, %v1053
  %v1102 = vpack.c.bf16 %v1056, %v1055
  %v1103 = vpack.c.bf16 %v1058, %v1057
  %v1104 = vpack.c.bf16 %v1060, %v1059
  %v1105 = vpack.c.bf16 %v1062, %v1061
  %v1106 = vpack.c.bf16 %v1064, %v1063
  %v1107 = vpack.c.bf16 %v1066, %v1065
  %v1108 = vpack.c.bf16 %v1068, %v1067
  %v1109 = vpack.c.bf16 %v1070, %v1069
  %v1110 = vpack.c.bf16 %v1072, %v1071
  %v1111 = vpack.c.bf16 %v1074, %v1073
  %v1112 = vpack.c.bf16 %v1076, %v1075
  %v1113 = vpack.c.bf16 %v1078, %v1077
  %v1114 = vpack.c.bf16 %v1080, %v1079
  %v1115 = vpack.c.bf16 %v1082, %v1081
  %v1116 = vpack.c.bf16 %v1084, %v1083
  %v1149 = vunpack.c.l.b16 %v1085
  %v1150 = vunpack.c.h.b16 %v1085
  %v1151 = vunpack.c.l.b16 %v1086
  %v1152 = vunpack.c.h.b16 %v1086
  %v1153 = vunpack.c.l.b16 %v1087
  %v1154 = vunpack.c.h.b16 %v1087
  %v1155 = vunpack.c.l.b16 %v1088
  %v1156 = vunpack.c.h.b16 %v1088
  %v1157 = vunpack.c.l.b16 %v1089
  %v1158 = vunpack.c.h.b16 %v1089
  %v1159 = vunpack.c.l.b16 %v1090
  %v1160 = vunpack.c.h.b16 %v1090
  %v1161 = vunpack.c.l.b16 %v1091
  %v1162 = vunpack.c.h.b16 %v1091
  %v1163 = vunpack.c.l.b16 %v1092
  %v1164 = vunpack.c.h.b16 %v1092
  %v1165 = vunpack.c.l.b16 %v1093
  %v1166 = vunpack.c.h.b16 %v1093
  %v1167 = vunpack.c.l.b16 %v1094
  %v1168 = vunpack.c.h.b16 %v1094
  %v1169 = vunpack.c.l.b16 %v1095
  %v1170 = vunpack.c.h.b16 %v1095
  %v1171 = vunpack.c.l.b16 %v1096
  %v1172 = vunpack.c.h.b16 %v1096
  %v1173 = vunpack.c.l.b16 %v1097
  %v1174 = vunpack.c.h.b16 %v1097
  %v1175 = vunpack.c.l.b16 %v1098
  %v1176 = vunpack.c.h.b16 %v1098
  %v1177 = vunpack.c.l.b16 %v1099
  %v1178 = vunpack.c.h.b16 %v1099
  %v1179 = vunpack.c.l.b16 %v1100
  %v1180 = vunpack.c.h.b16 %v1100
  %v1181 = vunpack.c.l.b16 %v1101
  %v1182 = vunpack.c.h.b16 %v1101
  %v1183 = vunpack.c.l.b16 %v1102
  %v1184 = vunpack.c.h.b16 %v1102
  %v1185 = vunpack.c.l.b16 %v1103
  %v1186 = vunpack.c.h.b16 %v1103
  %v1187 = vunpack.c.l.b16 %v1104
  %v1188 = vunpack.c.h.b16 %v1104
  %v1189 = vunpack.c.l.b16 %v1105
  %v1190 = vunpack.c.h.b16 %v1105
  %v1191 = vunpack.c.l.b16 %v1106
  %v1192 = vunpack.c.h.b16 %v1106
  %v1193 = vunpack.c.l.b16 %v1107
  %v1194 = vunpack.c.h.b16 %v1107
  %v1195 = vunpack.c.l.b16 %v1108
  %v1196 = vunpack.c.h.b16 %v1108
  %v1197 = vunpack.c.l.b16 %v1109
  %v1198 = vunpack.c.h.b16 %v1109
  %v1199 = vunpack.c.l.b16 %v1110
  %v1200 = vunpack.c.h.b16 %v1110
  %v1201 = vunpack.c.l.b16 %v1111
  %v1202 = vunpack.c.h.b16 %v1111
  %v1203 = vunpack.c.l.b16 %v1112
  %v1204 = vunpack.c.h.b16 %v1112
  %v1205 = vunpack.c.l.b16 %v1113
  %v1206 = vunpack.c.h.b16 %v1113
  %v1207 = vunpack.c.l.b16 %v1114
  %v1208 = vunpack.c.h.b16 %v1114
  %v1209 = vunpack.c.l.b16 %v1115
  %v1210 = vunpack.c.h.b16 %v1115
  %v1211 = vunpack.c.l.b16 %v1116
  %v1212 = vunpack.c.h.b16 %v1116
  %v1213 = vpack.c.b16 %v1149, %v1149
  %v1214 = vpack.c.b16 %v1150, %v1150
  %v1215 = vpack.c.b16 %v1151, %v1151
  %v1216 = vpack.c.b16 %v1152, %v1152
  %v1217 = vpack.c.b16 %v1153, %v1153
  %v1218 = vpack.c.b16 %v1154, %v1154
  %v1219 = vpack.c.b16 %v1155, %v1155
  %v1220 = vpack.c.b16 %v1156, %v1156
  %v1221 = vpack.c.b16 %v1157, %v1157
  %v1222 = vpack.c.b16 %v1158, %v1158
  %v1223 = vpack.c.b16 %v1159, %v1159
  %v1224 = vpack.c.b16 %v1160, %v1160
  %v1225 = vpack.c.b16 %v1161, %v1161
  %v1226 = vpack.c.b16 %v1162, %v1162
  %v1227 = vpack.c.b16 %v1163, %v1163
  %v1228 = vpack.c.b16 %v1164, %v1164
  %v1229 = vpack.c.b16 %v1165, %v1165
  %v1230 = vpack.c.b16 %v1166, %v1166
  %v1231 = vpack.c.b16 %v1167, %v1167
  %v1232 = vpack.c.b16 %v1168, %v1168
  %v1233 = vpack.c.b16 %v1169, %v1169
  %v1234 = vpack.c.b16 %v1170, %v1170
  %v1235 = vpack.c.b16 %v1171, %v1171
  %v1236 = vpack.c.b16 %v1172, %v1172
  %v1237 = vpack.c.b16 %v1173, %v1173
  %v1238 = vpack.c.b16 %v1174, %v1174
  %v1239 = vpack.c.b16 %v1175, %v1175
  %v1240 = vpack.c.b16 %v1176, %v1176
  %v1241 = vpack.c.b16 %v1177, %v1177
  %v1242 = vpack.c.b16 %v1178, %v1178
  %v1243 = vpack.c.b16 %v1179, %v1179
  %v1244 = vpack.c.b16 %v1180, %v1180
  %v1245 = vpack.c.b16 %v1181, %v1181
  %v1246 = vpack.c.b16 %v1182, %v1182
  %v1247 = vpack.c.b16 %v1183, %v1183
  %v1248 = vpack.c.b16 %v1184, %v1184
  %v1249 = vpack.c.b16 %v1185, %v1185
  %v1250 = vpack.c.b16 %v1186, %v1186
  %v1251 = vpack.c.b16 %v1187, %v1187
  %v1252 = vpack.c.b16 %v1188, %v1188
  %v1253 = vpack.c.b16 %v1189, %v1189
  %v1254 = vpack.c.b16 %v1190, %v1190
  %v1255 = vpack.c.b16 %v1191, %v1191
  %v1256 = vpack.c.b16 %v1192, %v1192
  %v1257 = vpack.c.b16 %v1193, %v1193
  %v1258 = vpack.c.b16 %v1194, %v1194
  %v1259 = vpack.c.b16 %v1195, %v1195
  %v1260 = vpack.c.b16 %v1196, %v1196
  %v1261 = vpack.c.b16 %v1197, %v1197
  %v1262 = vpack.c.b16 %v1198, %v1198
  %v1263 = vpack.c.b16 %v1199, %v1199
  %v1264 = vpack.c.b16 %v1200, %v1200
  %v1265 = vpack.c.b16 %v1201, %v1201
  %v1266 = vpack.c.b16 %v1202, %v1202
  %v1267 = vpack.c.b16 %v1203, %v1203
  %v1268 = vpack.c.b16 %v1204, %v1204
  %v1269 = vpack.c.b16 %v1205, %v1205
  %v1270 = vpack.c.b16 %v1206, %v1206
  %v1271 = vpack.c.b16 %v1207, %v1207
  %v1272 = vpack.c.b16 %v1208, %v1208
  %v1273 = vpack.c.b16 %v1209, %v1209
  %v1274 = vpack.c.b16 %v1210, %v1210
  %v1275 = vpack.c.b16 %v1211, %v1211
  %v1276 = vpack.c.b16 %v1212, %v1212
  %1341 = vst [vmem:[%s3] sm:$0xf] %v1213
  %1342 = vst [vmem:[%s3 + $0x4] sm:$0xf] %v1214
  %1343 = vst [vmem:[%s3 + $0x8] sm:$0xf] %v1215
  %1344 = vst [vmem:[%s3 + $0xc] sm:$0xf] %v1216
  %1345 = vst [vmem:[%s3 + $0x10] sm:$0xf] %v1217
  %1346 = vst [vmem:[%s3 + $0x14] sm:$0xf] %v1218
  %1347 = vst [vmem:[%s3 + $0x18] sm:$0xf] %v1219
  %1348 = vst [vmem:[%s3 + $0x1c] sm:$0xf] %v1220
  %1349 = vst [vmem:[%s3 + $0x20] sm:$0xf] %v1221
  %1350 = vst [vmem:[%s3 + $0x24] sm:$0xf] %v1222
  %1351 = vst [vmem:[%s3 + $0x28] sm:$0xf] %v1223
  %1352 = vst [vmem:[%s3 + $0x2c] sm:$0xf] %v1224
  %1353 = vst [vmem:[%s3 + $0x30] sm:$0xf] %v1225
  %1354 = vst [vmem:[%s3 + $0x34] sm:$0xf] %v1226
  %1355 = vst [vmem:[%s3 + $0x38] sm:$0xf] %v1227
  %1356 = vst [vmem:[%s3 + $0x3c] sm:$0xf] %v1228
  %1357 = vst [vmem:[%s3 + $0x40] sm:$0xf] %v1229
  %1358 = vst [vmem:[%s3 + $0x44] sm:$0xf] %v1230
  %1359 = vst [vmem:[%s3 + $0x48] sm:$0xf] %v1231
  %1360 = vst [vmem:[%s3 + $0x4c] sm:$0xf] %v1232
  %1361 = vst [vmem:[%s3 + $0x50] sm:$0xf] %v1233
  %1362 = vst [vmem:[%s3 + $0x54] sm:$0xf] %v1234
  %1363 = vst [vmem:[%s3 + $0x58] sm:$0xf] %v1235
  %1364 = vst [vmem:[%s3 + $0x5c] sm:$0xf] %v1236
  %1365 = vst [vmem:[%s3 + $0x60] sm:$0xf] %v1237
  %1366 = vst [vmem:[%s3 + $0x64] sm:$0xf] %v1238
  %1367 = vst [vmem:[%s3 + $0x68] sm:$0xf] %v1239
  %1368 = vst [vmem:[%s3 + $0x6c] sm:$0xf] %v1240
  %1369 = vst [vmem:[%s3 + $0x70] sm:$0xf] %v1241
  %1370 = vst [vmem:[%s3 + $0x74] sm:$0xf] %v1242
  %1371 = vst [vmem:[%s3 + $0x78] sm:$0xf] %v1243
  %1372 = vst [vmem:[%s3 + $0x7c] sm:$0xf] %v1244
  %1373 = vst [vmem:[%s3 + $0x80] sm:$0xf] %v1245
  %1374 = vst [vmem:[%s3 + $0x84] sm:$0xf] %v1246
  %1375 = vst [vmem:[%s3 + $0x88] sm:$0xf] %v1247
  %1376 = vst [vmem:[%s3 + $0x8c] sm:$0xf] %v1248
  %1377 = vst [vmem:[%s3 + $0x90] sm:$0xf] %v1249
  %1378 = vst [vmem:[%s3 + $0x94] sm:$0xf] %v1250
  %1379 = vst [vmem:[%s3 + $0x98] sm:$0xf] %v1251
  %1380 = vst [vmem:[%s3 + $0x9c] sm:$0xf] %v1252
  %1381 = vst [vmem:[%s3 + $0xa0] sm:$0xf] %v1253
  %1382 = vst [vmem:[%s3 + $0xa4] sm:$0xf] %v1254
  %1383 = vst [vmem:[%s3 + $0xa8] sm:$0xf] %v1255
  %1384 = vst [vmem:[%s3 + $0xac] sm:$0xf] %v1256
  %1385 = vst [vmem:[%s3 + $0xb0] sm:$0xf] %v1257
  %1386 = vst [vmem:[%s3 + $0xb4] sm:$0xf] %v1258
  %1387 = vst [vmem:[%s3 + $0xb8] sm:$0xf] %v1259
  %1388 = vst [vmem:[%s3 + $0xbc] sm:$0xf] %v1260
  %1389 = vst [vmem:[%s3 + $0xc0] sm:$0xf] %v1261
  %1390 = vst [vmem:[%s3 + $0xc4] sm:$0xf] %v1262
  %1391 = vst [vmem:[%s3 + $0xc8] sm:$0xf] %v1263
  %1392 = vst [vmem:[%s3 + $0xcc] sm:$0xf] %v1264
  %1393 = vst [vmem:[%s3 + $0xd0] sm:$0xf] %v1265
  %1394 = vst [vmem:[%s3 + $0xd4] sm:$0xf] %v1266
  %1395 = vst [vmem:[%s3 + $0xd8] sm:$0xf] %v1267
  %1396 = vst [vmem:[%s3 + $0xdc] sm:$0xf] %v1268
  %1397 = vst [vmem:[%s3 + $0xe0] sm:$0xf] %v1269
  %1398 = vst [vmem:[%s3 + $0xe4] sm:$0xf] %v1270
  %1399 = vst [vmem:[%s3 + $0xe8] sm:$0xf] %v1271
  %1400 = vst [vmem:[%s3 + $0xec] sm:$0xf] %v1272
  %1401 = vst [vmem:[%s3 + $0xf0] sm:$0xf] %v1273
  %1402 = vst [vmem:[%s3 + $0xf4] sm:$0xf] %v1274
  %1403 = vst [vmem:[%s3 + $0xf8] sm:$0xf] %v1275
  %1404 = vst [vmem:[%s3 + $0xfc] sm:$0xf] %v1276
  // Predicated region
  $region14: #{elan_forward.6} parent=0 // pred_check
    _
  $region15: #{elan_forward.6} parent=0 // pred_check_branch
    %1406 = sbr.rel (0) target = $region17
  $region16: #{elan_forward.6} parent=0 // pred_region
    _
  $region17: #{elan_forward.6} parent=0 // pred_fallthru
    _
  // Predicated region
  $region18: #{elan_forward.6} parent=0 // pred_check
    _
  $region19: #{elan_forward.6} parent=0 // pred_check_branch
    %1408 = sbr.rel (0) target = $region21
  $region20: #{elan_forward.6} parent=0 // pred_region
    _
  $region21: #{elan_forward.6} parent=0 // pred_fallthru
    _

// kernel: elan_forward.11
$region0: #{elan_forward.11}
  #allocation0 [shape = 'u32[]', space=smem, size = 0x4, offset = 0x4, fixed_abs, tag = 'smem constant byte address 0x4 - core index']
  #allocation1 [shape = 'u32[144,128]{1,0:T(1,128)}', space=vmem, size = 0x12000, scoped, tag = 'internal scratch']
  %s0 = inlined_call_operand.vmem [shape: bf16[512,16], index: 0, kind: input, shape index: {}]
  %s1 = inlined_call_operand.vmem [shape: bf16[512,8], index: 1, kind: input, shape index: {}]
  %s2 = inlined_call_operand.vmem [shape: bf16[512,8], index: 2, kind: input, shape index: {}]
  %s3 = inlined_call_operand.vmem [shape: bf16[16,128], index: 3, kind: input, shape index: {}]
  %s4 = inlined_call_operand.vmem [shape: bf16[8,128], index: 4, kind: input, shape index: {}]
  %s5 = inlined_call_operand.vmem [shape: bf16[8,128], index: 5, kind: input, shape index: {}]
  %s6 = inlined_call_operand.vmem [shape: f32[1,128], index: 6, kind: input, shape index: {}]
  %s7 = inlined_call_operand.hbm [shape: f32[512,128], index: 7, kind: output, shape index: {}]
  %s8 = sld [smem:[#allocation0]]
  $region38: #{elan_forward.11} parent=0
    _
  %s10 = ssub.s32 1, %s8
  %s11 = scalar_select 0, %s10, %s8
  $region1: #{elan_forward.11} parent=0
    #allocation2 [shape = 'u8[262144]{0}', space=vmem, size = 0x40000, scoped, tag = 'output window, operand 0, single buffered']
    #allocation3 [shape = 's32[1]{0}', space=sflag, size = 0x4, scoped, tag = 'scoped memory for elan_forward.11']
    %12 = vsyncpa [#allocation3], 0
    // Predicated region
    $region2: #{elan_forward.11} parent=1 // pred_check
      _
    $region3: #{elan_forward.11} parent=1 // pred_check_branch
      %14 = sbr.rel (0) target = $region5
    $region4: #{elan_forward.11} parent=1 // pred_region
      _
    $region5: #{elan_forward.11} parent=1 // pred_fallthru
      _
    // Predicated region
    $region6: #{elan_forward.11} parent=1 // pred_check
      _
    $region7: #{elan_forward.11} parent=1 // pred_check_branch
      %16 = sbr.rel (0) target = $region9
    $region8: #{elan_forward.11} parent=1 // pred_region
      _
    $region9: #{elan_forward.11} parent=1 // pred_fallthru
      _
    // Predicated region
    $region10: #{elan_forward.11} parent=1 // pred_check
      _
    $region11: #{elan_forward.11} parent=1 // pred_check_branch
      %18 = sbr.rel (0) target = $region13
    $region12: #{elan_forward.11} parent=1 // pred_region
      _
    $region13: #{elan_forward.11} parent=1 // pred_fallthru
      _
    // Predicated region
    $region14: #{elan_forward.11} parent=1 // pred_check
      _
    $region15: #{elan_forward.11} parent=1 // pred_check_branch
      %20 = sbr.rel (0) target = $region17
    $region16: #{elan_forward.11} parent=1 // pred_region
      _
    $region17: #{elan_forward.11} parent=1 // pred_fallthru
      _
    // Predicated region
    $region18: #{elan_forward.11} parent=1 // pred_check
      _
    $region19: #{elan_forward.11} parent=1 // pred_check_branch
      %22 = sbr.rel (0) target = $region21
    $region20: #{elan_forward.11} parent=1 // pred_region
      _
    $region21: #{elan_forward.11} parent=1 // pred_fallthru
      _
    // Predicated region
    $region22: #{elan_forward.11} parent=1 // pred_check
      _
    $region23: #{elan_forward.11} parent=1 // pred_check_branch
      %24 = sbr.rel (0) target = $region25
    $region24: #{elan_forward.11} parent=1 // pred_region
      _
    $region25: #{elan_forward.11} parent=1 // pred_fallthru
      _
    // Predicated region
    $region26: #{elan_forward.11} parent=1 // pred_check
      _
    $region27: #{elan_forward.11} parent=1 // pred_check_branch
      %26 = sbr.rel (0) target = $region29
    $region28: #{elan_forward.11} parent=1 // pred_region
      _
    $region29: #{elan_forward.11} parent=1 // pred_fallthru
      _
    %v28 = vld [vmem:[%s0] sm:$0xf]
    %v29 = vld [vmem:[%s0 + $0x4] sm:$0xf]
    %v30 = vld [vmem:[%s0 + $0x8] sm:$0xf]
    %v31 = vld [vmem:[%s0 + $0xc] sm:$0xf]
    %v32 = vld [vmem:[%s0 + $0x10] sm:$0xf]
    %v33 = vld [vmem:[%s0 + $0x14] sm:$0xf]
    %v34 = vld [vmem:[%s0 + $0x18] sm:$0xf]
    %v35 = vld [vmem:[%s0 + $0x1c] sm:$0xf]
    %v36 = vld [vmem:[%s0 + $0x20] sm:$0xf]
    %v37 = vld [vmem:[%s0 + $0x24] sm:$0xf]
    %v38 = vld [vmem:[%s0 + $0x28] sm:$0xf]
    %v39 = vld [vmem:[%s0 + $0x2c] sm:$0xf]
    %v40 = vld [vmem:[%s0 + $0x30] sm:$0xf]
    %v41 = vld [vmem:[%s0 + $0x34] sm:$0xf]
    %v42 = vld [vmem:[%s0 + $0x38] sm:$0xf]
    %v43 = vld [vmem:[%s0 + $0x3c] sm:$0xf]
    %v44 = vld [vmem:[%s0 + $0x40] sm:$0xf]
    %v45 = vld [vmem:[%s0 + $0x44] sm:$0xf]
    %v46 = vld [vmem:[%s0 + $0x48] sm:$0xf]
    %v47 = vld [vmem:[%s0 + $0x4c] sm:$0xf]
    %v48 = vld [vmem:[%s0 + $0x50] sm:$0xf]
    %v49 = vld [vmem:[%s0 + $0x54] sm:$0xf]
    %v50 = vld [vmem:[%s0 + $0x58] sm:$0xf]
    %v51 = vld [vmem:[%s0 + $0x5c] sm:$0xf]
    %v52 = vld [vmem:[%s0 + $0x60] sm:$0xf]
    %v53 = vld [vmem:[%s0 + $0x64] sm:$0xf]
    %v54 = vld [vmem:[%s0 + $0x68] sm:$0xf]
    %v55 = vld [vmem:[%s0 + $0x6c] sm:$0xf]
    %v56 = vld [vmem:[%s0 + $0x70] sm:$0xf]
    %v57 = vld [vmem:[%s0 + $0x74] sm:$0xf]
    %v58 = vld [vmem:[%s0 + $0x78] sm:$0xf]
    %v59 = vld [vmem:[%s0 + $0x7c] sm:$0xf]
    %v60 = vld [vmem:[%s0 + $0x80] sm:$0xf]
    %v61 = vld [vmem:[%s0 + $0x84] sm:$0xf]
    %v62 = vld [vmem:[%s0 + $0x88] sm:$0xf]
    %v63 = vld [vmem:[%s0 + $0x8c] sm:$0xf]
    %v64 = vld [vmem:[%s0 + $0x90] sm:$0xf]
    %v65 = vld [vmem:[%s0 + $0x94] sm:$0xf]
    %v66 = vld [vmem:[%s0 + $0x98] sm:$0xf]
    %v67 = vld [vmem:[%s0 + $0x9c] sm:$0xf]
    %v68 = vld [vmem:[%s0 + $0xa0] sm:$0xf]
    %v69 = vld [vmem:[%s0 + $0xa4] sm:$0xf]
    %v70 = vld [vmem:[%s0 + $0xa8] sm:$0xf]
    %v71 = vld [vmem:[%s0 + $0xac] sm:$0xf]
    %v72 = vld [vmem:[%s0 + $0xb0] sm:$0xf]
    %v73 = vld [vmem:[%s0 + $0xb4] sm:$0xf]
    %v74 = vld [vmem:[%s0 + $0xb8] sm:$0xf]
    %v75 = vld [vmem:[%s0 + $0xbc] sm:$0xf]
    %v76 = vld [vmem:[%s0 + $0xc0] sm:$0xf]
    %v77 = vld [vmem:[%s0 + $0xc4] sm:$0xf]
    %v78 = vld [vmem:[%s0 + $0xc8] sm:$0xf]
    %v79 = vld [vmem:[%s0 + $0xcc] sm:$0xf]
    %v80 = vld [vmem:[%s0 + $0xd0] sm:$0xf]
    %v81 = vld [vmem:[%s0 + $0xd4] sm:$0xf]
    %v82 = vld [vmem:[%s0 + $0xd8] sm:$0xf]
    %v83 = vld [vmem:[%s0 + $0xdc] sm:$0xf]
    %v84 = vld [vmem:[%s0 + $0xe0] sm:$0xf]
    %v85 = vld [vmem:[%s0 + $0xe4] sm:$0xf]
    %v86 = vld [vmem:[%s0 + $0xe8] sm:$0xf]
    %v87 = vld [vmem:[%s0 + $0xec] sm:$0xf]
    %v88 = vld [vmem:[%s0 + $0xf0] sm:$0xf]
    %v89 = vld [vmem:[%s0 + $0xf4] sm:$0xf]
    %v90 = vld [vmem:[%s0 + $0xf8] sm:$0xf]
    %v91 = vld [vmem:[%s0 + $0xfc] sm:$0xf]
    %v92 = vld [vmem:[%s3] sm:$0xf]
    %v93 = vld [vmem:[%s3 + $0x4] sm:$0xf]
    %v94 = vld [vmem:[%s1] sm:$0xf]
    %v95 = vld [vmem:[%s1 + $0x4] sm:$0xf]
    %v96 = vld [vmem:[%s1 + $0x8] sm:$0xf]
    %v97 = vld [vmem:[%s1 + $0xc] sm:$0xf]
    %v98 = vld [vmem:[%s1 + $0x10] sm:$0xf]
    %v99 = vld [vmem:[%s1 + $0x14] sm:$0xf]
    %v100 = vld [vmem:[%s1 + $0x18] sm:$0xf]
    %v101 = vld [vmem:[%s1 + $0x1c] sm:$0xf]
    %v102 = vld [vmem:[%s1 + $0x20] sm:$0xf]
    %v103 = vld [vmem:[%s1 + $0x24] sm:$0xf]
    %v104 = vld [vmem:[%s1 + $0x28] sm:$0xf]
    %v105 = vld [vmem:[%s1 + $0x2c] sm:$0xf]
    %v106 = vld [vmem:[%s1 + $0x30] sm:$0xf]
    %v107 = vld [vmem:[%s1 + $0x34] sm:$0xf]
    %v108 = vld [vmem:[%s1 + $0x38] sm:$0xf]
    %v109 = vld [vmem:[%s1 + $0x3c] sm:$0xf]
    %v110 = vld [vmem:[%s1 + $0x40] sm:$0xf]
    %v111 = vld [vmem:[%s1 + $0x44] sm:$0xf]
    %v112 = vld [vmem:[%s1 + $0x48] sm:$0xf]
    %v113 = vld [vmem:[%s1 + $0x4c] sm:$0xf]
    %v114 = vld [vmem:[%s1 + $0x50] sm:$0xf]
    %v115 = vld [vmem:[%s1 + $0x54] sm:$0xf]
    %v116 = vld [vmem:[%s1 + $0x58] sm:$0xf]
    %v117 = vld [vmem:[%s1 + $0x5c] sm:$0xf]
    %v118 = vld [vmem:[%s1 + $0x60] sm:$0xf]
    %v119 = vld [vmem:[%s1 + $0x64] sm:$0xf]
    %v120 = vld [vmem:[%s1 + $0x68] sm:$0xf]
    %v121 = vld [vmem:[%s1 + $0x6c] sm:$0xf]
    %v122 = vld [vmem:[%s1 + $0x70] sm:$0xf]
    %v123 = vld [vmem:[%s1 + $0x74] sm:$0xf]
    %v124 = vld [vmem:[%s1 + $0x78] sm:$0xf]
    %v125 = vld [vmem:[%s1 + $0x7c] sm:$0xf]
    %v126 = vld [vmem:[%s1 + $0x80] sm:$0xf]
    %v127 = vld [vmem:[%s1 + $0x84] sm:$0xf]
    %v128 = vld [vmem:[%s1 + $0x88] sm:$0xf]
    %v129 = vld [vmem:[%s1 + $0x8c] sm:$0xf]
    %v130 = vld [vmem:[%s1 + $0x90] sm:$0xf]
    %v131 = vld [vmem:[%s1 + $0x94] sm:$0xf]
    %v132 = vld [vmem:[%s1 + $0x98] sm:$0xf]
    %v133 = vld [vmem:[%s1 + $0x9c] sm:$0xf]
    %v134 = vld [vmem:[%s1 + $0xa0] sm:$0xf]
    %v135 = vld [vmem:[%s1 + $0xa4] sm:$0xf]
    %v136 = vld [vmem:[%s1 + $0xa8] sm:$0xf]
    %v137 = vld [vmem:[%s1 + $0xac] sm:$0xf]
    %v138 = vld [vmem:[%s1 + $0xb0] sm:$0xf]
    %v139 = vld [vmem:[%s1 + $0xb4] sm:$0xf]
    %v140 = vld [vmem:[%s1 + $0xb8] sm:$0xf]
    %v141 = vld [vmem:[%s1 + $0xbc] sm:$0xf]
    %v142 = vld [vmem:[%s1 + $0xc0] sm:$0xf]
    %v143 = vld [vmem:[%s1 + $0xc4] sm:$0xf]
    %v144 = vld [vmem:[%s1 + $0xc8] sm:$0xf]
    %v145 = vld [vmem:[%s1 + $0xcc] sm:$0xf]
    %v146 = vld [vmem:[%s1 + $0xd0] sm:$0xf]
    %v147 = vld [vmem:[%s1 + $0xd4] sm:$0xf]
    %v148 = vld [vmem:[%s1 + $0xd8] sm:$0xf]
    %v149 = vld [vmem:[%s1 + $0xdc] sm:$0xf]
    %v150 = vld [vmem:[%s1 + $0xe0] sm:$0xf]
    %v151 = vld [vmem:[%s1 + $0xe4] sm:$0xf]
    %v152 = vld [vmem:[%s1 + $0xe8] sm:$0xf]
    %v153 = vld [vmem:[%s1 + $0xec] sm:$0xf]
    %v154 = vld [vmem:[%s1 + $0xf0] sm:$0xf]
    %v155 = vld [vmem:[%s1 + $0xf4] sm:$0xf]
    %v156 = vld [vmem:[%s1 + $0xf8] sm:$0xf]
    %v157 = vld [vmem:[%s1 + $0xfc] sm:$0xf]
    %v158 = vld [vmem:[%s4] sm:$0xf]
    %v223 = vunpack.c.l.b16 %v94
    %v224 = vunpack.c.l.b16 %v95
    %v225 = vunpack.c.l.b16 %v96
    %v226 = vunpack.c.l.b16 %v97
    %v227 = vunpack.c.l.b16 %v98
    %v228 = vunpack.c.l.b16 %v99
    %v229 = vunpack.c.l.b16 %v100
    %v230 = vunpack.c.l.b16 %v101
    %v231 = vunpack.c.l.b16 %v102
    %v232 = vunpack.c.l.b16 %v103
    %v233 = vunpack.c.l.b16 %v104
    %v234 = vunpack.c.l.b16 %v105
    %v235 = vunpack.c.l.b16 %v106
    %v236 = vunpack.c.l.b16 %v107
    %v237 = vunpack.c.l.b16 %v108
    %v238 = vunpack.c.l.b16 %v109
    %v239 = vunpack.c.l.b16 %v110
    %v240 = vunpack.c.l.b16 %v111
    %v241 = vunpack.c.l.b16 %v112
    %v242 = vunpack.c.l.b16 %v113
    %v243 = vunpack.c.l.b16 %v114
    %v244 = vunpack.c.l.b16 %v115
    %v245 = vunpack.c.l.b16 %v116
    %v246 = vunpack.c.l.b16 %v117
    %v247 = vunpack.c.l.b16 %v118
    %v248 = vunpack.c.l.b16 %v119
    %v249 = vunpack.c.l.b16 %v120
    %v250 = vunpack.c.l.b16 %v121
    %v251 = vunpack.c.l.b16 %v122
    %v252 = vunpack.c.l.b16 %v123
    %v253 = vunpack.c.l.b16 %v124
    %v254 = vunpack.c.l.b16 %v125
    %v255 = vunpack.c.l.b16 %v126
    %v256 = vunpack.c.l.b16 %v127
    %v257 = vunpack.c.l.b16 %v128
    %v258 = vunpack.c.l.b16 %v129
    %v259 = vunpack.c.l.b16 %v130
    %v260 = vunpack.c.l.b16 %v131
    %v261 = vunpack.c.l.b16 %v132
    %v262 = vunpack.c.l.b16 %v133
    %v263 = vunpack.c.l.b16 %v134
    %v264 = vunpack.c.l.b16 %v135
    %v265 = vunpack.c.l.b16 %v136
    %v266 = vunpack.c.l.b16 %v137
    %v267 = vunpack.c.l.b16 %v138
    %v268 = vunpack.c.l.b16 %v139
    %v269 = vunpack.c.l.b16 %v140
    %v270 = vunpack.c.l.b16 %v141
    %v271 = vunpack.c.l.b16 %v142
    %v272 = vunpack.c.l.b16 %v143
    %v273 = vunpack.c.l.b16 %v144
    %v274 = vunpack.c.l.b16 %v145
    %v275 = vunpack.c.l.b16 %v146
    %v276 = vunpack.c.l.b16 %v147
    %v277 = vunpack.c.l.b16 %v148
    %v278 = vunpack.c.l.b16 %v149
    %v279 = vunpack.c.l.b16 %v150
    %v280 = vunpack.c.l.b16 %v151
    %v281 = vunpack.c.l.b16 %v152
    %v282 = vunpack.c.l.b16 %v153
    %v283 = vunpack.c.l.b16 %v154
    %v284 = vunpack.c.l.b16 %v155
    %v285 = vunpack.c.l.b16 %v156
    %v286 = vunpack.c.l.b16 %v157
    %v287 = vpack.c.b16 %v224, %v223
    %v288 = vpack.c.b16 %v226, %v225
    %v289 = vpack.c.b16 %v228, %v227
    %v290 = vpack.c.b16 %v230, %v229
    %v291 = vpack.c.b16 %v232, %v231
    %v292 = vpack.c.b16 %v234, %v233
    %v293 = vpack.c.b16 %v236, %v235
    %v294 = vpack.c.b16 %v238, %v237
    %v295 = vpack.c.b16 %v240, %v239
    %v296 = vpack.c.b16 %v242, %v241
    %v297 = vpack.c.b16 %v244, %v243
    %v298 = vpack.c.b16 %v246, %v245
    %v299 = vpack.c.b16 %v248, %v247
    %v300 = vpack.c.b16 %v250, %v249
    %v301 = vpack.c.b16 %v252, %v251
    %v302 = vpack.c.b16 %v254, %v253
    %v303 = vpack.c.b16 %v256, %v255
    %v304 = vpack.c.b16 %v258, %v257
    %v305 = vpack.c.b16 %v260, %v259
    %v306 = vpack.c.b16 %v262, %v261
    %v307 = vpack.c.b16 %v264, %v263
    %v308 = vpack.c.b16 %v266, %v265
    %v309 = vpack.c.b16 %v268, %v267
    %v310 = vpack.c.b16 %v270, %v269
    %v311 = vpack.c.b16 %v272, %v271
    %v312 = vpack.c.b16 %v274, %v273
    %v313 = vpack.c.b16 %v276, %v275
    %v314 = vpack.c.b16 %v278, %v277
    %v315 = vpack.c.b16 %v280, %v279
    %v316 = vpack.c.b16 %v282, %v281
    %v317 = vpack.c.b16 %v284, %v283
    %v318 = vpack.c.b16 %v286, %v285
    %vm319 = vcmask 64512
    %v321 = vsel %vm319, %v287, 0
    %v324 = vsel %vm319, %v288, 0
    %v327 = vsel %vm319, %v289, 0
    %v330 = vsel %vm319, %v290, 0
    %v333 = vsel %vm319, %v291, 0
    %v336 = vsel %vm319, %v292, 0
    %v339 = vsel %vm319, %v293, 0
    %v342 = vsel %vm319, %v294, 0
    %v345 = vsel %vm319, %v295, 0
    %v348 = vsel %vm319, %v296, 0
    %v351 = vsel %vm319, %v297, 0
    %v354 = vsel %vm319, %v298, 0
    %v357 = vsel %vm319, %v299, 0
    %v360 = vsel %vm319, %v300, 0
    %v363 = vsel %vm319, %v301, 0
    %v366 = vsel %vm319, %v302, 0
    %v369 = vsel %vm319, %v303, 0
    %v372 = vsel %vm319, %v304, 0
    %v375 = vsel %vm319, %v305, 0
    %v378 = vsel %vm319, %v306, 0
    %v381 = vsel %vm319, %v307, 0
    %v384 = vsel %vm319, %v308, 0
    %v387 = vsel %vm319, %v309, 0
    %v390 = vsel %vm319, %v310, 0
    %v393 = vsel %vm319, %v311, 0
    %v396 = vsel %vm319, %v312, 0
    %v399 = vsel %vm319, %v313, 0
    %v402 = vsel %vm319, %v314, 0
    %v405 = vsel %vm319, %v315, 0
    %v408 = vsel %vm319, %v316, 0
    %v411 = vsel %vm319, %v317, 0
    %v414 = vsel %vm319, %v318, 0
    %vm416 = vcmask 1043456
    %v418 = vsel %vm416, %v158, 0
    %420 = vmatprep.subr.bf16.mxu0 0
    %421 = vmatpush1.bf16.msra.mxu0 0
    %422 = vmatprep.subr.bf16.mxu0 0
    %423 = vmatpush1.bf16.msra.mxu0 0
    %424 = vmatprep.subr.bf16.mxu0 0
    %425 = vmatpush1.bf16.msra.mxu0 0
    %426 = vmatprep.subr.bf16.mxu0 0
    %427 = vmatpush1.bf16.msra.mxu0 0
    %428 = vmatprep.subr.bf16.mxu0 0
    %429 = vmatpush1.bf16.msra.mxu0 0
    %430 = vmatprep.subr.bf16.mxu0 0
    %431 = vmatpush1.bf16.msra.mxu0 0
    %432 = vmatprep.subr.bf16.mxu0 0
    %433 = vmatpush1.bf16.msra.mxu0 0
    %434 = vmatprep.subr.bf16.mxu0 0
    %435 = vmatpush1.bf16.msra.mxu0 %v418
    %436 = vmatprep.subr.bf16.mxu0 0
    %437 = vmatpush2.bf16.msra.mxu0 0
    %438 = vmatprep.subr.bf16.mxu0 0
    %439 = vmatpush2.bf16.msra.mxu0 0
    %440 = vmatprep.subr.bf16.mxu0 0
    %441 = vmatpush2.bf16.msra.mxu0 0
    %442 = vmatprep.subr.bf16.mxu0 0
    %443 = vmatpush2.bf16.msra.mxu0 0
    %444 = vmatprep.subr.bf16.mxu0 0
    %445 = vmatpush2.bf16.msra.mxu0 0
    %446 = vmatprep.subr.bf16.mxu0 0
    %447 = vmatpush2.bf16.msra.mxu0 0
    %448 = vmatprep.subr.bf16.mxu0 0
    %449 = vmatpush2.bf16.msra.mxu0 0
    %450 = vmatprep.subr.bf16.mxu0 0
    %451 = vmatpush2.bf16.msra.mxu0 0
    %452 = vmatprep.mubr.bf16.mxu0 0
    %453 = vmatmul.mubr.bf16.gmra.mxu0 %v321
    %v454 = vpop.f32.mrf.mxu0
    %v455 = vadd.f32 0.0, %v454
    %v456 = vpop.f32.mrf.mxu0
    %v457 = vpop.f32.mrf.mxu0
    %v458 = vadd.f32 0.0, %v457
    %v459 = vpop.f32.mrf.mxu0
    %460 = vmatprep.mubr.bf16.mxu0 0
    %461 = vmatmul.mubr.bf16.gmra.mxu0 %v324
    %v462 = vpop.f32.mrf.mxu0
    %v463 = vadd.f32 0.0, %v462
    %v464 = vpop.f32.mrf.mxu0
    %v465 = vpop.f32.mrf.mxu0
    %v466 = vadd.f32 0.0, %v465
    %v467 = vpop.f32.mrf.mxu0
    %468 = vmatprep.mubr.bf16.mxu0 0
    %469 = vmatmul.mubr.bf16.gmra.mxu0 %v327
    %v470 = vpop.f32.mrf.mxu0
    %v471 = vadd.f32 0.0, %v470
    %v472 = vpop.f32.mrf.mxu0
    %v473 = vpop.f32.mrf.mxu0
    %v474 = vadd.f32 0.0, %v473
    %v475 = vpop.f32.mrf.mxu0
    %476 = vmatprep.mubr.bf16.mxu0 0
    %477 = vmatmul.mubr.bf16.gmra.mxu0 %v330
    %v478 = vpop.f32.mrf.mxu0
    %v479 = vadd.f32 0.0, %v478
    %v480 = vpop.f32.mrf.mxu0
    %v481 = vpop.f32.mrf.mxu0
    %v482 = vadd.f32 0.0, %v481
    %v483 = vpop.f32.mrf.mxu0
    %484 = vmatprep.mubr.bf16.mxu0 0
    %485 = vmatmul.mubr.bf16.gmra.mxu0 %v333
    %v486 = vpop.f32.mrf.mxu0
    %v487 = vadd.f32 0.0, %v486
    %v488 = vpop.f32.mrf.mxu0
    %v489 = vpop.f32.mrf.mxu0
    %v490 = vadd.f32 0.0, %v489
    %v491 = vpop.f32.mrf.mxu0
    %492 = vmatprep.mubr.bf16.mxu0 0
    %493 = vmatmul.mubr.bf16.gmra.mxu0 %v336
    %v494 = vpop.f32.mrf.mxu0
    %v495 = vadd.f32 0.0, %v494
    %v496 = vpop.f32.mrf.mxu0
    %v497 = vpop.f32.mrf.mxu0
    %v498 = vadd.f32 0.0, %v497
    %v499 = vpop.f32.mrf.mxu0
    %500 = vmatprep.mubr.bf16.mxu0 0
    %501 = vmatmul.mubr.bf16.gmra.mxu0 %v339
    %v502 = vpop.f32.mrf.mxu0
    %v503 = vadd.f32 0.0, %v502
    %v504 = vpop.f32.mrf.mxu0
    %v505 = vpop.f32.mrf.mxu0
    %v506 = vadd.f32 0.0, %v505
    %v507 = vpop.f32.mrf.mxu0
    %508 = vmatprep.mubr.bf16.mxu0 0
    %509 = vmatmul.mubr.bf16.gmra.mxu0 %v342
    %v510 = vpop.f32.mrf.mxu0
    %v511 = vadd.f32 0.0, %v510
    %v512 = vpop.f32.mrf.mxu0
    %v513 = vpop.f32.mrf.mxu0
    %v514 = vadd.f32 0.0, %v513
    %v515 = vpop.f32.mrf.mxu0
    %516 = vmatprep.mubr.bf16.mxu0 0
    %517 = vmatmul.mubr.bf16.gmra.mxu0 %v345
    %v518 = vpop.f32.mrf.mxu0
    %v519 = vadd.f32 0.0, %v518
    %v520 = vpop.f32.mrf.mxu0
    %v521 = vpop.f32.mrf.mxu0
    %v522 = vadd.f32 0.0, %v521
    %v523 = vpop.f32.mrf.mxu0
    %524 = vmatprep.mubr.bf16.mxu0 0
    %525 = vmatmul.mubr.bf16.gmra.mxu0 %v348
    %v526 = vpop.f32.mrf.mxu0
    %v527 = vadd.f32 0.0, %v526
    %v528 = vpop.f32.mrf.mxu0
    %v529 = vpop.f32.mrf.mxu0
    %v530 = vadd.f32 0.0, %v529
    %v531 = vpop.f32.mrf.mxu0
    %532 = vmatprep.mubr.bf16.mxu0 0
    %533 = vmatmul.mubr.bf16.gmra.mxu0 %v351
    %v534 = vpop.f32.mrf.mxu0
    %v535 = vadd.f32 0.0, %v534
    %v536 = vpop.f32.mrf.mxu0
    %v537 = vpop.f32.mrf.mxu0
    %v538 = vadd.f32 0.0, %v537
    %v539 = vpop.f32.mrf.mxu0
    %540 = vmatprep.mubr.bf16.mxu0 0
    %541 = vmatmul.mubr.bf16.gmra.mxu0 %v354
    %v542 = vpop.f32.mrf.mxu0
    %v543 = vadd.f32 0.0, %v542
    %v544 = vpop.f32.mrf.mxu0
    %v545 = vpop.f32.mrf.mxu0
    %v546 = vadd.f32 0.0, %v545
    %v547 = vpop.f32.mrf.mxu0
    %548 = vmatprep.mubr.bf16.mxu0 0
    %549 = vmatmul.mubr.bf16.gmra.mxu0 %v357
    %v550 = vpop.f32.mrf.mxu0
    %v551 = vadd.f32 0.0, %v550
    %v552 = vpop.f32.mrf.mxu0
    %v553 = vpop.f32.mrf.mxu0
    %v554 = vadd.f32 0.0, %v553
    %v555 = vpop.f32.mrf.mxu0
    %556 = vmatprep.mubr.bf16.mxu0 0
    %557 = vmatmul.mubr.bf16.gmra.mxu0 %v360
    %v558 = vpop.f32.mrf.mxu0
    %v559 = vadd.f32 0.0, %v558
    %v560 = vpop.f32.mrf.mxu0
    %v561 = vpop.f32.mrf.mxu0
    %v562 = vadd.f32 0.0, %v561
    %v563 = vpop.f32.mrf.mxu0
    %564 = vmatprep.mubr.bf16.mxu0 0
    %565 = vmatmul.mubr.bf16.gmra.mxu0 %v363
    %v566 = vpop.f32.mrf.mxu0
    %v567 = vadd.f32 0.0, %v566
    %v568 = vpop.f32.mrf.mxu0
    %v569 = vpop.f32.mrf.mxu0
    %v570 = vadd.f32 0.0, %v569
    %v571 = vpop.f32.mrf.mxu0
    %572 = vmatprep.mubr.bf16.mxu0 0
    %573 = vmatmul.mubr.bf16.gmra.mxu0 %v366
    %v574 = vpop.f32.mrf.mxu0
    %v575 = vadd.f32 0.0, %v574
    %v576 = vpop.f32.mrf.mxu0
    %v577 = vpop.f32.mrf.mxu0
    %v578 = vadd.f32 0.0, %v577
    %v579 = vpop.f32.mrf.mxu0
    %580 = vmatprep.mubr.bf16.mxu0 0
    %581 = vmatmul.mubr.bf16.gmra.mxu0 %v369
    %v582 = vpop.f32.mrf.mxu0
    %v583 = vadd.f32 0.0, %v582
    %v584 = vpop.f32.mrf.mxu0
    %v585 = vpop.f32.mrf.mxu0
    %v586 = vadd.f32 0.0, %v585
    %v587 = vpop.f32.mrf.mxu0
    %588 = vmatprep.mubr.bf16.mxu0 0
    %589 = vmatmul.mubr.bf16.gmra.mxu0 %v372
    %v590 = vpop.f32.mrf.mxu0
    %v591 = vadd.f32 0.0, %v590
    %v592 = vpop.f32.mrf.mxu0
    %v593 = vpop.f32.mrf.mxu0
    %v594 = vadd.f32 0.0, %v593
    %v595 = vpop.f32.mrf.mxu0
    %596 = vmatprep.mubr.bf16.mxu0 0
    %597 = vmatmul.mubr.bf16.gmra.mxu0 %v375
    %v598 = vpop.f32.mrf.mxu0
    %v599 = vadd.f32 0.0, %v598
    %v600 = vpop.f32.mrf.mxu0
    %v601 = vpop.f32.mrf.mxu0
    %v602 = vadd.f32 0.0, %v601
    %v603 = vpop.f32.mrf.mxu0
    %604 = vmatprep.mubr.bf16.mxu0 0
    %605 = vmatmul.mubr.bf16.gmra.mxu0 %v378
    %v606 = vpop.f32.mrf.mxu0
    %v607 = vadd.f32 0.0, %v606
    %v608 = vpop.f32.mrf.mxu0
    %v609 = vpop.f32.mrf.mxu0
    %v610 = vadd.f32 0.0, %v609
    %v611 = vpop.f32.mrf.mxu0
    %612 = vmatprep.mubr.bf16.mxu0 0
    %613 = vmatmul.mubr.bf16.gmra.mxu0 %v381
    %v614 = vpop.f32.mrf.mxu0
    %v615 = vadd.f32 0.0, %v614
    %v616 = vpop.f32.mrf.mxu0
    %v617 = vpop.f32.mrf.mxu0
    %v618 = vadd.f32 0.0, %v617
    %v619 = vpop.f32.mrf.mxu0
    %620 = vmatprep.mubr.bf16.mxu0 0
    %621 = vmatmul.mubr.bf16.gmra.mxu0 %v384
    %v622 = vpop.f32.mrf.mxu0
    %v623 = vadd.f32 0.0, %v622
    %v624 = vpop.f32.mrf.mxu0
    %v625 = vpop.f32.mrf.mxu0
    %v626 = vadd.f32 0.0, %v625
    %v627 = vpop.f32.mrf.mxu0
    %628 = vmatprep.mubr.bf16.mxu0 0
    %629 = vmatmul.mubr.bf16.gmra.mxu0 %v387
    %v630 = vpop.f32.mrf.mxu0
    %v631 = vadd.f32 0.0, %v630
    %v632 = vpop.f32.mrf.mxu0
    %v633 = vpop.f32.mrf.mxu0
    %v634 = vadd.f32 0.0, %v633
    %v635 = vpop.f32.mrf.mxu0
    %636 = vmatprep.mubr.bf16.mxu0 0
    %637 = vmatmul.mubr.bf16.gmra.mxu0 %v390
    %v638 = vpop.f32.mrf.mxu0
    %v639 = vadd.f32 0.0, %v638
    %v640 = vpop.f32.mrf.mxu0
    %v641 = vpop.f32.mrf.mxu0
    %v642 = vadd.f32 0.0, %v641
    %v643 = vpop.f32.mrf.mxu0
    %644 = vmatprep.mubr.bf16.mxu0 0
    %645 = vmatmul.mubr.bf16.gmra.mxu0 %v393
    %v646 = vpop.f32.mrf.mxu0
    %v647 = vadd.f32 0.0, %v646
    %v648 = vpop.f32.mrf.mxu0
    %v649 = vpop.f32.mrf.mxu0
    %v650 = vadd.f32 0.0, %v649
    %v651 = vpop.f32.mrf.mxu0
    %652 = vmatprep.mubr.bf16.mxu0 0
    %653 = vmatmul.mubr.bf16.gmra.mxu0 %v396
    %v654 = vpop.f32.mrf.mxu0
    %v655 = vadd.f32 0.0, %v654
    %v656 = vpop.f32.mrf.mxu0
    %v657 = vpop.f32.mrf.mxu0
    %v658 = vadd.f32 0.0, %v657
    %v659 = vpop.f32.mrf.mxu0
    %660 = vmatprep.mubr.bf16.mxu0 0
    %661 = vmatmul.mubr.bf16.gmra.mxu0 %v399
    %v662 = vpop.f32.mrf.mxu0
    %v663 = vadd.f32 0.0, %v662
    %v664 = vpop.f32.mrf.mxu0
    %v665 = vpop.f32.mrf.mxu0
    %v666 = vadd.f32 0.0, %v665
    %v667 = vpop.f32.mrf.mxu0
    %668 = vmatprep.mubr.bf16.mxu0 0
    %669 = vmatmul.mubr.bf16.gmra.mxu0 %v402
    %v670 = vpop.f32.mrf.mxu0
    %v671 = vadd.f32 0.0, %v670
    %v672 = vpop.f32.mrf.mxu0
    %v673 = vpop.f32.mrf.mxu0
    %v674 = vadd.f32 0.0, %v673
    %v675 = vpop.f32.mrf.mxu0
    %676 = vmatprep.mubr.bf16.mxu0 0
    %677 = vmatmul.mubr.bf16.gmra.mxu0 %v405
    %v678 = vpop.f32.mrf.mxu0
    %v679 = vadd.f32 0.0, %v678
    %v680 = vpop.f32.mrf.mxu0
    %v681 = vpop.f32.mrf.mxu0
    %v682 = vadd.f32 0.0, %v681
    %v683 = vpop.f32.mrf.mxu0
    %684 = vmatprep.mubr.bf16.mxu0 0
    %685 = vmatmul.mubr.bf16.gmra.mxu0 %v408
    %v686 = vpop.f32.mrf.mxu0
    %v687 = vadd.f32 0.0, %v686
    %v688 = vpop.f32.mrf.mxu0
    %v689 = vpop.f32.mrf.mxu0
    %v690 = vadd.f32 0.0, %v689
    %v691 = vpop.f32.mrf.mxu0
    %692 = vmatprep.mubr.bf16.mxu0 0
    %693 = vmatmul.mubr.bf16.gmra.mxu0 %v411
    %v694 = vpop.f32.mrf.mxu0
    %v695 = vadd.f32 0.0, %v694
    %v696 = vpop.f32.mrf.mxu0
    %v697 = vpop.f32.mrf.mxu0
    %v698 = vadd.f32 0.0, %v697
    %v699 = vpop.f32.mrf.mxu0
    %700 = vmatprep.mubr.bf16.mxu0 0
    %701 = vmatmul.mubr.bf16.gmra.mxu0 %v414
    %v702 = vpop.f32.mrf.mxu0
    %v703 = vadd.f32 0.0, %v702
    %v704 = vpop.f32.mrf.mxu0
    %v705 = vpop.f32.mrf.mxu0
    %v706 = vadd.f32 0.0, %v705
    %v707 = vpop.f32.mrf.mxu0
    %708 = vdwg.mxu0
    %v773 = vunpack.c.l.b16 %v28
    %v774 = vunpack.c.l.b16 %v29
    %v775 = vunpack.c.l.b16 %v30
    %v776 = vunpack.c.l.b16 %v31
    %v777 = vunpack.c.l.b16 %v32
    %v778 = vunpack.c.l.b16 %v33
    %v779 = vunpack.c.l.b16 %v34
    %v780 = vunpack.c.l.b16 %v35
    %v781 = vunpack.c.l.b16 %v36
    %v782 = vunpack.c.l.b16 %v37
    %v783 = vunpack.c.l.b16 %v38
    %v784 = vunpack.c.l.b16 %v39
    %v785 = vunpack.c.l.b16 %v40
    %v786 = vunpack.c.l.b16 %v41
    %v787 = vunpack.c.l.b16 %v42
    %v788 = vunpack.c.l.b16 %v43
    %v789 = vunpack.c.l.b16 %v44
    %v790 = vunpack.c.l.b16 %v45
    %v791 = vunpack.c.l.b16 %v46
    %v792 = vunpack.c.l.b16 %v47
    %v793 = vunpack.c.l.b16 %v48
    %v794 = vunpack.c.l.b16 %v49
    %v795 = vunpack.c.l.b16 %v50
    %v796 = vunpack.c.l.b16 %v51
    %v797 = vunpack.c.l.b16 %v52
    %v798 = vunpack.c.l.b16 %v53
    %v799 = vunpack.c.l.b16 %v54
    %v800 = vunpack.c.l.b16 %v55
    %v801 = vunpack.c.l.b16 %v56
    %v802 = vunpack.c.l.b16 %v57
    %v803 = vunpack.c.l.b16 %v58
    %v804 = vunpack.c.l.b16 %v59
    %v805 = vunpack.c.l.b16 %v60
    %v806 = vunpack.c.l.b16 %v61
    %v807 = vunpack.c.l.b16 %v62
    %v808 = vunpack.c.l.b16 %v63
    %v809 = vunpack.c.l.b16 %v64
    %v810 = vunpack.c.l.b16 %v65
    %v811 = vunpack.c.l.b16 %v66
    %v812 = vunpack.c.l.b16 %v67
    %v813 = vunpack.c.l.b16 %v68
    %v814 = vunpack.c.l.b16 %v69
    %v815 = vunpack.c.l.b16 %v70
    %v816 = vunpack.c.l.b16 %v71
    %v817 = vunpack.c.l.b16 %v72
    %v818 = vunpack.c.l.b16 %v73
    %v819 = vunpack.c.l.b16 %v74
    %v820 = vunpack.c.l.b16 %v75
    %v821 = vunpack.c.l.b16 %v76
    %v822 = vunpack.c.l.b16 %v77
    %v823 = vunpack.c.l.b16 %v78
    %v824 = vunpack.c.l.b16 %v79
    %v825 = vunpack.c.l.b16 %v80
    %v826 = vunpack.c.l.b16 %v81
    %v827 = vunpack.c.l.b16 %v82
    %v828 = vunpack.c.l.b16 %v83
    %v829 = vunpack.c.l.b16 %v84
    %v830 = vunpack.c.l.b16 %v85
    %v831 = vunpack.c.l.b16 %v86
    %v832 = vunpack.c.l.b16 %v87
    %v833 = vunpack.c.l.b16 %v88
    %v834 = vunpack.c.l.b16 %v89
    %v835 = vunpack.c.l.b16 %v90
    %v836 = vunpack.c.l.b16 %v91
    %v837 = vpack.c.b16 %v774, %v773
    %v838 = vpack.c.b16 %v776, %v775
    %v839 = vpack.c.b16 %v778, %v777
    %v840 = vpack.c.b16 %v780, %v779
    %v841 = vpack.c.b16 %v782, %v781
    %v842 = vpack.c.b16 %v784, %v783
    %v843 = vpack.c.b16 %v786, %v785
    %v844 = vpack.c.b16 %v788, %v787
    %v845 = vpack.c.b16 %v790, %v789
    %v846 = vpack.c.b16 %v792, %v791
    %v847 = vpack.c.b16 %v794, %v793
    %v848 = vpack.c.b16 %v796, %v795
    %v849 = vpack.c.b16 %v798, %v797
    %v850 = vpack.c.b16 %v800, %v799
    %v851 = vpack.c.b16 %v802, %v801
    %v852 = vpack.c.b16 %v804, %v803
    %v853 = vpack.c.b16 %v806, %v805
    %v854 = vpack.c.b16 %v808, %v807
    %v855 = vpack.c.b16 %v810, %v809
    %v856 = vpack.c.b16 %v812, %v811
    %v857 = vpack.c.b16 %v814, %v813
    %v858 = vpack.c.b16 %v816, %v815
    %v859 = vpack.c.b16 %v818, %v817
    %v860 = vpack.c.b16 %v820, %v819
    %v861 = vpack.c.b16 %v822, %v821
    %v862 = vpack.c.b16 %v824, %v823
    %v863 = vpack.c.b16 %v826, %v825
    %v864 = vpack.c.b16 %v828, %v827
    %v865 = vpack.c.b16 %v830, %v829
    %v866 = vpack.c.b16 %v832, %v831
    %v867 = vpack.c.b16 %v834, %v833
    %v868 = vpack.c.b16 %v836, %v835
    %v871 = vunpack.c.l.b16 %v92
    %v872 = vunpack.c.l.b16 %v93
    %v873 = vpack.c.b16 %v872, %v871
    %vm875 = vcmask 130048
    %v877 = vsel %vm875, %v837, 0
    %v880 = vsel %vm875, %v838, 0
    %v883 = vsel %vm875, %v839, 0
    %v886 = vsel %vm875, %v840, 0
    %v889 = vsel %vm875, %v841, 0
    %v892 = vsel %vm875, %v842, 0
    %v895 = vsel %vm875, %v843, 0
    %v898 = vsel %vm875, %v844, 0
    %v901 = vsel %vm875, %v845, 0
    %v904 = vsel %vm875, %v846, 0
    %v907 = vsel %vm875, %v847, 0
    %v910 = vsel %vm875, %v848, 0
    %v913 = vsel %vm875, %v849, 0
    %v916 = vsel %vm875, %v850, 0
    %v919 = vsel %vm875, %v851, 0
    %v922 = vsel %vm875, %v852, 0
    %v925 = vsel %vm875, %v853, 0
    %v928 = vsel %vm875, %v854, 0
    %v931 = vsel %vm875, %v855, 0
    %v934 = vsel %vm875, %v856, 0
    %v937 = vsel %vm875, %v857, 0
    %v940 = vsel %vm875, %v858, 0
    %v943 = vsel %vm875, %v859, 0
    %v946 = vsel %vm875, %v860, 0
    %v949 = vsel %vm875, %v861, 0
    %v952 = vsel %vm875, %v862, 0
    %v955 = vsel %vm875, %v863, 0
    %v958 = vsel %vm875, %v864, 0
    %v961 = vsel %vm875, %v865, 0
    %v964 = vsel %vm875, %v866, 0
    %v967 = vsel %vm875, %v867, 0
    %v970 = vsel %vm875, %v868, 0
    %972 = vmatprep.subr.bf16.mxu0 0
    %973 = vmatpush1.bf16.msra.mxu0 0
    %974 = vmatprep.subr.bf16.mxu0 0
    %975 = vmatpush1.bf16.msra.mxu0 0
    %976 = vmatprep.subr.bf16.mxu0 0
    %977 = vmatpush1.bf16.msra.mxu0 0
    %978 = vmatprep.subr.bf16.mxu0 0
    %979 = vmatpush1.bf16.msra.mxu0 0
    %980 = vmatprep.subr.bf16.mxu0 0
    %981 = vmatpush1.bf16.msra.mxu0 0
    %982 = vmatprep.subr.bf16.mxu0 0
    %983 = vmatpush1.bf16.msra.mxu0 0
    %984 = vmatprep.subr.bf16.mxu0 0
    %985 = vmatpush1.bf16.msra.mxu0 0
    %986 = vmatprep.subr.bf16.mxu0 0
    %987 = vmatpush1.bf16.msra.mxu0 %v873
    %988 = vmatprep.subr.bf16.mxu0 0
    %989 = vmatpush2.bf16.msra.mxu0 0
    %990 = vmatprep.subr.bf16.mxu0 0
    %991 = vmatpush2.bf16.msra.mxu0 0
    %992 = vmatprep.subr.bf16.mxu0 0
    %993 = vmatpush2.bf16.msra.mxu0 0
    %994 = vmatprep.subr.bf16.mxu0 0
    %995 = vmatpush2.bf16.msra.mxu0 0
    %996 = vmatprep.subr.bf16.mxu0 0
    %997 = vmatpush2.bf16.msra.mxu0 0
    %998 = vmatprep.subr.bf16.mxu0 0
    %999 = vmatpush2.bf16.msra.mxu0 0
    %1000 = vmatprep.subr.bf16.mxu0 0
    %1001 = vmatpush2.bf16.msra.mxu0 0
    %1002 = vmatprep.subr.bf16.mxu0 0
    %1003 = vmatpush2.bf16.msra.mxu0 0
    %1004 = vmatprep.mubr.bf16.mxu0 0
    %1005 = vmatmul.mubr.bf16.gmra.mxu0 %v877
    %v1006 = vpop.f32.mrf.mxu0
    %v1007 = vadd.f32 %v455, %v1006
    %v1008 = vpop.f32.mrf.mxu0
    %v1009 = vpop.f32.mrf.mxu0
    %v1010 = vadd.f32 %v458, %v1009
    %v1011 = vpop.f32.mrf.mxu0
    %1012 = vmatprep.mubr.bf16.mxu0 0
    %1013 = vmatmul.mubr.bf16.gmra.mxu0 %v880
    %v1014 = vpop.f32.mrf.mxu0
    %v1015 = vadd.f32 %v463, %v1014
    %v1016 = vpop.f32.mrf.mxu0
    %v1017 = vpop.f32.mrf.mxu0
    %v1018 = vadd.f32 %v466, %v1017
    %v1019 = vpop.f32.mrf.mxu0
    %1020 = vmatprep.mubr.bf16.mxu0 0
    %1021 = vmatmul.mubr.bf16.gmra.mxu0 %v883
    %v1022 = vpop.f32.mrf.mxu0
    %v1023 = vadd.f32 %v471, %v1022
    %v1024 = vpop.f32.mrf.mxu0
    %v1025 = vpop.f32.mrf.mxu0
    %v1026 = vadd.f32 %v474, %v1025
    %v1027 = vpop.f32.mrf.mxu0
    %1028 = vmatprep.mubr.bf16.mxu0 0
    %1029 = vmatmul.mubr.bf16.gmra.mxu0 %v886
    %v1030 = vpop.f32.mrf.mxu0
    %v1031 = vadd.f32 %v479, %v1030
    %v1032 = vpop.f32.mrf.mxu0
    %v1033 = vpop.f32.mrf.mxu0
    %v1034 = vadd.f32 %v482, %v1033
    %v1035 = vpop.f32.mrf.mxu0
    %1036 = vmatprep.mubr.bf16.mxu0 0
    %1037 = vmatmul.mubr.bf16.gmra.mxu0 %v889
    %v1038 = vpop.f32.mrf.mxu0
    %v1039 = vadd.f32 %v487, %v1038
    %v1040 = vpop.f32.mrf.mxu0
    %v1041 = vpop.f32.mrf.mxu0
    %v1042 = vadd.f32 %v490, %v1041
    %v1043 = vpop.f32.mrf.mxu0
    %1044 = vmatprep.mubr.bf16.mxu0 0
    %1045 = vmatmul.mubr.bf16.gmra.mxu0 %v892
    %v1046 = vpop.f32.mrf.mxu0
    %v1047 = vadd.f32 %v495, %v1046
    %v1048 = vpop.f32.mrf.mxu0
    %v1049 = vpop.f32.mrf.mxu0
    %v1050 = vadd.f32 %v498, %v1049
    %v1051 = vpop.f32.mrf.mxu0
    %1052 = vmatprep.mubr.bf16.mxu0 0
    %1053 = vmatmul.mubr.bf16.gmra.mxu0 %v895
    %v1054 = vpop.f32.mrf.mxu0
    %v1055 = vadd.f32 %v503, %v1054
    %v1056 = vpop.f32.mrf.mxu0
    %v1057 = vpop.f32.mrf.mxu0
    %v1058 = vadd.f32 %v506, %v1057
    %v1059 = vpop.f32.mrf.mxu0
    %1060 = vmatprep.mubr.bf16.mxu0 0
    %1061 = vmatmul.mubr.bf16.gmra.mxu0 %v898
    %v1062 = vpop.f32.mrf.mxu0
    %v1063 = vadd.f32 %v511, %v1062
    %v1064 = vpop.f32.mrf.mxu0
    %v1065 = vpop.f32.mrf.mxu0
    %v1066 = vadd.f32 %v514, %v1065
    %v1067 = vpop.f32.mrf.mxu0
    %1068 = vmatprep.mubr.bf16.mxu0 0
    %1069 = vmatmul.mubr.bf16.gmra.mxu0 %v901
    %v1070 = vpop.f32.mrf.mxu0
    %v1071 = vadd.f32 %v519, %v1070
    %v1072 = vpop.f32.mrf.mxu0
    %v1073 = vpop.f32.mrf.mxu0
    %v1074 = vadd.f32 %v522, %v1073
    %v1075 = vpop.f32.mrf.mxu0
    %1076 = vmatprep.mubr.bf16.mxu0 0
    %1077 = vmatmul.mubr.bf16.gmra.mxu0 %v904
    %v1078 = vpop.f32.mrf.mxu0
    %v1079 = vadd.f32 %v527, %v1078
    %v1080 = vpop.f32.mrf.mxu0
    %v1081 = vpop.f32.mrf.mxu0
    %v1082 = vadd.f32 %v530, %v1081
    %v1083 = vpop.f32.mrf.mxu0
    %1084 = vmatprep.mubr.bf16.mxu0 0
    %1085 = vmatmul.mubr.bf16.gmra.mxu0 %v907
    %v1086 = vpop.f32.mrf.mxu0
    %v1087 = vadd.f32 %v535, %v1086
    %v1088 = vpop.f32.mrf.mxu0
    %v1089 = vpop.f32.mrf.mxu0
    %v1090 = vadd.f32 %v538, %v1089
    %v1091 = vpop.f32.mrf.mxu0
    %1092 = vmatprep.mubr.bf16.mxu0 0
    %1093 = vmatmul.mubr.bf16.gmra.mxu0 %v910
    %v1094 = vpop.f32.mrf.mxu0
    %v1095 = vadd.f32 %v543, %v1094
    %v1096 = vpop.f32.mrf.mxu0
    %v1097 = vpop.f32.mrf.mxu0
    %v1098 = vadd.f32 %v546, %v1097
    %v1099 = vpop.f32.mrf.mxu0
    %1100 = vmatprep.mubr.bf16.mxu0 0
    %1101 = vmatmul.mubr.bf16.gmra.mxu0 %v913
    %v1102 = vpop.f32.mrf.mxu0
    %v1103 = vadd.f32 %v551, %v1102
    %v1104 = vpop.f32.mrf.mxu0
    %v1105 = vpop.f32.mrf.mxu0
    %v1106 = vadd.f32 %v554, %v1105
    %v1107 = vpop.f32.mrf.mxu0
    %1108 = vmatprep.mubr.bf16.mxu0 0
    %1109 = vmatmul.mubr.bf16.gmra.mxu0 %v916
    %v1110 = vpop.f32.mrf.mxu0
    %v1111 = vadd.f32 %v559, %v1110
    %v1112 = vpop.f32.mrf.mxu0
    %v1113 = vpop.f32.mrf.mxu0
    %v1114 = vadd.f32 %v562, %v1113
    %v1115 = vpop.f32.mrf.mxu0
    %1116 = vmatprep.mubr.bf16.mxu0 0
    %1117 = vmatmul.mubr.bf16.gmra.mxu0 %v919
    %v1118 = vpop.f32.mrf.mxu0
    %v1119 = vadd.f32 %v567, %v1118
    %v1120 = vpop.f32.mrf.mxu0
    %v1121 = vpop.f32.mrf.mxu0
    %v1122 = vadd.f32 %v570, %v1121
    %v1123 = vpop.f32.mrf.mxu0
    %1124 = vmatprep.mubr.bf16.mxu0 0
    %1125 = vmatmul.mubr.bf16.gmra.mxu0 %v922
    %v1126 = vpop.f32.mrf.mxu0
    %v1127 = vadd.f32 %v575, %v1126
    %v1128 = vpop.f32.mrf.mxu0
    %v1129 = vpop.f32.mrf.mxu0
    %v1130 = vadd.f32 %v578, %v1129
    %v1131 = vpop.f32.mrf.mxu0
    %1132 = vmatprep.mubr.bf16.mxu0 0
    %1133 = vmatmul.mubr.bf16.gmra.mxu0 %v925
    %v1134 = vpop.f32.mrf.mxu0
    %v1135 = vadd.f32 %v583, %v1134
    %v1136 = vpop.f32.mrf.mxu0
    %v1137 = vpop.f32.mrf.mxu0
    %v1138 = vadd.f32 %v586, %v1137
    %v1139 = vpop.f32.mrf.mxu0
    %1140 = vmatprep.mubr.bf16.mxu0 0
    %1141 = vmatmul.mubr.bf16.gmra.mxu0 %v928
    %v1142 = vpop.f32.mrf.mxu0
    %v1143 = vadd.f32 %v591, %v1142
    %v1144 = vpop.f32.mrf.mxu0
    %v1145 = vpop.f32.mrf.mxu0
    %v1146 = vadd.f32 %v594, %v1145
    %v1147 = vpop.f32.mrf.mxu0
    %1148 = vmatprep.mubr.bf16.mxu0 0
    %1149 = vmatmul.mubr.bf16.gmra.mxu0 %v931
    %v1150 = vpop.f32.mrf.mxu0
    %v1151 = vadd.f32 %v599, %v1150
    %v1152 = vpop.f32.mrf.mxu0
    %v1153 = vpop.f32.mrf.mxu0
    %v1154 = vadd.f32 %v602, %v1153
    %v1155 = vpop.f32.mrf.mxu0
    %1156 = vmatprep.mubr.bf16.mxu0 0
    %1157 = vmatmul.mubr.bf16.gmra.mxu0 %v934
    %v1158 = vpop.f32.mrf.mxu0
    %v1159 = vadd.f32 %v607, %v1158
    %v1160 = vpop.f32.mrf.mxu0
    %v1161 = vpop.f32.mrf.mxu0
    %v1162 = vadd.f32 %v610, %v1161
    %v1163 = vpop.f32.mrf.mxu0
    %1164 = vmatprep.mubr.bf16.mxu0 0
    %1165 = vmatmul.mubr.bf16.gmra.mxu0 %v937
    %v1166 = vpop.f32.mrf.mxu0
    %v1167 = vadd.f32 %v615, %v1166
    %v1168 = vpop.f32.mrf.mxu0
    %v1169 = vpop.f32.mrf.mxu0
    %v1170 = vadd.f32 %v618, %v1169
    %v1171 = vpop.f32.mrf.mxu0
    %1172 = vmatprep.mubr.bf16.mxu0 0
    %1173 = vmatmul.mubr.bf16.gmra.mxu0 %v940
    %v1174 = vpop.f32.mrf.mxu0
    %v1175 = vadd.f32 %v623, %v1174
    %v1176 = vpop.f32.mrf.mxu0
    %v1177 = vpop.f32.mrf.mxu0
    %v1178 = vadd.f32 %v626, %v1177
    %v1179 = vpop.f32.mrf.mxu0
    %1180 = vmatprep.mubr.bf16.mxu0 0
    %1181 = vmatmul.mubr.bf16.gmra.mxu0 %v943
    %v1182 = vpop.f32.mrf.mxu0
    %v1183 = vadd.f32 %v631, %v1182
    %v1184 = vpop.f32.mrf.mxu0
    %v1185 = vpop.f32.mrf.mxu0
    %v1186 = vadd.f32 %v634, %v1185
    %v1187 = vpop.f32.mrf.mxu0
    %1188 = vmatprep.mubr.bf16.mxu0 0
    %1189 = vmatmul.mubr.bf16.gmra.mxu0 %v946
    %v1190 = vpop.f32.mrf.mxu0
    %v1191 = vadd.f32 %v639, %v1190
    %v1192 = vpop.f32.mrf.mxu0
    %v1193 = vpop.f32.mrf.mxu0
    %v1194 = vadd.f32 %v642, %v1193
    %v1195 = vpop.f32.mrf.mxu0
    %1196 = vmatprep.mubr.bf16.mxu0 0
    %1197 = vmatmul.mubr.bf16.gmra.mxu0 %v949
    %v1198 = vpop.f32.mrf.mxu0
    %v1199 = vadd.f32 %v647, %v1198
    %v1200 = vpop.f32.mrf.mxu0
    %v1201 = vpop.f32.mrf.mxu0
    %v1202 = vadd.f32 %v650, %v1201
    %v1203 = vpop.f32.mrf.mxu0
    %1204 = vmatprep.mubr.bf16.mxu0 0
    %1205 = vmatmul.mubr.bf16.gmra.mxu0 %v952
    %v1206 = vpop.f32.mrf.mxu0
    %v1207 = vadd.f32 %v655, %v1206
    %v1208 = vpop.f32.mrf.mxu0
    %v1209 = vpop.f32.mrf.mxu0
    %v1210 = vadd.f32 %v658, %v1209
    %v1211 = vpop.f32.mrf.mxu0
    %1212 = vmatprep.mubr.bf16.mxu0 0
    %1213 = vmatmul.mubr.bf16.gmra.mxu0 %v955
    %v1214 = vpop.f32.mrf.mxu0
    %v1215 = vadd.f32 %v663, %v1214
    %v1216 = vpop.f32.mrf.mxu0
    %v1217 = vpop.f32.mrf.mxu0
    %v1218 = vadd.f32 %v666, %v1217
    %v1219 = vpop.f32.mrf.mxu0
    %1220 = vmatprep.mubr.bf16.mxu0 0
    %1221 = vmatmul.mubr.bf16.gmra.mxu0 %v958
    %v1222 = vpop.f32.mrf.mxu0
    %v1223 = vadd.f32 %v671, %v1222
    %v1224 = vpop.f32.mrf.mxu0
    %v1225 = vpop.f32.mrf.mxu0
    %v1226 = vadd.f32 %v674, %v1225
    %v1227 = vpop.f32.mrf.mxu0
    %1228 = vmatprep.mubr.bf16.mxu0 0
    %1229 = vmatmul.mubr.bf16.gmra.mxu0 %v961
    %v1230 = vpop.f32.mrf.mxu0
    %v1231 = vadd.f32 %v679, %v1230
    %v1232 = vpop.f32.mrf.mxu0
    %v1233 = vpop.f32.mrf.mxu0
    %v1234 = vadd.f32 %v682, %v1233
    %v1235 = vpop.f32.mrf.mxu0
    %1236 = vmatprep.mubr.bf16.mxu0 0
    %1237 = vmatmul.mubr.bf16.gmra.mxu0 %v964
    %v1238 = vpop.f32.mrf.mxu0
    %v1239 = vadd.f32 %v687, %v1238
    %v1240 = vpop.f32.mrf.mxu0
    %v1241 = vpop.f32.mrf.mxu0
    %v1242 = vadd.f32 %v690, %v1241
    %v1243 = vpop.f32.mrf.mxu0
    %1244 = vmatprep.mubr.bf16.mxu0 0
    %1245 = vmatmul.mubr.bf16.gmra.mxu0 %v967
    %v1246 = vpop.f32.mrf.mxu0
    %v1247 = vadd.f32 %v695, %v1246
    %v1248 = vpop.f32.mrf.mxu0
    %v1249 = vpop.f32.mrf.mxu0
    %v1250 = vadd.f32 %v698, %v1249
    %v1251 = vpop.f32.mrf.mxu0
    %1252 = vmatprep.mubr.bf16.mxu0 0
    %1253 = vmatmul.mubr.bf16.gmra.mxu0 %v970
    %v1254 = vpop.f32.mrf.mxu0
    %v1255 = vadd.f32 %v703, %v1254
    %v1256 = vpop.f32.mrf.mxu0
    %v1257 = vpop.f32.mrf.mxu0
    %v1258 = vadd.f32 %v706, %v1257
    %v1259 = vpop.f32.mrf.mxu0
    %1260 = vdwg.mxu0
    %v1261 = vld [vmem:[%s2] sm:$0xf]
    %v1262 = vld [vmem:[%s2 + $0x4] sm:$0xf]
    %v1263 = vld [vmem:[%s2 + $0x8] sm:$0xf]
    %v1264 = vld [vmem:[%s2 + $0xc] sm:$0xf]
    %v1265 = vld [vmem:[%s2 + $0x10] sm:$0xf]
    %v1266 = vld [vmem:[%s2 + $0x14] sm:$0xf]
    %v1267 = vld [vmem:[%s2 + $0x18] sm:$0xf]
    %v1268 = vld [vmem:[%s2 + $0x1c] sm:$0xf]
    %v1269 = vld [vmem:[%s2 + $0x20] sm:$0xf]
    %v1270 = vld [vmem:[%s2 + $0x24] sm:$0xf]
    %v1271 = vld [vmem:[%s2 + $0x28] sm:$0xf]
    %v1272 = vld [vmem:[%s2 + $0x2c] sm:$0xf]
    %v1273 = vld [vmem:[%s2 + $0x30] sm:$0xf]
    %v1274 = vld [vmem:[%s2 + $0x34] sm:$0xf]
    %v1275 = vld [vmem:[%s2 + $0x38] sm:$0xf]
    %v1276 = vld [vmem:[%s2 + $0x3c] sm:$0xf]
    %v1277 = vld [vmem:[%s2 + $0x40] sm:$0xf]
    %v1278 = vld [vmem:[%s2 + $0x44] sm:$0xf]
    %v1279 = vld [vmem:[%s2 + $0x48] sm:$0xf]
    %v1280 = vld [vmem:[%s2 + $0x4c] sm:$0xf]
    %v1281 = vld [vmem:[%s2 + $0x50] sm:$0xf]
    %v1282 = vld [vmem:[%s2 + $0x54] sm:$0xf]
    %v1283 = vld [vmem:[%s2 + $0x58] sm:$0xf]
    %v1284 = vld [vmem:[%s2 + $0x5c] sm:$0xf]
    %v1285 = vld [vmem:[%s2 + $0x60] sm:$0xf]
    %v1286 = vld [vmem:[%s2 + $0x64] sm:$0xf]
    %v1287 = vld [vmem:[%s2 + $0x68] sm:$0xf]
    %v1288 = vld [vmem:[%s2 + $0x6c] sm:$0xf]
    %v1289 = vld [vmem:[%s2 + $0x70] sm:$0xf]
    %v1290 = vld [vmem:[%s2 + $0x74] sm:$0xf]
    %v1291 = vld [vmem:[%s2 + $0x78] sm:$0xf]
    %v1292 = vld [vmem:[%s2 + $0x7c] sm:$0xf]
    %v1293 = vld [vmem:[%s2 + $0x80] sm:$0xf]
    %v1294 = vld [vmem:[%s2 + $0x84] sm:$0xf]
    %v1295 = vld [vmem:[%s2 + $0x88] sm:$0xf]
    %v1296 = vld [vmem:[%s2 + $0x8c] sm:$0xf]
    %v1297 = vld [vmem:[%s2 + $0x90] sm:$0xf]
    %v1298 = vld [vmem:[%s2 + $0x94] sm:$0xf]
    %v1299 = vld [vmem:[%s2 + $0x98] sm:$0xf]
    %v1300 = vld [vmem:[%s2 + $0x9c] sm:$0xf]
    %v1301 = vld [vmem:[%s2 + $0xa0] sm:$0xf]
    %v1302 = vld [vmem:[%s2 + $0xa4] sm:$0xf]
    %v1303 = vld [vmem:[%s2 + $0xa8] sm:$0xf]
    %v1304 = vld [vmem:[%s2 + $0xac] sm:$0xf]
    %v1305 = vld [vmem:[%s2 + $0xb0] sm:$0xf]
    %v1306 = vld [vmem:[%s2 + $0xb4] sm:$0xf]
    %v1307 = vld [vmem:[%s2 + $0xb8] sm:$0xf]
    %v1308 = vld [vmem:[%s2 + $0xbc] sm:$0xf]
    %v1309 = vld [vmem:[%s2 + $0xc0] sm:$0xf]
    %v1310 = vld [vmem:[%s2 + $0xc4] sm:$0xf]
    %v1311 = vld [vmem:[%s2 + $0xc8] sm:$0xf]
    %v1312 = vld [vmem:[%s2 + $0xcc] sm:$0xf]
    %v1313 = vld [vmem:[%s2 + $0xd0] sm:$0xf]
    %v1314 = vld [vmem:[%s2 + $0xd4] sm:$0xf]
    %v1315 = vld [vmem:[%s2 + $0xd8] sm:$0xf]
    %v1316 = vld [vmem:[%s2 + $0xdc] sm:$0xf]
    %v1317 = vld [vmem:[%s2 + $0xe0] sm:$0xf]
    %v1318 = vld [vmem:[%s2 + $0xe4] sm:$0xf]
    %v1319 = vld [vmem:[%s2 + $0xe8] sm:$0xf]
    %v1320 = vld [vmem:[%s2 + $0xec] sm:$0xf]
    %v1321 = vld [vmem:[%s2 + $0xf0] sm:$0xf]
    %v1322 = vld [vmem:[%s2 + $0xf4] sm:$0xf]
    %v1323 = vld [vmem:[%s2 + $0xf8] sm:$0xf]
    %v1324 = vld [vmem:[%s2 + $0xfc] sm:$0xf]
    %v1325 = vld [vmem:[%s5] sm:$0xf]
    %v1390 = vunpack.c.l.b16 %v1261
    %v1391 = vunpack.c.l.b16 %v1262
    %v1392 = vunpack.c.l.b16 %v1263
    %v1393 = vunpack.c.l.b16 %v1264
    %v1394 = vunpack.c.l.b16 %v1265
    %v1395 = vunpack.c.l.b16 %v1266
    %v1396 = vunpack.c.l.b16 %v1267
    %v1397 = vunpack.c.l.b16 %v1268
    %v1398 = vunpack.c.l.b16 %v1269
    %v1399 = vunpack.c.l.b16 %v1270
    %v1400 = vunpack.c.l.b16 %v1271
    %v1401 = vunpack.c.l.b16 %v1272
    %v1402 = vunpack.c.l.b16 %v1273
    %v1403 = vunpack.c.l.b16 %v1274
    %v1404 = vunpack.c.l.b16 %v1275
    %v1405 = vunpack.c.l.b16 %v1276
    %v1406 = vunpack.c.l.b16 %v1277
    %v1407 = vunpack.c.l.b16 %v1278
    %v1408 = vunpack.c.l.b16 %v1279
    %v1409 = vunpack.c.l.b16 %v1280
    %v1410 = vunpack.c.l.b16 %v1281
    %v1411 = vunpack.c.l.b16 %v1282
    %v1412 = vunpack.c.l.b16 %v1283
    %v1413 = vunpack.c.l.b16 %v1284
    %v1414 = vunpack.c.l.b16 %v1285
    %v1415 = vunpack.c.l.b16 %v1286
    %v1416 = vunpack.c.l.b16 %v1287
    %v1417 = vunpack.c.l.b16 %v1288
    %v1418 = vunpack.c.l.b16 %v1289
    %v1419 = vunpack.c.l.b16 %v1290
    %v1420 = vunpack.c.l.b16 %v1291
    %v1421 = vunpack.c.l.b16 %v1292
    %v1422 = vunpack.c.l.b16 %v1293
    %v1423 = vunpack.c.l.b16 %v1294
    %v1424 = vunpack.c.l.b16 %v1295
    %v1425 = vunpack.c.l.b16 %v1296
    %v1426 = vunpack.c.l.b16 %v1297
    %v1427 = vunpack.c.l.b16 %v1298
    %v1428 = vunpack.c.l.b16 %v1299
    %v1429 = vunpack.c.l.b16 %v1300
    %v1430 = vunpack.c.l.b16 %v1301
    %v1431 = vunpack.c.l.b16 %v1302
    %v1432 = vunpack.c.l.b16 %v1303
    %v1433 = vunpack.c.l.b16 %v1304
    %v1434 = vunpack.c.l.b16 %v1305
    %v1435 = vunpack.c.l.b16 %v1306
    %v1436 = vunpack.c.l.b16 %v1307
    %v1437 = vunpack.c.l.b16 %v1308
    %v1438 = vunpack.c.l.b16 %v1309
    %v1439 = vunpack.c.l.b16 %v1310
    %v1440 = vunpack.c.l.b16 %v1311
    %v1441 = vunpack.c.l.b16 %v1312
    %v1442 = vunpack.c.l.b16 %v1313
    %v1443 = vunpack.c.l.b16 %v1314
    %v1444 = vunpack.c.l.b16 %v1315
    %v1445 = vunpack.c.l.b16 %v1316
    %v1446 = vunpack.c.l.b16 %v1317
    %v1447 = vunpack.c.l.b16 %v1318
    %v1448 = vunpack.c.l.b16 %v1319
    %v1449 = vunpack.c.l.b16 %v1320
    %v1450 = vunpack.c.l.b16 %v1321
    %v1451 = vunpack.c.l.b16 %v1322
    %v1452 = vunpack.c.l.b16 %v1323
    %v1453 = vunpack.c.l.b16 %v1324
    %v1454 = vpack.c.b16 %v1391, %v1390
    %v1455 = vpack.c.b16 %v1393, %v1392
    %v1456 = vpack.c.b16 %v1395, %v1394
    %v1457 = vpack.c.b16 %v1397, %v1396
    %v1458 = vpack.c.b16 %v1399, %v1398
    %v1459 = vpack.c.b16 %v1401, %v1400
    %v1460 = vpack.c.b16 %v1403, %v1402
    %v1461 = vpack.c.b16 %v1405, %v1404
    %v1462 = vpack.c.b16 %v1407, %v1406
    %v1463 = vpack.c.b16 %v1409, %v1408
    %v1464 = vpack.c.b16 %v1411, %v1410
    %v1465 = vpack.c.b16 %v1413, %v1412
    %v1466 = vpack.c.b16 %v1415, %v1414
    %v1467 = vpack.c.b16 %v1417, %v1416
    %v1468 = vpack.c.b16 %v1419, %v1418
    %v1469 = vpack.c.b16 %v1421, %v1420
    %v1470 = vpack.c.b16 %v1423, %v1422
    %v1471 = vpack.c.b16 %v1425, %v1424
    %v1472 = vpack.c.b16 %v1427, %v1426
    %v1473 = vpack.c.b16 %v1429, %v1428
    %v1474 = vpack.c.b16 %v1431, %v1430
    %v1475 = vpack.c.b16 %v1433, %v1432
    %v1476 = vpack.c.b16 %v1435, %v1434
    %v1477 = vpack.c.b16 %v1437, %v1436
    %v1478 = vpack.c.b16 %v1439, %v1438
    %v1479 = vpack.c.b16 %v1441, %v1440
    %v1480 = vpack.c.b16 %v1443, %v1442
    %v1481 = vpack.c.b16 %v1445, %v1444
    %v1482 = vpack.c.b16 %v1447, %v1446
    %v1483 = vpack.c.b16 %v1449, %v1448
    %v1484 = vpack.c.b16 %v1451, %v1450
    %v1485 = vpack.c.b16 %v1453, %v1452
    %v1487 = vsel %vm319, %v1454, 0
    %v1490 = vsel %vm319, %v1455, 0
    %v1493 = vsel %vm319, %v1456, 0
    %v1496 = vsel %vm319, %v1457, 0
    %v1499 = vsel %vm319, %v1458, 0
    %v1502 = vsel %vm319, %v1459, 0
    %v1505 = vsel %vm319, %v1460, 0
    %v1508 = vsel %vm319, %v1461, 0
    %v1511 = vsel %vm319, %v1462, 0
    %v1514 = vsel %vm319, %v1463, 0
    %v1517 = vsel %vm319, %v1464, 0
    %v1520 = vsel %vm319, %v1465, 0
    %v1523 = vsel %vm319, %v1466, 0
    %v1526 = vsel %vm319, %v1467, 0
    %v1529 = vsel %vm319, %v1468, 0
    %v1532 = vsel %vm319, %v1469, 0
    %v1535 = vsel %vm319, %v1470, 0
    %v1538 = vsel %vm319, %v1471, 0
    %v1541 = vsel %vm319, %v1472, 0
    %v1544 = vsel %vm319, %v1473, 0
    %v1547 = vsel %vm319, %v1474, 0
    %v1550 = vsel %vm319, %v1475, 0
    %v1553 = vsel %vm319, %v1476, 0
    %v1556 = vsel %vm319, %v1477, 0
    %v1559 = vsel %vm319, %v1478, 0
    %v1562 = vsel %vm319, %v1479, 0
    %v1565 = vsel %vm319, %v1480, 0
    %v1568 = vsel %vm319, %v1481, 0
    %v1571 = vsel %vm319, %v1482, 0
    %v1574 = vsel %vm319, %v1483, 0
    %v1577 = vsel %vm319, %v1484, 0
    %v1580 = vsel %vm319, %v1485, 0
    %v1583 = vsel %vm416, %v1325, 0
    %1585 = vmatprep.subr.bf16.mxu0 0
    %1586 = vmatpush1.bf16.msra.mxu0 0
    %1587 = vmatprep.subr.bf16.mxu0 0
    %1588 = vmatpush1.bf16.msra.mxu0 0
    %1589 = vmatprep.subr.bf16.mxu0 0
    %1590 = vmatpush1.bf16.msra.mxu0 0
    %1591 = vmatprep.subr.bf16.mxu0 0
    %1592 = vmatpush1.bf16.msra.mxu0 0
    %1593 = vmatprep.subr.bf16.mxu0 0
    %1594 = vmatpush1.bf16.msra.mxu0 0
    %1595 = vmatprep.subr.bf16.mxu0 0
    %1596 = vmatpush1.bf16.msra.mxu0 0
    %1597 = vmatprep.subr.bf16.mxu0 0
    %1598 = vmatpush1.bf16.msra.mxu0 0
    %1599 = vmatprep.subr.bf16.mxu0 0
    %1600 = vmatpush1.bf16.msra.mxu0 %v1583
    %1601 = vmatprep.subr.bf16.mxu0 0
    %1602 = vmatpush2.bf16.msra.mxu0 0
    %1603 = vmatprep.subr.bf16.mxu0 0
    %1604 = vmatpush2.bf16.msra.mxu0 0
    %1605 = vmatprep.subr.bf16.mxu0 0
    %1606 = vmatpush2.bf16.msra.mxu0 0
    %1607 = vmatprep.subr.bf16.mxu0 0
    %1608 = vmatpush2.bf16.msra.mxu0 0
    %1609 = vmatprep.subr.bf16.mxu0 0
    %1610 = vmatpush2.bf16.msra.mxu0 0
    %1611 = vmatprep.subr.bf16.mxu0 0
    %1612 = vmatpush2.bf16.msra.mxu0 0
    %1613 = vmatprep.subr.bf16.mxu0 0
    %1614 = vmatpush2.bf16.msra.mxu0 0
    %1615 = vmatprep.subr.bf16.mxu0 0
    %1616 = vmatpush2.bf16.msra.mxu0 0
    %1617 = vmatprep.mubr.bf16.mxu0 0
    %1618 = vmatmul.mubr.bf16.gmra.mxu0 %v1487
    %v1619 = vpop.f32.mrf.mxu0
    %v1620 = vadd.f32 0.0, %v1619
    %v1621 = vpop.f32.mrf.mxu0
    %v1622 = vpop.f32.mrf.mxu0
    %v1623 = vadd.f32 0.0, %v1622
    %v1624 = vpop.f32.mrf.mxu0
    %1625 = vmatprep.mubr.bf16.mxu0 0
    %1626 = vmatmul.mubr.bf16.gmra.mxu0 %v1490
    %v1627 = vpop.f32.mrf.mxu0
    %v1628 = vadd.f32 0.0, %v1627
    %v1629 = vpop.f32.mrf.mxu0
    %v1630 = vpop.f32.mrf.mxu0
    %v1631 = vadd.f32 0.0, %v1630
    %v1632 = vpop.f32.mrf.mxu0
    %1633 = vmatprep.mubr.bf16.mxu0 0
    %1634 = vmatmul.mubr.bf16.gmra.mxu0 %v1493
    %v1635 = vpop.f32.mrf.mxu0
    %v1636 = vadd.f32 0.0, %v1635
    %v1637 = vpop.f32.mrf.mxu0
    %v1638 = vpop.f32.mrf.mxu0
    %v1639 = vadd.f32 0.0, %v1638
    %v1640 = vpop.f32.mrf.mxu0
    %1641 = vmatprep.mubr.bf16.mxu0 0
    %1642 = vmatmul.mubr.bf16.gmra.mxu0 %v1496
    %v1643 = vpop.f32.mrf.mxu0
    %v1644 = vadd.f32 0.0, %v1643
    %v1645 = vpop.f32.mrf.mxu0
    %v1646 = vpop.f32.mrf.mxu0
    %v1647 = vadd.f32 0.0, %v1646
    %v1648 = vpop.f32.mrf.mxu0
    %1649 = vmatprep.mubr.bf16.mxu0 0
    %1650 = vmatmul.mubr.bf16.gmra.mxu0 %v1499
    %v1651 = vpop.f32.mrf.mxu0
    %v1652 = vadd.f32 0.0, %v1651
    %v1653 = vpop.f32.mrf.mxu0
    %v1654 = vpop.f32.mrf.mxu0
    %v1655 = vadd.f32 0.0, %v1654
    %v1656 = vpop.f32.mrf.mxu0
    %1657 = vmatprep.mubr.bf16.mxu0 0
    %1658 = vmatmul.mubr.bf16.gmra.mxu0 %v1502
    %v1659 = vpop.f32.mrf.mxu0
    %v1660 = vadd.f32 0.0, %v1659
    %v1661 = vpop.f32.mrf.mxu0
    %v1662 = vpop.f32.mrf.mxu0
    %v1663 = vadd.f32 0.0, %v1662
    %v1664 = vpop.f32.mrf.mxu0
    %1665 = vmatprep.mubr.bf16.mxu0 0
    %1666 = vmatmul.mubr.bf16.gmra.mxu0 %v1505
    %v1667 = vpop.f32.mrf.mxu0
    %v1668 = vadd.f32 0.0, %v1667
    %v1669 = vpop.f32.mrf.mxu0
    %v1670 = vpop.f32.mrf.mxu0
    %v1671 = vadd.f32 0.0, %v1670
    %v1672 = vpop.f32.mrf.mxu0
    %1673 = vmatprep.mubr.bf16.mxu0 0
    %1674 = vmatmul.mubr.bf16.gmra.mxu0 %v1508
    %v1675 = vpop.f32.mrf.mxu0
    %v1676 = vadd.f32 0.0, %v1675
    %v1677 = vpop.f32.mrf.mxu0
    %v1678 = vpop.f32.mrf.mxu0
    %v1679 = vadd.f32 0.0, %v1678
    %v1680 = vpop.f32.mrf.mxu0
    %1681 = vmatprep.mubr.bf16.mxu0 0
    %1682 = vmatmul.mubr.bf16.gmra.mxu0 %v1511
    %v1683 = vpop.f32.mrf.mxu0
    %v1684 = vadd.f32 0.0, %v1683
    %v1685 = vpop.f32.mrf.mxu0
    %v1686 = vpop.f32.mrf.mxu0
    %v1687 = vadd.f32 0.0, %v1686
    %v1688 = vpop.f32.mrf.mxu0
    %1689 = vmatprep.mubr.bf16.mxu0 0
    %1690 = vmatmul.mubr.bf16.gmra.mxu0 %v1514
    %v1691 = vpop.f32.mrf.mxu0
    %v1692 = vadd.f32 0.0, %v1691
    %v1693 = vpop.f32.mrf.mxu0
    %v1694 = vpop.f32.mrf.mxu0
    %v1695 = vadd.f32 0.0, %v1694
    %v1696 = vpop.f32.mrf.mxu0
    %1697 = vmatprep.mubr.bf16.mxu0 0
    %1698 = vmatmul.mubr.bf16.gmra.mxu0 %v1517
    %v1699 = vpop.f32.mrf.mxu0
    %v1700 = vadd.f32 0.0, %v1699
    %v1701 = vpop.f32.mrf.mxu0
    %v1702 = vpop.f32.mrf.mxu0
    %v1703 = vadd.f32 0.0, %v1702
    %v1704 = vpop.f32.mrf.mxu0
    %1705 = vmatprep.mubr.bf16.mxu0 0
    %1706 = vmatmul.mubr.bf16.gmra.mxu0 %v1520
    %v1707 = vpop.f32.mrf.mxu0
    %v1708 = vadd.f32 0.0, %v1707
    %v1709 = vpop.f32.mrf.mxu0
    %v1710 = vpop.f32.mrf.mxu0
    %v1711 = vadd.f32 0.0, %v1710
    %v1712 = vpop.f32.mrf.mxu0
    %1713 = vmatprep.mubr.bf16.mxu0 0
    %1714 = vmatmul.mubr.bf16.gmra.mxu0 %v1523
    %v1715 = vpop.f32.mrf.mxu0
    %v1716 = vadd.f32 0.0, %v1715
    %v1717 = vpop.f32.mrf.mxu0
    %v1718 = vpop.f32.mrf.mxu0
    %v1719 = vadd.f32 0.0, %v1718
    %v1720 = vpop.f32.mrf.mxu0
    %1721 = vmatprep.mubr.bf16.mxu0 0
    %1722 = vmatmul.mubr.bf16.gmra.mxu0 %v1526
    %v1723 = vpop.f32.mrf.mxu0
    %v1724 = vadd.f32 0.0, %v1723
    %v1725 = vpop.f32.mrf.mxu0
    %v1726 = vpop.f32.mrf.mxu0
    %v1727 = vadd.f32 0.0, %v1726
    %v1728 = vpop.f32.mrf.mxu0
    %1729 = vmatprep.mubr.bf16.mxu0 0
    %1730 = vmatmul.mubr.bf16.gmra.mxu0 %v1529
    %v1731 = vpop.f32.mrf.mxu0
    %v1732 = vadd.f32 0.0, %v1731
    %v1733 = vpop.f32.mrf.mxu0
    %v1734 = vpop.f32.mrf.mxu0
    %v1735 = vadd.f32 0.0, %v1734
    %v1736 = vpop.f32.mrf.mxu0
    %1737 = vmatprep.mubr.bf16.mxu0 0
    %1738 = vmatmul.mubr.bf16.gmra.mxu0 %v1532
    %v1739 = vpop.f32.mrf.mxu0
    %v1740 = vadd.f32 0.0, %v1739
    %v1741 = vpop.f32.mrf.mxu0
    %v1742 = vpop.f32.mrf.mxu0
    %v1743 = vadd.f32 0.0, %v1742
    %v1744 = vpop.f32.mrf.mxu0
    %1745 = vmatprep.mubr.bf16.mxu0 0
    %1746 = vmatmul.mubr.bf16.gmra.mxu0 %v1535
    %v1747 = vpop.f32.mrf.mxu0
    %v1748 = vadd.f32 0.0, %v1747
    %v1749 = vpop.f32.mrf.mxu0
    %v1750 = vpop.f32.mrf.mxu0
    %v1751 = vadd.f32 0.0, %v1750
    %v1752 = vpop.f32.mrf.mxu0
    %1753 = vmatprep.mubr.bf16.mxu0 0
    %1754 = vmatmul.mubr.bf16.gmra.mxu0 %v1538
    %v1755 = vpop.f32.mrf.mxu0
    %v1756 = vadd.f32 0.0, %v1755
    %v1757 = vpop.f32.mrf.mxu0
    %v1758 = vpop.f32.mrf.mxu0
    %v1759 = vadd.f32 0.0, %v1758
    %v1760 = vpop.f32.mrf.mxu0
    %1761 = vmatprep.mubr.bf16.mxu0 0
    %1762 = vmatmul.mubr.bf16.gmra.mxu0 %v1541
    %v1763 = vpop.f32.mrf.mxu0
    %v1764 = vadd.f32 0.0, %v1763
    %v1765 = vpop.f32.mrf.mxu0
    %v1766 = vpop.f32.mrf.mxu0
    %v1767 = vadd.f32 0.0, %v1766
    %v1768 = vpop.f32.mrf.mxu0
    %1769 = vmatprep.mubr.bf16.mxu0 0
    %1770 = vmatmul.mubr.bf16.gmra.mxu0 %v1544
    %v1771 = vpop.f32.mrf.mxu0
    %v1772 = vadd.f32 0.0, %v1771
    %v1773 = vpop.f32.mrf.mxu0
    %v1774 = vpop.f32.mrf.mxu0
    %v1775 = vadd.f32 0.0, %v1774
    %v1776 = vpop.f32.mrf.mxu0
    %1777 = vmatprep.mubr.bf16.mxu0 0
    %1778 = vmatmul.mubr.bf16.gmra.mxu0 %v1547
    %v1779 = vpop.f32.mrf.mxu0
    %v1780 = vadd.f32 0.0, %v1779
    %v1781 = vpop.f32.mrf.mxu0
    %v1782 = vpop.f32.mrf.mxu0
    %v1783 = vadd.f32 0.0, %v1782
    %v1784 = vpop.f32.mrf.mxu0
    %1785 = vmatprep.mubr.bf16.mxu0 0
    %1786 = vmatmul.mubr.bf16.gmra.mxu0 %v1550
    %v1787 = vpop.f32.mrf.mxu0
    %v1788 = vadd.f32 0.0, %v1787
    %v1789 = vpop.f32.mrf.mxu0
    %v1790 = vpop.f32.mrf.mxu0
    %v1791 = vadd.f32 0.0, %v1790
    %v1792 = vpop.f32.mrf.mxu0
    %1793 = vmatprep.mubr.bf16.mxu0 0
    %1794 = vmatmul.mubr.bf16.gmra.mxu0 %v1553
    %v1795 = vpop.f32.mrf.mxu0
    %v1796 = vadd.f32 0.0, %v1795
    %v1797 = vpop.f32.mrf.mxu0
    %v1798 = vpop.f32.mrf.mxu0
    %v1799 = vadd.f32 0.0, %v1798
    %v1800 = vpop.f32.mrf.mxu0
    %1801 = vmatprep.mubr.bf16.mxu0 0
    %1802 = vmatmul.mubr.bf16.gmra.mxu0 %v1556
    %v1803 = vpop.f32.mrf.mxu0
    %v1804 = vadd.f32 0.0, %v1803
    %v1805 = vpop.f32.mrf.mxu0
    %v1806 = vpop.f32.mrf.mxu0
    %v1807 = vadd.f32 0.0, %v1806
    %v1808 = vpop.f32.mrf.mxu0
    %1809 = vmatprep.mubr.bf16.mxu0 0
    %1810 = vmatmul.mubr.bf16.gmra.mxu0 %v1559
    %v1811 = vpop.f32.mrf.mxu0
    %v1812 = vadd.f32 0.0, %v1811
    %v1813 = vpop.f32.mrf.mxu0
    %v1814 = vpop.f32.mrf.mxu0
    %v1815 = vadd.f32 0.0, %v1814
    %v1816 = vpop.f32.mrf.mxu0
    %1817 = vmatprep.mubr.bf16.mxu0 0
    %1818 = vmatmul.mubr.bf16.gmra.mxu0 %v1562
    %v1819 = vpop.f32.mrf.mxu0
    %v1820 = vadd.f32 0.0, %v1819
    %v1821 = vpop.f32.mrf.mxu0
    %v1822 = vpop.f32.mrf.mxu0
    %v1823 = vadd.f32 0.0, %v1822
    %v1824 = vpop.f32.mrf.mxu0
    %1825 = vmatprep.mubr.bf16.mxu0 0
    %1826 = vmatmul.mubr.bf16.gmra.mxu0 %v1565
    %v1827 = vpop.f32.mrf.mxu0
    %v1828 = vadd.f32 0.0, %v1827
    %v1829 = vpop.f32.mrf.mxu0
    %v1830 = vpop.f32.mrf.mxu0
    %v1831 = vadd.f32 0.0, %v1830
    %v1832 = vpop.f32.mrf.mxu0
    %1833 = vmatprep.mubr.bf16.mxu0 0
    %1834 = vmatmul.mubr.bf16.gmra.mxu0 %v1568
    %v1835 = vpop.f32.mrf.mxu0
    %v1836 = vadd.f32 0.0, %v1835
    %v1837 = vpop.f32.mrf.mxu0
    %v1838 = vpop.f32.mrf.mxu0
    %v1839 = vadd.f32 0.0, %v1838
    %v1840 = vpop.f32.mrf.mxu0
    %1841 = vmatprep.mubr.bf16.mxu0 0
    %1842 = vmatmul.mubr.bf16.gmra.mxu0 %v1571
    %v1843 = vpop.f32.mrf.mxu0
    %v1844 = vadd.f32 0.0, %v1843
    %v1845 = vpop.f32.mrf.mxu0
    %v1846 = vpop.f32.mrf.mxu0
    %v1847 = vadd.f32 0.0, %v1846
    %v1848 = vpop.f32.mrf.mxu0
    %1849 = vmatprep.mubr.bf16.mxu0 0
    %1850 = vmatmul.mubr.bf16.gmra.mxu0 %v1574
    %v1851 = vpop.f32.mrf.mxu0
    %v1852 = vadd.f32 0.0, %v1851
    %v1853 = vpop.f32.mrf.mxu0
    %v1854 = vpop.f32.mrf.mxu0
    %v1855 = vadd.f32 0.0, %v1854
    %v1856 = vpop.f32.mrf.mxu0
    %1857 = vmatprep.mubr.bf16.mxu0 0
    %1858 = vmatmul.mubr.bf16.gmra.mxu0 %v1577
    %v1859 = vpop.f32.mrf.mxu0
    %v1860 = vadd.f32 0.0, %v1859
    %v1861 = vpop.f32.mrf.mxu0
    %v1862 = vpop.f32.mrf.mxu0
    %v1863 = vadd.f32 0.0, %v1862
    %v1864 = vpop.f32.mrf.mxu0
    %1865 = vmatprep.mubr.bf16.mxu0 0
    %1866 = vmatmul.mubr.bf16.gmra.mxu0 %v1580
    %v1867 = vpop.f32.mrf.mxu0
    %v1868 = vadd.f32 0.0, %v1867
    %v1869 = vpop.f32.mrf.mxu0
    %v1870 = vpop.f32.mrf.mxu0
    %v1871 = vadd.f32 0.0, %v1870
    %v1872 = vpop.f32.mrf.mxu0
    %1873 = vdwg.mxu0
    %v1874 = vadd.f32 %v1007, %v1620
    %v1875 = vadd.f32 %v1010, %v1623
    %v1876 = vadd.f32 %v1015, %v1628
    %v1877 = vadd.f32 %v1018, %v1631
    %v1878 = vadd.f32 %v1023, %v1636
    %v1879 = vadd.f32 %v1026, %v1639
    %v1880 = vadd.f32 %v1031, %v1644
    %v1881 = vadd.f32 %v1034, %v1647
    %v1882 = vadd.f32 %v1039, %v1652
    %v1883 = vadd.f32 %v1042, %v1655
    %v1884 = vadd.f32 %v1047, %v1660
    %v1885 = vadd.f32 %v1050, %v1663
    %v1886 = vadd.f32 %v1055, %v1668
    %v1887 = vadd.f32 %v1058, %v1671
    %v1888 = vadd.f32 %v1063, %v1676
    %v1889 = vadd.f32 %v1066, %v1679
    %v1890 = vadd.f32 %v1071, %v1684
    %v1891 = vadd.f32 %v1074, %v1687
    %v1892 = vadd.f32 %v1079, %v1692
    %v1893 = vadd.f32 %v1082, %v1695
    %v1894 = vadd.f32 %v1087, %v1700
    %v1895 = vadd.f32 %v1090, %v1703
    %v1896 = vadd.f32 %v1095, %v1708
    %v1897 = vadd.f32 %v1098, %v1711
    %v1898 = vadd.f32 %v1103, %v1716
    %v1899 = vadd.f32 %v1106, %v1719
    %v1900 = vadd.f32 %v1111, %v1724
    %v1901 = vadd.f32 %v1114, %v1727
    %v1902 = vadd.f32 %v1119, %v1732
    %v1903 = vadd.f32 %v1122, %v1735
    %v1904 = vadd.f32 %v1127, %v1740
    %v1905 = vadd.f32 %v1130, %v1743
    %v1906 = vadd.f32 %v1135, %v1748
    %v1907 = vadd.f32 %v1138, %v1751
    %v1908 = vadd.f32 %v1143, %v1756
    %v1909 = vadd.f32 %v1146, %v1759
    %v1910 = vadd.f32 %v1151, %v1764
    %v1911 = vadd.f32 %v1154, %v1767
    %v1912 = vadd.f32 %v1159, %v1772
    %v1913 = vadd.f32 %v1162, %v1775
    %v1914 = vadd.f32 %v1167, %v1780
    %v1915 = vadd.f32 %v1170, %v1783
    %v1916 = vadd.f32 %v1175, %v1788
    %v1917 = vadd.f32 %v1178, %v1791
    %v1918 = vadd.f32 %v1183, %v1796
    %v1919 = vadd.f32 %v1186, %v1799
    %v1920 = vadd.f32 %v1191, %v1804
    %v1921 = vadd.f32 %v1194, %v1807
    %v1922 = vadd.f32 %v1199, %v1812
    %v1923 = vadd.f32 %v1202, %v1815
    %v1924 = vadd.f32 %v1207, %v1820
    %v1925 = vadd.f32 %v1210, %v1823
    %v1926 = vadd.f32 %v1215, %v1828
    %v1927 = vadd.f32 %v1218, %v1831
    %v1928 = vadd.f32 %v1223, %v1836
    %v1929 = vadd.f32 %v1226, %v1839
    %v1930 = vadd.f32 %v1231, %v1844
    %v1931 = vadd.f32 %v1234, %v1847
    %v1932 = vadd.f32 %v1239, %v1852
    %v1933 = vadd.f32 %v1242, %v1855
    %v1934 = vadd.f32 %v1247, %v1860
    %v1935 = vadd.f32 %v1250, %v1863
    %v1936 = vadd.f32 %v1255, %v1868
    %v1937 = vadd.f32 %v1258, %v1871
    %v1938 = vld [vmem:[%s6] sm:$0x1]
    %v1940 = vlaneseq
    %v1941 = vshrl.u32 %v1940, 7
    %v1942 = vsub.s32 0, %v1941
    %v1943 = vrot.slane %v1938, %v1942
    %v1945 = vadd.f32 %v1874, %v1943
    %v1946 = vadd.f32 %v1875, %v1943
    %v1947 = vadd.f32 %v1876, %v1943
    %v1948 = vadd.f32 %v1877, %v1943
    %v1949 = vadd.f32 %v1878, %v1943
    %v1950 = vadd.f32 %v1879, %v1943
    %v1951 = vadd.f32 %v1880, %v1943
    %v1952 = vadd.f32 %v1881, %v1943
    %v1953 = vadd.f32 %v1882, %v1943
    %v1954 = vadd.f32 %v1883, %v1943
    %v1955 = vadd.f32 %v1884, %v1943
    %v1956 = vadd.f32 %v1885, %v1943
    %v1957 = vadd.f32 %v1886, %v1943
    %v1958 = vadd.f32 %v1887, %v1943
    %v1959 = vadd.f32 %v1888, %v1943
    %v1960 = vadd.f32 %v1889, %v1943
    %v1961 = vadd.f32 %v1890, %v1943
    %v1962 = vadd.f32 %v1891, %v1943
    %v1963 = vadd.f32 %v1892, %v1943
    %v1964 = vadd.f32 %v1893, %v1943
    %v1965 = vadd.f32 %v1894, %v1943
    %v1966 = vadd.f32 %v1895, %v1943
    %v1967 = vadd.f32 %v1896, %v1943
    %v1968 = vadd.f32 %v1897, %v1943
    %v1969 = vadd.f32 %v1898, %v1943
    %v1970 = vadd.f32 %v1899, %v1943
    %v1971 = vadd.f32 %v1900, %v1943
    %v1972 = vadd.f32 %v1901, %v1943
    %v1973 = vadd.f32 %v1902, %v1943
    %v1974 = vadd.f32 %v1903, %v1943
    %v1975 = vadd.f32 %v1904, %v1943
    %v1976 = vadd.f32 %v1905, %v1943
    %v1977 = vadd.f32 %v1906, %v1943
    %v1978 = vadd.f32 %v1907, %v1943
    %v1979 = vadd.f32 %v1908, %v1943
    %v1980 = vadd.f32 %v1909, %v1943
    %v1981 = vadd.f32 %v1910, %v1943
    %v1982 = vadd.f32 %v1911, %v1943
    %v1983 = vadd.f32 %v1912, %v1943
    %v1984 = vadd.f32 %v1913, %v1943
    %v1985 = vadd.f32 %v1914, %v1943
    %v1986 = vadd.f32 %v1915, %v1943
    %v1987 = vadd.f32 %v1916, %v1943
    %v1988 = vadd.f32 %v1917, %v1943
    %v1989 = vadd.f32 %v1918, %v1943
    %v1990 = vadd.f32 %v1919, %v1943
    %v1991 = vadd.f32 %v1920, %v1943
    %v1992 = vadd.f32 %v1921, %v1943
    %v1993 = vadd.f32 %v1922, %v1943
    %v1994 = vadd.f32 %v1923, %v1943
    %v1995 = vadd.f32 %v1924, %v1943
    %v1996 = vadd.f32 %v1925, %v1943
    %v1997 = vadd.f32 %v1926, %v1943
    %v1998 = vadd.f32 %v1927, %v1943
    %v1999 = vadd.f32 %v1928, %v1943
    %v2000 = vadd.f32 %v1929, %v1943
    %v2001 = vadd.f32 %v1930, %v1943
    %v2002 = vadd.f32 %v1931, %v1943
    %v2003 = vadd.f32 %v1932, %v1943
    %v2004 = vadd.f32 %v1933, %v1943
    %v2005 = vadd.f32 %v1934, %v1943
    %v2006 = vadd.f32 %v1935, %v1943
    %v2007 = vadd.f32 %v1936, %v1943
    %v2008 = vadd.f32 %v1937, %v1943
    %v2009 = vxor.u32 %v1945, 2147483648
    %v2010 = vxor.u32 %v1946, 2147483648
    %v2011 = vxor.u32 %v1947, 2147483648
    %v2012 = vxor.u32 %v1948, 2147483648
    %v2013 = vxor.u32 %v1949, 2147483648
    %v2014 = vxor.u32 %v1950, 2147483648
    %v2015 = vxor.u32 %v1951, 2147483648
    %v2016 = vxor.u32 %v1952, 2147483648
    %v2017 = vxor.u32 %v1953, 2147483648
    %v2018 = vxor.u32 %v1954, 2147483648
    %v2019 = vxor.u32 %v1955, 2147483648
    %v2020 = vxor.u32 %v1956, 2147483648
    %v2021 = vxor.u32 %v1957, 2147483648
    %v2022 = vxor.u32 %v1958, 2147483648
    %v2023 = vxor.u32 %v1959, 2147483648
    %v2024 = vxor.u32 %v1960, 2147483648
    %v2025 = vxor.u32 %v1961, 2147483648
    %v2026 = vxor.u32 %v1962, 2147483648
    %v2027 = vxor.u32 %v1963, 2147483648
    %v2028 = vxor.u32 %v1964, 2147483648
    %v2029 = vxor.u32 %v1965, 2147483648
    %v2030 = vxor.u32 %v1966, 2147483648
    %v2031 = vxor.u32 %v1967, 2147483648
    %v2032 = vxor.u32 %v1968, 2147483648
    %v2033 = vxor.u32 %v1969, 2147483648
    %v2034 = vxor.u32 %v1970, 2147483648
    %v2035 = vxor.u32 %v1971, 2147483648
    %v2036 = vxor.u32 %v1972, 2147483648
    %v2037 = vxor.u32 %v1973, 2147483648
    %v2038 = vxor.u32 %v1974, 2147483648
    %v2039 = vxor.u32 %v1975, 2147483648
    %v2040 = vxor.u32 %v1976, 2147483648
    %v2041 = vxor.u32 %v1977, 2147483648
    %v2042 = vxor.u32 %v1978, 2147483648
    %v2043 = vxor.u32 %v1979, 2147483648
    %v2044 = vxor.u32 %v1980, 2147483648
    %v2045 = vxor.u32 %v1981, 2147483648
    %v2046 = vxor.u32 %v1982, 2147483648
    %v2047 = vxor.u32 %v1983, 2147483648
    %v2048 = vxor.u32 %v1984, 2147483648
    %v2049 = vxor.u32 %v1985, 2147483648
    %v2050 = vxor.u32 %v1986, 2147483648
    %v2051 = vxor.u32 %v1987, 2147483648
    %v2052 = vxor.u32 %v1988, 2147483648
    %v2053 = vxor.u32 %v1989, 2147483648
    %v2054 = vxor.u32 %v1990, 2147483648
    %v2055 = vxor.u32 %v1991, 2147483648
    %v2056 = vxor.u32 %v1992, 2147483648
    %v2057 = vxor.u32 %v1993, 2147483648
    %v2058 = vxor.u32 %v1994, 2147483648
    %v2059 = vxor.u32 %v1995, 2147483648
    %v2060 = vxor.u32 %v1996, 2147483648
    %v2061 = vxor.u32 %v1997, 2147483648
    %v2062 = vxor.u32 %v1998, 2147483648
    %v2063 = vxor.u32 %v1999, 2147483648
    %v2064 = vxor.u32 %v2000, 2147483648
    %v2065 = vxor.u32 %v2001, 2147483648
    %v2066 = vxor.u32 %v2002, 2147483648
    %v2067 = vxor.u32 %v2003, 2147483648
    %v2068 = vxor.u32 %v2004, 2147483648
    %v2069 = vxor.u32 %v2005, 2147483648
    %v2070 = vxor.u32 %v2006, 2147483648
    %v2071 = vxor.u32 %v2007, 2147483648
    %v2072 = vxor.u32 %v2008, 2147483648
    %v2073 = vmul.f32 %v2009, 1.442695
    %v2074 = vpow.pop %v2073
    %v2075 = vmul.f32 %v2010, 1.442695
    %v2076 = vpow.pop %v2075
    %v2077 = vmul.f32 %v2011, 1.442695
    %v2078 = vpow.pop %v2077
    %v2079 = vmul.f32 %v2012, 1.442695
    %v2080 = vpow.pop %v2079
    %v2081 = vmul.f32 %v2013, 1.442695
    %v2082 = vpow.pop %v2081
    %v2083 = vmul.f32 %v2014, 1.442695
    %v2084 = vpow.pop %v2083
    %v2085 = vmul.f32 %v2015, 1.442695
    %v2086 = vpow.pop %v2085
    %v2087 = vmul.f32 %v2016, 1.442695
    %v2088 = vpow.pop %v2087
    %v2089 = vmul.f32 %v2017, 1.442695
    %v2090 = vpow.pop %v2089
    %v2091 = vmul.f32 %v2018, 1.442695
    %v2092 = vpow.pop %v2091
    %v2093 = vmul.f32 %v2019, 1.442695
    %v2094 = vpow.pop %v2093
    %v2095 = vmul.f32 %v2020, 1.442695
    %v2096 = vpow.pop %v2095
    %v2097 = vmul.f32 %v2021, 1.442695
    %v2098 = vpow.pop %v2097
    %v2099 = vmul.f32 %v2022, 1.442695
    %v2100 = vpow.pop %v2099
    %v2101 = vmul.f32 %v2023, 1.442695
    %v2102 = vpow.pop %v2101
    %v2103 = vmul.f32 %v2024, 1.442695
    %v2104 = vpow.pop %v2103
    %v2105 = vmul.f32 %v2025, 1.442695
    %v2106 = vpow.pop %v2105
    %v2107 = vmul.f32 %v2026, 1.442695
    %v2108 = vpow.pop %v2107
    %v2109 = vmul.f32 %v2027, 1.442695
    %v2110 = vpow.pop %v2109
    %v2111 = vmul.f32 %v2028, 1.442695
    %v2112 = vpow.pop %v2111
    %v2113 = vmul.f32 %v2029, 1.442695
    %v2114 = vpow.pop %v2113
    %v2115 = vmul.f32 %v2030, 1.442695
    %v2116 = vpow.pop %v2115
    %v2117 = vmul.f32 %v2031, 1.442695
    %v2118 = vpow.pop %v2117
    %v2119 = vmul.f32 %v2032, 1.442695
    %v2120 = vpow.pop %v2119
    %v2121 = vmul.f32 %v2033, 1.442695
    %v2122 = vpow.pop %v2121
    %v2123 = vmul.f32 %v2034, 1.442695
    %v2124 = vpow.pop %v2123
    %v2125 = vmul.f32 %v2035, 1.442695
    %v2126 = vpow.pop %v2125
    %v2127 = vmul.f32 %v2036, 1.442695
    %v2128 = vpow.pop %v2127
    %v2129 = vmul.f32 %v2037, 1.442695
    %v2130 = vpow.pop %v2129
    %v2131 = vmul.f32 %v2038, 1.442695
    %v2132 = vpow.pop %v2131
    %v2133 = vmul.f32 %v2039, 1.442695
    %v2134 = vpow.pop %v2133
    %v2135 = vmul.f32 %v2040, 1.442695
    %v2136 = vpow.pop %v2135
    %v2137 = vmul.f32 %v2041, 1.442695
    %v2138 = vpow.pop %v2137
    %v2139 = vmul.f32 %v2042, 1.442695
    %v2140 = vpow.pop %v2139
    %v2141 = vmul.f32 %v2043, 1.442695
    %v2142 = vpow.pop %v2141
    %v2143 = vmul.f32 %v2044, 1.442695
    %v2144 = vpow.pop %v2143
    %v2145 = vmul.f32 %v2045, 1.442695
    %v2146 = vpow.pop %v2145
    %v2147 = vmul.f32 %v2046, 1.442695
    %v2148 = vpow.pop %v2147
    %v2149 = vmul.f32 %v2047, 1.442695
    %v2150 = vpow.pop %v2149
    %v2151 = vmul.f32 %v2048, 1.442695
    %v2152 = vpow.pop %v2151
    %v2153 = vmul.f32 %v2049, 1.442695
    %v2154 = vpow.pop %v2153
    %v2155 = vmul.f32 %v2050, 1.442695
    %v2156 = vpow.pop %v2155
    %v2157 = vmul.f32 %v2051, 1.442695
    %v2158 = vpow.pop %v2157
    %v2159 = vmul.f32 %v2052, 1.442695
    %v2160 = vpow.pop %v2159
    %v2161 = vmul.f32 %v2053, 1.442695
    %v2162 = vpow.pop %v2161
    %v2163 = vmul.f32 %v2054, 1.442695
    %v2164 = vpow.pop %v2163
    %v2165 = vmul.f32 %v2055, 1.442695
    %v2166 = vpow.pop %v2165
    %v2167 = vmul.f32 %v2056, 1.442695
    %v2168 = vpow.pop %v2167
    %v2169 = vmul.f32 %v2057, 1.442695
    %v2170 = vpow.pop %v2169
    %v2171 = vmul.f32 %v2058, 1.442695
    %v2172 = vpow.pop %v2171
    %v2173 = vmul.f32 %v2059, 1.442695
    %v2174 = vpow.pop %v2173
    %v2175 = vmul.f32 %v2060, 1.442695
    %v2176 = vpow.pop %v2175
    %v2177 = vmul.f32 %v2061, 1.442695
    %v2178 = vpow.pop %v2177
    %v2179 = vmul.f32 %v2062, 1.442695
    %v2180 = vpow.pop %v2179
    %v2181 = vmul.f32 %v2063, 1.442695
    %v2182 = vpow.pop %v2181
    %v2183 = vmul.f32 %v2064, 1.442695
    %v2184 = vpow.pop %v2183
    %v2185 = vmul.f32 %v2065, 1.442695
    %v2186 = vpow.pop %v2185
    %v2187 = vmul.f32 %v2066, 1.442695
    %v2188 = vpow.pop %v2187
    %v2189 = vmul.f32 %v2067, 1.442695
    %v2190 = vpow.pop %v2189
    %v2191 = vmul.f32 %v2068, 1.442695
    %v2192 = vpow.pop %v2191
    %v2193 = vmul.f32 %v2069, 1.442695
    %v2194 = vpow.pop %v2193
    %v2195 = vmul.f32 %v2070, 1.442695
    %v2196 = vpow.pop %v2195
    %v2197 = vmul.f32 %v2071, 1.442695
    %v2198 = vpow.pop %v2197
    %v2199 = vmul.f32 %v2072, 1.442695
    %v2200 = vpow.pop %v2199
    %v2201 = vadd.f32 %v2074, 1.0
    %v2202 = vadd.f32 %v2076, 1.0
    %v2203 = vadd.f32 %v2078, 1.0
    %v2204 = vadd.f32 %v2080, 1.0
    %v2205 = vadd.f32 %v2082, 1.0
    %v2206 = vadd.f32 %v2084, 1.0
    %v2207 = vadd.f32 %v2086, 1.0
    %v2208 = vadd.f32 %v2088, 1.0
    %v2209 = vadd.f32 %v2090, 1.0
    %v2210 = vadd.f32 %v2092, 1.0
    %v2211 = vadd.f32 %v2094, 1.0
    %v2212 = vadd.f32 %v2096, 1.0
    %v2213 = vadd.f32 %v2098, 1.0
    %v2214 = vadd.f32 %v2100, 1.0
    %v2215 = vadd.f32 %v2102, 1.0
    %v2216 = vadd.f32 %v2104, 1.0
    %v2217 = vadd.f32 %v2106, 1.0
    %v2218 = vadd.f32 %v2108, 1.0
    %v2219 = vadd.f32 %v2110, 1.0
    %v2220 = vadd.f32 %v2112, 1.0
    %v2221 = vadd.f32 %v2114, 1.0
    %v2222 = vadd.f32 %v2116, 1.0
    %v2223 = vadd.f32 %v2118, 1.0
    %v2224 = vadd.f32 %v2120, 1.0
    %v2225 = vadd.f32 %v2122, 1.0
    %v2226 = vadd.f32 %v2124, 1.0
    %v2227 = vadd.f32 %v2126, 1.0
    %v2228 = vadd.f32 %v2128, 1.0
    %v2229 = vadd.f32 %v2130, 1.0
    %v2230 = vadd.f32 %v2132, 1.0
    %v2231 = vadd.f32 %v2134, 1.0
    %v2232 = vadd.f32 %v2136, 1.0
    %v2233 = vadd.f32 %v2138, 1.0
    %v2234 = vadd.f32 %v2140, 1.0
    %v2235 = vadd.f32 %v2142, 1.0
    %v2236 = vadd.f32 %v2144, 1.0
    %v2237 = vadd.f32 %v2146, 1.0
    %v2238 = vadd.f32 %v2148, 1.0
    %v2239 = vadd.f32 %v2150, 1.0
    %v2240 = vadd.f32 %v2152, 1.0
    %v2241 = vadd.f32 %v2154, 1.0
    %v2242 = vadd.f32 %v2156, 1.0
    %v2243 = vadd.f32 %v2158, 1.0
    %v2244 = vadd.f32 %v2160, 1.0
    %v2245 = vadd.f32 %v2162, 1.0
    %v2246 = vadd.f32 %v2164, 1.0
    %v2247 = vadd.f32 %v2166, 1.0
    %v2248 = vadd.f32 %v2168, 1.0
    %v2249 = vadd.f32 %v2170, 1.0
    %v2250 = vadd.f32 %v2172, 1.0
    %v2251 = vadd.f32 %v2174, 1.0
    %v2252 = vadd.f32 %v2176, 1.0
    %v2253 = vadd.f32 %v2178, 1.0
    %v2254 = vadd.f32 %v2180, 1.0
    %v2255 = vadd.f32 %v2182, 1.0
    %v2256 = vadd.f32 %v2184, 1.0
    %v2257 = vadd.f32 %v2186, 1.0
    %v2258 = vadd.f32 %v2188, 1.0
    %v2259 = vadd.f32 %v2190, 1.0
    %v2260 = vadd.f32 %v2192, 1.0
    %v2261 = vadd.f32 %v2194, 1.0
    %v2262 = vadd.f32 %v2196, 1.0
    %v2263 = vadd.f32 %v2198, 1.0
    %v2264 = vadd.f32 %v2200, 1.0
    %v2265 = vrcp.pop %v2201
    %v2266 = vmul.f32 1.0, %v2265
    %v2267 = vrcp.pop %v2202
    %v2268 = vmul.f32 1.0, %v2267
    %v2269 = vrcp.pop %v2203
    %v2270 = vmul.f32 1.0, %v2269
    %v2271 = vrcp.pop %v2204
    %v2272 = vmul.f32 1.0, %v2271
    %v2273 = vrcp.pop %v2205
    %v2274 = vmul.f32 1.0, %v2273
    %v2275 = vrcp.pop %v2206
    %v2276 = vmul.f32 1.0, %v2275
    %v2277 = vrcp.pop %v2207
    %v2278 = vmul.f32 1.0, %v2277
    %v2279 = vrcp.pop %v2208
    %v2280 = vmul.f32 1.0, %v2279
    %v2281 = vrcp.pop %v2209
    %v2282 = vmul.f32 1.0, %v2281
    %v2283 = vrcp.pop %v2210
    %v2284 = vmul.f32 1.0, %v2283
    %v2285 = vrcp.pop %v2211
    %v2286 = vmul.f32 1.0, %v2285
    %v2287 = vrcp.pop %v2212
    %v2288 = vmul.f32 1.0, %v2287
    %v2289 = vrcp.pop %v2213
    %v2290 = vmul.f32 1.0, %v2289
    %v2291 = vrcp.pop %v2214
    %v2292 = vmul.f32 1.0, %v2291
    %v2293 = vrcp.pop %v2215
    %v2294 = vmul.f32 1.0, %v2293
    %v2295 = vrcp.pop %v2216
    %v2296 = vmul.f32 1.0, %v2295
    %v2297 = vrcp.pop %v2217
    %v2298 = vmul.f32 1.0, %v2297
    %v2299 = vrcp.pop %v2218
    %v2300 = vmul.f32 1.0, %v2299
    %v2301 = vrcp.pop %v2219
    %v2302 = vmul.f32 1.0, %v2301
    %v2303 = vrcp.pop %v2220
    %v2304 = vmul.f32 1.0, %v2303
    %v2305 = vrcp.pop %v2221
    %v2306 = vmul.f32 1.0, %v2305
    %v2307 = vrcp.pop %v2222
    %v2308 = vmul.f32 1.0, %v2307
    %v2309 = vrcp.pop %v2223
    %v2310 = vmul.f32 1.0, %v2309
    %v2311 = vrcp.pop %v2224
    %v2312 = vmul.f32 1.0, %v2311
    %v2313 = vrcp.pop %v2225
    %v2314 = vmul.f32 1.0, %v2313
    %v2315 = vrcp.pop %v2226
    %v2316 = vmul.f32 1.0, %v2315
    %v2317 = vrcp.pop %v2227
    %v2318 = vmul.f32 1.0, %v2317
    %v2319 = vrcp.pop %v2228
    %v2320 = vmul.f32 1.0, %v2319
    %v2321 = vrcp.pop %v2229
    %v2322 = vmul.f32 1.0, %v2321
    %v2323 = vrcp.pop %v2230
    %v2324 = vmul.f32 1.0, %v2323
    %v2325 = vrcp.pop %v2231
    %v2326 = vmul.f32 1.0, %v2325
    %v2327 = vrcp.pop %v2232
    %v2328 = vmul.f32 1.0, %v2327
    %v2329 = vrcp.pop %v2233
    %v2330 = vmul.f32 1.0, %v2329
    %v2331 = vrcp.pop %v2234
    %v2332 = vmul.f32 1.0, %v2331
    %v2333 = vrcp.pop %v2235
    %v2334 = vmul.f32 1.0, %v2333
    %v2335 = vrcp.pop %v2236
    %v2336 = vmul.f32 1.0, %v2335
    %v2337 = vrcp.pop %v2237
    %v2338 = vmul.f32 1.0, %v2337
    %v2339 = vrcp.pop %v2238
    %v2340 = vmul.f32 1.0, %v2339
    %v2341 = vrcp.pop %v2239
    %v2342 = vmul.f32 1.0, %v2341
    %v2343 = vrcp.pop %v2240
    %v2344 = vmul.f32 1.0, %v2343
    %v2345 = vrcp.pop %v2241
    %v2346 = vmul.f32 1.0, %v2345
    %v2347 = vrcp.pop %v2242
    %v2348 = vmul.f32 1.0, %v2347
    %v2349 = vrcp.pop %v2243
    %v2350 = vmul.f32 1.0, %v2349
    %v2351 = vrcp.pop %v2244
    %v2352 = vmul.f32 1.0, %v2351
    %v2353 = vrcp.pop %v2245
    %v2354 = vmul.f32 1.0, %v2353
    %v2355 = vrcp.pop %v2246
    %v2356 = vmul.f32 1.0, %v2355
    %v2357 = vrcp.pop %v2247
    %v2358 = vmul.f32 1.0, %v2357
    %v2359 = vrcp.pop %v2248
    %v2360 = vmul.f32 1.0, %v2359
    %v2361 = vrcp.pop %v2249
    %v2362 = vmul.f32 1.0, %v2361
    %v2363 = vrcp.pop %v2250
    %v2364 = vmul.f32 1.0, %v2363
    %v2365 = vrcp.pop %v2251
    %v2366 = vmul.f32 1.0, %v2365
    %v2367 = vrcp.pop %v2252
    %v2368 = vmul.f32 1.0, %v2367
    %v2369 = vrcp.pop %v2253
    %v2370 = vmul.f32 1.0, %v2369
    %v2371 = vrcp.pop %v2254
    %v2372 = vmul.f32 1.0, %v2371
    %v2373 = vrcp.pop %v2255
    %v2374 = vmul.f32 1.0, %v2373
    %v2375 = vrcp.pop %v2256
    %v2376 = vmul.f32 1.0, %v2375
    %v2377 = vrcp.pop %v2257
    %v2378 = vmul.f32 1.0, %v2377
    %v2379 = vrcp.pop %v2258
    %v2380 = vmul.f32 1.0, %v2379
    %v2381 = vrcp.pop %v2259
    %v2382 = vmul.f32 1.0, %v2381
    %v2383 = vrcp.pop %v2260
    %v2384 = vmul.f32 1.0, %v2383
    %v2385 = vrcp.pop %v2261
    %v2386 = vmul.f32 1.0, %v2385
    %v2387 = vrcp.pop %v2262
    %v2388 = vmul.f32 1.0, %v2387
    %v2389 = vrcp.pop %v2263
    %v2390 = vmul.f32 1.0, %v2389
    %v2391 = vrcp.pop %v2264
    %v2392 = vmul.f32 1.0, %v2391
    %v2393 = vmul.f32 %v1945, %v2266
    %v2394 = vmul.f32 %v1946, %v2268
    %v2395 = vmul.f32 %v1947, %v2270
    %v2396 = vmul.f32 %v1948, %v2272
    %v2397 = vmul.f32 %v1949, %v2274
    %v2398 = vmul.f32 %v1950, %v2276
    %v2399 = vmul.f32 %v1951, %v2278
    %v2400 = vmul.f32 %v1952, %v2280
    %v2401 = vmul.f32 %v1953, %v2282
    %v2402 = vmul.f32 %v1954, %v2284
    %v2403 = vmul.f32 %v1955, %v2286
    %v2404 = vmul.f32 %v1956, %v2288
    %v2405 = vmul.f32 %v1957, %v2290
    %v2406 = vmul.f32 %v1958, %v2292
    %v2407 = vmul.f32 %v1959, %v2294
    %v2408 = vmul.f32 %v1960, %v2296
    %v2409 = vmul.f32 %v1961, %v2298
    %v2410 = vmul.f32 %v1962, %v2300
    %v2411 = vmul.f32 %v1963, %v2302
    %v2412 = vmul.f32 %v1964, %v2304
    %v2413 = vmul.f32 %v1965, %v2306
    %v2414 = vmul.f32 %v1966, %v2308
    %v2415 = vmul.f32 %v1967, %v2310
    %v2416 = vmul.f32 %v1968, %v2312
    %v2417 = vmul.f32 %v1969, %v2314
    %v2418 = vmul.f32 %v1970, %v2316
    %v2419 = vmul.f32 %v1971, %v2318
    %v2420 = vmul.f32 %v1972, %v2320
    %v2421 = vmul.f32 %v1973, %v2322
    %v2422 = vmul.f32 %v1974, %v2324
    %v2423 = vmul.f32 %v1975, %v2326
    %v2424 = vmul.f32 %v1976, %v2328
    %v2425 = vmul.f32 %v1977, %v2330
    %v2426 = vmul.f32 %v1978, %v2332
    %v2427 = vmul.f32 %v1979, %v2334
    %v2428 = vmul.f32 %v1980, %v2336
    %v2429 = vmul.f32 %v1981, %v2338
    %v2430 = vmul.f32 %v1982, %v2340
    %v2431 = vmul.f32 %v1983, %v2342
    %v2432 = vmul.f32 %v1984, %v2344
    %v2433 = vmul.f32 %v1985, %v2346
    %v2434 = vmul.f32 %v1986, %v2348
    %v2435 = vmul.f32 %v1987, %v2350
    %v2436 = vmul.f32 %v1988, %v2352
    %v2437 = vmul.f32 %v1989, %v2354
    %v2438 = vmul.f32 %v1990, %v2356
    %v2439 = vmul.f32 %v1991, %v2358
    %v2440 = vmul.f32 %v1992, %v2360
    %v2441 = vmul.f32 %v1993, %v2362
    %v2442 = vmul.f32 %v1994, %v2364
    %v2443 = vmul.f32 %v1995, %v2366
    %v2444 = vmul.f32 %v1996, %v2368
    %v2445 = vmul.f32 %v1997, %v2370
    %v2446 = vmul.f32 %v1998, %v2372
    %v2447 = vmul.f32 %v1999, %v2374
    %v2448 = vmul.f32 %v2000, %v2376
    %v2449 = vmul.f32 %v2001, %v2378
    %v2450 = vmul.f32 %v2002, %v2380
    %v2451 = vmul.f32 %v2003, %v2382
    %v2452 = vmul.f32 %v2004, %v2384
    %v2453 = vmul.f32 %v2005, %v2386
    %v2454 = vmul.f32 %v2006, %v2388
    %v2455 = vmul.f32 %v2007, %v2390
    %v2456 = vmul.f32 %v2008, %v2392
    %2457 = vst [vmem:[#allocation2] sm:$0xff] %v2393
    %2458 = vst [vmem:[#allocation2 + $0x8] sm:$0xff] %v2394
    %2459 = vst [vmem:[#allocation2 + $0x10] sm:$0xff] %v2395
    %2460 = vst [vmem:[#allocation2 + $0x18] sm:$0xff] %v2396
    %2461 = vst [vmem:[#allocation2 + $0x20] sm:$0xff] %v2397
    %2462 = vst [vmem:[#allocation2 + $0x28] sm:$0xff] %v2398
    %2463 = vst [vmem:[#allocation2 + $0x30] sm:$0xff] %v2399
    %2464 = vst [vmem:[#allocation2 + $0x38] sm:$0xff] %v2400
    %2465 = vst [vmem:[#allocation2 + $0x40] sm:$0xff] %v2401
    %2466 = vst [vmem:[#allocation2 + $0x48] sm:$0xff] %v2402
    %2467 = vst [vmem:[#allocation2 + $0x50] sm:$0xff] %v2403
    %2468 = vst [vmem:[#allocation2 + $0x58] sm:$0xff] %v2404
    %2469 = vst [vmem:[#allocation2 + $0x60] sm:$0xff] %v2405
    %2470 = vst [vmem:[#allocation2 + $0x68] sm:$0xff] %v2406
    %2471 = vst [vmem:[#allocation2 + $0x70] sm:$0xff] %v2407
    %2472 = vst [vmem:[#allocation2 + $0x78] sm:$0xff] %v2408
    %2473 = vst [vmem:[#allocation2 + $0x80] sm:$0xff] %v2409
    %2474 = vst [vmem:[#allocation2 + $0x88] sm:$0xff] %v2410
    %2475 = vst [vmem:[#allocation2 + $0x90] sm:$0xff] %v2411
    %2476 = vst [vmem:[#allocation2 + $0x98] sm:$0xff] %v2412
    %2477 = vst [vmem:[#allocation2 + $0xa0] sm:$0xff] %v2413
    %2478 = vst [vmem:[#allocation2 + $0xa8] sm:$0xff] %v2414
    %2479 = vst [vmem:[#allocation2 + $0xb0] sm:$0xff] %v2415
    %2480 = vst [vmem:[#allocation2 + $0xb8] sm:$0xff] %v2416
    %2481 = vst [vmem:[#allocation2 + $0xc0] sm:$0xff] %v2417
    %2482 = vst [vmem:[#allocation2 + $0xc8] sm:$0xff] %v2418
    %2483 = vst [vmem:[#allocation2 + $0xd0] sm:$0xff] %v2419
    %2484 = vst [vmem:[#allocation2 + $0xd8] sm:$0xff] %v2420
    %2485 = vst [vmem:[#allocation2 + $0xe0] sm:$0xff] %v2421
    %2486 = vst [vmem:[#allocation2 + $0xe8] sm:$0xff] %v2422
    %2487 = vst [vmem:[#allocation2 + $0xf0] sm:$0xff] %v2423
    %2488 = vst [vmem:[#allocation2 + $0xf8] sm:$0xff] %v2424
    %2489 = vst [vmem:[#allocation2 + $0x100] sm:$0xff] %v2425
    %2490 = vst [vmem:[#allocation2 + $0x108] sm:$0xff] %v2426
    %2491 = vst [vmem:[#allocation2 + $0x110] sm:$0xff] %v2427
    %2492 = vst [vmem:[#allocation2 + $0x118] sm:$0xff] %v2428
    %2493 = vst [vmem:[#allocation2 + $0x120] sm:$0xff] %v2429
    %2494 = vst [vmem:[#allocation2 + $0x128] sm:$0xff] %v2430
    %2495 = vst [vmem:[#allocation2 + $0x130] sm:$0xff] %v2431
    %2496 = vst [vmem:[#allocation2 + $0x138] sm:$0xff] %v2432
    %2497 = vst [vmem:[#allocation2 + $0x140] sm:$0xff] %v2433
    %2498 = vst [vmem:[#allocation2 + $0x148] sm:$0xff] %v2434
    %2499 = vst [vmem:[#allocation2 + $0x150] sm:$0xff] %v2435
    %2500 = vst [vmem:[#allocation2 + $0x158] sm:$0xff] %v2436
    %2501 = vst [vmem:[#allocation2 + $0x160] sm:$0xff] %v2437
    %2502 = vst [vmem:[#allocation2 + $0x168] sm:$0xff] %v2438
    %2503 = vst [vmem:[#allocation2 + $0x170] sm:$0xff] %v2439
    %2504 = vst [vmem:[#allocation2 + $0x178] sm:$0xff] %v2440
    %2505 = vst [vmem:[#allocation2 + $0x180] sm:$0xff] %v2441
    %2506 = vst [vmem:[#allocation2 + $0x188] sm:$0xff] %v2442
    %2507 = vst [vmem:[#allocation2 + $0x190] sm:$0xff] %v2443
    %2508 = vst [vmem:[#allocation2 + $0x198] sm:$0xff] %v2444
    %2509 = vst [vmem:[#allocation2 + $0x1a0] sm:$0xff] %v2445
    %2510 = vst [vmem:[#allocation2 + $0x1a8] sm:$0xff] %v2446
    %2511 = vst [vmem:[#allocation2 + $0x1b0] sm:$0xff] %v2447
    %2512 = vst [vmem:[#allocation2 + $0x1b8] sm:$0xff] %v2448
    %2513 = vst [vmem:[#allocation2 + $0x1c0] sm:$0xff] %v2449
    %2514 = vst [vmem:[#allocation2 + $0x1c8] sm:$0xff] %v2450
    %2515 = vst [vmem:[#allocation2 + $0x1d0] sm:$0xff] %v2451
    %2516 = vst [vmem:[#allocation2 + $0x1d8] sm:$0xff] %v2452
    %2517 = vst [vmem:[#allocation2 + $0x1e0] sm:$0xff] %v2453
    %2518 = vst [vmem:[#allocation2 + $0x1e8] sm:$0xff] %v2454
    %2519 = vst [vmem:[#allocation2 + $0x1f0] sm:$0xff] %v2455
    %2520 = vst [vmem:[#allocation2 + $0x1f8] sm:$0xff] %v2456
    // Predicated region
    $region30: #{elan_forward.11} parent=1 // pred_check
      _
    $region31: #{elan_forward.11} parent=1 // pred_check_branch
      %2522 = sbr.rel (0) target = $region33
    $region32: #{elan_forward.11} parent=1 // pred_region
      %s2524 = ssub.s32 8192, 8192
      %2525 = vsyncadd [#allocation3], %s2524
      %s2526 = sshll.u32 [#allocation2], 4
      %s2527 = int_to_ptr.vmem [resolvable:$true] %s2526
      %2532 = dma.vmem_to_hbm [thread:$0]  %s2527, 8192, %s7, [#allocation3], 128, 128, 8
    $region33: #{elan_forward.11} parent=1 // pred_fallthru
      _
    // Predicated region
    $region34: #{elan_forward.11} parent=1 // pred_check
      _
    $region35: #{elan_forward.11} parent=1 // pred_check_branch
      %2534 = sbr.rel (0) target = $region37
    $region36: #{elan_forward.11} parent=1 // pred_region
      %2535 = dma.done [#allocation3], 8192
    $region37: #{elan_forward.11} parent=1 // pred_fallthru
      _
    %2536 = vsyncpa [#allocation3], 1

// kernel: elan_forward.7
$region0: #{elan_forward.7}
  #allocation0 [shape = 'u32[]', space=smem, size = 0x4, offset = 0x4, fixed_abs, tag = 'smem constant byte address 0x4 - core index']
  #allocation1 [shape = 'u32[144,128]{1,0:T(1,128)}', space=vmem, size = 0x12000, scoped, tag = 'internal scratch']
  %s0 = inlined_call_operand.vmem [shape: bf16[2,456,8], index: 0, kind: input, shape index: {}]
  %s1 = inlined_call_operand.vmem [shape: bf16[9,8,128], index: 1, kind: input, shape index: {}]
  %s2 = inlined_call_operand.vmem [shape: f32[1,128], index: 2, kind: input, shape index: {}]
  %s3 = inlined_call_operand.vmem [shape: bf16[2,384,128], index: 3, kind: output, shape index: {}]
  %s4 = sld [smem:[#allocation0]]
  $region45: #{elan_forward.7} parent=0
    _
  %s6 = ssub.s32 1, %s4
  %s7 = scalar_select 0, %s6, %s4
  loop: start=0, step=1, limit=4
  $region2: #{elan_forward.7} parent=0 // loop_pre_header
    _
  $region3: #{elan_forward.7} parent=0 // loop_header
    %s9 = sphi 0, %s13
    %p10 = scmp.ge.s32.totalorder %s9, 4
    %s16 = sphi 0, %s28
    %s17 = sphi 0, %s24
    %s18 = sphi 0, %s16
    %s19 = sphi 0, %s17
    %s20 = sphi 0, %s18
    %s21 = sphi 0, %s19
    %s31 = sphi 0, %s33
    %s34 = sphi 0, %s31
    %s35 = sphi 0, %s34
    %s51 = sphi 0, %s35
    %s57 = sphi 0, %s59
    %s60 = sphi 0, %s57
    %s61 = sphi 0, %s60
    %s77 = sphi 0, %s61
    %s83 = sphi 0, %s85
    %s86 = sphi 0, %s83
    %s87 = sphi 0, %s86
    %s103 = sphi 0, %s87
    %s111 = sphi 0, %s113
    %s114 = sphi 0, %s111
    %s115 = sphi 0, %s114
    %s131 = sphi 0, %s115
  $region4: #{elan_forward.7} parent=0 // loop_header_branch
    %12 = sbr.rel (%p10) target = $region8
  $region5: #{elan_forward.7} parent=0 // loop_body
    %s14 = ssub.s32 %s9, 1
    %s15 = ssub.s32 %s9, 2
    %s22 = sadd.s32 1, %s17
    %p23 = scmp.ge.s32.totalorder %s22, 1
    %s24 = scalar_select %p23, 0, %s22
    %s25 = sadd.s32 1, %s16
    %s26 = scalar_select %p23, %s25, %s16
    %p27 = scmp.ge.s32.totalorder %s26, 2
    %s28 = scalar_select %p27, 0, %s26
    %s29 = ssub.s32 %s16, %s28
    %p30 = scmp.eq.s32.totalorder %s29, 0
    %s32 = sadd.s32 %s31, 1
    %s33 = scalar_select %p30, %s31, %s32
    %p36 = pneg %p30
    %p37 = scmp.eq.s32.totalorder %s9, 1
    %p38 = por %p36, %p37
    %p39 = scmp.ne.s32.totalorder %s31, %s34
    %p40 = scmp.eq.s32.totalorder %s9, 0
    %p41 = por %p39, %p40
    %p42 = scmp.ne.s32.totalorder %s31, %s34
    %p43 = scmp.eq.s32.totalorder %s14, 1
    %p44 = por %p42, %p43
    %p45 = scmp.ne.s32.totalorder %s34, %s35
    %p46 = scmp.eq.s32.totalorder %s14, 0
    %p47 = por %p45, %p46
    %p48 = scmp.ne.s32.totalorder %s34, %s35
    %p49 = scmp.eq.s32.totalorder %s15, 1
    %p50 = por %p48, %p49
    %p52 = scmp.ne.s32.totalorder %s35, %s51
    %p53 = scmp.eq.s32.totalorder %s15, 0
    %p54 = por %p52, %p53
    %s55 = ssub.s32 %s17, %s24
    %p56 = scmp.eq.s32.totalorder %s55, 0
    %s58 = sadd.s32 %s57, 1
    %s59 = scalar_select %p56, %s57, %s58
    %p62 = pneg %p56
    %p63 = scmp.eq.s32.totalorder %s9, 1
    %p64 = por %p62, %p63
    %p65 = scmp.ne.s32.totalorder %s57, %s60
    %p66 = scmp.eq.s32.totalorder %s9, 0
    %p67 = por %p65, %p66
    %p68 = scmp.ne.s32.totalorder %s57, %s60
    %p69 = scmp.eq.s32.totalorder %s14, 1
    %p70 = por %p68, %p69
    %p71 = scmp.ne.s32.totalorder %s60, %s61
    %p72 = scmp.eq.s32.totalorder %s14, 0
    %p73 = por %p71, %p72
    %p74 = scmp.ne.s32.totalorder %s60, %s61
    %p75 = scmp.eq.s32.totalorder %s15, 1
    %p76 = por %p74, %p75
    %p78 = scmp.ne.s32.totalorder %s61, %s77
    %p79 = scmp.eq.s32.totalorder %s15, 0
    %p80 = por %p78, %p79
    %s81 = ssub.s32 %s17, %s24
    %p82 = scmp.eq.s32.totalorder %s81, 0
    %s84 = sadd.s32 %s83, 1
    %s85 = scalar_select %p82, %s83, %s84
    %p88 = pneg %p82
    %p89 = scmp.eq.s32.totalorder %s9, 1
    %p90 = por %p88, %p89
    %p91 = scmp.ne.s32.totalorder %s83, %s86
    %p92 = scmp.eq.s32.totalorder %s9, 0
    %p93 = por %p91, %p92
    %p94 = scmp.ne.s32.totalorder %s83, %s86
    %p95 = scmp.eq.s32.totalorder %s14, 1
    %p96 = por %p94, %p95
    %p97 = scmp.ne.s32.totalorder %s86, %s87
    %p98 = scmp.eq.s32.totalorder %s14, 0
    %p99 = por %p97, %p98
    %p100 = scmp.ne.s32.totalorder %s86, %s87
    %p101 = scmp.eq.s32.totalorder %s15, 1
    %p102 = por %p100, %p101
    %p104 = scmp.ne.s32.totalorder %s87, %s103
    %p105 = scmp.eq.s32.totalorder %s15, 0
    %p106 = por %p104, %p105
    %s107 = ssub.s32 %s16, %s28
    %s108 = ssub.s32 %s17, %s24
    %s109 = sor.u32 %s107, %s108
    %p110 = scmp.eq.s32.totalorder %s109, 0
    %s112 = sadd.s32 %s111, 1
    %s113 = scalar_select %p110, %s111, %s112
    %p116 = pneg %p110
    %p117 = scmp.eq.s32.totalorder %s9, 1
    %p118 = por %p116, %p117
    %p119 = scmp.ne.s32.totalorder %s111, %s114
    %p120 = scmp.eq.s32.totalorder %s9, 0
    %p121 = por %p119, %p120
    %p122 = scmp.ne.s32.totalorder %s111, %s114
    %p123 = scmp.eq.s32.totalorder %s14, 1
    %p124 = por %p122, %p123
    %p125 = scmp.ne.s32.totalorder %s114, %s115
    %p126 = scmp.eq.s32.totalorder %s14, 0
    %p127 = por %p125, %p126
    %p128 = scmp.ne.s32.totalorder %s114, %s115
    %p129 = scmp.eq.s32.totalorder %s15, 1
    %p130 = por %p128, %p129
    %p132 = scmp.ne.s32.totalorder %s115, %s131
    %p133 = scmp.eq.s32.totalorder %s15, 0
    %p134 = por %p132, %p133
    %p135 = scmp.le.s32.totalorder 1, %s9
    %p136 = scmp.lt.s32.totalorder %s9, 3
    %p137 = pnand %p135, %p136
    %p138 = pneg %p137
    // Predicated region
    $region9: #{elan_forward.7} parent=5 // pred_check
      _
    $region10: #{elan_forward.7} parent=5 // pred_check_branch
      %140 = sbr.rel (%p137) target = $region12
    $region11: #{elan_forward.7} parent=5 // pred_region
      %s141 = ssub.s32 %s9, 1
      // Predicated region
      $region13: #{elan_forward.7} parent=11 // pred_check
        %p142 = pneg %p73
      $region14: #{elan_forward.7} parent=11 // pred_check_branch
        %144 = sbr.rel (%p142) target = $region16
      $region15: #{elan_forward.7} parent=11 // pred_region
        %p145 = scmp.lt.s32.totalorder %s19, 0
        %s146 = scalar_select %p145, %s19, 0
        %s147 = smul.addr %s146, 4
        %s148 = scalar_lea.vmem %s1, %s147
      $region16: #{elan_forward.7} parent=11 // pred_fallthru
        _
      // Predicated region
      $region17: #{elan_forward.7} parent=11 // pred_check
        %p149 = pneg %p99
      $region18: #{elan_forward.7} parent=11 // pred_check_branch
        %151 = sbr.rel (%p149) target = $region20
      $region19: #{elan_forward.7} parent=11 // pred_region
        %p152 = scmp.lt.s32.totalorder %s19, 0
        %s153 = scalar_select %p152, %s19, 0
        %s154 = scalar_lea.vmem %s2, %s153
      $region20: #{elan_forward.7} parent=11 // pred_fallthru
        _
    $region12: #{elan_forward.7} parent=5 // pred_fallthru
      _
    %p155 = scmp.lt.s32.totalorder %s9, 2
    // Predicated region
    $region21: #{elan_forward.7} parent=5 // pred_check
      %p156 = pneg %p155
    $region22: #{elan_forward.7} parent=5 // pred_check_branch
      %158 = sbr.rel (%p156) target = $region24
    $region23: #{elan_forward.7} parent=5 // pred_region
      // Predicated region
      $region25: #{elan_forward.7} parent=23 // pred_check
        %p159 = pneg %p41
      $region26: #{elan_forward.7} parent=23 // pred_check_branch
        %161 = sbr.rel (%p159) target = $region28
      $region27: #{elan_forward.7} parent=23 // pred_region
        %p162 = scmp.lt.s32.totalorder %s16, 1
        %s163 = scalar_select %p162, %s16, 1
        %s164 = smul.addr %s163, 57
        %s165 = smul.addr %s164, 4
        %s166 = scalar_lea.vmem %s0, %s165
      $region28: #{elan_forward.7} parent=23 // pred_fallthru
        _
    $region24: #{elan_forward.7} parent=5 // pred_fallthru
      _
    %p167 = scmp.le.s32.totalorder 1, %s9
    %p168 = scmp.lt.s32.totalorder %s9, 3
    %p169 = pnand %p167, %p168
    %p170 = pneg %p169
    // Predicated region
    $region29: #{elan_forward.7} parent=5 // pred_check
      _
    $region30: #{elan_forward.7} parent=5 // pred_check_branch
      %172 = sbr.rel (%p169) target = $region32
    $region31: #{elan_forward.7} parent=5 // pred_region
      %s173 = ssub.s32 %s9, 1
      %p174 = scmp.lt.s32.totalorder %s18, 1
      %s175 = scalar_select %p174, %s18, 1
      %s176 = smul.addr %s175, 57
      %s177 = smul.addr %s176, 4
      %s178 = scalar_lea.vmem %s0, %s177
      %p179 = pneg %p47
      %p180 = pneg %p44
      %p181 = scmp.lt.s32.totalorder %s19, 0
      %s182 = scalar_select %p181, %s19, 0
      %s183 = smul.addr %s182, 4
      %s184 = scalar_lea.vmem %s1, %s183
      %p185 = pneg %p73
      %p186 = pneg %p70
      %p187 = scmp.lt.s32.totalorder %s19, 0
      %s188 = scalar_select %p187, %s19, 0
      %s189 = scalar_lea.vmem %s2, %s188
      %p190 = pneg %p99
      %p191 = pneg %p96
      %p192 = pneg %p127
      %p193 = pneg %p124
      %p194 = scmp.lt.s32.totalorder %s18, 1
      %s195 = scalar_select %p194, %s18, 1
      %p196 = scmp.lt.s32.totalorder %s19, 0
      %s197 = scalar_select %p196, %s19, 0
      %s198 = smul.addr %s195, 48
      %s199 = sadd.s32 %s197, %s198
      %s200 = smul.addr %s199, 4
      %s201 = scalar_lea.vmem %s3, %s200
      %p202 = scmp.lt.s32.totalorder %s18, 1
      %s203 = scalar_select %p202, %s18, 1
      %s204 = smul.addr %s203, 57
      %s205 = smul.addr %s204, 4
      %s206 = scalar_lea.vmem %s0, %s205
      %p207 = scmp.lt.s32.totalorder %s19, 0
      %s208 = scalar_select %p207, %s19, 0
      %s209 = smul.addr %s208, 4
      %s210 = scalar_lea.vmem %s1, %s209
      %p211 = scmp.lt.s32.totalorder %s19, 0
      %s212 = scalar_select %p211, %s19, 0
      %s213 = scalar_lea.vmem %s2, %s212
      %p214 = scmp.lt.s32.totalorder %s18, 1
      %s215 = scalar_select %p214, %s18, 1
      %p216 = scmp.lt.s32.totalorder %s19, 0
      %s217 = scalar_select %p216, %s19, 0
      %s218 = smul.addr %s215, 48
      %s219 = sadd.s32 %s217, %s218
      %s220 = smul.addr %s219, 4
      %s221 = scalar_lea.vmem %s3, %s220
      %v223 = vld [vmem:[%s206] sm:$0xf]
      %v224 = vld [vmem:[%s206 + $0x4] sm:$0xf]
      %v225 = vld [vmem:[%s206 + $0x8] sm:$0xf]
      %v226 = vld [vmem:[%s206 + $0xc] sm:$0xf]
      %v227 = vld [vmem:[%s206 + $0x10] sm:$0xf]
      %v228 = vld [vmem:[%s206 + $0x14] sm:$0xf]
      %v229 = vld [vmem:[%s206 + $0x18] sm:$0xf]
      %v230 = vld [vmem:[%s206 + $0x1c] sm:$0xf]
      %v231 = vld [vmem:[%s206 + $0x20] sm:$0xf]
      %v232 = vld [vmem:[%s206 + $0x24] sm:$0xf]
      %v233 = vld [vmem:[%s206 + $0x28] sm:$0xf]
      %v234 = vld [vmem:[%s206 + $0x2c] sm:$0xf]
      %v235 = vld [vmem:[%s206 + $0x30] sm:$0xf]
      %v236 = vld [vmem:[%s206 + $0x34] sm:$0xf]
      %v237 = vld [vmem:[%s206 + $0x38] sm:$0xf]
      %v238 = vld [vmem:[%s206 + $0x3c] sm:$0xf]
      %v239 = vld [vmem:[%s206 + $0x40] sm:$0xf]
      %v240 = vld [vmem:[%s206 + $0x44] sm:$0xf]
      %v241 = vld [vmem:[%s206 + $0x48] sm:$0xf]
      %v242 = vld [vmem:[%s206 + $0x4c] sm:$0xf]
      %v243 = vld [vmem:[%s206 + $0x50] sm:$0xf]
      %v244 = vld [vmem:[%s206 + $0x54] sm:$0xf]
      %v245 = vld [vmem:[%s206 + $0x58] sm:$0xf]
      %v246 = vld [vmem:[%s206 + $0x5c] sm:$0xf]
      %v247 = vld [vmem:[%s206 + $0x60] sm:$0xf]
      %v248 = vld [vmem:[%s206 + $0x64] sm:$0xf]
      %v249 = vld [vmem:[%s206 + $0x68] sm:$0xf]
      %v250 = vld [vmem:[%s206 + $0x6c] sm:$0xf]
      %v251 = vld [vmem:[%s206 + $0x70] sm:$0xf]
      %v252 = vld [vmem:[%s206 + $0x74] sm:$0xf]
      %v253 = vld [vmem:[%s206 + $0x78] sm:$0xf]
      %v254 = vld [vmem:[%s206 + $0x7c] sm:$0xf]
      %v255 = vld [vmem:[%s206 + $0x80] sm:$0xf]
      %v256 = vld [vmem:[%s206 + $0x84] sm:$0xf]
      %v257 = vld [vmem:[%s206 + $0x88] sm:$0xf]
      %v258 = vld [vmem:[%s206 + $0x8c] sm:$0xf]
      %v259 = vld [vmem:[%s206 + $0x90] sm:$0xf]
      %v260 = vld [vmem:[%s206 + $0x94] sm:$0xf]
      %v261 = vld [vmem:[%s206 + $0x98] sm:$0xf]
      %v262 = vld [vmem:[%s206 + $0x9c] sm:$0xf]
      %v263 = vld [vmem:[%s206 + $0xa0] sm:$0xf]
      %v264 = vld [vmem:[%s206 + $0xa4] sm:$0xf]
      %v265 = vld [vmem:[%s206 + $0xa8] sm:$0xf]
      %v266 = vld [vmem:[%s206 + $0xac] sm:$0xf]
      %v267 = vld [vmem:[%s206 + $0xb0] sm:$0xf]
      %v268 = vld [vmem:[%s206 + $0xb4] sm:$0xf]
      %v269 = vld [vmem:[%s206 + $0xb8] sm:$0xf]
      %v270 = vld [vmem:[%s206 + $0xbc] sm:$0xf]
      %v271 = vld [vmem:[%s210] sm:$0xf]
      %v272 = vld [vmem:[%s206 + $0xc0] sm:$0x1]
      %s273 = scalar_lea.vmem %s210, 4
      %v274 = vld [vmem:[%s273] sm:$0xf]
      %v324 = vunpack.c.l.b16 %v223
      %v325 = vunpack.c.l.b16 %v224
      %v326 = vunpack.c.l.b16 %v225
      %v327 = vunpack.c.l.b16 %v226
      %v328 = vunpack.c.l.b16 %v227
      %v329 = vunpack.c.l.b16 %v228
      %v330 = vunpack.c.l.b16 %v229
      %v331 = vunpack.c.l.b16 %v230
      %v332 = vunpack.c.l.b16 %v231
      %v333 = vunpack.c.l.b16 %v232
      %v334 = vunpack.c.l.b16 %v233
      %v335 = vunpack.c.l.b16 %v234
      %v336 = vunpack.c.l.b16 %v235
      %v337 = vunpack.c.l.b16 %v236
      %v338 = vunpack.c.l.b16 %v237
      %v339 = vunpack.c.l.b16 %v238
      %v340 = vunpack.c.l.b16 %v239
      %v341 = vunpack.c.l.b16 %v240
      %v342 = vunpack.c.l.b16 %v241
      %v343 = vunpack.c.l.b16 %v242
      %v344 = vunpack.c.l.b16 %v243
      %v345 = vunpack.c.l.b16 %v244
      %v346 = vunpack.c.l.b16 %v245
      %v347 = vunpack.c.l.b16 %v246
      %v348 = vunpack.c.l.b16 %v247
      %v349 = vunpack.c.l.b16 %v248
      %v350 = vunpack.c.l.b16 %v249
      %v351 = vunpack.c.l.b16 %v250
      %v352 = vunpack.c.l.b16 %v251
      %v353 = vunpack.c.l.b16 %v252
      %v354 = vunpack.c.l.b16 %v253
      %v355 = vunpack.c.l.b16 %v254
      %v356 = vunpack.c.l.b16 %v255
      %v357 = vunpack.c.l.b16 %v256
      %v358 = vunpack.c.l.b16 %v257
      %v359 = vunpack.c.l.b16 %v258
      %v360 = vunpack.c.l.b16 %v259
      %v361 = vunpack.c.l.b16 %v260
      %v362 = vunpack.c.l.b16 %v261
      %v363 = vunpack.c.l.b16 %v262
      %v364 = vunpack.c.l.b16 %v263
      %v365 = vunpack.c.l.b16 %v264
      %v366 = vunpack.c.l.b16 %v265
      %v367 = vunpack.c.l.b16 %v266
      %v368 = vunpack.c.l.b16 %v267
      %v369 = vunpack.c.l.b16 %v268
      %v370 = vunpack.c.l.b16 %v269
      %v371 = vunpack.c.l.b16 %v270
      %v372 = vunpack.c.l.b16 %v272
      %v373 = vpack.c.b16 %v325, %v324
      %v374 = vpack.c.b16 %v327, %v326
      %v375 = vpack.c.b16 %v329, %v328
      %v376 = vpack.c.b16 %v331, %v330
      %v377 = vpack.c.b16 %v333, %v332
      %v378 = vpack.c.b16 %v335, %v334
      %v379 = vpack.c.b16 %v337, %v336
      %v380 = vpack.c.b16 %v339, %v338
      %v381 = vpack.c.b16 %v341, %v340
      %v382 = vpack.c.b16 %v343, %v342
      %v383 = vpack.c.b16 %v345, %v344
      %v384 = vpack.c.b16 %v347, %v346
      %v385 = vpack.c.b16 %v349, %v348
      %v386 = vpack.c.b16 %v351, %v350
      %v387 = vpack.c.b16 %v353, %v352
      %v388 = vpack.c.b16 %v355, %v354
      %v389 = vpack.c.b16 %v357, %v356
      %v390 = vpack.c.b16 %v359, %v358
      %v391 = vpack.c.b16 %v361, %v360
      %v392 = vpack.c.b16 %v363, %v362
      %v393 = vpack.c.b16 %v365, %v364
      %v394 = vpack.c.b16 %v367, %v366
      %v395 = vpack.c.b16 %v369, %v368
      %v396 = vpack.c.b16 %v371, %v370
      %v397 = vpack.c.b16 %v372, %v372
      %vm398 = vsmask.f32 7424
      %v400 = vshrl.u32 %v373, 16
      %v402 = vshll.u32 %v373, 16
      %v404 = vrot.slane %v402, 1
      %v405 = vor.u32 %v400, %v404
      %v407 = vshll.u32 %v374, 16
      %v409 = vrot.slane %v407, 1
      %v410 = vsel %vm398, %v405, %v409
      %v411 = vshrl.u32 %v374, 16
      %v413 = vor.u32 %v411, %v409
      %v415 = vshll.u32 %v375, 16
      %v417 = vrot.slane %v415, 1
      %v418 = vsel %vm398, %v413, %v417
      %v419 = vshrl.u32 %v375, 16
      %v421 = vor.u32 %v419, %v417
      %v423 = vshll.u32 %v376, 16
      %v425 = vrot.slane %v423, 1
      %v426 = vsel %vm398, %v421, %v425
      %v427 = vshrl.u32 %v376, 16
      %v429 = vor.u32 %v427, %v425
      %v431 = vshll.u32 %v377, 16
      %v433 = vrot.slane %v431, 1
      %v434 = vsel %vm398, %v429, %v433
      %v435 = vshrl.u32 %v377, 16
      %v437 = vor.u32 %v435, %v433
      %v439 = vshll.u32 %v378, 16
      %v441 = vrot.slane %v439, 1
      %v442 = vsel %vm398, %v437, %v441
      %v443 = vshrl.u32 %v378, 16
      %v445 = vor.u32 %v443, %v441
      %v447 = vshll.u32 %v379, 16
      %v449 = vrot.slane %v447, 1
      %v450 = vsel %vm398, %v445, %v449
      %v451 = vshrl.u32 %v379, 16
      %v453 = vor.u32 %v451, %v449
      %v455 = vshll.u32 %v380, 16
      %v457 = vrot.slane %v455, 1
      %v458 = vsel %vm398, %v453, %v457
      %v459 = vshrl.u32 %v380, 16
      %v461 = vor.u32 %v459, %v457
      %v463 = vshll.u32 %v381, 16
      %v465 = vrot.slane %v463, 1
      %v466 = vsel %vm398, %v461, %v465
      %v467 = vshrl.u32 %v381, 16
      %v469 = vor.u32 %v467, %v465
      %v471 = vshll.u32 %v382, 16
      %v473 = vrot.slane %v471, 1
      %v474 = vsel %vm398, %v469, %v473
      %v475 = vshrl.u32 %v382, 16
      %v477 = vor.u32 %v475, %v473
      %v479 = vshll.u32 %v383, 16
      %v481 = vrot.slane %v479, 1
      %v482 = vsel %vm398, %v477, %v481
      %v483 = vshrl.u32 %v383, 16
      %v485 = vor.u32 %v483, %v481
      %v487 = vshll.u32 %v384, 16
      %v489 = vrot.slane %v487, 1
      %v490 = vsel %vm398, %v485, %v489
      %v491 = vshrl.u32 %v384, 16
      %v493 = vor.u32 %v491, %v489
      %v495 = vshll.u32 %v385, 16
      %v497 = vrot.slane %v495, 1
      %v498 = vsel %vm398, %v493, %v497
      %v499 = vshrl.u32 %v385, 16
      %v501 = vor.u32 %v499, %v497
      %v503 = vshll.u32 %v386, 16
      %v505 = vrot.slane %v503, 1
      %v506 = vsel %vm398, %v501, %v505
      %v507 = vshrl.u32 %v386, 16
      %v509 = vor.u32 %v507, %v505
      %v511 = vshll.u32 %v387, 16
      %v513 = vrot.slane %v511, 1
      %v514 = vsel %vm398, %v509, %v513
      %v515 = vshrl.u32 %v387, 16
      %v517 = vor.u32 %v515, %v513
      %v519 = vshll.u32 %v388, 16
      %v521 = vrot.slane %v519, 1
      %v522 = vsel %vm398, %v517, %v521
      %v523 = vshrl.u32 %v388, 16
      %v525 = vor.u32 %v523, %v521
      %v527 = vshll.u32 %v389, 16
      %v529 = vrot.slane %v527, 1
      %v530 = vsel %vm398, %v525, %v529
      %v531 = vshrl.u32 %v389, 16
      %v533 = vor.u32 %v531, %v529
      %v535 = vshll.u32 %v390, 16
      %v537 = vrot.slane %v535, 1
      %v538 = vsel %vm398, %v533, %v537
      %v539 = vshrl.u32 %v390, 16
      %v541 = vor.u32 %v539, %v537
      %v543 = vshll.u32 %v391, 16
      %v545 = vrot.slane %v543, 1
      %v546 = vsel %vm398, %v541, %v545
      %v547 = vshrl.u32 %v391, 16
      %v549 = vor.u32 %v547, %v545
      %v551 = vshll.u32 %v392, 16
      %v553 = vrot.slane %v551, 1
      %v554 = vsel %vm398, %v549, %v553
      %v555 = vshrl.u32 %v392, 16
      %v557 = vor.u32 %v555, %v553
      %v559 = vshll.u32 %v393, 16
      %v561 = vrot.slane %v559, 1
      %v562 = vsel %vm398, %v557, %v561
      %v563 = vshrl.u32 %v393, 16
      %v565 = vor.u32 %v563, %v561
      %v567 = vshll.u32 %v394, 16
      %v569 = vrot.slane %v567, 1
      %v570 = vsel %vm398, %v565, %v569
      %v571 = vshrl.u32 %v394, 16
      %v573 = vor.u32 %v571, %v569
      %v575 = vshll.u32 %v395, 16
      %v577 = vrot.slane %v575, 1
      %v578 = vsel %vm398, %v573, %v577
      %v579 = vshrl.u32 %v395, 16
      %v581 = vor.u32 %v579, %v577
      %v583 = vshll.u32 %v396, 16
      %v585 = vrot.slane %v583, 1
      %v586 = vsel %vm398, %v581, %v585
      %v587 = vshrl.u32 %v396, 16
      %v589 = vor.u32 %v587, %v585
      %v591 = vshll.u32 %v397, 16
      %v593 = vrot.slane %v591, 1
      %v594 = vsel %vm398, %v589, %v593
      %vm595 = vcmask 64512
      %v597 = vsel %vm595, %v410, 0
      %v600 = vsel %vm595, %v418, 0
      %v603 = vsel %vm595, %v426, 0
      %v606 = vsel %vm595, %v434, 0
      %v609 = vsel %vm595, %v442, 0
      %v612 = vsel %vm595, %v450, 0
      %v615 = vsel %vm595, %v458, 0
      %v618 = vsel %vm595, %v466, 0
      %v621 = vsel %vm595, %v474, 0
      %v624 = vsel %vm595, %v482, 0
      %v627 = vsel %vm595, %v490, 0
      %v630 = vsel %vm595, %v498, 0
      %v633 = vsel %vm595, %v506, 0
      %v636 = vsel %vm595, %v514, 0
      %v639 = vsel %vm595, %v522, 0
      %v642 = vsel %vm595, %v530, 0
      %v645 = vsel %vm595, %v538, 0
      %v648 = vsel %vm595, %v546, 0
      %v651 = vsel %vm595, %v554, 0
      %v654 = vsel %vm595, %v562, 0
      %v657 = vsel %vm595, %v570, 0
      %v660 = vsel %vm595, %v578, 0
      %v663 = vsel %vm595, %v586, 0
      %v666 = vsel %vm595, %v594, 0
      %vm668 = vcmask 1043456
      %v670 = vsel %vm668, %v274, 0
      %672 = vmatprep.subr.bf16.mxu0 0
      %673 = vmatpush1.bf16.msra.mxu0 0
      %674 = vmatprep.subr.bf16.mxu0 0
      %675 = vmatpush1.bf16.msra.mxu0 0
      %676 = vmatprep.subr.bf16.mxu0 0
      %677 = vmatpush1.bf16.msra.mxu0 0
      %678 = vmatprep.subr.bf16.mxu0 0
      %679 = vmatpush1.bf16.msra.mxu0 0
      %680 = vmatprep.subr.bf16.mxu0 0
      %681 = vmatpush1.bf16.msra.mxu0 0
      %682 = vmatprep.subr.bf16.mxu0 0
      %683 = vmatpush1.bf16.msra.mxu0 0
      %684 = vmatprep.subr.bf16.mxu0 0
      %685 = vmatpush1.bf16.msra.mxu0 0
      %686 = vmatprep.subr.bf16.mxu0 0
      %687 = vmatpush1.bf16.msra.mxu0 %v670
      %688 = vmatprep.subr.bf16.mxu0 0
      %689 = vmatpush2.bf16.msra.mxu0 0
      %690 = vmatprep.subr.bf16.mxu0 0
      %691 = vmatpush2.bf16.msra.mxu0 0
      %692 = vmatprep.subr.bf16.mxu0 0
      %693 = vmatpush2.bf16.msra.mxu0 0
      %694 = vmatprep.subr.bf16.mxu0 0
      %695 = vmatpush2.bf16.msra.mxu0 0
      %696 = vmatprep.subr.bf16.mxu0 0
      %697 = vmatpush2.bf16.msra.mxu0 0
      %698 = vmatprep.subr.bf16.mxu0 0
      %699 = vmatpush2.bf16.msra.mxu0 0
      %700 = vmatprep.subr.bf16.mxu0 0
      %701 = vmatpush2.bf16.msra.mxu0 0
      %702 = vmatprep.subr.bf16.mxu0 0
      %703 = vmatpush2.bf16.msra.mxu0 0
      %704 = vmatprep.mubr.bf16.mxu0 0
      %705 = vmatmul.mubr.bf16.gmra.mxu0 %v597
      %v706 = vpop.f32.mrf.mxu0
      %v707 = vadd.f32 0.0, %v706
      %v708 = vpop.f32.mrf.mxu0
      %v709 = vpop.f32.mrf.mxu0
      %v710 = vadd.f32 0.0, %v709
      %v711 = vpop.f32.mrf.mxu0
      %712 = vmatprep.mubr.bf16.mxu0 0
      %713 = vmatmul.mubr.bf16.gmra.mxu0 %v600
      %v714 = vpop.f32.mrf.mxu0
      %v715 = vadd.f32 0.0, %v714
      %v716 = vpop.f32.mrf.mxu0
      %v717 = vpop.f32.mrf.mxu0
      %v718 = vadd.f32 0.0, %v717
      %v719 = vpop.f32.mrf.mxu0
      %720 = vmatprep.mubr.bf16.mxu0 0
      %721 = vmatmul.mubr.bf16.gmra.mxu0 %v603
      %v722 = vpop.f32.mrf.mxu0
      %v723 = vadd.f32 0.0, %v722
      %v724 = vpop.f32.mrf.mxu0
      %v725 = vpop.f32.mrf.mxu0
      %v726 = vadd.f32 0.0, %v725
      %v727 = vpop.f32.mrf.mxu0
      %728 = vmatprep.mubr.bf16.mxu0 0
      %729 = vmatmul.mubr.bf16.gmra.mxu0 %v606
      %v730 = vpop.f32.mrf.mxu0
      %v731 = vadd.f32 0.0, %v730
      %v732 = vpop.f32.mrf.mxu0
      %v733 = vpop.f32.mrf.mxu0
      %v734 = vadd.f32 0.0, %v733
      %v735 = vpop.f32.mrf.mxu0
      %736 = vmatprep.mubr.bf16.mxu0 0
      %737 = vmatmul.mubr.bf16.gmra.mxu0 %v609
      %v738 = vpop.f32.mrf.mxu0
      %v739 = vadd.f32 0.0, %v738
      %v740 = vpop.f32.mrf.mxu0
      %v741 = vpop.f32.mrf.mxu0
      %v742 = vadd.f32 0.0, %v741
      %v743 = vpop.f32.mrf.mxu0
      %744 = vmatprep.mubr.bf16.mxu0 0
      %745 = vmatmul.mubr.bf16.gmra.mxu0 %v612
      %v746 = vpop.f32.mrf.mxu0
      %v747 = vadd.f32 0.0, %v746
      %v748 = vpop.f32.mrf.mxu0
      %v749 = vpop.f32.mrf.mxu0
      %v750 = vadd.f32 0.0, %v749
      %v751 = vpop.f32.mrf.mxu0
      %752 = vmatprep.mubr.bf16.mxu0 0
      %753 = vmatmul.mubr.bf16.gmra.mxu0 %v615
      %v754 = vpop.f32.mrf.mxu0
      %v755 = vadd.f32 0.0, %v754
      %v756 = vpop.f32.mrf.mxu0
      %v757 = vpop.f32.mrf.mxu0
      %v758 = vadd.f32 0.0, %v757
      %v759 = vpop.f32.mrf.mxu0
      %760 = vmatprep.mubr.bf16.mxu0 0
      %761 = vmatmul.mubr.bf16.gmra.mxu0 %v618
      %v762 = vpop.f32.mrf.mxu0
      %v763 = vadd.f32 0.0, %v762
      %v764 = vpop.f32.mrf.mxu0
      %v765 = vpop.f32.mrf.mxu0
      %v766 = vadd.f32 0.0, %v765
      %v767 = vpop.f32.mrf.mxu0
      %768 = vmatprep.mubr.bf16.mxu0 0
      %769 = vmatmul.mubr.bf16.gmra.mxu0 %v621
      %v770 = vpop.f32.mrf.mxu0
      %v771 = vadd.f32 0.0, %v770
      %v772 = vpop.f32.mrf.mxu0
      %v773 = vpop.f32.mrf.mxu0
      %v774 = vadd.f32 0.0, %v773
      %v775 = vpop.f32.mrf.mxu0
      %776 = vmatprep.mubr.bf16.mxu0 0
      %777 = vmatmul.mubr.bf16.gmra.mxu0 %v624
      %v778 = vpop.f32.mrf.mxu0
      %v779 = vadd.f32 0.0, %v778
      %v780 = vpop.f32.mrf.mxu0
      %v781 = vpop.f32.mrf.mxu0
      %v782 = vadd.f32 0.0, %v781
      %v783 = vpop.f32.mrf.mxu0
      %784 = vmatprep.mubr.bf16.mxu0 0
      %785 = vmatmul.mubr.bf16.gmra.mxu0 %v627
      %v786 = vpop.f32.mrf.mxu0
      %v787 = vadd.f32 0.0, %v786
      %v788 = vpop.f32.mrf.mxu0
      %v789 = vpop.f32.mrf.mxu0
      %v790 = vadd.f32 0.0, %v789
      %v791 = vpop.f32.mrf.mxu0
      %792 = vmatprep.mubr.bf16.mxu0 0
      %793 = vmatmul.mubr.bf16.gmra.mxu0 %v630
      %v794 = vpop.f32.mrf.mxu0
      %v795 = vadd.f32 0.0, %v794
      %v796 = vpop.f32.mrf.mxu0
      %v797 = vpop.f32.mrf.mxu0
      %v798 = vadd.f32 0.0, %v797
      %v799 = vpop.f32.mrf.mxu0
      %800 = vmatprep.mubr.bf16.mxu0 0
      %801 = vmatmul.mubr.bf16.gmra.mxu0 %v633
      %v802 = vpop.f32.mrf.mxu0
      %v803 = vadd.f32 0.0, %v802
      %v804 = vpop.f32.mrf.mxu0
      %v805 = vpop.f32.mrf.mxu0
      %v806 = vadd.f32 0.0, %v805
      %v807 = vpop.f32.mrf.mxu0
      %808 = vmatprep.mubr.bf16.mxu0 0
      %809 = vmatmul.mubr.bf16.gmra.mxu0 %v636
      %v810 = vpop.f32.mrf.mxu0
      %v811 = vadd.f32 0.0, %v810
      %v812 = vpop.f32.mrf.mxu0
      %v813 = vpop.f32.mrf.mxu0
      %v814 = vadd.f32 0.0, %v813
      %v815 = vpop.f32.mrf.mxu0
      %816 = vmatprep.mubr.bf16.mxu0 0
      %817 = vmatmul.mubr.bf16.gmra.mxu0 %v639
      %v818 = vpop.f32.mrf.mxu0
      %v819 = vadd.f32 0.0, %v818
      %v820 = vpop.f32.mrf.mxu0
      %v821 = vpop.f32.mrf.mxu0
      %v822 = vadd.f32 0.0, %v821
      %v823 = vpop.f32.mrf.mxu0
      %824 = vmatprep.mubr.bf16.mxu0 0
      %825 = vmatmul.mubr.bf16.gmra.mxu0 %v642
      %v826 = vpop.f32.mrf.mxu0
      %v827 = vadd.f32 0.0, %v826
      %v828 = vpop.f32.mrf.mxu0
      %v829 = vpop.f32.mrf.mxu0
      %v830 = vadd.f32 0.0, %v829
      %v831 = vpop.f32.mrf.mxu0
      %832 = vmatprep.mubr.bf16.mxu0 0
      %833 = vmatmul.mubr.bf16.gmra.mxu0 %v645
      %v834 = vpop.f32.mrf.mxu0
      %v835 = vadd.f32 0.0, %v834
      %v836 = vpop.f32.mrf.mxu0
      %v837 = vpop.f32.mrf.mxu0
      %v838 = vadd.f32 0.0, %v837
      %v839 = vpop.f32.mrf.mxu0
      %840 = vmatprep.mubr.bf16.mxu0 0
      %841 = vmatmul.mubr.bf16.gmra.mxu0 %v648
      %v842 = vpop.f32.mrf.mxu0
      %v843 = vadd.f32 0.0, %v842
      %v844 = vpop.f32.mrf.mxu0
      %v845 = vpop.f32.mrf.mxu0
      %v846 = vadd.f32 0.0, %v845
      %v847 = vpop.f32.mrf.mxu0
      %848 = vmatprep.mubr.bf16.mxu0 0
      %849 = vmatmul.mubr.bf16.gmra.mxu0 %v651
      %v850 = vpop.f32.mrf.mxu0
      %v851 = vadd.f32 0.0, %v850
      %v852 = vpop.f32.mrf.mxu0
      %v853 = vpop.f32.mrf.mxu0
      %v854 = vadd.f32 0.0, %v853
      %v855 = vpop.f32.mrf.mxu0
      %856 = vmatprep.mubr.bf16.mxu0 0
      %857 = vmatmul.mubr.bf16.gmra.mxu0 %v654
      %v858 = vpop.f32.mrf.mxu0
      %v859 = vadd.f32 0.0, %v858
      %v860 = vpop.f32.mrf.mxu0
      %v861 = vpop.f32.mrf.mxu0
      %v862 = vadd.f32 0.0, %v861
      %v863 = vpop.f32.mrf.mxu0
      %864 = vmatprep.mubr.bf16.mxu0 0
      %865 = vmatmul.mubr.bf16.gmra.mxu0 %v657
      %v866 = vpop.f32.mrf.mxu0
      %v867 = vadd.f32 0.0, %v866
      %v868 = vpop.f32.mrf.mxu0
      %v869 = vpop.f32.mrf.mxu0
      %v870 = vadd.f32 0.0, %v869
      %v871 = vpop.f32.mrf.mxu0
      %872 = vmatprep.mubr.bf16.mxu0 0
      %873 = vmatmul.mubr.bf16.gmra.mxu0 %v660
      %v874 = vpop.f32.mrf.mxu0
      %v875 = vadd.f32 0.0, %v874
      %v876 = vpop.f32.mrf.mxu0
      %v877 = vpop.f32.mrf.mxu0
      %v878 = vadd.f32 0.0, %v877
      %v879 = vpop.f32.mrf.mxu0
      %880 = vmatprep.mubr.bf16.mxu0 0
      %881 = vmatmul.mubr.bf16.gmra.mxu0 %v663
      %v882 = vpop.f32.mrf.mxu0
      %v883 = vadd.f32 0.0, %v882
      %v884 = vpop.f32.mrf.mxu0
      %v885 = vpop.f32.mrf.mxu0
      %v886 = vadd.f32 0.0, %v885
      %v887 = vpop.f32.mrf.mxu0
      %888 = vmatprep.mubr.bf16.mxu0 0
      %889 = vmatmul.mubr.bf16.gmra.mxu0 %v666
      %v890 = vpop.f32.mrf.mxu0
      %v891 = vadd.f32 0.0, %v890
      %v892 = vpop.f32.mrf.mxu0
      %v893 = vpop.f32.mrf.mxu0
      %v894 = vadd.f32 0.0, %v893
      %v895 = vpop.f32.mrf.mxu0
      %896 = vdwg.mxu0
      %v897 = vsel %vm595, %v373, 0
      %v899 = vsel %vm595, %v374, 0
      %v901 = vsel %vm595, %v375, 0
      %v903 = vsel %vm595, %v376, 0
      %v905 = vsel %vm595, %v377, 0
      %v907 = vsel %vm595, %v378, 0
      %v909 = vsel %vm595, %v379, 0
      %v911 = vsel %vm595, %v380, 0
      %v913 = vsel %vm595, %v381, 0
      %v915 = vsel %vm595, %v382, 0
      %v917 = vsel %vm595, %v383, 0
      %v919 = vsel %vm595, %v384, 0
      %v921 = vsel %vm595, %v385, 0
      %v923 = vsel %vm595, %v386, 0
      %v925 = vsel %vm595, %v387, 0
      %v927 = vsel %vm595, %v388, 0
      %v929 = vsel %vm595, %v389, 0
      %v931 = vsel %vm595, %v390, 0
      %v933 = vsel %vm595, %v391, 0
      %v935 = vsel %vm595, %v392, 0
      %v937 = vsel %vm595, %v393, 0
      %v939 = vsel %vm595, %v394, 0
      %v941 = vsel %vm595, %v395, 0
      %v943 = vsel %vm595, %v396, 0
      %v946 = vsel %vm668, %v271, 0
      %948 = vmatprep.subr.bf16.mxu0 0
      %949 = vmatpush1.bf16.msra.mxu0 0
      %950 = vmatprep.subr.bf16.mxu0 0
      %951 = vmatpush1.bf16.msra.mxu0 0
      %952 = vmatprep.subr.bf16.mxu0 0
      %953 = vmatpush1.bf16.msra.mxu0 0
      %954 = vmatprep.subr.bf16.mxu0 0
      %955 = vmatpush1.bf16.msra.mxu0 0
      %956 = vmatprep.subr.bf16.mxu0 0
      %957 = vmatpush1.bf16.msra.mxu0 0
      %958 = vmatprep.subr.bf16.mxu0 0
      %959 = vmatpush1.bf16.msra.mxu0 0
      %960 = vmatprep.subr.bf16.mxu0 0
      %961 = vmatpush1.bf16.msra.mxu0 0
      %962 = vmatprep.subr.bf16.mxu0 0
      %963 = vmatpush1.bf16.msra.mxu0 %v946
      %964 = vmatprep.subr.bf16.mxu0 0
      %965 = vmatpush2.bf16.msra.mxu0 0
      %966 = vmatprep.subr.bf16.mxu0 0
      %967 = vmatpush2.bf16.msra.mxu0 0
      %968 = vmatprep.subr.bf16.mxu0 0
      %969 = vmatpush2.bf16.msra.mxu0 0
      %970 = vmatprep.subr.bf16.mxu0 0
      %971 = vmatpush2.bf16.msra.mxu0 0
      %972 = vmatprep.subr.bf16.mxu0 0
      %973 = vmatpush2.bf16.msra.mxu0 0
      %974 = vmatprep.subr.bf16.mxu0 0
      %975 = vmatpush2.bf16.msra.mxu0 0
      %976 = vmatprep.subr.bf16.mxu0 0
      %977 = vmatpush2.bf16.msra.mxu0 0
      %978 = vmatprep.subr.bf16.mxu0 0
      %979 = vmatpush2.bf16.msra.mxu0 0
      %980 = vmatprep.mubr.bf16.mxu0 0
      %981 = vmatmul.mubr.bf16.gmra.mxu0 %v897
      %v982 = vpop.f32.mrf.mxu0
      %v983 = vadd.f32 %v707, %v982
      %v984 = vpop.f32.mrf.mxu0
      %v985 = vpop.f32.mrf.mxu0
      %v986 = vadd.f32 %v710, %v985
      %v987 = vpop.f32.mrf.mxu0
      %988 = vmatprep.mubr.bf16.mxu0 0
      %989 = vmatmul.mubr.bf16.gmra.mxu0 %v899
      %v990 = vpop.f32.mrf.mxu0
      %v991 = vadd.f32 %v715, %v990
      %v992 = vpop.f32.mrf.mxu0
      %v993 = vpop.f32.mrf.mxu0
      %v994 = vadd.f32 %v718, %v993
      %v995 = vpop.f32.mrf.mxu0
      %996 = vmatprep.mubr.bf16.mxu0 0
      %997 = vmatmul.mubr.bf16.gmra.mxu0 %v901
      %v998 = vpop.f32.mrf.mxu0
      %v999 = vadd.f32 %v723, %v998
      %v1000 = vpop.f32.mrf.mxu0
      %v1001 = vpop.f32.mrf.mxu0
      %v1002 = vadd.f32 %v726, %v1001
      %v1003 = vpop.f32.mrf.mxu0
      %1004 = vmatprep.mubr.bf16.mxu0 0
      %1005 = vmatmul.mubr.bf16.gmra.mxu0 %v903
      %v1006 = vpop.f32.mrf.mxu0
      %v1007 = vadd.f32 %v731, %v1006
      %v1008 = vpop.f32.mrf.mxu0
      %v1009 = vpop.f32.mrf.mxu0
      %v1010 = vadd.f32 %v734, %v1009
      %v1011 = vpop.f32.mrf.mxu0
      %1012 = vmatprep.mubr.bf16.mxu0 0
      %1013 = vmatmul.mubr.bf16.gmra.mxu0 %v905
      %v1014 = vpop.f32.mrf.mxu0
      %v1015 = vadd.f32 %v739, %v1014
      %v1016 = vpop.f32.mrf.mxu0
      %v1017 = vpop.f32.mrf.mxu0
      %v1018 = vadd.f32 %v742, %v1017
      %v1019 = vpop.f32.mrf.mxu0
      %1020 = vmatprep.mubr.bf16.mxu0 0
      %1021 = vmatmul.mubr.bf16.gmra.mxu0 %v907
      %v1022 = vpop.f32.mrf.mxu0
      %v1023 = vadd.f32 %v747, %v1022
      %v1024 = vpop.f32.mrf.mxu0
      %v1025 = vpop.f32.mrf.mxu0
      %v1026 = vadd.f32 %v750, %v1025
      %v1027 = vpop.f32.mrf.mxu0
      %1028 = vmatprep.mubr.bf16.mxu0 0
      %1029 = vmatmul.mubr.bf16.gmra.mxu0 %v909
      %v1030 = vpop.f32.mrf.mxu0
      %v1031 = vadd.f32 %v755, %v1030
      %v1032 = vpop.f32.mrf.mxu0
      %v1033 = vpop.f32.mrf.mxu0
      %v1034 = vadd.f32 %v758, %v1033
      %v1035 = vpop.f32.mrf.mxu0
      %1036 = vmatprep.mubr.bf16.mxu0 0
      %1037 = vmatmul.mubr.bf16.gmra.mxu0 %v911
      %v1038 = vpop.f32.mrf.mxu0
      %v1039 = vadd.f32 %v763, %v1038
      %v1040 = vpop.f32.mrf.mxu0
      %v1041 = vpop.f32.mrf.mxu0
      %v1042 = vadd.f32 %v766, %v1041
      %v1043 = vpop.f32.mrf.mxu0
      %1044 = vmatprep.mubr.bf16.mxu0 0
      %1045 = vmatmul.mubr.bf16.gmra.mxu0 %v913
      %v1046 = vpop.f32.mrf.mxu0
      %v1047 = vadd.f32 %v771, %v1046
      %v1048 = vpop.f32.mrf.mxu0
      %v1049 = vpop.f32.mrf.mxu0
      %v1050 = vadd.f32 %v774, %v1049
      %v1051 = vpop.f32.mrf.mxu0
      %1052 = vmatprep.mubr.bf16.mxu0 0
      %1053 = vmatmul.mubr.bf16.gmra.mxu0 %v915
      %v1054 = vpop.f32.mrf.mxu0
      %v1055 = vadd.f32 %v779, %v1054
      %v1056 = vpop.f32.mrf.mxu0
      %v1057 = vpop.f32.mrf.mxu0
      %v1058 = vadd.f32 %v782, %v1057
      %v1059 = vpop.f32.mrf.mxu0
      %1060 = vmatprep.mubr.bf16.mxu0 0
      %1061 = vmatmul.mubr.bf16.gmra.mxu0 %v917
      %v1062 = vpop.f32.mrf.mxu0
      %v1063 = vadd.f32 %v787, %v1062
      %v1064 = vpop.f32.mrf.mxu0
      %v1065 = vpop.f32.mrf.mxu0
      %v1066 = vadd.f32 %v790, %v1065
      %v1067 = vpop.f32.mrf.mxu0
      %1068 = vmatprep.mubr.bf16.mxu0 0
      %1069 = vmatmul.mubr.bf16.gmra.mxu0 %v919
      %v1070 = vpop.f32.mrf.mxu0
      %v1071 = vadd.f32 %v795, %v1070
      %v1072 = vpop.f32.mrf.mxu0
      %v1073 = vpop.f32.mrf.mxu0
      %v1074 = vadd.f32 %v798, %v1073
      %v1075 = vpop.f32.mrf.mxu0
      %1076 = vmatprep.mubr.bf16.mxu0 0
      %1077 = vmatmul.mubr.bf16.gmra.mxu0 %v921
      %v1078 = vpop.f32.mrf.mxu0
      %v1079 = vadd.f32 %v803, %v1078
      %v1080 = vpop.f32.mrf.mxu0
      %v1081 = vpop.f32.mrf.mxu0
      %v1082 = vadd.f32 %v806, %v1081
      %v1083 = vpop.f32.mrf.mxu0
      %1084 = vmatprep.mubr.bf16.mxu0 0
      %1085 = vmatmul.mubr.bf16.gmra.mxu0 %v923
      %v1086 = vpop.f32.mrf.mxu0
      %v1087 = vadd.f32 %v811, %v1086
      %v1088 = vpop.f32.mrf.mxu0
      %v1089 = vpop.f32.mrf.mxu0
      %v1090 = vadd.f32 %v814, %v1089
      %v1091 = vpop.f32.mrf.mxu0
      %1092 = vmatprep.mubr.bf16.mxu0 0
      %1093 = vmatmul.mubr.bf16.gmra.mxu0 %v925
      %v1094 = vpop.f32.mrf.mxu0
      %v1095 = vadd.f32 %v819, %v1094
      %v1096 = vpop.f32.mrf.mxu0
      %v1097 = vpop.f32.mrf.mxu0
      %v1098 = vadd.f32 %v822, %v1097
      %v1099 = vpop.f32.mrf.mxu0
      %1100 = vmatprep.mubr.bf16.mxu0 0
      %1101 = vmatmul.mubr.bf16.gmra.mxu0 %v927
      %v1102 = vpop.f32.mrf.mxu0
      %v1103 = vadd.f32 %v827, %v1102
      %v1104 = vpop.f32.mrf.mxu0
      %v1105 = vpop.f32.mrf.mxu0
      %v1106 = vadd.f32 %v830, %v1105
      %v1107 = vpop.f32.mrf.mxu0
      %1108 = vmatprep.mubr.bf16.mxu0 0
      %1109 = vmatmul.mubr.bf16.gmra.mxu0 %v929
      %v1110 = vpop.f32.mrf.mxu0
      %v1111 = vadd.f32 %v835, %v1110
      %v1112 = vpop.f32.mrf.mxu0
      %v1113 = vpop.f32.mrf.mxu0
      %v1114 = vadd.f32 %v838, %v1113
      %v1115 = vpop.f32.mrf.mxu0
      %1116 = vmatprep.mubr.bf16.mxu0 0
      %1117 = vmatmul.mubr.bf16.gmra.mxu0 %v931
      %v1118 = vpop.f32.mrf.mxu0
      %v1119 = vadd.f32 %v843, %v1118
      %v1120 = vpop.f32.mrf.mxu0
      %v1121 = vpop.f32.mrf.mxu0
      %v1122 = vadd.f32 %v846, %v1121
      %v1123 = vpop.f32.mrf.mxu0
      %1124 = vmatprep.mubr.bf16.mxu0 0
      %1125 = vmatmul.mubr.bf16.gmra.mxu0 %v933
      %v1126 = vpop.f32.mrf.mxu0
      %v1127 = vadd.f32 %v851, %v1126
      %v1128 = vpop.f32.mrf.mxu0
      %v1129 = vpop.f32.mrf.mxu0
      %v1130 = vadd.f32 %v854, %v1129
      %v1131 = vpop.f32.mrf.mxu0
      %1132 = vmatprep.mubr.bf16.mxu0 0
      %1133 = vmatmul.mubr.bf16.gmra.mxu0 %v935
      %v1134 = vpop.f32.mrf.mxu0
      %v1135 = vadd.f32 %v859, %v1134
      %v1136 = vpop.f32.mrf.mxu0
      %v1137 = vpop.f32.mrf.mxu0
      %v1138 = vadd.f32 %v862, %v1137
      %v1139 = vpop.f32.mrf.mxu0
      %1140 = vmatprep.mubr.bf16.mxu0 0
      %1141 = vmatmul.mubr.bf16.gmra.mxu0 %v937
      %v1142 = vpop.f32.mrf.mxu0
      %v1143 = vadd.f32 %v867, %v1142
      %v1144 = vpop.f32.mrf.mxu0
      %v1145 = vpop.f32.mrf.mxu0
      %v1146 = vadd.f32 %v870, %v1145
      %v1147 = vpop.f32.mrf.mxu0
      %1148 = vmatprep.mubr.bf16.mxu0 0
      %1149 = vmatmul.mubr.bf16.gmra.mxu0 %v939
      %v1150 = vpop.f32.mrf.mxu0
      %v1151 = vadd.f32 %v875, %v1150
      %v1152 = vpop.f32.mrf.mxu0
      %v1153 = vpop.f32.mrf.mxu0
      %v1154 = vadd.f32 %v878, %v1153
      %v1155 = vpop.f32.mrf.mxu0
      %1156 = vmatprep.mubr.bf16.mxu0 0
      %1157 = vmatmul.mubr.bf16.gmra.mxu0 %v941
      %v1158 = vpop.f32.mrf.mxu0
      %v1159 = vadd.f32 %v883, %v1158
      %v1160 = vpop.f32.mrf.mxu0
      %v1161 = vpop.f32.mrf.mxu0
      %v1162 = vadd.f32 %v886, %v1161
      %v1163 = vpop.f32.mrf.mxu0
      %1164 = vmatprep.mubr.bf16.mxu0 0
      %1165 = vmatmul.mubr.bf16.gmra.mxu0 %v943
      %v1166 = vpop.f32.mrf.mxu0
      %v1167 = vadd.f32 %v891, %v1166
      %v1168 = vpop.f32.mrf.mxu0
      %v1169 = vpop.f32.mrf.mxu0
      %v1170 = vadd.f32 %v894, %v1169
      %v1171 = vpop.f32.mrf.mxu0
      %1172 = vdwg.mxu0
      %v1173 = vld [vmem:[%s206] sm:$0xe]
      %s1174 = scalar_lea.vmem %s210, 8
      %v1175 = vld [vmem:[%s1174] sm:$0xf]
      %v1177 = vunpack.c.l.b16 %v1173
      %v1178 = vpack.c.b16 %v325, %v1177
      %vm1179 = vcmask 1046528
      %v1180 = vrot.slane %v1178, 1
      %v1181 = vrot.slane %v374, 1
      %v1182 = vsel %vm1179, %v1180, %v1181
      %v1183 = vrot.slane %v375, 1
      %v1184 = vsel %vm1179, %v1181, %v1183
      %v1185 = vrot.slane %v376, 1
      %v1186 = vsel %vm1179, %v1183, %v1185
      %v1187 = vrot.slane %v377, 1
      %v1188 = vsel %vm1179, %v1185, %v1187
      %v1189 = vrot.slane %v378, 1
      %v1190 = vsel %vm1179, %v1187, %v1189
      %v1191 = vrot.slane %v379, 1
      %v1192 = vsel %vm1179, %v1189, %v1191
      %v1193 = vrot.slane %v380, 1
      %v1194 = vsel %vm1179, %v1191, %v1193
      %v1195 = vrot.slane %v381, 1
      %v1196 = vsel %vm1179, %v1193, %v1195
      %v1197 = vrot.slane %v382, 1
      %v1198 = vsel %vm1179, %v1195, %v1197
      %v1199 = vrot.slane %v383, 1
      %v1200 = vsel %vm1179, %v1197, %v1199
      %v1201 = vrot.slane %v384, 1
      %v1202 = vsel %vm1179, %v1199, %v1201
      %v1203 = vrot.slane %v385, 1
      %v1204 = vsel %vm1179, %v1201, %v1203
      %v1205 = vrot.slane %v386, 1
      %v1206 = vsel %vm1179, %v1203, %v1205
      %v1207 = vrot.slane %v387, 1
      %v1208 = vsel %vm1179, %v1205, %v1207
      %v1209 = vrot.slane %v388, 1
      %v1210 = vsel %vm1179, %v1207, %v1209
      %v1211 = vrot.slane %v389, 1
      %v1212 = vsel %vm1179, %v1209, %v1211
      %v1213 = vrot.slane %v390, 1
      %v1214 = vsel %vm1179, %v1211, %v1213
      %v1215 = vrot.slane %v391, 1
      %v1216 = vsel %vm1179, %v1213, %v1215
      %v1217 = vrot.slane %v392, 1
      %v1218 = vsel %vm1179, %v1215, %v1217
      %v1219 = vrot.slane %v393, 1
      %v1220 = vsel %vm1179, %v1217, %v1219
      %v1221 = vrot.slane %v394, 1
      %v1222 = vsel %vm1179, %v1219, %v1221
      %v1223 = vrot.slane %v395, 1
      %v1224 = vsel %vm1179, %v1221, %v1223
      %v1225 = vrot.slane %v396, 1
      %v1226 = vsel %vm1179, %v1223, %v1225
      %v1227 = vrot.slane %v397, 1
      %v1228 = vsel %vm1179, %v1225, %v1227
      %v1230 = vsel %vm595, %v1182, 0
      %v1233 = vsel %vm595, %v1184, 0
      %v1236 = vsel %vm595, %v1186, 0
      %v1239 = vsel %vm595, %v1188, 0
      %v1242 = vsel %vm595, %v1190, 0
      %v1245 = vsel %vm595, %v1192, 0
      %v1248 = vsel %vm595, %v1194, 0
      %v1251 = vsel %vm595, %v1196, 0
      %v1254 = vsel %vm595, %v1198, 0
      %v1257 = vsel %vm595, %v1200, 0
      %v1260 = vsel %vm595, %v1202, 0
      %v1263 = vsel %vm595, %v1204, 0
      %v1266 = vsel %vm595, %v1206, 0
      %v1269 = vsel %vm595, %v1208, 0
      %v1272 = vsel %vm595, %v1210, 0
      %v1275 = vsel %vm595, %v1212, 0
      %v1278 = vsel %vm595, %v1214, 0
      %v1281 = vsel %vm595, %v1216, 0
      %v1284 = vsel %vm595, %v1218, 0
      %v1287 = vsel %vm595, %v1220, 0
      %v1290 = vsel %vm595, %v1222, 0
      %v1293 = vsel %vm595, %v1224, 0
      %v1296 = vsel %vm595, %v1226, 0
      %v1299 = vsel %vm595, %v1228, 0
      %v1302 = vsel %vm668, %v1175, 0
      %1304 = vmatprep.subr.bf16.mxu0 0
      %1305 = vmatpush1.bf16.msra.mxu0 0
      %1306 = vmatprep.subr.bf16.mxu0 0
      %1307 = vmatpush1.bf16.msra.mxu0 0
      %1308 = vmatprep.subr.bf16.mxu0 0
      %1309 = vmatpush1.bf16.msra.mxu0 0
      %1310 = vmatprep.subr.bf16.mxu0 0
      %1311 = vmatpush1.bf16.msra.mxu0 0
      %1312 = vmatprep.subr.bf16.mxu0 0
      %1313 = vmatpush1.bf16.msra.mxu0 0
      %1314 = vmatprep.subr.bf16.mxu0 0
      %1315 = vmatpush1.bf16.msra.mxu0 0
      %1316 = vmatprep.subr.bf16.mxu0 0
      %1317 = vmatpush1.bf16.msra.mxu0 0
      %1318 = vmatprep.subr.bf16.mxu0 0
      %1319 = vmatpush1.bf16.msra.mxu0 %v1302
      %1320 = vmatprep.subr.bf16.mxu0 0
      %1321 = vmatpush2.bf16.msra.mxu0 0
      %1322 = vmatprep.subr.bf16.mxu0 0
      %1323 = vmatpush2.bf16.msra.mxu0 0
      %1324 = vmatprep.subr.bf16.mxu0 0
      %1325 = vmatpush2.bf16.msra.mxu0 0
      %1326 = vmatprep.subr.bf16.mxu0 0
      %1327 = vmatpush2.bf16.msra.mxu0 0
      %1328 = vmatprep.subr.bf16.mxu0 0
      %1329 = vmatpush2.bf16.msra.mxu0 0
      %1330 = vmatprep.subr.bf16.mxu0 0
      %1331 = vmatpush2.bf16.msra.mxu0 0
      %1332 = vmatprep.subr.bf16.mxu0 0
      %1333 = vmatpush2.bf16.msra.mxu0 0
      %1334 = vmatprep.subr.bf16.mxu0 0
      %1335 = vmatpush2.bf16.msra.mxu0 0
      %1336 = vmatprep.mubr.bf16.mxu0 0
      %1337 = vmatmul.mubr.bf16.gmra.mxu0 %v1230
      %v1338 = vpop.f32.mrf.mxu0
      %v1339 = vadd.f32 0.0, %v1338
      %v1340 = vpop.f32.mrf.mxu0
      %v1341 = vpop.f32.mrf.mxu0
      %v1342 = vadd.f32 0.0, %v1341
      %v1343 = vpop.f32.mrf.mxu0
      %1344 = vmatprep.mubr.bf16.mxu0 0
      %1345 = vmatmul.mubr.bf16.gmra.mxu0 %v1233
      %v1346 = vpop.f32.mrf.mxu0
      %v1347 = vadd.f32 0.0, %v1346
      %v1348 = vpop.f32.mrf.mxu0
      %v1349 = vpop.f32.mrf.mxu0
      %v1350 = vadd.f32 0.0, %v1349
      %v1351 = vpop.f32.mrf.mxu0
      %1352 = vmatprep.mubr.bf16.mxu0 0
      %1353 = vmatmul.mubr.bf16.gmra.mxu0 %v1236
      %v1354 = vpop.f32.mrf.mxu0
      %v1355 = vadd.f32 0.0, %v1354
      %v1356 = vpop.f32.mrf.mxu0
      %v1357 = vpop.f32.mrf.mxu0
      %v1358 = vadd.f32 0.0, %v1357
      %v1359 = vpop.f32.mrf.mxu0
      %1360 = vmatprep.mubr.bf16.mxu0 0
      %1361 = vmatmul.mubr.bf16.gmra.mxu0 %v1239
      %v1362 = vpop.f32.mrf.mxu0
      %v1363 = vadd.f32 0.0, %v1362
      %v1364 = vpop.f32.mrf.mxu0
      %v1365 = vpop.f32.mrf.mxu0
      %v1366 = vadd.f32 0.0, %v1365
      %v1367 = vpop.f32.mrf.mxu0
      %1368 = vmatprep.mubr.bf16.mxu0 0
      %1369 = vmatmul.mubr.bf16.gmra.mxu0 %v1242
      %v1370 = vpop.f32.mrf.mxu0
      %v1371 = vadd.f32 0.0, %v1370
      %v1372 = vpop.f32.mrf.mxu0
      %v1373 = vpop.f32.mrf.mxu0
      %v1374 = vadd.f32 0.0, %v1373
      %v1375 = vpop.f32.mrf.mxu0
      %1376 = vmatprep.mubr.bf16.mxu0 0
      %1377 = vmatmul.mubr.bf16.gmra.mxu0 %v1245
      %v1378 = vpop.f32.mrf.mxu0
      %v1379 = vadd.f32 0.0, %v1378
      %v1380 = vpop.f32.mrf.mxu0
      %v1381 = vpop.f32.mrf.mxu0
      %v1382 = vadd.f32 0.0, %v1381
      %v1383 = vpop.f32.mrf.mxu0
      %1384 = vmatprep.mubr.bf16.mxu0 0
      %1385 = vmatmul.mubr.bf16.gmra.mxu0 %v1248
      %v1386 = vpop.f32.mrf.mxu0
      %v1387 = vadd.f32 0.0, %v1386
      %v1388 = vpop.f32.mrf.mxu0
      %v1389 = vpop.f32.mrf.mxu0
      %v1390 = vadd.f32 0.0, %v1389
      %v1391 = vpop.f32.mrf.mxu0
      %1392 = vmatprep.mubr.bf16.mxu0 0
      %1393 = vmatmul.mubr.bf16.gmra.mxu0 %v1251
      %v1394 = vpop.f32.mrf.mxu0
      %v1395 = vadd.f32 0.0, %v1394
      %v1396 = vpop.f32.mrf.mxu0
      %v1397 = vpop.f32.mrf.mxu0
      %v1398 = vadd.f32 0.0, %v1397
      %v1399 = vpop.f32.mrf.mxu0
      %1400 = vmatprep.mubr.bf16.mxu0 0
      %1401 = vmatmul.mubr.bf16.gmra.mxu0 %v1254
      %v1402 = vpop.f32.mrf.mxu0
      %v1403 = vadd.f32 0.0, %v1402
      %v1404 = vpop.f32.mrf.mxu0
      %v1405 = vpop.f32.mrf.mxu0
      %v1406 = vadd.f32 0.0, %v1405
      %v1407 = vpop.f32.mrf.mxu0
      %1408 = vmatprep.mubr.bf16.mxu0 0
      %1409 = vmatmul.mubr.bf16.gmra.mxu0 %v1257
      %v1410 = vpop.f32.mrf.mxu0
      %v1411 = vadd.f32 0.0, %v1410
      %v1412 = vpop.f32.mrf.mxu0
      %v1413 = vpop.f32.mrf.mxu0
      %v1414 = vadd.f32 0.0, %v1413
      %v1415 = vpop.f32.mrf.mxu0
      %1416 = vmatprep.mubr.bf16.mxu0 0
      %1417 = vmatmul.mubr.bf16.gmra.mxu0 %v1260
      %v1418 = vpop.f32.mrf.mxu0
      %v1419 = vadd.f32 0.0, %v1418
      %v1420 = vpop.f32.mrf.mxu0
      %v1421 = vpop.f32.mrf.mxu0
      %v1422 = vadd.f32 0.0, %v1421
      %v1423 = vpop.f32.mrf.mxu0
      %1424 = vmatprep.mubr.bf16.mxu0 0
      %1425 = vmatmul.mubr.bf16.gmra.mxu0 %v1263
      %v1426 = vpop.f32.mrf.mxu0
      %v1427 = vadd.f32 0.0, %v1426
      %v1428 = vpop.f32.mrf.mxu0
      %v1429 = vpop.f32.mrf.mxu0
      %v1430 = vadd.f32 0.0, %v1429
      %v1431 = vpop.f32.mrf.mxu0
      %1432 = vmatprep.mubr.bf16.mxu0 0
      %1433 = vmatmul.mubr.bf16.gmra.mxu0 %v1266
      %v1434 = vpop.f32.mrf.mxu0
      %v1435 = vadd.f32 0.0, %v1434
      %v1436 = vpop.f32.mrf.mxu0
      %v1437 = vpop.f32.mrf.mxu0
      %v1438 = vadd.f32 0.0, %v1437
      %v1439 = vpop.f32.mrf.mxu0
      %1440 = vmatprep.mubr.bf16.mxu0 0
      %1441 = vmatmul.mubr.bf16.gmra.mxu0 %v1269
      %v1442 = vpop.f32.mrf.mxu0
      %v1443 = vadd.f32 0.0, %v1442
      %v1444 = vpop.f32.mrf.mxu0
      %v1445 = vpop.f32.mrf.mxu0
      %v1446 = vadd.f32 0.0, %v1445
      %v1447 = vpop.f32.mrf.mxu0
      %1448 = vmatprep.mubr.bf16.mxu0 0
      %1449 = vmatmul.mubr.bf16.gmra.mxu0 %v1272
      %v1450 = vpop.f32.mrf.mxu0
      %v1451 = vadd.f32 0.0, %v1450
      %v1452 = vpop.f32.mrf.mxu0
      %v1453 = vpop.f32.mrf.mxu0
      %v1454 = vadd.f32 0.0, %v1453
      %v1455 = vpop.f32.mrf.mxu0
      %1456 = vmatprep.mubr.bf16.mxu0 0
      %1457 = vmatmul.mubr.bf16.gmra.mxu0 %v1275
      %v1458 = vpop.f32.mrf.mxu0
      %v1459 = vadd.f32 0.0, %v1458
      %v1460 = vpop.f32.mrf.mxu0
      %v1461 = vpop.f32.mrf.mxu0
      %v1462 = vadd.f32 0.0, %v1461
      %v1463 = vpop.f32.mrf.mxu0
      %1464 = vmatprep.mubr.bf16.mxu0 0
      %1465 = vmatmul.mubr.bf16.gmra.mxu0 %v1278
      %v1466 = vpop.f32.mrf.mxu0
      %v1467 = vadd.f32 0.0, %v1466
      %v1468 = vpop.f32.mrf.mxu0
      %v1469 = vpop.f32.mrf.mxu0
      %v1470 = vadd.f32 0.0, %v1469
      %v1471 = vpop.f32.mrf.mxu0
      %1472 = vmatprep.mubr.bf16.mxu0 0
      %1473 = vmatmul.mubr.bf16.gmra.mxu0 %v1281
      %v1474 = vpop.f32.mrf.mxu0
      %v1475 = vadd.f32 0.0, %v1474
      %v1476 = vpop.f32.mrf.mxu0
      %v1477 = vpop.f32.mrf.mxu0
      %v1478 = vadd.f32 0.0, %v1477
      %v1479 = vpop.f32.mrf.mxu0
      %1480 = vmatprep.mubr.bf16.mxu0 0
      %1481 = vmatmul.mubr.bf16.gmra.mxu0 %v1284
      %v1482 = vpop.f32.mrf.mxu0
      %v1483 = vadd.f32 0.0, %v1482
      %v1484 = vpop.f32.mrf.mxu0
      %v1485 = vpop.f32.mrf.mxu0
      %v1486 = vadd.f32 0.0, %v1485
      %v1487 = vpop.f32.mrf.mxu0
      %1488 = vmatprep.mubr.bf16.mxu0 0
      %1489 = vmatmul.mubr.bf16.gmra.mxu0 %v1287
      %v1490 = vpop.f32.mrf.mxu0
      %v1491 = vadd.f32 0.0, %v1490
      %v1492 = vpop.f32.mrf.mxu0
      %v1493 = vpop.f32.mrf.mxu0
      %v1494 = vadd.f32 0.0, %v1493
      %v1495 = vpop.f32.mrf.mxu0
      %1496 = vmatprep.mubr.bf16.mxu0 0
      %1497 = vmatmul.mubr.bf16.gmra.mxu0 %v1290
      %v1498 = vpop.f32.mrf.mxu0
      %v1499 = vadd.f32 0.0, %v1498
      %v1500 = vpop.f32.mrf.mxu0
      %v1501 = vpop.f32.mrf.mxu0
      %v1502 = vadd.f32 0.0, %v1501
      %v1503 = vpop.f32.mrf.mxu0
      %1504 = vmatprep.mubr.bf16.mxu0 0
      %1505 = vmatmul.mubr.bf16.gmra.mxu0 %v1293
      %v1506 = vpop.f32.mrf.mxu0
      %v1507 = vadd.f32 0.0, %v1506
      %v1508 = vpop.f32.mrf.mxu0
      %v1509 = vpop.f32.mrf.mxu0
      %v1510 = vadd.f32 0.0, %v1509
      %v1511 = vpop.f32.mrf.mxu0
      %1512 = vmatprep.mubr.bf16.mxu0 0
      %1513 = vmatmul.mubr.bf16.gmra.mxu0 %v1296
      %v1514 = vpop.f32.mrf.mxu0
      %v1515 = vadd.f32 0.0, %v1514
      %v1516 = vpop.f32.mrf.mxu0
      %v1517 = vpop.f32.mrf.mxu0
      %v1518 = vadd.f32 0.0, %v1517
      %v1519 = vpop.f32.mrf.mxu0
      %1520 = vmatprep.mubr.bf16.mxu0 0
      %1521 = vmatmul.mubr.bf16.gmra.mxu0 %v1299
      %v1522 = vpop.f32.mrf.mxu0
      %v1523 = vadd.f32 0.0, %v1522
      %v1524 = vpop.f32.mrf.mxu0
      %v1525 = vpop.f32.mrf.mxu0
      %v1526 = vadd.f32 0.0, %v1525
      %v1527 = vpop.f32.mrf.mxu0
      %1528 = vdwg.mxu0
      %v1529 = vadd.f32 %v983, %v1339
      %v1530 = vadd.f32 %v986, %v1342
      %v1531 = vadd.f32 %v991, %v1347
      %v1532 = vadd.f32 %v994, %v1350
      %v1533 = vadd.f32 %v999, %v1355
      %v1534 = vadd.f32 %v1002, %v1358
      %v1535 = vadd.f32 %v1007, %v1363
      %v1536 = vadd.f32 %v1010, %v1366
      %v1537 = vadd.f32 %v1015, %v1371
      %v1538 = vadd.f32 %v1018, %v1374
      %v1539 = vadd.f32 %v1023, %v1379
      %v1540 = vadd.f32 %v1026, %v1382
      %v1541 = vadd.f32 %v1031, %v1387
      %v1542 = vadd.f32 %v1034, %v1390
      %v1543 = vadd.f32 %v1039, %v1395
      %v1544 = vadd.f32 %v1042, %v1398
      %v1545 = vadd.f32 %v1047, %v1403
      %v1546 = vadd.f32 %v1050, %v1406
      %v1547 = vadd.f32 %v1055, %v1411
      %v1548 = vadd.f32 %v1058, %v1414
      %v1549 = vadd.f32 %v1063, %v1419
      %v1550 = vadd.f32 %v1066, %v1422
      %v1551 = vadd.f32 %v1071, %v1427
      %v1552 = vadd.f32 %v1074, %v1430
      %v1553 = vadd.f32 %v1079, %v1435
      %v1554 = vadd.f32 %v1082, %v1438
      %v1555 = vadd.f32 %v1087, %v1443
      %v1556 = vadd.f32 %v1090, %v1446
      %v1557 = vadd.f32 %v1095, %v1451
      %v1558 = vadd.f32 %v1098, %v1454
      %v1559 = vadd.f32 %v1103, %v1459
      %v1560 = vadd.f32 %v1106, %v1462
      %v1561 = vadd.f32 %v1111, %v1467
      %v1562 = vadd.f32 %v1114, %v1470
      %v1563 = vadd.f32 %v1119, %v1475
      %v1564 = vadd.f32 %v1122, %v1478
      %v1565 = vadd.f32 %v1127, %v1483
      %v1566 = vadd.f32 %v1130, %v1486
      %v1567 = vadd.f32 %v1135, %v1491
      %v1568 = vadd.f32 %v1138, %v1494
      %v1569 = vadd.f32 %v1143, %v1499
      %v1570 = vadd.f32 %v1146, %v1502
      %v1571 = vadd.f32 %v1151, %v1507
      %v1572 = vadd.f32 %v1154, %v1510
      %v1573 = vadd.f32 %v1159, %v1515
      %v1574 = vadd.f32 %v1162, %v1518
      %v1575 = vadd.f32 %v1167, %v1523
      %v1576 = vadd.f32 %v1170, %v1526
      %v1577 = vld [vmem:[%s206 + $0xc] sm:$0xf]
      %v1578 = vld [vmem:[%s206 + $0x10] sm:$0xf]
      %v1579 = vld [vmem:[%s206 + $0x14] sm:$0xf]
      %v1580 = vld [vmem:[%s206 + $0x18] sm:$0xf]
      %v1581 = vld [vmem:[%s206 + $0x1c] sm:$0xf]
      %v1582 = vld [vmem:[%s206 + $0x20] sm:$0xf]
      %v1583 = vld [vmem:[%s206 + $0x24] sm:$0xf]
      %v1584 = vld [vmem:[%s206 + $0x28] sm:$0xf]
      %v1585 = vld [vmem:[%s206 + $0x2c] sm:$0xf]
      %v1586 = vld [vmem:[%s206 + $0x30] sm:$0xf]
      %v1587 = vld [vmem:[%s206 + $0x34] sm:$0xf]
      %v1588 = vld [vmem:[%s206 + $0x38] sm:$0xf]
      %v1589 = vld [vmem:[%s206 + $0x3c] sm:$0xf]
      %v1590 = vld [vmem:[%s206 + $0x40] sm:$0xf]
      %v1591 = vld [vmem:[%s206 + $0x44] sm:$0xf]
      %v1592 = vld [vmem:[%s206 + $0x48] sm:$0xf]
      %v1593 = vld [vmem:[%s206 + $0x4c] sm:$0xf]
      %v1594 = vld [vmem:[%s206 + $0x50] sm:$0xf]
      %v1595 = vld [vmem:[%s206 + $0x54] sm:$0xf]
      %v1596 = vld [vmem:[%s206 + $0x58] sm:$0xf]
      %v1597 = vld [vmem:[%s206 + $0x5c] sm:$0xf]
      %v1598 = vld [vmem:[%s206 + $0x60] sm:$0xf]
      %v1599 = vld [vmem:[%s206 + $0x64] sm:$0xf]
      %v1600 = vld [vmem:[%s206 + $0x68] sm:$0xf]
      %v1601 = vld [vmem:[%s206 + $0x6c] sm:$0xf]
      %v1602 = vld [vmem:[%s206 + $0x70] sm:$0xf]
      %v1603 = vld [vmem:[%s206 + $0x74] sm:$0xf]
      %v1604 = vld [vmem:[%s206 + $0x78] sm:$0xf]
      %v1605 = vld [vmem:[%s206 + $0x7c] sm:$0xf]
      %v1606 = vld [vmem:[%s206 + $0x80] sm:$0xf]
      %v1607 = vld [vmem:[%s206 + $0x84] sm:$0xf]
      %v1608 = vld [vmem:[%s206 + $0x88] sm:$0xf]
      %v1609 = vld [vmem:[%s206 + $0x8c] sm:$0xf]
      %v1610 = vld [vmem:[%s206 + $0x90] sm:$0xf]
      %v1611 = vld [vmem:[%s206 + $0x94] sm:$0xf]
      %v1612 = vld [vmem:[%s206 + $0x98] sm:$0xf]
      %v1613 = vld [vmem:[%s206 + $0x9c] sm:$0xf]
      %v1614 = vld [vmem:[%s206 + $0xa0] sm:$0xf]
      %v1615 = vld [vmem:[%s206 + $0xa4] sm:$0xf]
      %v1616 = vld [vmem:[%s206 + $0xa8] sm:$0xf]
      %v1617 = vld [vmem:[%s206 + $0xac] sm:$0xf]
      %v1618 = vld [vmem:[%s206 + $0xb0] sm:$0xf]
      %v1619 = vld [vmem:[%s206 + $0xb4] sm:$0xf]
      %v1620 = vld [vmem:[%s206 + $0xb8] sm:$0xf]
      %v1621 = vld [vmem:[%s206 + $0xbc] sm:$0xf]
      %v1622 = vld [vmem:[%s206 + $0xc0] sm:$0xf]
      %v1623 = vld [vmem:[%s206 + $0xc4] sm:$0xf]
      %v1624 = vld [vmem:[%s206 + $0xc8] sm:$0xf]
      %s1625 = scalar_lea.vmem %s210, 12
      %v1626 = vld [vmem:[%s1625] sm:$0xf]
      %v1675 = vunpack.c.l.b16 %v1577
      %v1676 = vunpack.c.l.b16 %v1578
      %v1677 = vunpack.c.l.b16 %v1579
      %v1678 = vunpack.c.l.b16 %v1580
      %v1679 = vunpack.c.l.b16 %v1581
      %v1680 = vunpack.c.l.b16 %v1582
      %v1681 = vunpack.c.l.b16 %v1583
      %v1682 = vunpack.c.l.b16 %v1584
      %v1683 = vunpack.c.l.b16 %v1585
      %v1684 = vunpack.c.l.b16 %v1586
      %v1685 = vunpack.c.l.b16 %v1587
      %v1686 = vunpack.c.l.b16 %v1588
      %v1687 = vunpack.c.l.b16 %v1589
      %v1688 = vunpack.c.l.b16 %v1590
      %v1689 = vunpack.c.l.b16 %v1591
      %v1690 = vunpack.c.l.b16 %v1592
      %v1691 = vunpack.c.l.b16 %v1593
      %v1692 = vunpack.c.l.b16 %v1594
      %v1693 = vunpack.c.l.b16 %v1595
      %v1694 = vunpack.c.l.b16 %v1596
      %v1695 = vunpack.c.l.b16 %v1597
      %v1696 = vunpack.c.l.b16 %v1598
      %v1697 = vunpack.c.l.b16 %v1599
      %v1698 = vunpack.c.l.b16 %v1600
      %v1699 = vunpack.c.l.b16 %v1601
      %v1700 = vunpack.c.l.b16 %v1602
      %v1701 = vunpack.c.l.b16 %v1603
      %v1702 = vunpack.c.l.b16 %v1604
      %v1703 = vunpack.c.l.b16 %v1605
      %v1704 = vunpack.c.l.b16 %v1606
      %v1705 = vunpack.c.l.b16 %v1607
      %v1706 = vunpack.c.l.b16 %v1608
      %v1707 = vunpack.c.l.b16 %v1609
      %v1708 = vunpack.c.l.b16 %v1610
      %v1709 = vunpack.c.l.b16 %v1611
      %v1710 = vunpack.c.l.b16 %v1612
      %v1711 = vunpack.c.l.b16 %v1613
      %v1712 = vunpack.c.l.b16 %v1614
      %v1713 = vunpack.c.l.b16 %v1615
      %v1714 = vunpack.c.l.b16 %v1616
      %v1715 = vunpack.c.l.b16 %v1617
      %v1716 = vunpack.c.l.b16 %v1618
      %v1717 = vunpack.c.l.b16 %v1619
      %v1718 = vunpack.c.l.b16 %v1620
      %v1719 = vunpack.c.l.b16 %v1621
      %v1720 = vunpack.c.l.b16 %v1622
      %v1721 = vunpack.c.l.b16 %v1623
      %v1722 = vunpack.c.l.b16 %v1624
      %v1723 = vpack.c.b16 %v1676, %v1675
      %v1724 = vpack.c.b16 %v1678, %v1677
      %v1725 = vpack.c.b16 %v1680, %v1679
      %v1726 = vpack.c.b16 %v1682, %v1681
      %v1727 = vpack.c.b16 %v1684, %v1683
      %v1728 = vpack.c.b16 %v1686, %v1685
      %v1729 = vpack.c.b16 %v1688, %v1687
      %v1730 = vpack.c.b16 %v1690, %v1689
      %v1731 = vpack.c.b16 %v1692, %v1691
      %v1732 = vpack.c.b16 %v1694, %v1693
      %v1733 = vpack.c.b16 %v1696, %v1695
      %v1734 = vpack.c.b16 %v1698, %v1697
      %v1735 = vpack.c.b16 %v1700, %v1699
      %v1736 = vpack.c.b16 %v1702, %v1701
      %v1737 = vpack.c.b16 %v1704, %v1703
      %v1738 = vpack.c.b16 %v1706, %v1705
      %v1739 = vpack.c.b16 %v1708, %v1707
      %v1740 = vpack.c.b16 %v1710, %v1709
      %v1741 = vpack.c.b16 %v1712, %v1711
      %v1742 = vpack.c.b16 %v1714, %v1713
      %v1743 = vpack.c.b16 %v1716, %v1715
      %v1744 = vpack.c.b16 %v1718, %v1717
      %v1745 = vpack.c.b16 %v1720, %v1719
      %v1746 = vpack.c.b16 %v1722, %v1721
      %v1748 = vsel %vm595, %v1723, 0
      %v1751 = vsel %vm595, %v1724, 0
      %v1754 = vsel %vm595, %v1725, 0
      %v1757 = vsel %vm595, %v1726, 0
      %v1760 = vsel %vm595, %v1727, 0
      %v1763 = vsel %vm595, %v1728, 0
      %v1766 = vsel %vm595, %v1729, 0
      %v1769 = vsel %vm595, %v1730, 0
      %v1772 = vsel %vm595, %v1731, 0
      %v1775 = vsel %vm595, %v1732, 0
      %v1778 = vsel %vm595, %v1733, 0
      %v1781 = vsel %vm595, %v1734, 0
      %v1784 = vsel %vm595, %v1735, 0
      %v1787 = vsel %vm595, %v1736, 0
      %v1790 = vsel %vm595, %v1737, 0
      %v1793 = vsel %vm595, %v1738, 0
      %v1796 = vsel %vm595, %v1739, 0
      %v1799 = vsel %vm595, %v1740, 0
      %v1802 = vsel %vm595, %v1741, 0
      %v1805 = vsel %vm595, %v1742, 0
      %v1808 = vsel %vm595, %v1743, 0
      %v1811 = vsel %vm595, %v1744, 0
      %v1814 = vsel %vm595, %v1745, 0
      %v1817 = vsel %vm595, %v1746, 0
      %v1820 = vsel %vm668, %v1626, 0
      %1822 = vmatprep.subr.bf16.mxu0 0
      %1823 = vmatpush1.bf16.msra.mxu0 0
      %1824 = vmatprep.subr.bf16.mxu0 0
      %1825 = vmatpush1.bf16.msra.mxu0 0
      %1826 = vmatprep.subr.bf16.mxu0 0
      %1827 = vmatpush1.bf16.msra.mxu0 0
      %1828 = vmatprep.subr.bf16.mxu0 0
      %1829 = vmatpush1.bf16.msra.mxu0 0
      %1830 = vmatprep.subr.bf16.mxu0 0
      %1831 = vmatpush1.bf16.msra.mxu0 0
      %1832 = vmatprep.subr.bf16.mxu0 0
      %1833 = vmatpush1.bf16.msra.mxu0 0
      %1834 = vmatprep.subr.bf16.mxu0 0
      %1835 = vmatpush1.bf16.msra.mxu0 0
      %1836 = vmatprep.subr.bf16.mxu0 0
      %1837 = vmatpush1.bf16.msra.mxu0 %v1820
      %1838 = vmatprep.subr.bf16.mxu0 0
      %1839 = vmatpush2.bf16.msra.mxu0 0
      %1840 = vmatprep.subr.bf16.mxu0 0
      %1841 = vmatpush2.bf16.msra.mxu0 0
      %1842 = vmatprep.subr.bf16.mxu0 0
      %1843 = vmatpush2.bf16.msra.mxu0 0
      %1844 = vmatprep.subr.bf16.mxu0 0
      %1845 = vmatpush2.bf16.msra.mxu0 0
      %1846 = vmatprep.subr.bf16.mxu0 0
      %1847 = vmatpush2.bf16.msra.mxu0 0
      %1848 = vmatprep.subr.bf16.mxu0 0
      %1849 = vmatpush2.bf16.msra.mxu0 0
      %1850 = vmatprep.subr.bf16.mxu0 0
      %1851 = vmatpush2.bf16.msra.mxu0 0
      %1852 = vmatprep.subr.bf16.mxu0 0
      %1853 = vmatpush2.bf16.msra.mxu0 0
      %1854 = vmatprep.mubr.bf16.mxu0 0
      %1855 = vmatmul.mubr.bf16.gmra.mxu0 %v1748
      %v1856 = vpop.f32.mrf.mxu0
      %v1857 = vadd.f32 0.0, %v1856
      %v1858 = vpop.f32.mrf.mxu0
      %v1859 = vpop.f32.mrf.mxu0
      %v1860 = vadd.f32 0.0, %v1859
      %v1861 = vpop.f32.mrf.mxu0
      %1862 = vmatprep.mubr.bf16.mxu0 0
      %1863 = vmatmul.mubr.bf16.gmra.mxu0 %v1751
      %v1864 = vpop.f32.mrf.mxu0
      %v1865 = vadd.f32 0.0, %v1864
      %v1866 = vpop.f32.mrf.mxu0
      %v1867 = vpop.f32.mrf.mxu0
      %v1868 = vadd.f32 0.0, %v1867
      %v1869 = vpop.f32.mrf.mxu0
      %1870 = vmatprep.mubr.bf16.mxu0 0
      %1871 = vmatmul.mubr.bf16.gmra.mxu0 %v1754
      %v1872 = vpop.f32.mrf.mxu0
      %v1873 = vadd.f32 0.0, %v1872
      %v1874 = vpop.f32.mrf.mxu0
      %v1875 = vpop.f32.mrf.mxu0
      %v1876 = vadd.f32 0.0, %v1875
      %v1877 = vpop.f32.mrf.mxu0
      %1878 = vmatprep.mubr.bf16.mxu0 0
      %1879 = vmatmul.mubr.bf16.gmra.mxu0 %v1757
      %v1880 = vpop.f32.mrf.mxu0
      %v1881 = vadd.f32 0.0, %v1880
      %v1882 = vpop.f32.mrf.mxu0
      %v1883 = vpop.f32.mrf.mxu0
      %v1884 = vadd.f32 0.0, %v1883
      %v1885 = vpop.f32.mrf.mxu0
      %1886 = vmatprep.mubr.bf16.mxu0 0
      %1887 = vmatmul.mubr.bf16.gmra.mxu0 %v1760
      %v1888 = vpop.f32.mrf.mxu0
      %v1889 = vadd.f32 0.0, %v1888
      %v1890 = vpop.f32.mrf.mxu0
      %v1891 = vpop.f32.mrf.mxu0
      %v1892 = vadd.f32 0.0, %v1891
      %v1893 = vpop.f32.mrf.mxu0
      %1894 = vmatprep.mubr.bf16.mxu0 0
      %1895 = vmatmul.mubr.bf16.gmra.mxu0 %v1763
      %v1896 = vpop.f32.mrf.mxu0
      %v1897 = vadd.f32 0.0, %v1896
      %v1898 = vpop.f32.mrf.mxu0
      %v1899 = vpop.f32.mrf.mxu0
      %v1900 = vadd.f32 0.0, %v1899
      %v1901 = vpop.f32.mrf.mxu0
      %1902 = vmatprep.mubr.bf16.mxu0 0
      %1903 = vmatmul.mubr.bf16.gmra.mxu0 %v1766
      %v1904 = vpop.f32.mrf.mxu0
      %v1905 = vadd.f32 0.0, %v1904
      %v1906 = vpop.f32.mrf.mxu0
      %v1907 = vpop.f32.mrf.mxu0
      %v1908 = vadd.f32 0.0, %v1907
      %v1909 = vpop.f32.mrf.mxu0
      %1910 = vmatprep.mubr.bf16.mxu0 0
      %1911 = vmatmul.mubr.bf16.gmra.mxu0 %v1769
      %v1912 = vpop.f32.mrf.mxu0
      %v1913 = vadd.f32 0.0, %v1912
      %v1914 = vpop.f32.mrf.mxu0
      %v1915 = vpop.f32.mrf.mxu0
      %v1916 = vadd.f32 0.0, %v1915
      %v1917 = vpop.f32.mrf.mxu0
      %1918 = vmatprep.mubr.bf16.mxu0 0
      %1919 = vmatmul.mubr.bf16.gmra.mxu0 %v1772
      %v1920 = vpop.f32.mrf.mxu0
      %v1921 = vadd.f32 0.0, %v1920
      %v1922 = vpop.f32.mrf.mxu0
      %v1923 = vpop.f32.mrf.mxu0
      %v1924 = vadd.f32 0.0, %v1923
      %v1925 = vpop.f32.mrf.mxu0
      %1926 = vmatprep.mubr.bf16.mxu0 0
      %1927 = vmatmul.mubr.bf16.gmra.mxu0 %v1775
      %v1928 = vpop.f32.mrf.mxu0
      %v1929 = vadd.f32 0.0, %v1928
      %v1930 = vpop.f32.mrf.mxu0
      %v1931 = vpop.f32.mrf.mxu0
      %v1932 = vadd.f32 0.0, %v1931
      %v1933 = vpop.f32.mrf.mxu0
      %1934 = vmatprep.mubr.bf16.mxu0 0
      %1935 = vmatmul.mubr.bf16.gmra.mxu0 %v1778
      %v1936 = vpop.f32.mrf.mxu0
      %v1937 = vadd.f32 0.0, %v1936
      %v1938 = vpop.f32.mrf.mxu0
      %v1939 = vpop.f32.mrf.mxu0
      %v1940 = vadd.f32 0.0, %v1939
      %v1941 = vpop.f32.mrf.mxu0
      %1942 = vmatprep.mubr.bf16.mxu0 0
      %1943 = vmatmul.mubr.bf16.gmra.mxu0 %v1781
      %v1944 = vpop.f32.mrf.mxu0
      %v1945 = vadd.f32 0.0, %v1944
      %v1946 = vpop.f32.mrf.mxu0
      %v1947 = vpop.f32.mrf.mxu0
      %v1948 = vadd.f32 0.0, %v1947
      %v1949 = vpop.f32.mrf.mxu0
      %1950 = vmatprep.mubr.bf16.mxu0 0
      %1951 = vmatmul.mubr.bf16.gmra.mxu0 %v1784
      %v1952 = vpop.f32.mrf.mxu0
      %v1953 = vadd.f32 0.0, %v1952
      %v1954 = vpop.f32.mrf.mxu0
      %v1955 = vpop.f32.mrf.mxu0
      %v1956 = vadd.f32 0.0, %v1955
      %v1957 = vpop.f32.mrf.mxu0
      %1958 = vmatprep.mubr.bf16.mxu0 0
      %1959 = vmatmul.mubr.bf16.gmra.mxu0 %v1787
      %v1960 = vpop.f32.mrf.mxu0
      %v1961 = vadd.f32 0.0, %v1960
      %v1962 = vpop.f32.mrf.mxu0
      %v1963 = vpop.f32.mrf.mxu0
      %v1964 = vadd.f32 0.0, %v1963
      %v1965 = vpop.f32.mrf.mxu0
      %1966 = vmatprep.mubr.bf16.mxu0 0
      %1967 = vmatmul.mubr.bf16.gmra.mxu0 %v1790
      %v1968 = vpop.f32.mrf.mxu0
      %v1969 = vadd.f32 0.0, %v1968
      %v1970 = vpop.f32.mrf.mxu0
      %v1971 = vpop.f32.mrf.mxu0
      %v1972 = vadd.f32 0.0, %v1971
      %v1973 = vpop.f32.mrf.mxu0
      %1974 = vmatprep.mubr.bf16.mxu0 0
      %1975 = vmatmul.mubr.bf16.gmra.mxu0 %v1793
      %v1976 = vpop.f32.mrf.mxu0
      %v1977 = vadd.f32 0.0, %v1976
      %v1978 = vpop.f32.mrf.mxu0
      %v1979 = vpop.f32.mrf.mxu0
      %v1980 = vadd.f32 0.0, %v1979
      %v1981 = vpop.f32.mrf.mxu0
      %1982 = vmatprep.mubr.bf16.mxu0 0
      %1983 = vmatmul.mubr.bf16.gmra.mxu0 %v1796
      %v1984 = vpop.f32.mrf.mxu0
      %v1985 = vadd.f32 0.0, %v1984
      %v1986 = vpop.f32.mrf.mxu0
      %v1987 = vpop.f32.mrf.mxu0
      %v1988 = vadd.f32 0.0, %v1987
      %v1989 = vpop.f32.mrf.mxu0
      %1990 = vmatprep.mubr.bf16.mxu0 0
      %1991 = vmatmul.mubr.bf16.gmra.mxu0 %v1799
      %v1992 = vpop.f32.mrf.mxu0
      %v1993 = vadd.f32 0.0, %v1992
      %v1994 = vpop.f32.mrf.mxu0
      %v1995 = vpop.f32.mrf.mxu0
      %v1996 = vadd.f32 0.0, %v1995
      %v1997 = vpop.f32.mrf.mxu0
      %1998 = vmatprep.mubr.bf16.mxu0 0
      %1999 = vmatmul.mubr.bf16.gmra.mxu0 %v1802
      %v2000 = vpop.f32.mrf.mxu0
      %v2001 = vadd.f32 0.0, %v2000
      %v2002 = vpop.f32.mrf.mxu0
      %v2003 = vpop.f32.mrf.mxu0
      %v2004 = vadd.f32 0.0, %v2003
      %v2005 = vpop.f32.mrf.mxu0
      %2006 = vmatprep.mubr.bf16.mxu0 0
      %2007 = vmatmul.mubr.bf16.gmra.mxu0 %v1805
      %v2008 = vpop.f32.mrf.mxu0
      %v2009 = vadd.f32 0.0, %v2008
      %v2010 = vpop.f32.mrf.mxu0
      %v2011 = vpop.f32.mrf.mxu0
      %v2012 = vadd.f32 0.0, %v2011
      %v2013 = vpop.f32.mrf.mxu0
      %2014 = vmatprep.mubr.bf16.mxu0 0
      %2015 = vmatmul.mubr.bf16.gmra.mxu0 %v1808
      %v2016 = vpop.f32.mrf.mxu0
      %v2017 = vadd.f32 0.0, %v2016
      %v2018 = vpop.f32.mrf.mxu0
      %v2019 = vpop.f32.mrf.mxu0
      %v2020 = vadd.f32 0.0, %v2019
      %v2021 = vpop.f32.mrf.mxu0
      %2022 = vmatprep.mubr.bf16.mxu0 0
      %2023 = vmatmul.mubr.bf16.gmra.mxu0 %v1811
      %v2024 = vpop.f32.mrf.mxu0
      %v2025 = vadd.f32 0.0, %v2024
      %v2026 = vpop.f32.mrf.mxu0
      %v2027 = vpop.f32.mrf.mxu0
      %v2028 = vadd.f32 0.0, %v2027
      %v2029 = vpop.f32.mrf.mxu0
      %2030 = vmatprep.mubr.bf16.mxu0 0
      %2031 = vmatmul.mubr.bf16.gmra.mxu0 %v1814
      %v2032 = vpop.f32.mrf.mxu0
      %v2033 = vadd.f32 0.0, %v2032
      %v2034 = vpop.f32.mrf.mxu0
      %v2035 = vpop.f32.mrf.mxu0
      %v2036 = vadd.f32 0.0, %v2035
      %v2037 = vpop.f32.mrf.mxu0
      %2038 = vmatprep.mubr.bf16.mxu0 0
      %2039 = vmatmul.mubr.bf16.gmra.mxu0 %v1817
      %v2040 = vpop.f32.mrf.mxu0
      %v2041 = vadd.f32 0.0, %v2040
      %v2042 = vpop.f32.mrf.mxu0
      %v2043 = vpop.f32.mrf.mxu0
      %v2044 = vadd.f32 0.0, %v2043
      %v2045 = vpop.f32.mrf.mxu0
      %2046 = vdwg.mxu0
      %v2047 = vadd.f32 %v1529, %v1857
      %v2048 = vadd.f32 %v1530, %v1860
      %v2049 = vadd.f32 %v1531, %v1865
      %v2050 = vadd.f32 %v1532, %v1868
      %v2051 = vadd.f32 %v1533, %v1873
      %v2052 = vadd.f32 %v1534, %v1876
      %v2053 = vadd.f32 %v1535, %v1881
      %v2054 = vadd.f32 %v1536, %v1884
      %v2055 = vadd.f32 %v1537, %v1889
      %v2056 = vadd.f32 %v1538, %v1892
      %v2057 = vadd.f32 %v1539, %v1897
      %v2058 = vadd.f32 %v1540, %v1900
      %v2059 = vadd.f32 %v1541, %v1905
      %v2060 = vadd.f32 %v1542, %v1908
      %v2061 = vadd.f32 %v1543, %v1913
      %v2062 = vadd.f32 %v1544, %v1916
      %v2063 = vadd.f32 %v1545, %v1921
      %v2064 = vadd.f32 %v1546, %v1924
      %v2065 = vadd.f32 %v1547, %v1929
      %v2066 = vadd.f32 %v1548, %v1932
      %v2067 = vadd.f32 %v1549, %v1937
      %v2068 = vadd.f32 %v1550, %v1940
      %v2069 = vadd.f32 %v1551, %v1945
      %v2070 = vadd.f32 %v1552, %v1948
      %v2071 = vadd.f32 %v1553, %v1953
      %v2072 = vadd.f32 %v1554, %v1956
      %v2073 = vadd.f32 %v1555, %v1961
      %v2074 = vadd.f32 %v1556, %v1964
      %v2075 = vadd.f32 %v1557, %v1969
      %v2076 = vadd.f32 %v1558, %v1972
      %v2077 = vadd.f32 %v1559, %v1977
      %v2078 = vadd.f32 %v1560, %v1980
      %v2079 = vadd.f32 %v1561, %v1985
      %v2080 = vadd.f32 %v1562, %v1988
      %v2081 = vadd.f32 %v1563, %v1993
      %v2082 = vadd.f32 %v1564, %v1996
      %v2083 = vadd.f32 %v1565, %v2001
      %v2084 = vadd.f32 %v1566, %v2004
      %v2085 = vadd.f32 %v1567, %v2009
      %v2086 = vadd.f32 %v1568, %v2012
      %v2087 = vadd.f32 %v1569, %v2017
      %v2088 = vadd.f32 %v1570, %v2020
      %v2089 = vadd.f32 %v1571, %v2025
      %v2090 = vadd.f32 %v1572, %v2028
      %v2091 = vadd.f32 %v1573, %v2033
      %v2092 = vadd.f32 %v1574, %v2036
      %v2093 = vadd.f32 %v1575, %v2041
      %v2094 = vadd.f32 %v1576, %v2044
      %v2095 = vld [vmem:[%s206 + $0xc] sm:$0xf]
      %v2096 = vld [vmem:[%s206 + $0x10] sm:$0xf]
      %v2097 = vld [vmem:[%s206 + $0x14] sm:$0xf]
      %v2098 = vld [vmem:[%s206 + $0x18] sm:$0xf]
      %v2099 = vld [vmem:[%s206 + $0x1c] sm:$0xf]
      %v2100 = vld [vmem:[%s206 + $0x20] sm:$0xf]
      %v2101 = vld [vmem:[%s206 + $0x24] sm:$0xf]
      %v2102 = vld [vmem:[%s206 + $0x28] sm:$0xf]
      %v2103 = vld [vmem:[%s206 + $0x2c] sm:$0xf]
      %v2104 = vld [vmem:[%s206 + $0x30] sm:$0xf]
      %v2105 = vld [vmem:[%s206 + $0x34] sm:$0xf]
      %v2106 = vld [vmem:[%s206 + $0x38] sm:$0xf]
      %v2107 = vld [vmem:[%s206 + $0x3c] sm:$0xf]
      %v2108 = vld [vmem:[%s206 + $0x40] sm:$0xf]
      %v2109 = vld [vmem:[%s206 + $0x44] sm:$0xf]
      %v2110 = vld [vmem:[%s206 + $0x48] sm:$0xf]
      %v2111 = vld [vmem:[%s206 + $0x4c] sm:$0xf]
      %v2112 = vld [vmem:[%s206 + $0x50] sm:$0xf]
      %v2113 = vld [vmem:[%s206 + $0x54] sm:$0xf]
      %v2114 = vld [vmem:[%s206 + $0x58] sm:$0xf]
      %v2115 = vld [vmem:[%s206 + $0x5c] sm:$0xf]
      %v2116 = vld [vmem:[%s206 + $0x60] sm:$0xf]
      %v2117 = vld [vmem:[%s206 + $0x64] sm:$0xf]
      %v2118 = vld [vmem:[%s206 + $0x68] sm:$0xf]
      %v2119 = vld [vmem:[%s206 + $0x6c] sm:$0xf]
      %v2120 = vld [vmem:[%s206 + $0x70] sm:$0xf]
      %v2121 = vld [vmem:[%s206 + $0x74] sm:$0xf]
      %v2122 = vld [vmem:[%s206 + $0x78] sm:$0xf]
      %v2123 = vld [vmem:[%s206 + $0x7c] sm:$0xf]
      %v2124 = vld [vmem:[%s206 + $0x80] sm:$0xf]
      %v2125 = vld [vmem:[%s206 + $0x84] sm:$0xf]
      %v2126 = vld [vmem:[%s206 + $0x88] sm:$0xf]
      %v2127 = vld [vmem:[%s206 + $0x8c] sm:$0xf]
      %v2128 = vld [vmem:[%s206 + $0x90] sm:$0xf]
      %v2129 = vld [vmem:[%s206 + $0x94] sm:$0xf]
      %v2130 = vld [vmem:[%s206 + $0x98] sm:$0xf]
      %v2131 = vld [vmem:[%s206 + $0x9c] sm:$0xf]
      %v2132 = vld [vmem:[%s206 + $0xa0] sm:$0xf]
      %v2133 = vld [vmem:[%s206 + $0xa4] sm:$0xf]
      %v2134 = vld [vmem:[%s206 + $0xa8] sm:$0xf]
      %v2135 = vld [vmem:[%s206 + $0xac] sm:$0xf]
      %v2136 = vld [vmem:[%s206 + $0xb0] sm:$0xf]
      %v2137 = vld [vmem:[%s206 + $0xb4] sm:$0xf]
      %v2138 = vld [vmem:[%s206 + $0xb8] sm:$0xf]
      %v2139 = vld [vmem:[%s206 + $0xbc] sm:$0xf]
      %v2140 = vld [vmem:[%s206 + $0xc0] sm:$0xf]
      %v2141 = vld [vmem:[%s206 + $0xc4] sm:$0xf]
      %v2142 = vld [vmem:[%s206 + $0xc8] sm:$0xf]
      %v2143 = vld [vmem:[%s206 + $0xcc] sm:$0x1]
      %s2144 = scalar_lea.vmem %s210, 16
      %v2145 = vld [vmem:[%s2144] sm:$0xf]
      %v2195 = vunpack.c.l.b16 %v2095
      %v2196 = vunpack.c.l.b16 %v2096
      %v2197 = vunpack.c.l.b16 %v2097
      %v2198 = vunpack.c.l.b16 %v2098
      %v2199 = vunpack.c.l.b16 %v2099
      %v2200 = vunpack.c.l.b16 %v2100
      %v2201 = vunpack.c.l.b16 %v2101
      %v2202 = vunpack.c.l.b16 %v2102
      %v2203 = vunpack.c.l.b16 %v2103
      %v2204 = vunpack.c.l.b16 %v2104
      %v2205 = vunpack.c.l.b16 %v2105
      %v2206 = vunpack.c.l.b16 %v2106
      %v2207 = vunpack.c.l.b16 %v2107
      %v2208 = vunpack.c.l.b16 %v2108
      %v2209 = vunpack.c.l.b16 %v2109
      %v2210 = vunpack.c.l.b16 %v2110
      %v2211 = vunpack.c.l.b16 %v2111
      %v2212 = vunpack.c.l.b16 %v2112
      %v2213 = vunpack.c.l.b16 %v2113
      %v2214 = vunpack.c.l.b16 %v2114
      %v2215 = vunpack.c.l.b16 %v2115
      %v2216 = vunpack.c.l.b16 %v2116
      %v2217 = vunpack.c.l.b16 %v2117
      %v2218 = vunpack.c.l.b16 %v2118
      %v2219 = vunpack.c.l.b16 %v2119
      %v2220 = vunpack.c.l.b16 %v2120
      %v2221 = vunpack.c.l.b16 %v2121
      %v2222 = vunpack.c.l.b16 %v2122
      %v2223 = vunpack.c.l.b16 %v2123
      %v2224 = vunpack.c.l.b16 %v2124
      %v2225 = vunpack.c.l.b16 %v2125
      %v2226 = vunpack.c.l.b16 %v2126
      %v2227 = vunpack.c.l.b16 %v2127
      %v2228 = vunpack.c.l.b16 %v2128
      %v2229 = vunpack.c.l.b16 %v2129
      %v2230 = vunpack.c.l.b16 %v2130
      %v2231 = vunpack.c.l.b16 %v2131
      %v2232 = vunpack.c.l.b16 %v2132
      %v2233 = vunpack.c.l.b16 %v2133
      %v2234 = vunpack.c.l.b16 %v2134
      %v2235 = vunpack.c.l.b16 %v2135
      %v2236 = vunpack.c.l.b16 %v2136
      %v2237 = vunpack.c.l.b16 %v2137
      %v2238 = vunpack.c.l.b16 %v2138
      %v2239 = vunpack.c.l.b16 %v2139
      %v2240 = vunpack.c.l.b16 %v2140
      %v2241 = vunpack.c.l.b16 %v2141
      %v2242 = vunpack.c.l.b16 %v2142
      %v2243 = vunpack.c.l.b16 %v2143
      %v2244 = vpack.c.b16 %v2196, %v2195
      %v2245 = vpack.c.b16 %v2198, %v2197
      %v2246 = vpack.c.b16 %v2200, %v2199
      %v2247 = vpack.c.b16 %v2202, %v2201
      %v2248 = vpack.c.b16 %v2204, %v2203
      %v2249 = vpack.c.b16 %v2206, %v2205
      %v2250 = vpack.c.b16 %v2208, %v2207
      %v2251 = vpack.c.b16 %v2210, %v2209
      %v2252 = vpack.c.b16 %v2212, %v2211
      %v2253 = vpack.c.b16 %v2214, %v2213
      %v2254 = vpack.c.b16 %v2216, %v2215
      %v2255 = vpack.c.b16 %v2218, %v2217
      %v2256 = vpack.c.b16 %v2220, %v2219
      %v2257 = vpack.c.b16 %v2222, %v2221
      %v2258 = vpack.c.b16 %v2224, %v2223
      %v2259 = vpack.c.b16 %v2226, %v2225
      %v2260 = vpack.c.b16 %v2228, %v2227
      %v2261 = vpack.c.b16 %v2230, %v2229
      %v2262 = vpack.c.b16 %v2232, %v2231
      %v2263 = vpack.c.b16 %v2234, %v2233
      %v2264 = vpack.c.b16 %v2236, %v2235
      %v2265 = vpack.c.b16 %v2238, %v2237
      %v2266 = vpack.c.b16 %v2240, %v2239
      %v2267 = vpack.c.b16 %v2242, %v2241
      %v2268 = vpack.c.b16 %v2243, %v2243
      %v2270 = vshrl.u32 %v2244, 16
      %v2272 = vshll.u32 %v2244, 16
      %v2274 = vrot.slane %v2272, 1
      %v2275 = vor.u32 %v2270, %v2274
      %v2277 = vshll.u32 %v2245, 16
      %v2279 = vrot.slane %v2277, 1
      %v2280 = vsel %vm398, %v2275, %v2279
      %v2281 = vshrl.u32 %v2245, 16
      %v2283 = vor.u32 %v2281, %v2279
      %v2285 = vshll.u32 %v2246, 16
      %v2287 = vrot.slane %v2285, 1
      %v2288 = vsel %vm398, %v2283, %v2287
      %v2289 = vshrl.u32 %v2246, 16
      %v2291 = vor.u32 %v2289, %v2287
      %v2293 = vshll.u32 %v2247, 16
      %v2295 = vrot.slane %v2293, 1
      %v2296 = vsel %vm398, %v2291, %v2295
      %v2297 = vshrl.u32 %v2247, 16
      %v2299 = vor.u32 %v2297, %v2295
      %v2301 = vshll.u32 %v2248, 16
      %v2303 = vrot.slane %v2301, 1
      %v2304 = vsel %vm398, %v2299, %v2303
      %v2305 = vshrl.u32 %v2248, 16
      %v2307 = vor.u32 %v2305, %v2303
      %v2309 = vshll.u32 %v2249, 16
      %v2311 = vrot.slane %v2309, 1
      %v2312 = vsel %vm398, %v2307, %v2311
      %v2313 = vshrl.u32 %v2249, 16
      %v2315 = vor.u32 %v2313, %v2311
      %v2317 = vshll.u32 %v2250, 16
      %v2319 = vrot.slane %v2317, 1
      %v2320 = vsel %vm398, %v2315, %v2319
      %v2321 = vshrl.u32 %v2250, 16
      %v2323 = vor.u32 %v2321, %v2319
      %v2325 = vshll.u32 %v2251, 16
      %v2327 = vrot.slane %v2325, 1
      %v2328 = vsel %vm398, %v2323, %v2327
      %v2329 = vshrl.u32 %v2251, 16
      %v2331 = vor.u32 %v2329, %v2327
      %v2333 = vshll.u32 %v2252, 16
      %v2335 = vrot.slane %v2333, 1
      %v2336 = vsel %vm398, %v2331, %v2335
      %v2337 = vshrl.u32 %v2252, 16
      %v2339 = vor.u32 %v2337, %v2335
      %v2341 = vshll.u32 %v2253, 16
      %v2343 = vrot.slane %v2341, 1
      %v2344 = vsel %vm398, %v2339, %v2343
      %v2345 = vshrl.u32 %v2253, 16
      %v2347 = vor.u32 %v2345, %v2343
      %v2349 = vshll.u32 %v2254, 16
      %v2351 = vrot.slane %v2349, 1
      %v2352 = vsel %vm398, %v2347, %v2351
      %v2353 = vshrl.u32 %v2254, 16
      %v2355 = vor.u32 %v2353, %v2351
      %v2357 = vshll.u32 %v2255, 16
      %v2359 = vrot.slane %v2357, 1
      %v2360 = vsel %vm398, %v2355, %v2359
      %v2361 = vshrl.u32 %v2255, 16
      %v2363 = vor.u32 %v2361, %v2359
      %v2365 = vshll.u32 %v2256, 16
      %v2367 = vrot.slane %v2365, 1
      %v2368 = vsel %vm398, %v2363, %v2367
      %v2369 = vshrl.u32 %v2256, 16
      %v2371 = vor.u32 %v2369, %v2367
      %v2373 = vshll.u32 %v2257, 16
      %v2375 = vrot.slane %v2373, 1
      %v2376 = vsel %vm398, %v2371, %v2375
      %v2377 = vshrl.u32 %v2257, 16
      %v2379 = vor.u32 %v2377, %v2375
      %v2381 = vshll.u32 %v2258, 16
      %v2383 = vrot.slane %v2381, 1
      %v2384 = vsel %vm398, %v2379, %v2383
      %v2385 = vshrl.u32 %v2258, 16
      %v2387 = vor.u32 %v2385, %v2383
      %v2389 = vshll.u32 %v2259, 16
      %v2391 = vrot.slane %v2389, 1
      %v2392 = vsel %vm398, %v2387, %v2391
      %v2393 = vshrl.u32 %v2259, 16
      %v2395 = vor.u32 %v2393, %v2391
      %v2397 = vshll.u32 %v2260, 16
      %v2399 = vrot.slane %v2397, 1
      %v2400 = vsel %vm398, %v2395, %v2399
      %v2401 = vshrl.u32 %v2260, 16
      %v2403 = vor.u32 %v2401, %v2399
      %v2405 = vshll.u32 %v2261, 16
      %v2407 = vrot.slane %v2405, 1
      %v2408 = vsel %vm398, %v2403, %v2407
      %v2409 = vshrl.u32 %v2261, 16
      %v2411 = vor.u32 %v2409, %v2407
      %v2413 = vshll.u32 %v2262, 16
      %v2415 = vrot.slane %v2413, 1
      %v2416 = vsel %vm398, %v2411, %v2415
      %v2417 = vshrl.u32 %v2262, 16
      %v2419 = vor.u32 %v2417, %v2415
      %v2421 = vshll.u32 %v2263, 16
      %v2423 = vrot.slane %v2421, 1
      %v2424 = vsel %vm398, %v2419, %v2423
      %v2425 = vshrl.u32 %v2263, 16
      %v2427 = vor.u32 %v2425, %v2423
      %v2429 = vshll.u32 %v2264, 16
      %v2431 = vrot.slane %v2429, 1
      %v2432 = vsel %vm398, %v2427, %v2431
      %v2433 = vshrl.u32 %v2264, 16
      %v2435 = vor.u32 %v2433, %v2431
      %v2437 = vshll.u32 %v2265, 16
      %v2439 = vrot.slane %v2437, 1
      %v2440 = vsel %vm398, %v2435, %v2439
      %v2441 = vshrl.u32 %v2265, 16
      %v2443 = vor.u32 %v2441, %v2439
      %v2445 = vshll.u32 %v2266, 16
      %v2447 = vrot.slane %v2445, 1
      %v2448 = vsel %vm398, %v2443, %v2447
      %v2449 = vshrl.u32 %v2266, 16
      %v2451 = vor.u32 %v2449, %v2447
      %v2453 = vshll.u32 %v2267, 16
      %v2455 = vrot.slane %v2453, 1
      %v2456 = vsel %vm398, %v2451, %v2455
      %v2457 = vshrl.u32 %v2267, 16
      %v2459 = vor.u32 %v2457, %v2455
      %v2461 = vshll.u32 %v2268, 16
      %v2463 = vrot.slane %v2461, 1
      %v2464 = vsel %vm398, %v2459, %v2463
      %v2466 = vsel %vm595, %v2280, 0
      %v2469 = vsel %vm595, %v2288, 0
      %v2472 = vsel %vm595, %v2296, 0
      %v2475 = vsel %vm595, %v2304, 0
      %v2478 = vsel %vm595, %v2312, 0
      %v2481 = vsel %vm595, %v2320, 0
      %v2484 = vsel %vm595, %v2328, 0
      %v2487 = vsel %vm595, %v2336, 0
      %v2490 = vsel %vm595, %v2344, 0
      %v2493 = vsel %vm595, %v2352, 0
      %v2496 = vsel %vm595, %v2360, 0
      %v2499 = vsel %vm595, %v2368, 0
      %v2502 = vsel %vm595, %v2376, 0
      %v2505 = vsel %vm595, %v2384, 0
      %v2508 = vsel %vm595, %v2392, 0
      %v2511 = vsel %vm595, %v2400, 0
      %v2514 = vsel %vm595, %v2408, 0
      %v2517 = vsel %vm595, %v2416, 0
      %v2520 = vsel %vm595, %v2424, 0
      %v2523 = vsel %vm595, %v2432, 0
      %v2526 = vsel %vm595, %v2440, 0
      %v2529 = vsel %vm595, %v2448, 0
      %v2532 = vsel %vm595, %v2456, 0
      %v2535 = vsel %vm595, %v2464, 0
      %v2538 = vsel %vm668, %v2145, 0
      %2540 = vmatprep.subr.bf16.mxu0 0
      %2541 = vmatpush1.bf16.msra.mxu0 0
      %2542 = vmatprep.subr.bf16.mxu0 0
      %2543 = vmatpush1.bf16.msra.mxu0 0
      %2544 = vmatprep.subr.bf16.mxu0 0
      %2545 = vmatpush1.bf16.msra.mxu0 0
      %2546 = vmatprep.subr.bf16.mxu0 0
      %2547 = vmatpush1.bf16.msra.mxu0 0
      %2548 = vmatprep.subr.bf16.mxu0 0
      %2549 = vmatpush1.bf16.msra.mxu0 0
      %2550 = vmatprep.subr.bf16.mxu0 0
      %2551 = vmatpush1.bf16.msra.mxu0 0
      %2552 = vmatprep.subr.bf16.mxu0 0
      %2553 = vmatpush1.bf16.msra.mxu0 0
      %2554 = vmatprep.subr.bf16.mxu0 0
      %2555 = vmatpush1.bf16.msra.mxu0 %v2538
      %2556 = vmatprep.subr.bf16.mxu0 0
      %2557 = vmatpush2.bf16.msra.mxu0 0
      %2558 = vmatprep.subr.bf16.mxu0 0
      %2559 = vmatpush2.bf16.msra.mxu0 0
      %2560 = vmatprep.subr.bf16.mxu0 0
      %2561 = vmatpush2.bf16.msra.mxu0 0
      %2562 = vmatprep.subr.bf16.mxu0 0
      %2563 = vmatpush2.bf16.msra.mxu0 0
      %2564 = vmatprep.subr.bf16.mxu0 0
      %2565 = vmatpush2.bf16.msra.mxu0 0
      %2566 = vmatprep.subr.bf16.mxu0 0
      %2567 = vmatpush2.bf16.msra.mxu0 0
      %2568 = vmatprep.subr.bf16.mxu0 0
      %2569 = vmatpush2.bf16.msra.mxu0 0
      %2570 = vmatprep.subr.bf16.mxu0 0
      %2571 = vmatpush2.bf16.msra.mxu0 0
      %2572 = vmatprep.mubr.bf16.mxu0 0
      %2573 = vmatmul.mubr.bf16.gmra.mxu0 %v2466
      %v2574 = vpop.f32.mrf.mxu0
      %v2575 = vadd.f32 0.0, %v2574
      %v2576 = vpop.f32.mrf.mxu0
      %v2577 = vpop.f32.mrf.mxu0
      %v2578 = vadd.f32 0.0, %v2577
      %v2579 = vpop.f32.mrf.mxu0
      %2580 = vmatprep.mubr.bf16.mxu0 0
      %2581 = vmatmul.mubr.bf16.gmra.mxu0 %v2469
      %v2582 = vpop.f32.mrf.mxu0
      %v2583 = vadd.f32 0.0, %v2582
      %v2584 = vpop.f32.mrf.mxu0
      %v2585 = vpop.f32.mrf.mxu0
      %v2586 = vadd.f32 0.0, %v2585
      %v2587 = vpop.f32.mrf.mxu0
      %2588 = vmatprep.mubr.bf16.mxu0 0
      %2589 = vmatmul.mubr.bf16.gmra.mxu0 %v2472
      %v2590 = vpop.f32.mrf.mxu0
      %v2591 = vadd.f32 0.0, %v2590
      %v2592 = vpop.f32.mrf.mxu0
      %v2593 = vpop.f32.mrf.mxu0
      %v2594 = vadd.f32 0.0, %v2593
      %v2595 = vpop.f32.mrf.mxu0
      %2596 = vmatprep.mubr.bf16.mxu0 0
      %2597 = vmatmul.mubr.bf16.gmra.mxu0 %v2475
      %v2598 = vpop.f32.mrf.mxu0
      %v2599 = vadd.f32 0.0, %v2598
      %v2600 = vpop.f32.mrf.mxu0
      %v2601 = vpop.f32.mrf.mxu0
      %v2602 = vadd.f32 0.0, %v2601
      %v2603 = vpop.f32.mrf.mxu0
      %2604 = vmatprep.mubr.bf16.mxu0 0
      %2605 = vmatmul.mubr.bf16.gmra.mxu0 %v2478
      %v2606 = vpop.f32.mrf.mxu0
      %v2607 = vadd.f32 0.0, %v2606
      %v2608 = vpop.f32.mrf.mxu0
      %v2609 = vpop.f32.mrf.mxu0
      %v2610 = vadd.f32 0.0, %v2609
      %v2611 = vpop.f32.mrf.mxu0
      %2612 = vmatprep.mubr.bf16.mxu0 0
      %2613 = vmatmul.mubr.bf16.gmra.mxu0 %v2481
      %v2614 = vpop.f32.mrf.mxu0
      %v2615 = vadd.f32 0.0, %v2614
      %v2616 = vpop.f32.mrf.mxu0
      %v2617 = vpop.f32.mrf.mxu0
      %v2618 = vadd.f32 0.0, %v2617
      %v2619 = vpop.f32.mrf.mxu0
      %2620 = vmatprep.mubr.bf16.mxu0 0
      %2621 = vmatmul.mubr.bf16.gmra.mxu0 %v2484
      %v2622 = vpop.f32.mrf.mxu0
      %v2623 = vadd.f32 0.0, %v2622
      %v2624 = vpop.f32.mrf.mxu0
      %v2625 = vpop.f32.mrf.mxu0
      %v2626 = vadd.f32 0.0, %v2625
      %v2627 = vpop.f32.mrf.mxu0
      %2628 = vmatprep.mubr.bf16.mxu0 0
      %2629 = vmatmul.mubr.bf16.gmra.mxu0 %v2487
      %v2630 = vpop.f32.mrf.mxu0
      %v2631 = vadd.f32 0.0, %v2630
      %v2632 = vpop.f32.mrf.mxu0
      %v2633 = vpop.f32.mrf.mxu0
      %v2634 = vadd.f32 0.0, %v2633
      %v2635 = vpop.f32.mrf.mxu0
      %2636 = vmatprep.mubr.bf16.mxu0 0
      %2637 = vmatmul.mubr.bf16.gmra.mxu0 %v2490
      %v2638 = vpop.f32.mrf.mxu0
      %v2639 = vadd.f32 0.0, %v2638
      %v2640 = vpop.f32.mrf.mxu0
      %v2641 = vpop.f32.mrf.mxu0
      %v2642 = vadd.f32 0.0, %v2641
      %v2643 = vpop.f32.mrf.mxu0
      %2644 = vmatprep.mubr.bf16.mxu0 0
      %2645 = vmatmul.mubr.bf16.gmra.mxu0 %v2493
      %v2646 = vpop.f32.mrf.mxu0
      %v2647 = vadd.f32 0.0, %v2646
      %v2648 = vpop.f32.mrf.mxu0
      %v2649 = vpop.f32.mrf.mxu0
      %v2650 = vadd.f32 0.0, %v2649
      %v2651 = vpop.f32.mrf.mxu0
      %2652 = vmatprep.mubr.bf16.mxu0 0
      %2653 = vmatmul.mubr.bf16.gmra.mxu0 %v2496
      %v2654 = vpop.f32.mrf.mxu0
      %v2655 = vadd.f32 0.0, %v2654
      %v2656 = vpop.f32.mrf.mxu0
      %v2657 = vpop.f32.mrf.mxu0
      %v2658 = vadd.f32 0.0, %v2657
      %v2659 = vpop.f32.mrf.mxu0
      %2660 = vmatprep.mubr.bf16.mxu0 0
      %2661 = vmatmul.mubr.bf16.gmra.mxu0 %v2499
      %v2662 = vpop.f32.mrf.mxu0
      %v2663 = vadd.f32 0.0, %v2662
      %v2664 = vpop.f32.mrf.mxu0
      %v2665 = vpop.f32.mrf.mxu0
      %v2666 = vadd.f32 0.0, %v2665
      %v2667 = vpop.f32.mrf.mxu0
      %2668 = vmatprep.mubr.bf16.mxu0 0
      %2669 = vmatmul.mubr.bf16.gmra.mxu0 %v2502
      %v2670 = vpop.f32.mrf.mxu0
      %v2671 = vadd.f32 0.0, %v2670
      %v2672 = vpop.f32.mrf.mxu0
      %v2673 = vpop.f32.mrf.mxu0
      %v2674 = vadd.f32 0.0, %v2673
      %v2675 = vpop.f32.mrf.mxu0
      %2676 = vmatprep.mubr.bf16.mxu0 0
      %2677 = vmatmul.mubr.bf16.gmra.mxu0 %v2505
      %v2678 = vpop.f32.mrf.mxu0
      %v2679 = vadd.f32 0.0, %v2678
      %v2680 = vpop.f32.mrf.mxu0
      %v2681 = vpop.f32.mrf.mxu0
      %v2682 = vadd.f32 0.0, %v2681
      %v2683 = vpop.f32.mrf.mxu0
      %2684 = vmatprep.mubr.bf16.mxu0 0
      %2685 = vmatmul.mubr.bf16.gmra.mxu0 %v2508
      %v2686 = vpop.f32.mrf.mxu0
      %v2687 = vadd.f32 0.0, %v2686
      %v2688 = vpop.f32.mrf.mxu0
      %v2689 = vpop.f32.mrf.mxu0
      %v2690 = vadd.f32 0.0, %v2689
      %v2691 = vpop.f32.mrf.mxu0
      %2692 = vmatprep.mubr.bf16.mxu0 0
      %2693 = vmatmul.mubr.bf16.gmra.mxu0 %v2511
      %v2694 = vpop.f32.mrf.mxu0
      %v2695 = vadd.f32 0.0, %v2694
      %v2696 = vpop.f32.mrf.mxu0
      %v2697 = vpop.f32.mrf.mxu0
      %v2698 = vadd.f32 0.0, %v2697
      %v2699 = vpop.f32.mrf.mxu0
      %2700 = vmatprep.mubr.bf16.mxu0 0
      %2701 = vmatmul.mubr.bf16.gmra.mxu0 %v2514
      %v2702 = vpop.f32.mrf.mxu0
      %v2703 = vadd.f32 0.0, %v2702
      %v2704 = vpop.f32.mrf.mxu0
      %v2705 = vpop.f32.mrf.mxu0
      %v2706 = vadd.f32 0.0, %v2705
      %v2707 = vpop.f32.mrf.mxu0
      %2708 = vmatprep.mubr.bf16.mxu0 0
      %2709 = vmatmul.mubr.bf16.gmra.mxu0 %v2517
      %v2710 = vpop.f32.mrf.mxu0
      %v2711 = vadd.f32 0.0, %v2710
      %v2712 = vpop.f32.mrf.mxu0
      %v2713 = vpop.f32.mrf.mxu0
      %v2714 = vadd.f32 0.0, %v2713
      %v2715 = vpop.f32.mrf.mxu0
      %2716 = vmatprep.mubr.bf16.mxu0 0
      %2717 = vmatmul.mubr.bf16.gmra.mxu0 %v2520
      %v2718 = vpop.f32.mrf.mxu0
      %v2719 = vadd.f32 0.0, %v2718
      %v2720 = vpop.f32.mrf.mxu0
      %v2721 = vpop.f32.mrf.mxu0
      %v2722 = vadd.f32 0.0, %v2721
      %v2723 = vpop.f32.mrf.mxu0
      %2724 = vmatprep.mubr.bf16.mxu0 0
      %2725 = vmatmul.mubr.bf16.gmra.mxu0 %v2523
      %v2726 = vpop.f32.mrf.mxu0
      %v2727 = vadd.f32 0.0, %v2726
      %v2728 = vpop.f32.mrf.mxu0
      %v2729 = vpop.f32.mrf.mxu0
      %v2730 = vadd.f32 0.0, %v2729
      %v2731 = vpop.f32.mrf.mxu0
      %2732 = vmatprep.mubr.bf16.mxu0 0
      %2733 = vmatmul.mubr.bf16.gmra.mxu0 %v2526
      %v2734 = vpop.f32.mrf.mxu0
      %v2735 = vadd.f32 0.0, %v2734
      %v2736 = vpop.f32.mrf.mxu0
      %v2737 = vpop.f32.mrf.mxu0
      %v2738 = vadd.f32 0.0, %v2737
      %v2739 = vpop.f32.mrf.mxu0
      %2740 = vmatprep.mubr.bf16.mxu0 0
      %2741 = vmatmul.mubr.bf16.gmra.mxu0 %v2529
      %v2742 = vpop.f32.mrf.mxu0
      %v2743 = vadd.f32 0.0, %v2742
      %v2744 = vpop.f32.mrf.mxu0
      %v2745 = vpop.f32.mrf.mxu0
      %v2746 = vadd.f32 0.0, %v2745
      %v2747 = vpop.f32.mrf.mxu0
      %2748 = vmatprep.mubr.bf16.mxu0 0
      %2749 = vmatmul.mubr.bf16.gmra.mxu0 %v2532
      %v2750 = vpop.f32.mrf.mxu0
      %v2751 = vadd.f32 0.0, %v2750
      %v2752 = vpop.f32.mrf.mxu0
      %v2753 = vpop.f32.mrf.mxu0
      %v2754 = vadd.f32 0.0, %v2753
      %v2755 = vpop.f32.mrf.mxu0
      %2756 = vmatprep.mubr.bf16.mxu0 0
      %2757 = vmatmul.mubr.bf16.gmra.mxu0 %v2535
      %v2758 = vpop.f32.mrf.mxu0
      %v2759 = vadd.f32 0.0, %v2758
      %v2760 = vpop.f32.mrf.mxu0
      %v2761 = vpop.f32.mrf.mxu0
      %v2762 = vadd.f32 0.0, %v2761
      %v2763 = vpop.f32.mrf.mxu0
      %2764 = vdwg.mxu0
      %v2765 = vadd.f32 %v2047, %v2575
      %v2766 = vadd.f32 %v2048, %v2578
      %v2767 = vadd.f32 %v2049, %v2583
      %v2768 = vadd.f32 %v2050, %v2586
      %v2769 = vadd.f32 %v2051, %v2591
      %v2770 = vadd.f32 %v2052, %v2594
      %v2771 = vadd.f32 %v2053, %v2599
      %v2772 = vadd.f32 %v2054, %v2602
      %v2773 = vadd.f32 %v2055, %v2607
      %v2774 = vadd.f32 %v2056, %v2610
      %v2775 = vadd.f32 %v2057, %v2615
      %v2776 = vadd.f32 %v2058, %v2618
      %v2777 = vadd.f32 %v2059, %v2623
      %v2778 = vadd.f32 %v2060, %v2626
      %v2779 = vadd.f32 %v2061, %v2631
      %v2780 = vadd.f32 %v2062, %v2634
      %v2781 = vadd.f32 %v2063, %v2639
      %v2782 = vadd.f32 %v2064, %v2642
      %v2783 = vadd.f32 %v2065, %v2647
      %v2784 = vadd.f32 %v2066, %v2650
      %v2785 = vadd.f32 %v2067, %v2655
      %v2786 = vadd.f32 %v2068, %v2658
      %v2787 = vadd.f32 %v2069, %v2663
      %v2788 = vadd.f32 %v2070, %v2666
      %v2789 = vadd.f32 %v2071, %v2671
      %v2790 = vadd.f32 %v2072, %v2674
      %v2791 = vadd.f32 %v2073, %v2679
      %v2792 = vadd.f32 %v2074, %v2682
      %v2793 = vadd.f32 %v2075, %v2687
      %v2794 = vadd.f32 %v2076, %v2690
      %v2795 = vadd.f32 %v2077, %v2695
      %v2796 = vadd.f32 %v2078, %v2698
      %v2797 = vadd.f32 %v2079, %v2703
      %v2798 = vadd.f32 %v2080, %v2706
      %v2799 = vadd.f32 %v2081, %v2711
      %v2800 = vadd.f32 %v2082, %v2714
      %v2801 = vadd.f32 %v2083, %v2719
      %v2802 = vadd.f32 %v2084, %v2722
      %v2803 = vadd.f32 %v2085, %v2727
      %v2804 = vadd.f32 %v2086, %v2730
      %v2805 = vadd.f32 %v2087, %v2735
      %v2806 = vadd.f32 %v2088, %v2738
      %v2807 = vadd.f32 %v2089, %v2743
      %v2808 = vadd.f32 %v2090, %v2746
      %v2809 = vadd.f32 %v2091, %v2751
      %v2810 = vadd.f32 %v2092, %v2754
      %v2811 = vadd.f32 %v2093, %v2759
      %v2812 = vadd.f32 %v2094, %v2762
      %v2813 = vld [vmem:[%s206 + $0xc] sm:$0xe]
      %s2814 = scalar_lea.vmem %s210, 20
      %v2815 = vld [vmem:[%s2814] sm:$0xf]
      %v2817 = vunpack.c.l.b16 %v2813
      %v2818 = vpack.c.b16 %v2196, %v2817
      %v2819 = vrot.slane %v2818, 1
      %v2820 = vrot.slane %v2245, 1
      %v2821 = vsel %vm1179, %v2819, %v2820
      %v2822 = vrot.slane %v2246, 1
      %v2823 = vsel %vm1179, %v2820, %v2822
      %v2824 = vrot.slane %v2247, 1
      %v2825 = vsel %vm1179, %v2822, %v2824
      %v2826 = vrot.slane %v2248, 1
      %v2827 = vsel %vm1179, %v2824, %v2826
      %v2828 = vrot.slane %v2249, 1
      %v2829 = vsel %vm1179, %v2826, %v2828
      %v2830 = vrot.slane %v2250, 1
      %v2831 = vsel %vm1179, %v2828, %v2830
      %v2832 = vrot.slane %v2251, 1
      %v2833 = vsel %vm1179, %v2830, %v2832
      %v2834 = vrot.slane %v2252, 1
      %v2835 = vsel %vm1179, %v2832, %v2834
      %v2836 = vrot.slane %v2253, 1
      %v2837 = vsel %vm1179, %v2834, %v2836
      %v2838 = vrot.slane %v2254, 1
      %v2839 = vsel %vm1179, %v2836, %v2838
      %v2840 = vrot.slane %v2255, 1
      %v2841 = vsel %vm1179, %v2838, %v2840
      %v2842 = vrot.slane %v2256, 1
      %v2843 = vsel %vm1179, %v2840, %v2842
      %v2844 = vrot.slane %v2257, 1
      %v2845 = vsel %vm1179, %v2842, %v2844
      %v2846 = vrot.slane %v2258, 1
      %v2847 = vsel %vm1179, %v2844, %v2846
      %v2848 = vrot.slane %v2259, 1
      %v2849 = vsel %vm1179, %v2846, %v2848
      %v2850 = vrot.slane %v2260, 1
      %v2851 = vsel %vm1179, %v2848, %v2850
      %v2852 = vrot.slane %v2261, 1
      %v2853 = vsel %vm1179, %v2850, %v2852
      %v2854 = vrot.slane %v2262, 1
      %v2855 = vsel %vm1179, %v2852, %v2854
      %v2856 = vrot.slane %v2263, 1
      %v2857 = vsel %vm1179, %v2854, %v2856
      %v2858 = vrot.slane %v2264, 1
      %v2859 = vsel %vm1179, %v2856, %v2858
      %v2860 = vrot.slane %v2265, 1
      %v2861 = vsel %vm1179, %v2858, %v2860
      %v2862 = vrot.slane %v2266, 1
      %v2863 = vsel %vm1179, %v2860, %v2862
      %v2864 = vrot.slane %v2267, 1
      %v2865 = vsel %vm1179, %v2862, %v2864
      %v2866 = vrot.slane %v2268, 1
      %v2867 = vsel %vm1179, %v2864, %v2866
      %v2869 = vsel %vm595, %v2821, 0
      %v2872 = vsel %vm595, %v2823, 0
      %v2875 = vsel %vm595, %v2825, 0
      %v2878 = vsel %vm595, %v2827, 0
      %v2881 = vsel %vm595, %v2829, 0
      %v2884 = vsel %vm595, %v2831, 0
      %v2887 = vsel %vm595, %v2833, 0
      %v2890 = vsel %vm595, %v2835, 0
      %v2893 = vsel %vm595, %v2837, 0
      %v2896 = vsel %vm595, %v2839, 0
      %v2899 = vsel %vm595, %v2841, 0
      %v2902 = vsel %vm595, %v2843, 0
      %v2905 = vsel %vm595, %v2845, 0
      %v2908 = vsel %vm595, %v2847, 0
      %v2911 = vsel %vm595, %v2849, 0
      %v2914 = vsel %vm595, %v2851, 0
      %v2917 = vsel %vm595, %v2853, 0
      %v2920 = vsel %vm595, %v2855, 0
      %v2923 = vsel %vm595, %v2857, 0
      %v2926 = vsel %vm595, %v2859, 0
      %v2929 = vsel %vm595, %v2861, 0
      %v2932 = vsel %vm595, %v2863, 0
      %v2935 = vsel %vm595, %v2865, 0
      %v2938 = vsel %vm595, %v2867, 0
      %v2941 = vsel %vm668, %v2815, 0
      %2943 = vmatprep.subr.bf16.mxu0 0
      %2944 = vmatpush1.bf16.msra.mxu0 0
      %2945 = vmatprep.subr.bf16.mxu0 0
      %2946 = vmatpush1.bf16.msra.mxu0 0
      %2947 = vmatprep.subr.bf16.mxu0 0
      %2948 = vmatpush1.bf16.msra.mxu0 0
      %2949 = vmatprep.subr.bf16.mxu0 0
      %2950 = vmatpush1.bf16.msra.mxu0 0
      %2951 = vmatprep.subr.bf16.mxu0 0
      %2952 = vmatpush1.bf16.msra.mxu0 0
      %2953 = vmatprep.subr.bf16.mxu0 0
      %2954 = vmatpush1.bf16.msra.mxu0 0
      %2955 = vmatprep.subr.bf16.mxu0 0
      %2956 = vmatpush1.bf16.msra.mxu0 0
      %2957 = vmatprep.subr.bf16.mxu0 0
      %2958 = vmatpush1.bf16.msra.mxu0 %v2941
      %2959 = vmatprep.subr.bf16.mxu0 0
      %2960 = vmatpush2.bf16.msra.mxu0 0
      %2961 = vmatprep.subr.bf16.mxu0 0
      %2962 = vmatpush2.bf16.msra.mxu0 0
      %2963 = vmatprep.subr.bf16.mxu0 0
      %2964 = vmatpush2.bf16.msra.mxu0 0
      %2965 = vmatprep.subr.bf16.mxu0 0
      %2966 = vmatpush2.bf16.msra.mxu0 0
      %2967 = vmatprep.subr.bf16.mxu0 0
      %2968 = vmatpush2.bf16.msra.mxu0 0
      %2969 = vmatprep.subr.bf16.mxu0 0
      %2970 = vmatpush2.bf16.msra.mxu0 0
      %2971 = vmatprep.subr.bf16.mxu0 0
      %2972 = vmatpush2.bf16.msra.mxu0 0
      %2973 = vmatprep.subr.bf16.mxu0 0
      %2974 = vmatpush2.bf16.msra.mxu0 0
      %2975 = vmatprep.mubr.bf16.mxu0 0
      %2976 = vmatmul.mubr.bf16.gmra.mxu0 %v2869
      %v2977 = vpop.f32.mrf.mxu0
      %v2978 = vadd.f32 0.0, %v2977
      %v2979 = vpop.f32.mrf.mxu0
      %v2980 = vpop.f32.mrf.mxu0
      %v2981 = vadd.f32 0.0, %v2980
      %v2982 = vpop.f32.mrf.mxu0
      %2983 = vmatprep.mubr.bf16.mxu0 0
      %2984 = vmatmul.mubr.bf16.gmra.mxu0 %v2872
      %v2985 = vpop.f32.mrf.mxu0
      %v2986 = vadd.f32 0.0, %v2985
      %v2987 = vpop.f32.mrf.mxu0
      %v2988 = vpop.f32.mrf.mxu0
      %v2989 = vadd.f32 0.0, %v2988
      %v2990 = vpop.f32.mrf.mxu0
      %2991 = vmatprep.mubr.bf16.mxu0 0
      %2992 = vmatmul.mubr.bf16.gmra.mxu0 %v2875
      %v2993 = vpop.f32.mrf.mxu0
      %v2994 = vadd.f32 0.0, %v2993
      %v2995 = vpop.f32.mrf.mxu0
      %v2996 = vpop.f32.mrf.mxu0
      %v2997 = vadd.f32 0.0, %v2996
      %v2998 = vpop.f32.mrf.mxu0
      %2999 = vmatprep.mubr.bf16.mxu0 0
      %3000 = vmatmul.mubr.bf16.gmra.mxu0 %v2878
      %v3001 = vpop.f32.mrf.mxu0
      %v3002 = vadd.f32 0.0, %v3001
      %v3003 = vpop.f32.mrf.mxu0
      %v3004 = vpop.f32.mrf.mxu0
      %v3005 = vadd.f32 0.0, %v3004
      %v3006 = vpop.f32.mrf.mxu0
      %3007 = vmatprep.mubr.bf16.mxu0 0
      %3008 = vmatmul.mubr.bf16.gmra.mxu0 %v2881
      %v3009 = vpop.f32.mrf.mxu0
      %v3010 = vadd.f32 0.0, %v3009
      %v3011 = vpop.f32.mrf.mxu0
      %v3012 = vpop.f32.mrf.mxu0
      %v3013 = vadd.f32 0.0, %v3012
      %v3014 = vpop.f32.mrf.mxu0
      %3015 = vmatprep.mubr.bf16.mxu0 0
      %3016 = vmatmul.mubr.bf16.gmra.mxu0 %v2884
      %v3017 = vpop.f32.mrf.mxu0
      %v3018 = vadd.f32 0.0, %v3017
      %v3019 = vpop.f32.mrf.mxu0
      %v3020 = vpop.f32.mrf.mxu0
      %v3021 = vadd.f32 0.0, %v3020
      %v3022 = vpop.f32.mrf.mxu0
      %3023 = vmatprep.mubr.bf16.mxu0 0
      %3024 = vmatmul.mubr.bf16.gmra.mxu0 %v2887
      %v3025 = vpop.f32.mrf.mxu0
      %v3026 = vadd.f32 0.0, %v3025
      %v3027 = vpop.f32.mrf.mxu0
      %v3028 = vpop.f32.mrf.mxu0
      %v3029 = vadd.f32 0.0, %v3028
      %v3030 = vpop.f32.mrf.mxu0
      %3031 = vmatprep.mubr.bf16.mxu0 0
      %3032 = vmatmul.mubr.bf16.gmra.mxu0 %v2890
      %v3033 = vpop.f32.mrf.mxu0
      %v3034 = vadd.f32 0.0, %v3033
      %v3035 = vpop.f32.mrf.mxu0
      %v3036 = vpop.f32.mrf.mxu0
      %v3037 = vadd.f32 0.0, %v3036
      %v3038 = vpop.f32.mrf.mxu0
      %3039 = vmatprep.mubr.bf16.mxu0 0
      %3040 = vmatmul.mubr.bf16.gmra.mxu0 %v2893
      %v3041 = vpop.f32.mrf.mxu0
      %v3042 = vadd.f32 0.0, %v3041
      %v3043 = vpop.f32.mrf.mxu0
      %v3044 = vpop.f32.mrf.mxu0
      %v3045 = vadd.f32 0.0, %v3044
      %v3046 = vpop.f32.mrf.mxu0
      %3047 = vmatprep.mubr.bf16.mxu0 0
      %3048 = vmatmul.mubr.bf16.gmra.mxu0 %v2896
      %v3049 = vpop.f32.mrf.mxu0
      %v3050 = vadd.f32 0.0, %v3049
      %v3051 = vpop.f32.mrf.mxu0
      %v3052 = vpop.f32.mrf.mxu0
      %v3053 = vadd.f32 0.0, %v3052
      %v3054 = vpop.f32.mrf.mxu0
      %3055 = vmatprep.mubr.bf16.mxu0 0
      %3056 = vmatmul.mubr.bf16.gmra.mxu0 %v2899
      %v3057 = vpop.f32.mrf.mxu0
      %v3058 = vadd.f32 0.0, %v3057
      %v3059 = vpop.f32.mrf.mxu0
      %v3060 = vpop.f32.mrf.mxu0
      %v3061 = vadd.f32 0.0, %v3060
      %v3062 = vpop.f32.mrf.mxu0
      %3063 = vmatprep.mubr.bf16.mxu0 0
      %3064 = vmatmul.mubr.bf16.gmra.mxu0 %v2902
      %v3065 = vpop.f32.mrf.mxu0
      %v3066 = vadd.f32 0.0, %v3065
      %v3067 = vpop.f32.mrf.mxu0
      %v3068 = vpop.f32.mrf.mxu0
      %v3069 = vadd.f32 0.0, %v3068
      %v3070 = vpop.f32.mrf.mxu0
      %3071 = vmatprep.mubr.bf16.mxu0 0
      %3072 = vmatmul.mubr.bf16.gmra.mxu0 %v2905
      %v3073 = vpop.f32.mrf.mxu0
      %v3074 = vadd.f32 0.0, %v3073
      %v3075 = vpop.f32.mrf.mxu0
      %v3076 = vpop.f32.mrf.mxu0
      %v3077 = vadd.f32 0.0, %v3076
      %v3078 = vpop.f32.mrf.mxu0
      %3079 = vmatprep.mubr.bf16.mxu0 0
      %3080 = vmatmul.mubr.bf16.gmra.mxu0 %v2908
      %v3081 = vpop.f32.mrf.mxu0
      %v3082 = vadd.f32 0.0, %v3081
      %v3083 = vpop.f32.mrf.mxu0
      %v3084 = vpop.f32.mrf.mxu0
      %v3085 = vadd.f32 0.0, %v3084
      %v3086 = vpop.f32.mrf.mxu0
      %3087 = vmatprep.mubr.bf16.mxu0 0
      %3088 = vmatmul.mubr.bf16.gmra.mxu0 %v2911
      %v3089 = vpop.f32.mrf.mxu0
      %v3090 = vadd.f32 0.0, %v3089
      %v3091 = vpop.f32.mrf.mxu0
      %v3092 = vpop.f32.mrf.mxu0
      %v3093 = vadd.f32 0.0, %v3092
      %v3094 = vpop.f32.mrf.mxu0
      %3095 = vmatprep.mubr.bf16.mxu0 0
      %3096 = vmatmul.mubr.bf16.gmra.mxu0 %v2914
      %v3097 = vpop.f32.mrf.mxu0
      %v3098 = vadd.f32 0.0, %v3097
      %v3099 = vpop.f32.mrf.mxu0
      %v3100 = vpop.f32.mrf.mxu0
      %v3101 = vadd.f32 0.0, %v3100
      %v3102 = vpop.f32.mrf.mxu0
      %3103 = vmatprep.mubr.bf16.mxu0 0
      %3104 = vmatmul.mubr.bf16.gmra.mxu0 %v2917
      %v3105 = vpop.f32.mrf.mxu0
      %v3106 = vadd.f32 0.0, %v3105
      %v3107 = vpop.f32.mrf.mxu0
      %v3108 = vpop.f32.mrf.mxu0
      %v3109 = vadd.f32 0.0, %v3108
      %v3110 = vpop.f32.mrf.mxu0
      %3111 = vmatprep.mubr.bf16.mxu0 0
      %3112 = vmatmul.mubr.bf16.gmra.mxu0 %v2920
      %v3113 = vpop.f32.mrf.mxu0
      %v3114 = vadd.f32 0.0, %v3113
      %v3115 = vpop.f32.mrf.mxu0
      %v3116 = vpop.f32.mrf.mxu0
      %v3117 = vadd.f32 0.0, %v3116
      %v3118 = vpop.f32.mrf.mxu0
      %3119 = vmatprep.mubr.bf16.mxu0 0
      %3120 = vmatmul.mubr.bf16.gmra.mxu0 %v2923
      %v3121 = vpop.f32.mrf.mxu0
      %v3122 = vadd.f32 0.0, %v3121
      %v3123 = vpop.f32.mrf.mxu0
      %v3124 = vpop.f32.mrf.mxu0
      %v3125 = vadd.f32 0.0, %v3124
      %v3126 = vpop.f32.mrf.mxu0
      %3127 = vmatprep.mubr.bf16.mxu0 0
      %3128 = vmatmul.mubr.bf16.gmra.mxu0 %v2926
      %v3129 = vpop.f32.mrf.mxu0
      %v3130 = vadd.f32 0.0, %v3129
      %v3131 = vpop.f32.mrf.mxu0
      %v3132 = vpop.f32.mrf.mxu0
      %v3133 = vadd.f32 0.0, %v3132
      %v3134 = vpop.f32.mrf.mxu0
      %3135 = vmatprep.mubr.bf16.mxu0 0
      %3136 = vmatmul.mubr.bf16.gmra.mxu0 %v2929
      %v3137 = vpop.f32.mrf.mxu0
      %v3138 = vadd.f32 0.0, %v3137
      %v3139 = vpop.f32.mrf.mxu0
      %v3140 = vpop.f32.mrf.mxu0
      %v3141 = vadd.f32 0.0, %v3140
      %v3142 = vpop.f32.mrf.mxu0
      %3143 = vmatprep.mubr.bf16.mxu0 0
      %3144 = vmatmul.mubr.bf16.gmra.mxu0 %v2932
      %v3145 = vpop.f32.mrf.mxu0
      %v3146 = vadd.f32 0.0, %v3145
      %v3147 = vpop.f32.mrf.mxu0
      %v3148 = vpop.f32.mrf.mxu0
      %v3149 = vadd.f32 0.0, %v3148
      %v3150 = vpop.f32.mrf.mxu0
      %3151 = vmatprep.mubr.bf16.mxu0 0
      %3152 = vmatmul.mubr.bf16.gmra.mxu0 %v2935
      %v3153 = vpop.f32.mrf.mxu0
      %v3154 = vadd.f32 0.0, %v3153
      %v3155 = vpop.f32.mrf.mxu0
      %v3156 = vpop.f32.mrf.mxu0
      %v3157 = vadd.f32 0.0, %v3156
      %v3158 = vpop.f32.mrf.mxu0
      %3159 = vmatprep.mubr.bf16.mxu0 0
      %3160 = vmatmul.mubr.bf16.gmra.mxu0 %v2938
      %v3161 = vpop.f32.mrf.mxu0
      %v3162 = vadd.f32 0.0, %v3161
      %v3163 = vpop.f32.mrf.mxu0
      %v3164 = vpop.f32.mrf.mxu0
      %v3165 = vadd.f32 0.0, %v3164
      %v3166 = vpop.f32.mrf.mxu0
      %3167 = vdwg.mxu0
      %v3168 = vadd.f32 %v2765, %v2978
      %v3169 = vadd.f32 %v2766, %v2981
      %v3170 = vadd.f32 %v2767, %v2986
      %v3171 = vadd.f32 %v2768, %v2989
      %v3172 = vadd.f32 %v2769, %v2994
      %v3173 = vadd.f32 %v2770, %v2997
      %v3174 = vadd.f32 %v2771, %v3002
      %v3175 = vadd.f32 %v2772, %v3005
      %v3176 = vadd.f32 %v2773, %v3010
      %v3177 = vadd.f32 %v2774, %v3013
      %v3178 = vadd.f32 %v2775, %v3018
      %v3179 = vadd.f32 %v2776, %v3021
      %v3180 = vadd.f32 %v2777, %v3026
      %v3181 = vadd.f32 %v2778, %v3029
      %v3182 = vadd.f32 %v2779, %v3034
      %v3183 = vadd.f32 %v2780, %v3037
      %v3184 = vadd.f32 %v2781, %v3042
      %v3185 = vadd.f32 %v2782, %v3045
      %v3186 = vadd.f32 %v2783, %v3050
      %v3187 = vadd.f32 %v2784, %v3053
      %v3188 = vadd.f32 %v2785, %v3058
      %v3189 = vadd.f32 %v2786, %v3061
      %v3190 = vadd.f32 %v2787, %v3066
      %v3191 = vadd.f32 %v2788, %v3069
      %v3192 = vadd.f32 %v2789, %v3074
      %v3193 = vadd.f32 %v2790, %v3077
      %v3194 = vadd.f32 %v2791, %v3082
      %v3195 = vadd.f32 %v2792, %v3085
      %v3196 = vadd.f32 %v2793, %v3090
      %v3197 = vadd.f32 %v2794, %v3093
      %v3198 = vadd.f32 %v2795, %v3098
      %v3199 = vadd.f32 %v2796, %v3101
      %v3200 = vadd.f32 %v2797, %v3106
      %v3201 = vadd.f32 %v2798, %v3109
      %v3202 = vadd.f32 %v2799, %v3114
      %v3203 = vadd.f32 %v2800, %v3117
      %v3204 = vadd.f32 %v2801, %v3122
      %v3205 = vadd.f32 %v2802, %v3125
      %v3206 = vadd.f32 %v2803, %v3130
      %v3207 = vadd.f32 %v2804, %v3133
      %v3208 = vadd.f32 %v2805, %v3138
      %v3209 = vadd.f32 %v2806, %v3141
      %v3210 = vadd.f32 %v2807, %v3146
      %v3211 = vadd.f32 %v2808, %v3149
      %v3212 = vadd.f32 %v2809, %v3154
      %v3213 = vadd.f32 %v2810, %v3157
      %v3214 = vadd.f32 %v2811, %v3162
      %v3215 = vadd.f32 %v2812, %v3165
      %v3216 = vld [vmem:[%s206 + $0x18] sm:$0xf]
      %v3217 = vld [vmem:[%s206 + $0x1c] sm:$0xf]
      %v3218 = vld [vmem:[%s206 + $0x20] sm:$0xf]
      %v3219 = vld [vmem:[%s206 + $0x24] sm:$0xf]
      %v3220 = vld [vmem:[%s206 + $0x28] sm:$0xf]
      %v3221 = vld [vmem:[%s206 + $0x2c] sm:$0xf]
      %v3222 = vld [vmem:[%s206 + $0x30] sm:$0xf]
      %v3223 = vld [vmem:[%s206 + $0x34] sm:$0xf]
      %v3224 = vld [vmem:[%s206 + $0x38] sm:$0xf]
      %v3225 = vld [vmem:[%s206 + $0x3c] sm:$0xf]
      %v3226 = vld [vmem:[%s206 + $0x40] sm:$0xf]
      %v3227 = vld [vmem:[%s206 + $0x44] sm:$0xf]
      %v3228 = vld [vmem:[%s206 + $0x48] sm:$0xf]
      %v3229 = vld [vmem:[%s206 + $0x4c] sm:$0xf]
      %v3230 = vld [vmem:[%s206 + $0x50] sm:$0xf]
      %v3231 = vld [vmem:[%s206 + $0x54] sm:$0xf]
      %v3232 = vld [vmem:[%s206 + $0x58] sm:$0xf]
      %v3233 = vld [vmem:[%s206 + $0x5c] sm:$0xf]
      %v3234 = vld [vmem:[%s206 + $0x60] sm:$0xf]
      %v3235 = vld [vmem:[%s206 + $0x64] sm:$0xf]
      %v3236 = vld [vmem:[%s206 + $0x68] sm:$0xf]
      %v3237 = vld [vmem:[%s206 + $0x6c] sm:$0xf]
      %v3238 = vld [vmem:[%s206 + $0x70] sm:$0xf]
      %v3239 = vld [vmem:[%s206 + $0x74] sm:$0xf]
      %v3240 = vld [vmem:[%s206 + $0x78] sm:$0xf]
      %v3241 = vld [vmem:[%s206 + $0x7c] sm:$0xf]
      %v3242 = vld [vmem:[%s206 + $0x80] sm:$0xf]
      %v3243 = vld [vmem:[%s206 + $0x84] sm:$0xf]
      %v3244 = vld [vmem:[%s206 + $0x88] sm:$0xf]
      %v3245 = vld [vmem:[%s206 + $0x8c] sm:$0xf]
      %v3246 = vld [vmem:[%s206 + $0x90] sm:$0xf]
      %v3247 = vld [vmem:[%s206 + $0x94] sm:$0xf]
      %v3248 = vld [vmem:[%s206 + $0x98] sm:$0xf]
      %v3249 = vld [vmem:[%s206 + $0x9c] sm:$0xf]
      %v3250 = vld [vmem:[%s206 + $0xa0] sm:$0xf]
      %v3251 = vld [vmem:[%s206 + $0xa4] sm:$0xf]
      %v3252 = vld [vmem:[%s206 + $0xa8] sm:$0xf]
      %v3253 = vld [vmem:[%s206 + $0xac] sm:$0xf]
      %v3254 = vld [vmem:[%s206 + $0xb0] sm:$0xf]
      %v3255 = vld [vmem:[%s206 + $0xb4] sm:$0xf]
      %v3256 = vld [vmem:[%s206 + $0xb8] sm:$0xf]
      %v3257 = vld [vmem:[%s206 + $0xbc] sm:$0xf]
      %v3258 = vld [vmem:[%s206 + $0xc0] sm:$0xf]
      %v3259 = vld [vmem:[%s206 + $0xc4] sm:$0xf]
      %v3260 = vld [vmem:[%s206 + $0xc8] sm:$0xf]
      %v3261 = vld [vmem:[%s206 + $0xcc] sm:$0xf]
      %v3262 = vld [vmem:[%s206 + $0xd0] sm:$0xf]
      %v3263 = vld [vmem:[%s206 + $0xd4] sm:$0xf]
      %s3264 = scalar_lea.vmem %s210, 24
      %v3265 = vld [vmem:[%s3264] sm:$0xf]
      %v3314 = vunpack.c.l.b16 %v3216
      %v3315 = vunpack.c.l.b16 %v3217
      %v3316 = vunpack.c.l.b16 %v3218
      %v3317 = vunpack.c.l.b16 %v3219
      %v3318 = vunpack.c.l.b16 %v3220
      %v3319 = vunpack.c.l.b16 %v3221
      %v3320 = vunpack.c.l.b16 %v3222
      %v3321 = vunpack.c.l.b16 %v3223
      %v3322 = vunpack.c.l.b16 %v3224
      %v3323 = vunpack.c.l.b16 %v3225
      %v3324 = vunpack.c.l.b16 %v3226
      %v3325 = vunpack.c.l.b16 %v3227
      %v3326 = vunpack.c.l.b16 %v3228
      %v3327 = vunpack.c.l.b16 %v3229
      %v3328 = vunpack.c.l.b16 %v3230
      %v3329 = vunpack.c.l.b16 %v3231
      %v3330 = vunpack.c.l.b16 %v3232
      %v3331 = vunpack.c.l.b16 %v3233
      %v3332 = vunpack.c.l.b16 %v3234
      %v3333 = vunpack.c.l.b16 %v3235
      %v3334 = vunpack.c.l.b16 %v3236
      %v3335 = vunpack.c.l.b16 %v3237
      %v3336 = vunpack.c.l.b16 %v3238
      %v3337 = vunpack.c.l.b16 %v3239
      %v3338 = vunpack.c.l.b16 %v3240
      %v3339 = vunpack.c.l.b16 %v3241
      %v3340 = vunpack.c.l.b16 %v3242
      %v3341 = vunpack.c.l.b16 %v3243
      %v3342 = vunpack.c.l.b16 %v3244
      %v3343 = vunpack.c.l.b16 %v3245
      %v3344 = vunpack.c.l.b16 %v3246
      %v3345 = vunpack.c.l.b16 %v3247
      %v3346 = vunpack.c.l.b16 %v3248
      %v3347 = vunpack.c.l.b16 %v3249
      %v3348 = vunpack.c.l.b16 %v3250
      %v3349 = vunpack.c.l.b16 %v3251
      %v3350 = vunpack.c.l.b16 %v3252
      %v3351 = vunpack.c.l.b16 %v3253
      %v3352 = vunpack.c.l.b16 %v3254
      %v3353 = vunpack.c.l.b16 %v3255
      %v3354 = vunpack.c.l.b16 %v3256
      %v3355 = vunpack.c.l.b16 %v3257
      %v3356 = vunpack.c.l.b16 %v3258
      %v3357 = vunpack.c.l.b16 %v3259
      %v3358 = vunpack.c.l.b16 %v3260
      %v3359 = vunpack.c.l.b16 %v3261
      %v3360 = vunpack.c.l.b16 %v3262
      %v3361 = vunpack.c.l.b16 %v3263
      %v3362 = vpack.c.b16 %v3315, %v3314
      %v3363 = vpack.c.b16 %v3317, %v3316
      %v3364 = vpack.c.b16 %v3319, %v3318
      %v3365 = vpack.c.b16 %v3321, %v3320
      %v3366 = vpack.c.b16 %v3323, %v3322
      %v3367 = vpack.c.b16 %v3325, %v3324
      %v3368 = vpack.c.b16 %v3327, %v3326
      %v3369 = vpack.c.b16 %v3329, %v3328
      %v3370 = vpack.c.b16 %v3331, %v3330
      %v3371 = vpack.c.b16 %v3333, %v3332
      %v3372 = vpack.c.b16 %v3335, %v3334
      %v3373 = vpack.c.b16 %v3337, %v3336
      %v3374 = vpack.c.b16 %v3339, %v3338
      %v3375 = vpack.c.b16 %v3341, %v3340
      %v3376 = vpack.c.b16 %v3343, %v3342
      %v3377 = vpack.c.b16 %v3345, %v3344
      %v3378 = vpack.c.b16 %v3347, %v3346
      %v3379 = vpack.c.b16 %v3349, %v3348
      %v3380 = vpack.c.b16 %v3351, %v3350
      %v3381 = vpack.c.b16 %v3353, %v3352
      %v3382 = vpack.c.b16 %v3355, %v3354
      %v3383 = vpack.c.b16 %v3357, %v3356
      %v3384 = vpack.c.b16 %v3359, %v3358
      %v3385 = vpack.c.b16 %v3361, %v3360
      %v3387 = vsel %vm595, %v3362, 0
      %v3390 = vsel %vm595, %v3363, 0
      %v3393 = vsel %vm595, %v3364, 0
      %v3396 = vsel %vm595, %v3365, 0
      %v3399 = vsel %vm595, %v3366, 0
      %v3402 = vsel %vm595, %v3367, 0
      %v3405 = vsel %vm595, %v3368, 0
      %v3408 = vsel %vm595, %v3369, 0
      %v3411 = vsel %vm595, %v3370, 0
      %v3414 = vsel %vm595, %v3371, 0
      %v3417 = vsel %vm595, %v3372, 0
      %v3420 = vsel %vm595, %v3373, 0
      %v3423 = vsel %vm595, %v3374, 0
      %v3426 = vsel %vm595, %v3375, 0
      %v3429 = vsel %vm595, %v3376, 0
      %v3432 = vsel %vm595, %v3377, 0
      %v3435 = vsel %vm595, %v3378, 0
      %v3438 = vsel %vm595, %v3379, 0
      %v3441 = vsel %vm595, %v3380, 0
      %v3444 = vsel %vm595, %v3381, 0
      %v3447 = vsel %vm595, %v3382, 0
      %v3450 = vsel %vm595, %v3383, 0
      %v3453 = vsel %vm595, %v3384, 0
      %v3456 = vsel %vm595, %v3385, 0
      %v3459 = vsel %vm668, %v3265, 0
      %3461 = vmatprep.subr.bf16.mxu0 0
      %3462 = vmatpush1.bf16.msra.mxu0 0
      %3463 = vmatprep.subr.bf16.mxu0 0
      %3464 = vmatpush1.bf16.msra.mxu0 0
      %3465 = vmatprep.subr.bf16.mxu0 0
      %3466 = vmatpush1.bf16.msra.mxu0 0
      %3467 = vmatprep.subr.bf16.mxu0 0
      %3468 = vmatpush1.bf16.msra.mxu0 0
      %3469 = vmatprep.subr.bf16.mxu0 0
      %3470 = vmatpush1.bf16.msra.mxu0 0
      %3471 = vmatprep.subr.bf16.mxu0 0
      %3472 = vmatpush1.bf16.msra.mxu0 0
      %3473 = vmatprep.subr.bf16.mxu0 0
      %3474 = vmatpush1.bf16.msra.mxu0 0
      %3475 = vmatprep.subr.bf16.mxu0 0
      %3476 = vmatpush1.bf16.msra.mxu0 %v3459
      %3477 = vmatprep.subr.bf16.mxu0 0
      %3478 = vmatpush2.bf16.msra.mxu0 0
      %3479 = vmatprep.subr.bf16.mxu0 0
      %3480 = vmatpush2.bf16.msra.mxu0 0
      %3481 = vmatprep.subr.bf16.mxu0 0
      %3482 = vmatpush2.bf16.msra.mxu0 0
      %3483 = vmatprep.subr.bf16.mxu0 0
      %3484 = vmatpush2.bf16.msra.mxu0 0
      %3485 = vmatprep.subr.bf16.mxu0 0
      %3486 = vmatpush2.bf16.msra.mxu0 0
      %3487 = vmatprep.subr.bf16.mxu0 0
      %3488 = vmatpush2.bf16.msra.mxu0 0
      %3489 = vmatprep.subr.bf16.mxu0 0
      %3490 = vmatpush2.bf16.msra.mxu0 0
      %3491 = vmatprep.subr.bf16.mxu0 0
      %3492 = vmatpush2.bf16.msra.mxu0 0
      %3493 = vmatprep.mubr.bf16.mxu0 0
      %3494 = vmatmul.mubr.bf16.gmra.mxu0 %v3387
      %v3495 = vpop.f32.mrf.mxu0
      %v3496 = vadd.f32 0.0, %v3495
      %v3497 = vpop.f32.mrf.mxu0
      %v3498 = vpop.f32.mrf.mxu0
      %v3499 = vadd.f32 0.0, %v3498
      %v3500 = vpop.f32.mrf.mxu0
      %3501 = vmatprep.mubr.bf16.mxu0 0
      %3502 = vmatmul.mubr.bf16.gmra.mxu0 %v3390
      %v3503 = vpop.f32.mrf.mxu0
      %v3504 = vadd.f32 0.0, %v3503
      %v3505 = vpop.f32.mrf.mxu0
      %v3506 = vpop.f32.mrf.mxu0
      %v3507 = vadd.f32 0.0, %v3506
      %v3508 = vpop.f32.mrf.mxu0
      %3509 = vmatprep.mubr.bf16.mxu0 0
      %3510 = vmatmul.mubr.bf16.gmra.mxu0 %v3393
      %v3511 = vpop.f32.mrf.mxu0
      %v3512 = vadd.f32 0.0, %v3511
      %v3513 = vpop.f32.mrf.mxu0
      %v3514 = vpop.f32.mrf.mxu0
      %v3515 = vadd.f32 0.0, %v3514
      %v3516 = vpop.f32.mrf.mxu0
      %3517 = vmatprep.mubr.bf16.mxu0 0
      %3518 = vmatmul.mubr.bf16.gmra.mxu0 %v3396
      %v3519 = vpop.f32.mrf.mxu0
      %v3520 = vadd.f32 0.0, %v3519
      %v3521 = vpop.f32.mrf.mxu0
      %v3522 = vpop.f32.mrf.mxu0
      %v3523 = vadd.f32 0.0, %v3522
      %v3524 = vpop.f32.mrf.mxu0
      %3525 = vmatprep.mubr.bf16.mxu0 0
      %3526 = vmatmul.mubr.bf16.gmra.mxu0 %v3399
      %v3527 = vpop.f32.mrf.mxu0
      %v3528 = vadd.f32 0.0, %v3527
      %v3529 = vpop.f32.mrf.mxu0
      %v3530 = vpop.f32.mrf.mxu0
      %v3531 = vadd.f32 0.0, %v3530
      %v3532 = vpop.f32.mrf.mxu0
      %3533 = vmatprep.mubr.bf16.mxu0 0
      %3534 = vmatmul.mubr.bf16.gmra.mxu0 %v3402
      %v3535 = vpop.f32.mrf.mxu0
      %v3536 = vadd.f32 0.0, %v3535
      %v3537 = vpop.f32.mrf.mxu0
      %v3538 = vpop.f32.mrf.mxu0
      %v3539 = vadd.f32 0.0, %v3538
      %v3540 = vpop.f32.mrf.mxu0
      %3541 = vmatprep.mubr.bf16.mxu0 0
      %3542 = vmatmul.mubr.bf16.gmra.mxu0 %v3405
      %v3543 = vpop.f32.mrf.mxu0
      %v3544 = vadd.f32 0.0, %v3543
      %v3545 = vpop.f32.mrf.mxu0
      %v3546 = vpop.f32.mrf.mxu0
      %v3547 = vadd.f32 0.0, %v3546
      %v3548 = vpop.f32.mrf.mxu0
      %3549 = vmatprep.mubr.bf16.mxu0 0
      %3550 = vmatmul.mubr.bf16.gmra.mxu0 %v3408
      %v3551 = vpop.f32.mrf.mxu0
      %v3552 = vadd.f32 0.0, %v3551
      %v3553 = vpop.f32.mrf.mxu0
      %v3554 = vpop.f32.mrf.mxu0
      %v3555 = vadd.f32 0.0, %v3554
      %v3556 = vpop.f32.mrf.mxu0
      %3557 = vmatprep.mubr.bf16.mxu0 0
      %3558 = vmatmul.mubr.bf16.gmra.mxu0 %v3411
      %v3559 = vpop.f32.mrf.mxu0
      %v3560 = vadd.f32 0.0, %v3559
      %v3561 = vpop.f32.mrf.mxu0
      %v3562 = vpop.f32.mrf.mxu0
      %v3563 = vadd.f32 0.0, %v3562
      %v3564 = vpop.f32.mrf.mxu0
      %3565 = vmatprep.mubr.bf16.mxu0 0
      %3566 = vmatmul.mubr.bf16.gmra.mxu0 %v3414
      %v3567 = vpop.f32.mrf.mxu0
      %v3568 = vadd.f32 0.0, %v3567
      %v3569 = vpop.f32.mrf.mxu0
      %v3570 = vpop.f32.mrf.mxu0
      %v3571 = vadd.f32 0.0, %v3570
      %v3572 = vpop.f32.mrf.mxu0
      %3573 = vmatprep.mubr.bf16.mxu0 0
      %3574 = vmatmul.mubr.bf16.gmra.mxu0 %v3417
      %v3575 = vpop.f32.mrf.mxu0
      %v3576 = vadd.f32 0.0, %v3575
      %v3577 = vpop.f32.mrf.mxu0
      %v3578 = vpop.f32.mrf.mxu0
      %v3579 = vadd.f32 0.0, %v3578
      %v3580 = vpop.f32.mrf.mxu0
      %3581 = vmatprep.mubr.bf16.mxu0 0
      %3582 = vmatmul.mubr.bf16.gmra.mxu0 %v3420
      %v3583 = vpop.f32.mrf.mxu0
      %v3584 = vadd.f32 0.0, %v3583
      %v3585 = vpop.f32.mrf.mxu0
      %v3586 = vpop.f32.mrf.mxu0
      %v3587 = vadd.f32 0.0, %v3586
      %v3588 = vpop.f32.mrf.mxu0
      %3589 = vmatprep.mubr.bf16.mxu0 0
      %3590 = vmatmul.mubr.bf16.gmra.mxu0 %v3423
      %v3591 = vpop.f32.mrf.mxu0
      %v3592 = vadd.f32 0.0, %v3591
      %v3593 = vpop.f32.mrf.mxu0
      %v3594 = vpop.f32.mrf.mxu0
      %v3595 = vadd.f32 0.0, %v3594
      %v3596 = vpop.f32.mrf.mxu0
      %3597 = vmatprep.mubr.bf16.mxu0 0
      %3598 = vmatmul.mubr.bf16.gmra.mxu0 %v3426
      %v3599 = vpop.f32.mrf.mxu0
      %v3600 = vadd.f32 0.0, %v3599
      %v3601 = vpop.f32.mrf.mxu0
      %v3602 = vpop.f32.mrf.mxu0
      %v3603 = vadd.f32 0.0, %v3602
      %v3604 = vpop.f32.mrf.mxu0
      %3605 = vmatprep.mubr.bf16.mxu0 0
      %3606 = vmatmul.mubr.bf16.gmra.mxu0 %v3429
      %v3607 = vpop.f32.mrf.mxu0
      %v3608 = vadd.f32 0.0, %v3607
      %v3609 = vpop.f32.mrf.mxu0
      %v3610 = vpop.f32.mrf.mxu0
      %v3611 = vadd.f32 0.0, %v3610
      %v3612 = vpop.f32.mrf.mxu0
      %3613 = vmatprep.mubr.bf16.mxu0 0
      %3614 = vmatmul.mubr.bf16.gmra.mxu0 %v3432
      %v3615 = vpop.f32.mrf.mxu0
      %v3616 = vadd.f32 0.0, %v3615
      %v3617 = vpop.f32.mrf.mxu0
      %v3618 = vpop.f32.mrf.mxu0
      %v3619 = vadd.f32 0.0, %v3618
      %v3620 = vpop.f32.mrf.mxu0
      %3621 = vmatprep.mubr.bf16.mxu0 0
      %3622 = vmatmul.mubr.bf16.gmra.mxu0 %v3435
      %v3623 = vpop.f32.mrf.mxu0
      %v3624 = vadd.f32 0.0, %v3623
      %v3625 = vpop.f32.mrf.mxu0
      %v3626 = vpop.f32.mrf.mxu0
      %v3627 = vadd.f32 0.0, %v3626
      %v3628 = vpop.f32.mrf.mxu0
      %3629 = vmatprep.mubr.bf16.mxu0 0
      %3630 = vmatmul.mubr.bf16.gmra.mxu0 %v3438
      %v3631 = vpop.f32.mrf.mxu0
      %v3632 = vadd.f32 0.0, %v3631
      %v3633 = vpop.f32.mrf.mxu0
      %v3634 = vpop.f32.mrf.mxu0
      %v3635 = vadd.f32 0.0, %v3634
      %v3636 = vpop.f32.mrf.mxu0
      %3637 = vmatprep.mubr.bf16.mxu0 0
      %3638 = vmatmul.mubr.bf16.gmra.mxu0 %v3441
      %v3639 = vpop.f32.mrf.mxu0
      %v3640 = vadd.f32 0.0, %v3639
      %v3641 = vpop.f32.mrf.mxu0
      %v3642 = vpop.f32.mrf.mxu0
      %v3643 = vadd.f32 0.0, %v3642
      %v3644 = vpop.f32.mrf.mxu0
      %3645 = vmatprep.mubr.bf16.mxu0 0
      %3646 = vmatmul.mubr.bf16.gmra.mxu0 %v3444
      %v3647 = vpop.f32.mrf.mxu0
      %v3648 = vadd.f32 0.0, %v3647
      %v3649 = vpop.f32.mrf.mxu0
      %v3650 = vpop.f32.mrf.mxu0
      %v3651 = vadd.f32 0.0, %v3650
      %v3652 = vpop.f32.mrf.mxu0
      %3653 = vmatprep.mubr.bf16.mxu0 0
      %3654 = vmatmul.mubr.bf16.gmra.mxu0 %v3447
      %v3655 = vpop.f32.mrf.mxu0
      %v3656 = vadd.f32 0.0, %v3655
      %v3657 = vpop.f32.mrf.mxu0
      %v3658 = vpop.f32.mrf.mxu0
      %v3659 = vadd.f32 0.0, %v3658
      %v3660 = vpop.f32.mrf.mxu0
      %3661 = vmatprep.mubr.bf16.mxu0 0
      %3662 = vmatmul.mubr.bf16.gmra.mxu0 %v3450
      %v3663 = vpop.f32.mrf.mxu0
      %v3664 = vadd.f32 0.0, %v3663
      %v3665 = vpop.f32.mrf.mxu0
      %v3666 = vpop.f32.mrf.mxu0
      %v3667 = vadd.f32 0.0, %v3666
      %v3668 = vpop.f32.mrf.mxu0
      %3669 = vmatprep.mubr.bf16.mxu0 0
      %3670 = vmatmul.mubr.bf16.gmra.mxu0 %v3453
      %v3671 = vpop.f32.mrf.mxu0
      %v3672 = vadd.f32 0.0, %v3671
      %v3673 = vpop.f32.mrf.mxu0
      %v3674 = vpop.f32.mrf.mxu0
      %v3675 = vadd.f32 0.0, %v3674
      %v3676 = vpop.f32.mrf.mxu0
      %3677 = vmatprep.mubr.bf16.mxu0 0
      %3678 = vmatmul.mubr.bf16.gmra.mxu0 %v3456
      %v3679 = vpop.f32.mrf.mxu0
      %v3680 = vadd.f32 0.0, %v3679
      %v3681 = vpop.f32.mrf.mxu0
      %v3682 = vpop.f32.mrf.mxu0
      %v3683 = vadd.f32 0.0, %v3682
      %v3684 = vpop.f32.mrf.mxu0
      %3685 = vdwg.mxu0
      %v3686 = vadd.f32 %v3168, %v3496
      %v3687 = vadd.f32 %v3169, %v3499
      %v3688 = vadd.f32 %v3170, %v3504
      %v3689 = vadd.f32 %v3171, %v3507
      %v3690 = vadd.f32 %v3172, %v3512
      %v3691 = vadd.f32 %v3173, %v3515
      %v3692 = vadd.f32 %v3174, %v3520
      %v3693 = vadd.f32 %v3175, %v3523
      %v3694 = vadd.f32 %v3176, %v3528
      %v3695 = vadd.f32 %v3177, %v3531
      %v3696 = vadd.f32 %v3178, %v3536
      %v3697 = vadd.f32 %v3179, %v3539
      %v3698 = vadd.f32 %v3180, %v3544
      %v3699 = vadd.f32 %v3181, %v3547
      %v3700 = vadd.f32 %v3182, %v3552
      %v3701 = vadd.f32 %v3183, %v3555
      %v3702 = vadd.f32 %v3184, %v3560
      %v3703 = vadd.f32 %v3185, %v3563
      %v3704 = vadd.f32 %v3186, %v3568
      %v3705 = vadd.f32 %v3187, %v3571
      %v3706 = vadd.f32 %v3188, %v3576
      %v3707 = vadd.f32 %v3189, %v3579
      %v3708 = vadd.f32 %v3190, %v3584
      %v3709 = vadd.f32 %v3191, %v3587
      %v3710 = vadd.f32 %v3192, %v3592
      %v3711 = vadd.f32 %v3193, %v3595
      %v3712 = vadd.f32 %v3194, %v3600
      %v3713 = vadd.f32 %v3195, %v3603
      %v3714 = vadd.f32 %v3196, %v3608
      %v3715 = vadd.f32 %v3197, %v3611
      %v3716 = vadd.f32 %v3198, %v3616
      %v3717 = vadd.f32 %v3199, %v3619
      %v3718 = vadd.f32 %v3200, %v3624
      %v3719 = vadd.f32 %v3201, %v3627
      %v3720 = vadd.f32 %v3202, %v3632
      %v3721 = vadd.f32 %v3203, %v3635
      %v3722 = vadd.f32 %v3204, %v3640
      %v3723 = vadd.f32 %v3205, %v3643
      %v3724 = vadd.f32 %v3206, %v3648
      %v3725 = vadd.f32 %v3207, %v3651
      %v3726 = vadd.f32 %v3208, %v3656
      %v3727 = vadd.f32 %v3209, %v3659
      %v3728 = vadd.f32 %v3210, %v3664
      %v3729 = vadd.f32 %v3211, %v3667
      %v3730 = vadd.f32 %v3212, %v3672
      %v3731 = vadd.f32 %v3213, %v3675
      %v3732 = vadd.f32 %v3214, %v3680
      %v3733 = vadd.f32 %v3215, %v3683
      %v3734 = vld [vmem:[%s206 + $0x18] sm:$0xf]
      %v3735 = vld [vmem:[%s206 + $0x1c] sm:$0xf]
      %v3736 = vld [vmem:[%s206 + $0x20] sm:$0xf]
      %v3737 = vld [vmem:[%s206 + $0x24] sm:$0xf]
      %v3738 = vld [vmem:[%s206 + $0x28] sm:$0xf]
      %v3739 = vld [vmem:[%s206 + $0x2c] sm:$0xf]
      %v3740 = vld [vmem:[%s206 + $0x30] sm:$0xf]
      %v3741 = vld [vmem:[%s206 + $0x34] sm:$0xf]
      %v3742 = vld [vmem:[%s206 + $0x38] sm:$0xf]
      %v3743 = vld [vmem:[%s206 + $0x3c] sm:$0xf]
      %v3744 = vld [vmem:[%s206 + $0x40] sm:$0xf]
      %v3745 = vld [vmem:[%s206 + $0x44] sm:$0xf]
      %v3746 = vld [vmem:[%s206 + $0x48] sm:$0xf]
      %v3747 = vld [vmem:[%s206 + $0x4c] sm:$0xf]
      %v3748 = vld [vmem:[%s206 + $0x50] sm:$0xf]
      %v3749 = vld [vmem:[%s206 + $0x54] sm:$0xf]
      %v3750 = vld [vmem:[%s206 + $0x58] sm:$0xf]
      %v3751 = vld [vmem:[%s206 + $0x5c] sm:$0xf]
      %v3752 = vld [vmem:[%s206 + $0x60] sm:$0xf]
      %v3753 = vld [vmem:[%s206 + $0x64] sm:$0xf]
      %v3754 = vld [vmem:[%s206 + $0x68] sm:$0xf]
      %v3755 = vld [vmem:[%s206 + $0x6c] sm:$0xf]
      %v3756 = vld [vmem:[%s206 + $0x70] sm:$0xf]
      %v3757 = vld [vmem:[%s206 + $0x74] sm:$0xf]
      %v3758 = vld [vmem:[%s206 + $0x78] sm:$0xf]
      %v3759 = vld [vmem:[%s206 + $0x7c] sm:$0xf]
      %v3760 = vld [vmem:[%s206 + $0x80] sm:$0xf]
      %v3761 = vld [vmem:[%s206 + $0x84] sm:$0xf]
      %v3762 = vld [vmem:[%s206 + $0x88] sm:$0xf]
      %v3763 = vld [vmem:[%s206 + $0x8c] sm:$0xf]
      %v3764 = vld [vmem:[%s206 + $0x90] sm:$0xf]
      %v3765 = vld [vmem:[%s206 + $0x94] sm:$0xf]
      %v3766 = vld [vmem:[%s206 + $0x98] sm:$0xf]
      %v3767 = vld [vmem:[%s206 + $0x9c] sm:$0xf]
      %v3768 = vld [vmem:[%s206 + $0xa0] sm:$0xf]
      %v3769 = vld [vmem:[%s206 + $0xa4] sm:$0xf]
      %v3770 = vld [vmem:[%s206 + $0xa8] sm:$0xf]
      %v3771 = vld [vmem:[%s206 + $0xac] sm:$0xf]
      %v3772 = vld [vmem:[%s206 + $0xb0] sm:$0xf]
      %v3773 = vld [vmem:[%s206 + $0xb4] sm:$0xf]
      %v3774 = vld [vmem:[%s206 + $0xb8] sm:$0xf]
      %v3775 = vld [vmem:[%s206 + $0xbc] sm:$0xf]
      %v3776 = vld [vmem:[%s206 + $0xc0] sm:$0xf]
      %v3777 = vld [vmem:[%s206 + $0xc4] sm:$0xf]
      %v3778 = vld [vmem:[%s206 + $0xc8] sm:$0xf]
      %v3779 = vld [vmem:[%s206 + $0xcc] sm:$0xf]
      %v3780 = vld [vmem:[%s206 + $0xd0] sm:$0xf]
      %v3781 = vld [vmem:[%s206 + $0xd4] sm:$0xf]
      %v3782 = vld [vmem:[%s206 + $0xd8] sm:$0x1]
      %s3783 = scalar_lea.vmem %s210, 28
      %v3784 = vld [vmem:[%s3783] sm:$0xf]
      %v3834 = vunpack.c.l.b16 %v3734
      %v3835 = vunpack.c.l.b16 %v3735
      %v3836 = vunpack.c.l.b16 %v3736
      %v3837 = vunpack.c.l.b16 %v3737
      %v3838 = vunpack.c.l.b16 %v3738
      %v3839 = vunpack.c.l.b16 %v3739
      %v3840 = vunpack.c.l.b16 %v3740
      %v3841 = vunpack.c.l.b16 %v3741
      %v3842 = vunpack.c.l.b16 %v3742
      %v3843 = vunpack.c.l.b16 %v3743
      %v3844 = vunpack.c.l.b16 %v3744
      %v3845 = vunpack.c.l.b16 %v3745
      %v3846 = vunpack.c.l.b16 %v3746
      %v3847 = vunpack.c.l.b16 %v3747
      %v3848 = vunpack.c.l.b16 %v3748
      %v3849 = vunpack.c.l.b16 %v3749
      %v3850 = vunpack.c.l.b16 %v3750
      %v3851 = vunpack.c.l.b16 %v3751
      %v3852 = vunpack.c.l.b16 %v3752
      %v3853 = vunpack.c.l.b16 %v3753
      %v3854 = vunpack.c.l.b16 %v3754
      %v3855 = vunpack.c.l.b16 %v3755
      %v3856 = vunpack.c.l.b16 %v3756
      %v3857 = vunpack.c.l.b16 %v3757
      %v3858 = vunpack.c.l.b16 %v3758
      %v3859 = vunpack.c.l.b16 %v3759
      %v3860 = vunpack.c.l.b16 %v3760
      %v3861 = vunpack.c.l.b16 %v3761
      %v3862 = vunpack.c.l.b16 %v3762
      %v3863 = vunpack.c.l.b16 %v3763
      %v3864 = vunpack.c.l.b16 %v3764
      %v3865 = vunpack.c.l.b16 %v3765
      %v3866 = vunpack.c.l.b16 %v3766
      %v3867 = vunpack.c.l.b16 %v3767
      %v3868 = vunpack.c.l.b16 %v3768
      %v3869 = vunpack.c.l.b16 %v3769
      %v3870 = vunpack.c.l.b16 %v3770
      %v3871 = vunpack.c.l.b16 %v3771
      %v3872 = vunpack.c.l.b16 %v3772
      %v3873 = vunpack.c.l.b16 %v3773
      %v3874 = vunpack.c.l.b16 %v3774
      %v3875 = vunpack.c.l.b16 %v3775
      %v3876 = vunpack.c.l.b16 %v3776
      %v3877 = vunpack.c.l.b16 %v3777
      %v3878 = vunpack.c.l.b16 %v3778
      %v3879 = vunpack.c.l.b16 %v3779
      %v3880 = vunpack.c.l.b16 %v3780
      %v3881 = vunpack.c.l.b16 %v3781
      %v3882 = vunpack.c.l.b16 %v3782
      %v3883 = vpack.c.b16 %v3835, %v3834
      %v3884 = vpack.c.b16 %v3837, %v3836
      %v3885 = vpack.c.b16 %v3839, %v3838
      %v3886 = vpack.c.b16 %v3841, %v3840
      %v3887 = vpack.c.b16 %v3843, %v3842
      %v3888 = vpack.c.b16 %v3845, %v3844
      %v3889 = vpack.c.b16 %v3847, %v3846
      %v3890 = vpack.c.b16 %v3849, %v3848
      %v3891 = vpack.c.b16 %v3851, %v3850
      %v3892 = vpack.c.b16 %v3853, %v3852
      %v3893 = vpack.c.b16 %v3855, %v3854
      %v3894 = vpack.c.b16 %v3857, %v3856
      %v3895 = vpack.c.b16 %v3859, %v3858
      %v3896 = vpack.c.b16 %v3861, %v3860
      %v3897 = vpack.c.b16 %v3863, %v3862
      %v3898 = vpack.c.b16 %v3865, %v3864
      %v3899 = vpack.c.b16 %v3867, %v3866
      %v3900 = vpack.c.b16 %v3869, %v3868
      %v3901 = vpack.c.b16 %v3871, %v3870
      %v3902 = vpack.c.b16 %v3873, %v3872
      %v3903 = vpack.c.b16 %v3875, %v3874
      %v3904 = vpack.c.b16 %v3877, %v3876
      %v3905 = vpack.c.b16 %v3879, %v3878
      %v3906 = vpack.c.b16 %v3881, %v3880
      %v3907 = vpack.c.b16 %v3882, %v3882
      %v3909 = vshrl.u32 %v3883, 16
      %v3911 = vshll.u32 %v3883, 16
      %v3913 = vrot.slane %v3911, 1
      %v3914 = vor.u32 %v3909, %v3913
      %v3916 = vshll.u32 %v3884, 16
      %v3918 = vrot.slane %v3916, 1
      %v3919 = vsel %vm398, %v3914, %v3918
      %v3920 = vshrl.u32 %v3884, 16
      %v3922 = vor.u32 %v3920, %v3918
      %v3924 = vshll.u32 %v3885, 16
      %v3926 = vrot.slane %v3924, 1
      %v3927 = vsel %vm398, %v3922, %v3926
      %v3928 = vshrl.u32 %v3885, 16
      %v3930 = vor.u32 %v3928, %v3926
      %v3932 = vshll.u32 %v3886, 16
      %v3934 = vrot.slane %v3932, 1
      %v3935 = vsel %vm398, %v3930, %v3934
      %v3936 = vshrl.u32 %v3886, 16
      %v3938 = vor.u32 %v3936, %v3934
      %v3940 = vshll.u32 %v3887, 16
      %v3942 = vrot.slane %v3940, 1
      %v3943 = vsel %vm398, %v3938, %v3942
      %v3944 = vshrl.u32 %v3887, 16
      %v3946 = vor.u32 %v3944, %v3942
      %v3948 = vshll.u32 %v3888, 16
      %v3950 = vrot.slane %v3948, 1
      %v3951 = vsel %vm398, %v3946, %v3950
      %v3952 = vshrl.u32 %v3888, 16
      %v3954 = vor.u32 %v3952, %v3950
      %v3956 = vshll.u32 %v3889, 16
      %v3958 = vrot.slane %v3956, 1
      %v3959 = vsel %vm398, %v3954, %v3958
      %v3960 = vshrl.u32 %v3889, 16
      %v3962 = vor.u32 %v3960, %v3958
      %v3964 = vshll.u32 %v3890, 16
      %v3966 = vrot.slane %v3964, 1
      %v3967 = vsel %vm398, %v3962, %v3966
      %v3968 = vshrl.u32 %v3890, 16
      %v3970 = vor.u32 %v3968, %v3966
      %v3972 = vshll.u32 %v3891, 16
      %v3974 = vrot.slane %v3972, 1
      %v3975 = vsel %vm398, %v3970, %v3974
      %v3976 = vshrl.u32 %v3891, 16
      %v3978 = vor.u32 %v3976, %v3974
      %v3980 = vshll.u32 %v3892, 16
      %v3982 = vrot.slane %v3980, 1
      %v3983 = vsel %vm398, %v3978, %v3982
      %v3984 = vshrl.u32 %v3892, 16
      %v3986 = vor.u32 %v3984, %v3982
      %v3988 = vshll.u32 %v3893, 16
      %v3990 = vrot.slane %v3988, 1
      %v3991 = vsel %vm398, %v3986, %v3990
      %v3992 = vshrl.u32 %v3893, 16
      %v3994 = vor.u32 %v3992, %v3990
      %v3996 = vshll.u32 %v3894, 16
      %v3998 = vrot.slane %v3996, 1
      %v3999 = vsel %vm398, %v3994, %v3998
      %v4000 = vshrl.u32 %v3894, 16
      %v4002 = vor.u32 %v4000, %v3998
      %v4004 = vshll.u32 %v3895, 16
      %v4006 = vrot.slane %v4004, 1
      %v4007 = vsel %vm398, %v4002, %v4006
      %v4008 = vshrl.u32 %v3895, 16
      %v4010 = vor.u32 %v4008, %v4006
      %v4012 = vshll.u32 %v3896, 16
      %v4014 = vrot.slane %v4012, 1
      %v4015 = vsel %vm398, %v4010, %v4014
      %v4016 = vshrl.u32 %v3896, 16
      %v4018 = vor.u32 %v4016, %v4014
      %v4020 = vshll.u32 %v3897, 16
      %v4022 = vrot.slane %v4020, 1
      %v4023 = vsel %vm398, %v4018, %v4022
      %v4024 = vshrl.u32 %v3897, 16
      %v4026 = vor.u32 %v4024, %v4022
      %v4028 = vshll.u32 %v3898, 16
      %v4030 = vrot.slane %v4028, 1
      %v4031 = vsel %vm398, %v4026, %v4030
      %v4032 = vshrl.u32 %v3898, 16
      %v4034 = vor.u32 %v4032, %v4030
      %v4036 = vshll.u32 %v3899, 16
      %v4038 = vrot.slane %v4036, 1
      %v4039 = vsel %vm398, %v4034, %v4038
      %v4040 = vshrl.u32 %v3899, 16
      %v4042 = vor.u32 %v4040, %v4038
      %v4044 = vshll.u32 %v3900, 16
      %v4046 = vrot.slane %v4044, 1
      %v4047 = vsel %vm398, %v4042, %v4046
      %v4048 = vshrl.u32 %v3900, 16
      %v4050 = vor.u32 %v4048, %v4046
      %v4052 = vshll.u32 %v3901, 16
      %v4054 = vrot.slane %v4052, 1
      %v4055 = vsel %vm398, %v4050, %v4054
      %v4056 = vshrl.u32 %v3901, 16
      %v4058 = vor.u32 %v4056, %v4054
      %v4060 = vshll.u32 %v3902, 16
      %v4062 = vrot.slane %v4060, 1
      %v4063 = vsel %vm398, %v4058, %v4062
      %v4064 = vshrl.u32 %v3902, 16
      %v4066 = vor.u32 %v4064, %v4062
      %v4068 = vshll.u32 %v3903, 16
      %v4070 = vrot.slane %v4068, 1
      %v4071 = vsel %vm398, %v4066, %v4070
      %v4072 = vshrl.u32 %v3903, 16
      %v4074 = vor.u32 %v4072, %v4070
      %v4076 = vshll.u32 %v3904, 16
      %v4078 = vrot.slane %v4076, 1
      %v4079 = vsel %vm398, %v4074, %v4078
      %v4080 = vshrl.u32 %v3904, 16
      %v4082 = vor.u32 %v4080, %v4078
      %v4084 = vshll.u32 %v3905, 16
      %v4086 = vrot.slane %v4084, 1
      %v4087 = vsel %vm398, %v4082, %v4086
      %v4088 = vshrl.u32 %v3905, 16
      %v4090 = vor.u32 %v4088, %v4086
      %v4092 = vshll.u32 %v3906, 16
      %v4094 = vrot.slane %v4092, 1
      %v4095 = vsel %vm398, %v4090, %v4094
      %v4096 = vshrl.u32 %v3906, 16
      %v4098 = vor.u32 %v4096, %v4094
      %v4100 = vshll.u32 %v3907, 16
      %v4102 = vrot.slane %v4100, 1
      %v4103 = vsel %vm398, %v4098, %v4102
      %v4105 = vsel %vm595, %v3919, 0
      %v4108 = vsel %vm595, %v3927, 0
      %v4111 = vsel %vm595, %v3935, 0
      %v4114 = vsel %vm595, %v3943, 0
      %v4117 = vsel %vm595, %v3951, 0
      %v4120 = vsel %vm595, %v3959, 0
      %v4123 = vsel %vm595, %v3967, 0
      %v4126 = vsel %vm595, %v3975, 0
      %v4129 = vsel %vm595, %v3983, 0
      %v4132 = vsel %vm595, %v3991, 0
      %v4135 = vsel %vm595, %v3999, 0
      %v4138 = vsel %vm595, %v4007, 0
      %v4141 = vsel %vm595, %v4015, 0
      %v4144 = vsel %vm595, %v4023, 0
      %v4147 = vsel %vm595, %v4031, 0
      %v4150 = vsel %vm595, %v4039, 0
      %v4153 = vsel %vm595, %v4047, 0
      %v4156 = vsel %vm595, %v4055, 0
      %v4159 = vsel %vm595, %v4063, 0
      %v4162 = vsel %vm595, %v4071, 0
      %v4165 = vsel %vm595, %v4079, 0
      %v4168 = vsel %vm595, %v4087, 0
      %v4171 = vsel %vm595, %v4095, 0
      %v4174 = vsel %vm595, %v4103, 0
      %v4177 = vsel %vm668, %v3784, 0
      %4179 = vmatprep.subr.bf16.mxu0 0
      %4180 = vmatpush1.bf16.msra.mxu0 0
      %4181 = vmatprep.subr.bf16.mxu0 0
      %4182 = vmatpush1.bf16.msra.mxu0 0
      %4183 = vmatprep.subr.bf16.mxu0 0
      %4184 = vmatpush1.bf16.msra.mxu0 0
      %4185 = vmatprep.subr.bf16.mxu0 0
      %4186 = vmatpush1.bf16.msra.mxu0 0
      %4187 = vmatprep.subr.bf16.mxu0 0
      %4188 = vmatpush1.bf16.msra.mxu0 0
      %4189 = vmatprep.subr.bf16.mxu0 0
      %4190 = vmatpush1.bf16.msra.mxu0 0
      %4191 = vmatprep.subr.bf16.mxu0 0
      %4192 = vmatpush1.bf16.msra.mxu0 0
      %4193 = vmatprep.subr.bf16.mxu0 0
      %4194 = vmatpush1.bf16.msra.mxu0 %v4177
      %4195 = vmatprep.subr.bf16.mxu0 0
      %4196 = vmatpush2.bf16.msra.mxu0 0
      %4197 = vmatprep.subr.bf16.mxu0 0
      %4198 = vmatpush2.bf16.msra.mxu0 0
      %4199 = vmatprep.subr.bf16.mxu0 0
      %4200 = vmatpush2.bf16.msra.mxu0 0
      %4201 = vmatprep.subr.bf16.mxu0 0
      %4202 = vmatpush2.bf16.msra.mxu0 0
      %4203 = vmatprep.subr.bf16.mxu0 0
      %4204 = vmatpush2.bf16.msra.mxu0 0
      %4205 = vmatprep.subr.bf16.mxu0 0
      %4206 = vmatpush2.bf16.msra.mxu0 0
      %4207 = vmatprep.subr.bf16.mxu0 0
      %4208 = vmatpush2.bf16.msra.mxu0 0
      %4209 = vmatprep.subr.bf16.mxu0 0
      %4210 = vmatpush2.bf16.msra.mxu0 0
      %4211 = vmatprep.mubr.bf16.mxu0 0
      %4212 = vmatmul.mubr.bf16.gmra.mxu0 %v4105
      %v4213 = vpop.f32.mrf.mxu0
      %v4214 = vadd.f32 0.0, %v4213
      %v4215 = vpop.f32.mrf.mxu0
      %v4216 = vpop.f32.mrf.mxu0
      %v4217 = vadd.f32 0.0, %v4216
      %v4218 = vpop.f32.mrf.mxu0
      %4219 = vmatprep.mubr.bf16.mxu0 0
      %4220 = vmatmul.mubr.bf16.gmra.mxu0 %v4108
      %v4221 = vpop.f32.mrf.mxu0
      %v4222 = vadd.f32 0.0, %v4221
      %v4223 = vpop.f32.mrf.mxu0
      %v4224 = vpop.f32.mrf.mxu0
      %v4225 = vadd.f32 0.0, %v4224
      %v4226 = vpop.f32.mrf.mxu0
      %4227 = vmatprep.mubr.bf16.mxu0 0
      %4228 = vmatmul.mubr.bf16.gmra.mxu0 %v4111
      %v4229 = vpop.f32.mrf.mxu0
      %v4230 = vadd.f32 0.0, %v4229
      %v4231 = vpop.f32.mrf.mxu0
      %v4232 = vpop.f32.mrf.mxu0
      %v4233 = vadd.f32 0.0, %v4232
      %v4234 = vpop.f32.mrf.mxu0
      %4235 = vmatprep.mubr.bf16.mxu0 0
      %4236 = vmatmul.mubr.bf16.gmra.mxu0 %v4114
      %v4237 = vpop.f32.mrf.mxu0
      %v4238 = vadd.f32 0.0, %v4237
      %v4239 = vpop.f32.mrf.mxu0
      %v4240 = vpop.f32.mrf.mxu0
      %v4241 = vadd.f32 0.0, %v4240
      %v4242 = vpop.f32.mrf.mxu0
      %4243 = vmatprep.mubr.bf16.mxu0 0
      %4244 = vmatmul.mubr.bf16.gmra.mxu0 %v4117
      %v4245 = vpop.f32.mrf.mxu0
      %v4246 = vadd.f32 0.0, %v4245
      %v4247 = vpop.f32.mrf.mxu0
      %v4248 = vpop.f32.mrf.mxu0
      %v4249 = vadd.f32 0.0, %v4248
      %v4250 = vpop.f32.mrf.mxu0
      %4251 = vmatprep.mubr.bf16.mxu0 0
      %4252 = vmatmul.mubr.bf16.gmra.mxu0 %v4120
      %v4253 = vpop.f32.mrf.mxu0
      %v4254 = vadd.f32 0.0, %v4253
      %v4255 = vpop.f32.mrf.mxu0
      %v4256 = vpop.f32.mrf.mxu0
      %v4257 = vadd.f32 0.0, %v4256
      %v4258 = vpop.f32.mrf.mxu0
      %4259 = vmatprep.mubr.bf16.mxu0 0
      %4260 = vmatmul.mubr.bf16.gmra.mxu0 %v4123
      %v4261 = vpop.f32.mrf.mxu0
      %v4262 = vadd.f32 0.0, %v4261
      %v4263 = vpop.f32.mrf.mxu0
      %v4264 = vpop.f32.mrf.mxu0
      %v4265 = vadd.f32 0.0, %v4264
      %v4266 = vpop.f32.mrf.mxu0
      %4267 = vmatprep.mubr.bf16.mxu0 0
      %4268 = vmatmul.mubr.bf16.gmra.mxu0 %v4126
      %v4269 = vpop.f32.mrf.mxu0
      %v4270 = vadd.f32 0.0, %v4269
      %v4271 = vpop.f32.mrf.mxu0
      %v4272 = vpop.f32.mrf.mxu0
      %v4273 = vadd.f32 0.0, %v4272
      %v4274 = vpop.f32.mrf.mxu0
      %4275 = vmatprep.mubr.bf16.mxu0 0
      %4276 = vmatmul.mubr.bf16.gmra.mxu0 %v4129
      %v4277 = vpop.f32.mrf.mxu0
      %v4278 = vadd.f32 0.0, %v4277
      %v4279 = vpop.f32.mrf.mxu0
      %v4280 = vpop.f32.mrf.mxu0
      %v4281 = vadd.f32 0.0, %v4280
      %v4282 = vpop.f32.mrf.mxu0
      %4283 = vmatprep.mubr.bf16.mxu0 0
      %4284 = vmatmul.mubr.bf16.gmra.mxu0 %v4132
      %v4285 = vpop.f32.mrf.mxu0
      %v4286 = vadd.f32 0.0, %v4285
      %v4287 = vpop.f32.mrf.mxu0
      %v4288 = vpop.f32.mrf.mxu0
      %v4289 = vadd.f32 0.0, %v4288
      %v4290 = vpop.f32.mrf.mxu0
      %4291 = vmatprep.mubr.bf16.mxu0 0
      %4292 = vmatmul.mubr.bf16.gmra.mxu0 %v4135
      %v4293 = vpop.f32.mrf.mxu0
      %v4294 = vadd.f32 0.0, %v4293
      %v4295 = vpop.f32.mrf.mxu0
      %v4296 = vpop.f32.mrf.mxu0
      %v4297 = vadd.f32 0.0, %v4296
      %v4298 = vpop.f32.mrf.mxu0
      %4299 = vmatprep.mubr.bf16.mxu0 0
      %4300 = vmatmul.mubr.bf16.gmra.mxu0 %v4138
      %v4301 = vpop.f32.mrf.mxu0
      %v4302 = vadd.f32 0.0, %v4301
      %v4303 = vpop.f32.mrf.mxu0
      %v4304 = vpop.f32.mrf.mxu0
      %v4305 = vadd.f32 0.0, %v4304
      %v4306 = vpop.f32.mrf.mxu0
      %4307 = vmatprep.mubr.bf16.mxu0 0
      %4308 = vmatmul.mubr.bf16.gmra.mxu0 %v4141
      %v4309 = vpop.f32.mrf.mxu0
      %v4310 = vadd.f32 0.0, %v4309
      %v4311 = vpop.f32.mrf.mxu0
      %v4312 = vpop.f32.mrf.mxu0
      %v4313 = vadd.f32 0.0, %v4312
      %v4314 = vpop.f32.mrf.mxu0
      %4315 = vmatprep.mubr.bf16.mxu0 0
      %4316 = vmatmul.mubr.bf16.gmra.mxu0 %v4144
      %v4317 = vpop.f32.mrf.mxu0
      %v4318 = vadd.f32 0.0, %v4317
      %v4319 = vpop.f32.mrf.mxu0
      %v4320 = vpop.f32.mrf.mxu0
      %v4321 = vadd.f32 0.0, %v4320
      %v4322 = vpop.f32.mrf.mxu0
      %4323 = vmatprep.mubr.bf16.mxu0 0
      %4324 = vmatmul.mubr.bf16.gmra.mxu0 %v4147
      %v4325 = vpop.f32.mrf.mxu0
      %v4326 = vadd.f32 0.0, %v4325
      %v4327 = vpop.f32.mrf.mxu0
      %v4328 = vpop.f32.mrf.mxu0
      %v4329 = vadd.f32 0.0, %v4328
      %v4330 = vpop.f32.mrf.mxu0
      %4331 = vmatprep.mubr.bf16.mxu0 0
      %4332 = vmatmul.mubr.bf16.gmra.mxu0 %v4150
      %v4333 = vpop.f32.mrf.mxu0
      %v4334 = vadd.f32 0.0, %v4333
      %v4335 = vpop.f32.mrf.mxu0
      %v4336 = vpop.f32.mrf.mxu0
      %v4337 = vadd.f32 0.0, %v4336
      %v4338 = vpop.f32.mrf.mxu0
      %4339 = vmatprep.mubr.bf16.mxu0 0
      %4340 = vmatmul.mubr.bf16.gmra.mxu0 %v4153
      %v4341 = vpop.f32.mrf.mxu0
      %v4342 = vadd.f32 0.0, %v4341
      %v4343 = vpop.f32.mrf.mxu0
      %v4344 = vpop.f32.mrf.mxu0
      %v4345 = vadd.f32 0.0, %v4344
      %v4346 = vpop.f32.mrf.mxu0
      %4347 = vmatprep.mubr.bf16.mxu0 0
      %4348 = vmatmul.mubr.bf16.gmra.mxu0 %v4156
      %v4349 = vpop.f32.mrf.mxu0
      %v4350 = vadd.f32 0.0, %v4349
      %v4351 = vpop.f32.mrf.mxu0
      %v4352 = vpop.f32.mrf.mxu0
      %v4353 = vadd.f32 0.0, %v4352
      %v4354 = vpop.f32.mrf.mxu0
      %4355 = vmatprep.mubr.bf16.mxu0 0
      %4356 = vmatmul.mubr.bf16.gmra.mxu0 %v4159
      %v4357 = vpop.f32.mrf.mxu0
      %v4358 = vadd.f32 0.0, %v4357
      %v4359 = vpop.f32.mrf.mxu0
      %v4360 = vpop.f32.mrf.mxu0
      %v4361 = vadd.f32 0.0, %v4360
      %v4362 = vpop.f32.mrf.mxu0
      %4363 = vmatprep.mubr.bf16.mxu0 0
      %4364 = vmatmul.mubr.bf16.gmra.mxu0 %v4162
      %v4365 = vpop.f32.mrf.mxu0
      %v4366 = vadd.f32 0.0, %v4365
      %v4367 = vpop.f32.mrf.mxu0
      %v4368 = vpop.f32.mrf.mxu0
      %v4369 = vadd.f32 0.0, %v4368
      %v4370 = vpop.f32.mrf.mxu0
      %4371 = vmatprep.mubr.bf16.mxu0 0
      %4372 = vmatmul.mubr.bf16.gmra.mxu0 %v4165
      %v4373 = vpop.f32.mrf.mxu0
      %v4374 = vadd.f32 0.0, %v4373
      %v4375 = vpop.f32.mrf.mxu0
      %v4376 = vpop.f32.mrf.mxu0
      %v4377 = vadd.f32 0.0, %v4376
      %v4378 = vpop.f32.mrf.mxu0
      %4379 = vmatprep.mubr.bf16.mxu0 0
      %4380 = vmatmul.mubr.bf16.gmra.mxu0 %v4168
      %v4381 = vpop.f32.mrf.mxu0
      %v4382 = vadd.f32 0.0, %v4381
      %v4383 = vpop.f32.mrf.mxu0
      %v4384 = vpop.f32.mrf.mxu0
      %v4385 = vadd.f32 0.0, %v4384
      %v4386 = vpop.f32.mrf.mxu0
      %4387 = vmatprep.mubr.bf16.mxu0 0
      %4388 = vmatmul.mubr.bf16.gmra.mxu0 %v4171
      %v4389 = vpop.f32.mrf.mxu0
      %v4390 = vadd.f32 0.0, %v4389
      %v4391 = vpop.f32.mrf.mxu0
      %v4392 = vpop.f32.mrf.mxu0
      %v4393 = vadd.f32 0.0, %v4392
      %v4394 = vpop.f32.mrf.mxu0
      %4395 = vmatprep.mubr.bf16.mxu0 0
      %4396 = vmatmul.mubr.bf16.gmra.mxu0 %v4174
      %v4397 = vpop.f32.mrf.mxu0
      %v4398 = vadd.f32 0.0, %v4397
      %v4399 = vpop.f32.mrf.mxu0
      %v4400 = vpop.f32.mrf.mxu0
      %v4401 = vadd.f32 0.0, %v4400
      %v4402 = vpop.f32.mrf.mxu0
      %4403 = vdwg.mxu0
      %v4404 = vadd.f32 %v3686, %v4214
      %v4405 = vadd.f32 %v3687, %v4217
      %v4406 = vadd.f32 %v3688, %v4222
      %v4407 = vadd.f32 %v3689, %v4225
      %v4408 = vadd.f32 %v3690, %v4230
      %v4409 = vadd.f32 %v3691, %v4233
      %v4410 = vadd.f32 %v3692, %v4238
      %v4411 = vadd.f32 %v3693, %v4241
      %v4412 = vadd.f32 %v3694, %v4246
      %v4413 = vadd.f32 %v3695, %v4249
      %v4414 = vadd.f32 %v3696, %v4254
      %v4415 = vadd.f32 %v3697, %v4257
      %v4416 = vadd.f32 %v3698, %v4262
      %v4417 = vadd.f32 %v3699, %v4265
      %v4418 = vadd.f32 %v3700, %v4270
      %v4419 = vadd.f32 %v3701, %v4273
      %v4420 = vadd.f32 %v3702, %v4278
      %v4421 = vadd.f32 %v3703, %v4281
      %v4422 = vadd.f32 %v3704, %v4286
      %v4423 = vadd.f32 %v3705, %v4289
      %v4424 = vadd.f32 %v3706, %v4294
      %v4425 = vadd.f32 %v3707, %v4297
      %v4426 = vadd.f32 %v3708, %v4302
      %v4427 = vadd.f32 %v3709, %v4305
      %v4428 = vadd.f32 %v3710, %v4310
      %v4429 = vadd.f32 %v3711, %v4313
      %v4430 = vadd.f32 %v3712, %v4318
      %v4431 = vadd.f32 %v3713, %v4321
      %v4432 = vadd.f32 %v3714, %v4326
      %v4433 = vadd.f32 %v3715, %v4329
      %v4434 = vadd.f32 %v3716, %v4334
      %v4435 = vadd.f32 %v3717, %v4337
      %v4436 = vadd.f32 %v3718, %v4342
      %v4437 = vadd.f32 %v3719, %v4345
      %v4438 = vadd.f32 %v3720, %v4350
      %v4439 = vadd.f32 %v3721, %v4353
      %v4440 = vadd.f32 %v3722, %v4358
      %v4441 = vadd.f32 %v3723, %v4361
      %v4442 = vadd.f32 %v3724, %v4366
      %v4443 = vadd.f32 %v3725, %v4369
      %v4444 = vadd.f32 %v3726, %v4374
      %v4445 = vadd.f32 %v3727, %v4377
      %v4446 = vadd.f32 %v3728, %v4382
      %v4447 = vadd.f32 %v3729, %v4385
      %v4448 = vadd.f32 %v3730, %v4390
      %v4449 = vadd.f32 %v3731, %v4393
      %v4450 = vadd.f32 %v3732, %v4398
      %v4451 = vadd.f32 %v3733, %v4401
      %v4452 = vld [vmem:[%s206 + $0x18] sm:$0xe]
      %s4453 = scalar_lea.vmem %s210, 32
      %v4454 = vld [vmem:[%s4453] sm:$0xf]
      %v4456 = vunpack.c.l.b16 %v4452
      %v4457 = vpack.c.b16 %v3835, %v4456
      %v4458 = vrot.slane %v4457, 1
      %v4459 = vrot.slane %v3884, 1
      %v4460 = vsel %vm1179, %v4458, %v4459
      %v4461 = vrot.slane %v3885, 1
      %v4462 = vsel %vm1179, %v4459, %v4461
      %v4463 = vrot.slane %v3886, 1
      %v4464 = vsel %vm1179, %v4461, %v4463
      %v4465 = vrot.slane %v3887, 1
      %v4466 = vsel %vm1179, %v4463, %v4465
      %v4467 = vrot.slane %v3888, 1
      %v4468 = vsel %vm1179, %v4465, %v4467
      %v4469 = vrot.slane %v3889, 1
      %v4470 = vsel %vm1179, %v4467, %v4469
      %v4471 = vrot.slane %v3890, 1
      %v4472 = vsel %vm1179, %v4469, %v4471
      %v4473 = vrot.slane %v3891, 1
      %v4474 = vsel %vm1179, %v4471, %v4473
      %v4475 = vrot.slane %v3892, 1
      %v4476 = vsel %vm1179, %v4473, %v4475
      %v4477 = vrot.slane %v3893, 1
      %v4478 = vsel %vm1179, %v4475, %v4477
      %v4479 = vrot.slane %v3894, 1
      %v4480 = vsel %vm1179, %v4477, %v4479
      %v4481 = vrot.slane %v3895, 1
      %v4482 = vsel %vm1179, %v4479, %v4481
      %v4483 = vrot.slane %v3896, 1
      %v4484 = vsel %vm1179, %v4481, %v4483
      %v4485 = vrot.slane %v3897, 1
      %v4486 = vsel %vm1179, %v4483, %v4485
      %v4487 = vrot.slane %v3898, 1
      %v4488 = vsel %vm1179, %v4485, %v4487
      %v4489 = vrot.slane %v3899, 1
      %v4490 = vsel %vm1179, %v4487, %v4489
      %v4491 = vrot.slane %v3900, 1
      %v4492 = vsel %vm1179, %v4489, %v4491
      %v4493 = vrot.slane %v3901, 1
      %v4494 = vsel %vm1179, %v4491, %v4493
      %v4495 = vrot.slane %v3902, 1
      %v4496 = vsel %vm1179, %v4493, %v4495
      %v4497 = vrot.slane %v3903, 1
      %v4498 = vsel %vm1179, %v4495, %v4497
      %v4499 = vrot.slane %v3904, 1
      %v4500 = vsel %vm1179, %v4497, %v4499
      %v4501 = vrot.slane %v3905, 1
      %v4502 = vsel %vm1179, %v4499, %v4501
      %v4503 = vrot.slane %v3906, 1
      %v4504 = vsel %vm1179, %v4501, %v4503
      %v4505 = vrot.slane %v3907, 1
      %v4506 = vsel %vm1179, %v4503, %v4505
      %v4508 = vsel %vm595, %v4460, 0
      %v4511 = vsel %vm595, %v4462, 0
      %v4514 = vsel %vm595, %v4464, 0
      %v4517 = vsel %vm595, %v4466, 0
      %v4520 = vsel %vm595, %v4468, 0
      %v4523 = vsel %vm595, %v4470, 0
      %v4526 = vsel %vm595, %v4472, 0
      %v4529 = vsel %vm595, %v4474, 0
      %v4532 = vsel %vm595, %v4476, 0
      %v4535 = vsel %vm595, %v4478, 0
      %v4538 = vsel %vm595, %v4480, 0
      %v4541 = vsel %vm595, %v4482, 0
      %v4544 = vsel %vm595, %v4484, 0
      %v4547 = vsel %vm595, %v4486, 0
      %v4550 = vsel %vm595, %v4488, 0
      %v4553 = vsel %vm595, %v4490, 0
      %v4556 = vsel %vm595, %v4492, 0
      %v4559 = vsel %vm595, %v4494, 0
      %v4562 = vsel %vm595, %v4496, 0
      %v4565 = vsel %vm595, %v4498, 0
      %v4568 = vsel %vm595, %v4500, 0
      %v4571 = vsel %vm595, %v4502, 0
      %v4574 = vsel %vm595, %v4504, 0
      %v4577 = vsel %vm595, %v4506, 0
      %v4580 = vsel %vm668, %v4454, 0
      %4582 = vmatprep.subr.bf16.mxu0 0
      %4583 = vmatpush1.bf16.msra.mxu0 0
      %4584 = vmatprep.subr.bf16.mxu0 0
      %4585 = vmatpush1.bf16.msra.mxu0 0
      %4586 = vmatprep.subr.bf16.mxu0 0
      %4587 = vmatpush1.bf16.msra.mxu0 0
      %4588 = vmatprep.subr.bf16.mxu0 0
      %4589 = vmatpush1.bf16.msra.mxu0 0
      %4590 = vmatprep.subr.bf16.mxu0 0
      %4591 = vmatpush1.bf16.msra.mxu0 0
      %4592 = vmatprep.subr.bf16.mxu0 0
      %4593 = vmatpush1.bf16.msra.mxu0 0
      %4594 = vmatprep.subr.bf16.mxu0 0
      %4595 = vmatpush1.bf16.msra.mxu0 0
      %4596 = vmatprep.subr.bf16.mxu0 0
      %4597 = vmatpush1.bf16.msra.mxu0 %v4580
      %4598 = vmatprep.subr.bf16.mxu0 0
      %4599 = vmatpush2.bf16.msra.mxu0 0
      %4600 = vmatprep.subr.bf16.mxu0 0
      %4601 = vmatpush2.bf16.msra.mxu0 0
      %4602 = vmatprep.subr.bf16.mxu0 0
      %4603 = vmatpush2.bf16.msra.mxu0 0
      %4604 = vmatprep.subr.bf16.mxu0 0
      %4605 = vmatpush2.bf16.msra.mxu0 0
      %4606 = vmatprep.subr.bf16.mxu0 0
      %4607 = vmatpush2.bf16.msra.mxu0 0
      %4608 = vmatprep.subr.bf16.mxu0 0
      %4609 = vmatpush2.bf16.msra.mxu0 0
      %4610 = vmatprep.subr.bf16.mxu0 0
      %4611 = vmatpush2.bf16.msra.mxu0 0
      %4612 = vmatprep.subr.bf16.mxu0 0
      %4613 = vmatpush2.bf16.msra.mxu0 0
      %4614 = vmatprep.mubr.bf16.mxu0 0
      %4615 = vmatmul.mubr.bf16.gmra.mxu0 %v4508
      %v4616 = vpop.f32.mrf.mxu0
      %v4617 = vadd.f32 0.0, %v4616
      %v4618 = vpop.f32.mrf.mxu0
      %v4619 = vpop.f32.mrf.mxu0
      %v4620 = vadd.f32 0.0, %v4619
      %v4621 = vpop.f32.mrf.mxu0
      %4622 = vmatprep.mubr.bf16.mxu0 0
      %4623 = vmatmul.mubr.bf16.gmra.mxu0 %v4511
      %v4624 = vpop.f32.mrf.mxu0
      %v4625 = vadd.f32 0.0, %v4624
      %v4626 = vpop.f32.mrf.mxu0
      %v4627 = vpop.f32.mrf.mxu0
      %v4628 = vadd.f32 0.0, %v4627
      %v4629 = vpop.f32.mrf.mxu0
      %4630 = vmatprep.mubr.bf16.mxu0 0
      %4631 = vmatmul.mubr.bf16.gmra.mxu0 %v4514
      %v4632 = vpop.f32.mrf.mxu0
      %v4633 = vadd.f32 0.0, %v4632
      %v4634 = vpop.f32.mrf.mxu0
      %v4635 = vpop.f32.mrf.mxu0
      %v4636 = vadd.f32 0.0, %v4635
      %v4637 = vpop.f32.mrf.mxu0
      %4638 = vmatprep.mubr.bf16.mxu0 0
      %4639 = vmatmul.mubr.bf16.gmra.mxu0 %v4517
      %v4640 = vpop.f32.mrf.mxu0
      %v4641 = vadd.f32 0.0, %v4640
      %v4642 = vpop.f32.mrf.mxu0
      %v4643 = vpop.f32.mrf.mxu0
      %v4644 = vadd.f32 0.0, %v4643
      %v4645 = vpop.f32.mrf.mxu0
      %4646 = vmatprep.mubr.bf16.mxu0 0
      %4647 = vmatmul.mubr.bf16.gmra.mxu0 %v4520
      %v4648 = vpop.f32.mrf.mxu0
      %v4649 = vadd.f32 0.0, %v4648
      %v4650 = vpop.f32.mrf.mxu0
      %v4651 = vpop.f32.mrf.mxu0
      %v4652 = vadd.f32 0.0, %v4651
      %v4653 = vpop.f32.mrf.mxu0
      %4654 = vmatprep.mubr.bf16.mxu0 0
      %4655 = vmatmul.mubr.bf16.gmra.mxu0 %v4523
      %v4656 = vpop.f32.mrf.mxu0
      %v4657 = vadd.f32 0.0, %v4656
      %v4658 = vpop.f32.mrf.mxu0
      %v4659 = vpop.f32.mrf.mxu0
      %v4660 = vadd.f32 0.0, %v4659
      %v4661 = vpop.f32.mrf.mxu0
      %4662 = vmatprep.mubr.bf16.mxu0 0
      %4663 = vmatmul.mubr.bf16.gmra.mxu0 %v4526
      %v4664 = vpop.f32.mrf.mxu0
      %v4665 = vadd.f32 0.0, %v4664
      %v4666 = vpop.f32.mrf.mxu0
      %v4667 = vpop.f32.mrf.mxu0
      %v4668 = vadd.f32 0.0, %v4667
      %v4669 = vpop.f32.mrf.mxu0
      %4670 = vmatprep.mubr.bf16.mxu0 0
      %4671 = vmatmul.mubr.bf16.gmra.mxu0 %v4529
      %v4672 = vpop.f32.mrf.mxu0
      %v4673 = vadd.f32 0.0, %v4672
      %v4674 = vpop.f32.mrf.mxu0
      %v4675 = vpop.f32.mrf.mxu0
      %v4676 = vadd.f32 0.0, %v4675
      %v4677 = vpop.f32.mrf.mxu0
      %4678 = vmatprep.mubr.bf16.mxu0 0
      %4679 = vmatmul.mubr.bf16.gmra.mxu0 %v4532
      %v4680 = vpop.f32.mrf.mxu0
      %v4681 = vadd.f32 0.0, %v4680
      %v4682 = vpop.f32.mrf.mxu0
      %v4683 = vpop.f32.mrf.mxu0
      %v4684 = vadd.f32 0.0, %v4683
      %v4685 = vpop.f32.mrf.mxu0
      %4686 = vmatprep.mubr.bf16.mxu0 0
      %4687 = vmatmul.mubr.bf16.gmra.mxu0 %v4535
      %v4688 = vpop.f32.mrf.mxu0
      %v4689 = vadd.f32 0.0, %v4688
      %v4690 = vpop.f32.mrf.mxu0
      %v4691 = vpop.f32.mrf.mxu0
      %v4692 = vadd.f32 0.0, %v4691
      %v4693 = vpop.f32.mrf.mxu0
      %4694 = vmatprep.mubr.bf16.mxu0 0
      %4695 = vmatmul.mubr.bf16.gmra.mxu0 %v4538
      %v4696 = vpop.f32.mrf.mxu0
      %v4697 = vadd.f32 0.0, %v4696
      %v4698 = vpop.f32.mrf.mxu0
      %v4699 = vpop.f32.mrf.mxu0
      %v4700 = vadd.f32 0.0, %v4699
      %v4701 = vpop.f32.mrf.mxu0
      %4702 = vmatprep.mubr.bf16.mxu0 0
      %4703 = vmatmul.mubr.bf16.gmra.mxu0 %v4541
      %v4704 = vpop.f32.mrf.mxu0
      %v4705 = vadd.f32 0.0, %v4704
      %v4706 = vpop.f32.mrf.mxu0
      %v4707 = vpop.f32.mrf.mxu0
      %v4708 = vadd.f32 0.0, %v4707
      %v4709 = vpop.f32.mrf.mxu0
      %4710 = vmatprep.mubr.bf16.mxu0 0
      %4711 = vmatmul.mubr.bf16.gmra.mxu0 %v4544
      %v4712 = vpop.f32.mrf.mxu0
      %v4713 = vadd.f32 0.0, %v4712
      %v4714 = vpop.f32.mrf.mxu0
      %v4715 = vpop.f32.mrf.mxu0
      %v4716 = vadd.f32 0.0, %v4715
      %v4717 = vpop.f32.mrf.mxu0
      %4718 = vmatprep.mubr.bf16.mxu0 0
      %4719 = vmatmul.mubr.bf16.gmra.mxu0 %v4547
      %v4720 = vpop.f32.mrf.mxu0
      %v4721 = vadd.f32 0.0, %v4720
      %v4722 = vpop.f32.mrf.mxu0
      %v4723 = vpop.f32.mrf.mxu0
      %v4724 = vadd.f32 0.0, %v4723
      %v4725 = vpop.f32.mrf.mxu0
      %4726 = vmatprep.mubr.bf16.mxu0 0
      %4727 = vmatmul.mubr.bf16.gmra.mxu0 %v4550
      %v4728 = vpop.f32.mrf.mxu0
      %v4729 = vadd.f32 0.0, %v4728
      %v4730 = vpop.f32.mrf.mxu0
      %v4731 = vpop.f32.mrf.mxu0
      %v4732 = vadd.f32 0.0, %v4731
      %v4733 = vpop.f32.mrf.mxu0
      %4734 = vmatprep.mubr.bf16.mxu0 0
      %4735 = vmatmul.mubr.bf16.gmra.mxu0 %v4553
      %v4736 = vpop.f32.mrf.mxu0
      %v4737 = vadd.f32 0.0, %v4736
      %v4738 = vpop.f32.mrf.mxu0
      %v4739 = vpop.f32.mrf.mxu0
      %v4740 = vadd.f32 0.0, %v4739
      %v4741 = vpop.f32.mrf.mxu0
      %4742 = vmatprep.mubr.bf16.mxu0 0
      %4743 = vmatmul.mubr.bf16.gmra.mxu0 %v4556
      %v4744 = vpop.f32.mrf.mxu0
      %v4745 = vadd.f32 0.0, %v4744
      %v4746 = vpop.f32.mrf.mxu0
      %v4747 = vpop.f32.mrf.mxu0
      %v4748 = vadd.f32 0.0, %v4747
      %v4749 = vpop.f32.mrf.mxu0
      %4750 = vmatprep.mubr.bf16.mxu0 0
      %4751 = vmatmul.mubr.bf16.gmra.mxu0 %v4559
      %v4752 = vpop.f32.mrf.mxu0
      %v4753 = vadd.f32 0.0, %v4752
      %v4754 = vpop.f32.mrf.mxu0
      %v4755 = vpop.f32.mrf.mxu0
      %v4756 = vadd.f32 0.0, %v4755
      %v4757 = vpop.f32.mrf.mxu0
      %4758 = vmatprep.mubr.bf16.mxu0 0
      %4759 = vmatmul.mubr.bf16.gmra.mxu0 %v4562
      %v4760 = vpop.f32.mrf.mxu0
      %v4761 = vadd.f32 0.0, %v4760
      %v4762 = vpop.f32.mrf.mxu0
      %v4763 = vpop.f32.mrf.mxu0
      %v4764 = vadd.f32 0.0, %v4763
      %v4765 = vpop.f32.mrf.mxu0
      %4766 = vmatprep.mubr.bf16.mxu0 0
      %4767 = vmatmul.mubr.bf16.gmra.mxu0 %v4565
      %v4768 = vpop.f32.mrf.mxu0
      %v4769 = vadd.f32 0.0, %v4768
      %v4770 = vpop.f32.mrf.mxu0
      %v4771 = vpop.f32.mrf.mxu0
      %v4772 = vadd.f32 0.0, %v4771
      %v4773 = vpop.f32.mrf.mxu0
      %4774 = vmatprep.mubr.bf16.mxu0 0
      %4775 = vmatmul.mubr.bf16.gmra.mxu0 %v4568
      %v4776 = vpop.f32.mrf.mxu0
      %v4777 = vadd.f32 0.0, %v4776
      %v4778 = vpop.f32.mrf.mxu0
      %v4779 = vpop.f32.mrf.mxu0
      %v4780 = vadd.f32 0.0, %v4779
      %v4781 = vpop.f32.mrf.mxu0
      %4782 = vmatprep.mubr.bf16.mxu0 0
      %4783 = vmatmul.mubr.bf16.gmra.mxu0 %v4571
      %v4784 = vpop.f32.mrf.mxu0
      %v4785 = vadd.f32 0.0, %v4784
      %v4786 = vpop.f32.mrf.mxu0
      %v4787 = vpop.f32.mrf.mxu0
      %v4788 = vadd.f32 0.0, %v4787
      %v4789 = vpop.f32.mrf.mxu0
      %4790 = vmatprep.mubr.bf16.mxu0 0
      %4791 = vmatmul.mubr.bf16.gmra.mxu0 %v4574
      %v4792 = vpop.f32.mrf.mxu0
      %v4793 = vadd.f32 0.0, %v4792
      %v4794 = vpop.f32.mrf.mxu0
      %v4795 = vpop.f32.mrf.mxu0
      %v4796 = vadd.f32 0.0, %v4795
      %v4797 = vpop.f32.mrf.mxu0
      %4798 = vmatprep.mubr.bf16.mxu0 0
      %4799 = vmatmul.mubr.bf16.gmra.mxu0 %v4577
      %v4800 = vpop.f32.mrf.mxu0
      %v4801 = vadd.f32 0.0, %v4800
      %v4802 = vpop.f32.mrf.mxu0
      %v4803 = vpop.f32.mrf.mxu0
      %v4804 = vadd.f32 0.0, %v4803
      %v4805 = vpop.f32.mrf.mxu0
      %4806 = vdwg.mxu0
      %v4807 = vadd.f32 %v4404, %v4617
      %v4808 = vadd.f32 %v4405, %v4620
      %v4809 = vadd.f32 %v4406, %v4625
      %v4810 = vadd.f32 %v4407, %v4628
      %v4811 = vadd.f32 %v4408, %v4633
      %v4812 = vadd.f32 %v4409, %v4636
      %v4813 = vadd.f32 %v4410, %v4641
      %v4814 = vadd.f32 %v4411, %v4644
      %v4815 = vadd.f32 %v4412, %v4649
      %v4816 = vadd.f32 %v4413, %v4652
      %v4817 = vadd.f32 %v4414, %v4657
      %v4818 = vadd.f32 %v4415, %v4660
      %v4819 = vadd.f32 %v4416, %v4665
      %v4820 = vadd.f32 %v4417, %v4668
      %v4821 = vadd.f32 %v4418, %v4673
      %v4822 = vadd.f32 %v4419, %v4676
      %v4823 = vadd.f32 %v4420, %v4681
      %v4824 = vadd.f32 %v4421, %v4684
      %v4825 = vadd.f32 %v4422, %v4689
      %v4826 = vadd.f32 %v4423, %v4692
      %v4827 = vadd.f32 %v4424, %v4697
      %v4828 = vadd.f32 %v4425, %v4700
      %v4829 = vadd.f32 %v4426, %v4705
      %v4830 = vadd.f32 %v4427, %v4708
      %v4831 = vadd.f32 %v4428, %v4713
      %v4832 = vadd.f32 %v4429, %v4716
      %v4833 = vadd.f32 %v4430, %v4721
      %v4834 = vadd.f32 %v4431, %v4724
      %v4835 = vadd.f32 %v4432, %v4729
      %v4836 = vadd.f32 %v4433, %v4732
      %v4837 = vadd.f32 %v4434, %v4737
      %v4838 = vadd.f32 %v4435, %v4740
      %v4839 = vadd.f32 %v4436, %v4745
      %v4840 = vadd.f32 %v4437, %v4748
      %v4841 = vadd.f32 %v4438, %v4753
      %v4842 = vadd.f32 %v4439, %v4756
      %v4843 = vadd.f32 %v4440, %v4761
      %v4844 = vadd.f32 %v4441, %v4764
      %v4845 = vadd.f32 %v4442, %v4769
      %v4846 = vadd.f32 %v4443, %v4772
      %v4847 = vadd.f32 %v4444, %v4777
      %v4848 = vadd.f32 %v4445, %v4780
      %v4849 = vadd.f32 %v4446, %v4785
      %v4850 = vadd.f32 %v4447, %v4788
      %v4851 = vadd.f32 %v4448, %v4793
      %v4852 = vadd.f32 %v4449, %v4796
      %v4853 = vadd.f32 %v4450, %v4801
      %v4854 = vadd.f32 %v4451, %v4804
      %v4855 = vld [vmem:[%s213] sm:$0x1]
      %v4857 = vlaneseq
      %v4858 = vshrl.u32 %v4857, 7
      %v4859 = vsub.s32 0, %v4858
      %v4860 = vrot.slane %v4855, %v4859
      %v4862 = vadd.f32 %v4807, %v4860
      %v4863 = vadd.f32 %v4808, %v4860
      %v4864 = vadd.f32 %v4809, %v4860
      %v4865 = vadd.f32 %v4810, %v4860
      %v4866 = vadd.f32 %v4811, %v4860
      %v4867 = vadd.f32 %v4812, %v4860
      %v4868 = vadd.f32 %v4813, %v4860
      %v4869 = vadd.f32 %v4814, %v4860
      %v4870 = vadd.f32 %v4815, %v4860
      %v4871 = vadd.f32 %v4816, %v4860
      %v4872 = vadd.f32 %v4817, %v4860
      %v4873 = vadd.f32 %v4818, %v4860
      %v4874 = vadd.f32 %v4819, %v4860
      %v4875 = vadd.f32 %v4820, %v4860
      %v4876 = vadd.f32 %v4821, %v4860
      %v4877 = vadd.f32 %v4822, %v4860
      %v4878 = vadd.f32 %v4823, %v4860
      %v4879 = vadd.f32 %v4824, %v4860
      %v4880 = vadd.f32 %v4825, %v4860
      %v4881 = vadd.f32 %v4826, %v4860
      %v4882 = vadd.f32 %v4827, %v4860
      %v4883 = vadd.f32 %v4828, %v4860
      %v4884 = vadd.f32 %v4829, %v4860
      %v4885 = vadd.f32 %v4830, %v4860
      %v4886 = vadd.f32 %v4831, %v4860
      %v4887 = vadd.f32 %v4832, %v4860
      %v4888 = vadd.f32 %v4833, %v4860
      %v4889 = vadd.f32 %v4834, %v4860
      %v4890 = vadd.f32 %v4835, %v4860
      %v4891 = vadd.f32 %v4836, %v4860
      %v4892 = vadd.f32 %v4837, %v4860
      %v4893 = vadd.f32 %v4838, %v4860
      %v4894 = vadd.f32 %v4839, %v4860
      %v4895 = vadd.f32 %v4840, %v4860
      %v4896 = vadd.f32 %v4841, %v4860
      %v4897 = vadd.f32 %v4842, %v4860
      %v4898 = vadd.f32 %v4843, %v4860
      %v4899 = vadd.f32 %v4844, %v4860
      %v4900 = vadd.f32 %v4845, %v4860
      %v4901 = vadd.f32 %v4846, %v4860
      %v4902 = vadd.f32 %v4847, %v4860
      %v4903 = vadd.f32 %v4848, %v4860
      %v4904 = vadd.f32 %v4849, %v4860
      %v4905 = vadd.f32 %v4850, %v4860
      %v4906 = vadd.f32 %v4851, %v4860
      %v4907 = vadd.f32 %v4852, %v4860
      %v4908 = vadd.f32 %v4853, %v4860
      %v4909 = vadd.f32 %v4854, %v4860
      %v4910 = vxor.u32 %v4862, 2147483648
      %v4911 = vxor.u32 %v4863, 2147483648
      %v4912 = vxor.u32 %v4864, 2147483648
      %v4913 = vxor.u32 %v4865, 2147483648
      %v4914 = vxor.u32 %v4866, 2147483648
      %v4915 = vxor.u32 %v4867, 2147483648
      %v4916 = vxor.u32 %v4868, 2147483648
      %v4917 = vxor.u32 %v4869, 2147483648
      %v4918 = vxor.u32 %v4870, 2147483648
      %v4919 = vxor.u32 %v4871, 2147483648
      %v4920 = vxor.u32 %v4872, 2147483648
      %v4921 = vxor.u32 %v4873, 2147483648
      %v4922 = vxor.u32 %v4874, 2147483648
      %v4923 = vxor.u32 %v4875, 2147483648
      %v4924 = vxor.u32 %v4876, 2147483648
      %v4925 = vxor.u32 %v4877, 2147483648
      %v4926 = vxor.u32 %v4878, 2147483648
      %v4927 = vxor.u32 %v4879, 2147483648
      %v4928 = vxor.u32 %v4880, 2147483648
      %v4929 = vxor.u32 %v4881, 2147483648
      %v4930 = vxor.u32 %v4882, 2147483648
      %v4931 = vxor.u32 %v4883, 2147483648
      %v4932 = vxor.u32 %v4884, 2147483648
      %v4933 = vxor.u32 %v4885, 2147483648
      %v4934 = vxor.u32 %v4886, 2147483648
      %v4935 = vxor.u32 %v4887, 2147483648
      %v4936 = vxor.u32 %v4888, 2147483648
      %v4937 = vxor.u32 %v4889, 2147483648
      %v4938 = vxor.u32 %v4890, 2147483648
      %v4939 = vxor.u32 %v4891, 2147483648
      %v4940 = vxor.u32 %v4892, 2147483648
      %v4941 = vxor.u32 %v4893, 2147483648
      %v4942 = vxor.u32 %v4894, 2147483648
      %v4943 = vxor.u32 %v4895, 2147483648
      %v4944 = vxor.u32 %v4896, 2147483648
      %v4945 = vxor.u32 %v4897, 2147483648
      %v4946 = vxor.u32 %v4898, 2147483648
      %v4947 = vxor.u32 %v4899, 2147483648
      %v4948 = vxor.u32 %v4900, 2147483648
      %v4949 = vxor.u32 %v4901, 2147483648
      %v4950 = vxor.u32 %v4902, 2147483648
      %v4951 = vxor.u32 %v4903, 2147483648
      %v4952 = vxor.u32 %v4904, 2147483648
      %v4953 = vxor.u32 %v4905, 2147483648
      %v4954 = vxor.u32 %v4906, 2147483648
      %v4955 = vxor.u32 %v4907, 2147483648
      %v4956 = vxor.u32 %v4908, 2147483648
      %v4957 = vxor.u32 %v4909, 2147483648
      %v4958 = vmul.f32 %v4910, 1.442695
      %v4959 = vpow.pop %v4958
      %v4960 = vmul.f32 %v4911, 1.442695
      %v4961 = vpow.pop %v4960
      %v4962 = vmul.f32 %v4912, 1.442695
      %v4963 = vpow.pop %v4962
      %v4964 = vmul.f32 %v4913, 1.442695
      %v4965 = vpow.pop %v4964
      %v4966 = vmul.f32 %v4914, 1.442695
      %v4967 = vpow.pop %v4966
      %v4968 = vmul.f32 %v4915, 1.442695
      %v4969 = vpow.pop %v4968
      %v4970 = vmul.f32 %v4916, 1.442695
      %v4971 = vpow.pop %v4970
      %v4972 = vmul.f32 %v4917, 1.442695
      %v4973 = vpow.pop %v4972
      %v4974 = vmul.f32 %v4918, 1.442695
      %v4975 = vpow.pop %v4974
      %v4976 = vmul.f32 %v4919, 1.442695
      %v4977 = vpow.pop %v4976
      %v4978 = vmul.f32 %v4920, 1.442695
      %v4979 = vpow.pop %v4978
      %v4980 = vmul.f32 %v4921, 1.442695
      %v4981 = vpow.pop %v4980
      %v4982 = vmul.f32 %v4922, 1.442695
      %v4983 = vpow.pop %v4982
      %v4984 = vmul.f32 %v4923, 1.442695
      %v4985 = vpow.pop %v4984
      %v4986 = vmul.f32 %v4924, 1.442695
      %v4987 = vpow.pop %v4986
      %v4988 = vmul.f32 %v4925, 1.442695
      %v4989 = vpow.pop %v4988
      %v4990 = vmul.f32 %v4926, 1.442695
      %v4991 = vpow.pop %v4990
      %v4992 = vmul.f32 %v4927, 1.442695
      %v4993 = vpow.pop %v4992
      %v4994 = vmul.f32 %v4928, 1.442695
      %v4995 = vpow.pop %v4994
      %v4996 = vmul.f32 %v4929, 1.442695
      %v4997 = vpow.pop %v4996
      %v4998 = vmul.f32 %v4930, 1.442695
      %v4999 = vpow.pop %v4998
      %v5000 = vmul.f32 %v4931, 1.442695
      %v5001 = vpow.pop %v5000
      %v5002 = vmul.f32 %v4932, 1.442695
      %v5003 = vpow.pop %v5002
      %v5004 = vmul.f32 %v4933, 1.442695
      %v5005 = vpow.pop %v5004
      %v5006 = vmul.f32 %v4934, 1.442695
      %v5007 = vpow.pop %v5006
      %v5008 = vmul.f32 %v4935, 1.442695
      %v5009 = vpow.pop %v5008
      %v5010 = vmul.f32 %v4936, 1.442695
      %v5011 = vpow.pop %v5010
      %v5012 = vmul.f32 %v4937, 1.442695
      %v5013 = vpow.pop %v5012
      %v5014 = vmul.f32 %v4938, 1.442695
      %v5015 = vpow.pop %v5014
      %v5016 = vmul.f32 %v4939, 1.442695
      %v5017 = vpow.pop %v5016
      %v5018 = vmul.f32 %v4940, 1.442695
      %v5019 = vpow.pop %v5018
      %v5020 = vmul.f32 %v4941, 1.442695
      %v5021 = vpow.pop %v5020
      %v5022 = vmul.f32 %v4942, 1.442695
      %v5023 = vpow.pop %v5022
      %v5024 = vmul.f32 %v4943, 1.442695
      %v5025 = vpow.pop %v5024
      %v5026 = vmul.f32 %v4944, 1.442695
      %v5027 = vpow.pop %v5026
      %v5028 = vmul.f32 %v4945, 1.442695
      %v5029 = vpow.pop %v5028
      %v5030 = vmul.f32 %v4946, 1.442695
      %v5031 = vpow.pop %v5030
      %v5032 = vmul.f32 %v4947, 1.442695
      %v5033 = vpow.pop %v5032
      %v5034 = vmul.f32 %v4948, 1.442695
      %v5035 = vpow.pop %v5034
      %v5036 = vmul.f32 %v4949, 1.442695
      %v5037 = vpow.pop %v5036
      %v5038 = vmul.f32 %v4950, 1.442695
      %v5039 = vpow.pop %v5038
      %v5040 = vmul.f32 %v4951, 1.442695
      %v5041 = vpow.pop %v5040
      %v5042 = vmul.f32 %v4952, 1.442695
      %v5043 = vpow.pop %v5042
      %v5044 = vmul.f32 %v4953, 1.442695
      %v5045 = vpow.pop %v5044
      %v5046 = vmul.f32 %v4954, 1.442695
      %v5047 = vpow.pop %v5046
      %v5048 = vmul.f32 %v4955, 1.442695
      %v5049 = vpow.pop %v5048
      %v5050 = vmul.f32 %v4956, 1.442695
      %v5051 = vpow.pop %v5050
      %v5052 = vmul.f32 %v4957, 1.442695
      %v5053 = vpow.pop %v5052
      %v5054 = vadd.f32 %v4959, 1.0
      %v5055 = vadd.f32 %v4961, 1.0
      %v5056 = vadd.f32 %v4963, 1.0
      %v5057 = vadd.f32 %v4965, 1.0
      %v5058 = vadd.f32 %v4967, 1.0
      %v5059 = vadd.f32 %v4969, 1.0
      %v5060 = vadd.f32 %v4971, 1.0
      %v5061 = vadd.f32 %v4973, 1.0
      %v5062 = vadd.f32 %v4975, 1.0
      %v5063 = vadd.f32 %v4977, 1.0
      %v5064 = vadd.f32 %v4979, 1.0
      %v5065 = vadd.f32 %v4981, 1.0
      %v5066 = vadd.f32 %v4983, 1.0
      %v5067 = vadd.f32 %v4985, 1.0
      %v5068 = vadd.f32 %v4987, 1.0
      %v5069 = vadd.f32 %v4989, 1.0
      %v5070 = vadd.f32 %v4991, 1.0
      %v5071 = vadd.f32 %v4993, 1.0
      %v5072 = vadd.f32 %v4995, 1.0
      %v5073 = vadd.f32 %v4997, 1.0
      %v5074 = vadd.f32 %v4999, 1.0
      %v5075 = vadd.f32 %v5001, 1.0
      %v5076 = vadd.f32 %v5003, 1.0
      %v5077 = vadd.f32 %v5005, 1.0
      %v5078 = vadd.f32 %v5007, 1.0
      %v5079 = vadd.f32 %v5009, 1.0
      %v5080 = vadd.f32 %v5011, 1.0
      %v5081 = vadd.f32 %v5013, 1.0
      %v5082 = vadd.f32 %v5015, 1.0
      %v5083 = vadd.f32 %v5017, 1.0
      %v5084 = vadd.f32 %v5019, 1.0
      %v5085 = vadd.f32 %v5021, 1.0
      %v5086 = vadd.f32 %v5023, 1.0
      %v5087 = vadd.f32 %v5025, 1.0
      %v5088 = vadd.f32 %v5027, 1.0
      %v5089 = vadd.f32 %v5029, 1.0
      %v5090 = vadd.f32 %v5031, 1.0
      %v5091 = vadd.f32 %v5033, 1.0
      %v5092 = vadd.f32 %v5035, 1.0
      %v5093 = vadd.f32 %v5037, 1.0
      %v5094 = vadd.f32 %v5039, 1.0
      %v5095 = vadd.f32 %v5041, 1.0
      %v5096 = vadd.f32 %v5043, 1.0
      %v5097 = vadd.f32 %v5045, 1.0
      %v5098 = vadd.f32 %v5047, 1.0
      %v5099 = vadd.f32 %v5049, 1.0
      %v5100 = vadd.f32 %v5051, 1.0
      %v5101 = vadd.f32 %v5053, 1.0
      %v5102 = vrcp.pop %v5054
      %v5103 = vmul.f32 1.0, %v5102
      %v5104 = vrcp.pop %v5055
      %v5105 = vmul.f32 1.0, %v5104
      %v5106 = vrcp.pop %v5056
      %v5107 = vmul.f32 1.0, %v5106
      %v5108 = vrcp.pop %v5057
      %v5109 = vmul.f32 1.0, %v5108
      %v5110 = vrcp.pop %v5058
      %v5111 = vmul.f32 1.0, %v5110
      %v5112 = vrcp.pop %v5059
      %v5113 = vmul.f32 1.0, %v5112
      %v5114 = vrcp.pop %v5060
      %v5115 = vmul.f32 1.0, %v5114
      %v5116 = vrcp.pop %v5061
      %v5117 = vmul.f32 1.0, %v5116
      %v5118 = vrcp.pop %v5062
      %v5119 = vmul.f32 1.0, %v5118
      %v5120 = vrcp.pop %v5063
      %v5121 = vmul.f32 1.0, %v5120
      %v5122 = vrcp.pop %v5064
      %v5123 = vmul.f32 1.0, %v5122
      %v5124 = vrcp.pop %v5065
      %v5125 = vmul.f32 1.0, %v5124
      %v5126 = vrcp.pop %v5066
      %v5127 = vmul.f32 1.0, %v5126
      %v5128 = vrcp.pop %v5067
      %v5129 = vmul.f32 1.0, %v5128
      %v5130 = vrcp.pop %v5068
      %v5131 = vmul.f32 1.0, %v5130
      %v5132 = vrcp.pop %v5069
      %v5133 = vmul.f32 1.0, %v5132
      %v5134 = vrcp.pop %v5070
      %v5135 = vmul.f32 1.0, %v5134
      %v5136 = vrcp.pop %v5071
      %v5137 = vmul.f32 1.0, %v5136
      %v5138 = vrcp.pop %v5072
      %v5139 = vmul.f32 1.0, %v5138
      %v5140 = vrcp.pop %v5073
      %v5141 = vmul.f32 1.0, %v5140
      %v5142 = vrcp.pop %v5074
      %v5143 = vmul.f32 1.0, %v5142
      %v5144 = vrcp.pop %v5075
      %v5145 = vmul.f32 1.0, %v5144
      %v5146 = vrcp.pop %v5076
      %v5147 = vmul.f32 1.0, %v5146
      %v5148 = vrcp.pop %v5077
      %v5149 = vmul.f32 1.0, %v5148
      %v5150 = vrcp.pop %v5078
      %v5151 = vmul.f32 1.0, %v5150
      %v5152 = vrcp.pop %v5079
      %v5153 = vmul.f32 1.0, %v5152
      %v5154 = vrcp.pop %v5080
      %v5155 = vmul.f32 1.0, %v5154
      %v5156 = vrcp.pop %v5081
      %v5157 = vmul.f32 1.0, %v5156
      %v5158 = vrcp.pop %v5082
      %v5159 = vmul.f32 1.0, %v5158
      %v5160 = vrcp.pop %v5083
      %v5161 = vmul.f32 1.0, %v5160
      %v5162 = vrcp.pop %v5084
      %v5163 = vmul.f32 1.0, %v5162
      %v5164 = vrcp.pop %v5085
      %v5165 = vmul.f32 1.0, %v5164
      %v5166 = vrcp.pop %v5086
      %v5167 = vmul.f32 1.0, %v5166
      %v5168 = vrcp.pop %v5087
      %v5169 = vmul.f32 1.0, %v5168
      %v5170 = vrcp.pop %v5088
      %v5171 = vmul.f32 1.0, %v5170
      %v5172 = vrcp.pop %v5089
      %v5173 = vmul.f32 1.0, %v5172
      %v5174 = vrcp.pop %v5090
      %v5175 = vmul.f32 1.0, %v5174
      %v5176 = vrcp.pop %v5091
      %v5177 = vmul.f32 1.0, %v5176
      %v5178 = vrcp.pop %v5092
      %v5179 = vmul.f32 1.0, %v5178
      %v5180 = vrcp.pop %v5093
      %v5181 = vmul.f32 1.0, %v5180
      %v5182 = vrcp.pop %v5094
      %v5183 = vmul.f32 1.0, %v5182
      %v5184 = vrcp.pop %v5095
      %v5185 = vmul.f32 1.0, %v5184
      %v5186 = vrcp.pop %v5096
      %v5187 = vmul.f32 1.0, %v5186
      %v5188 = vrcp.pop %v5097
      %v5189 = vmul.f32 1.0, %v5188
      %v5190 = vrcp.pop %v5098
      %v5191 = vmul.f32 1.0, %v5190
      %v5192 = vrcp.pop %v5099
      %v5193 = vmul.f32 1.0, %v5192
      %v5194 = vrcp.pop %v5100
      %v5195 = vmul.f32 1.0, %v5194
      %v5196 = vrcp.pop %v5101
      %v5197 = vmul.f32 1.0, %v5196
      %v5198 = vmul.f32 %v4862, %v5103
      %v5199 = vmul.f32 %v4863, %v5105
      %v5200 = vmul.f32 %v4864, %v5107
      %v5201 = vmul.f32 %v4865, %v5109
      %v5202 = vmul.f32 %v4866, %v5111
      %v5203 = vmul.f32 %v4867, %v5113
      %v5204 = vmul.f32 %v4868, %v5115
      %v5205 = vmul.f32 %v4869, %v5117
      %v5206 = vmul.f32 %v4870, %v5119
      %v5207 = vmul.f32 %v4871, %v5121
      %v5208 = vmul.f32 %v4872, %v5123
      %v5209 = vmul.f32 %v4873, %v5125
      %v5210 = vmul.f32 %v4874, %v5127
      %v5211 = vmul.f32 %v4875, %v5129
      %v5212 = vmul.f32 %v4876, %v5131
      %v5213 = vmul.f32 %v4877, %v5133
      %v5214 = vmul.f32 %v4878, %v5135
      %v5215 = vmul.f32 %v4879, %v5137
      %v5216 = vmul.f32 %v4880, %v5139
      %v5217 = vmul.f32 %v4881, %v5141
      %v5218 = vmul.f32 %v4882, %v5143
      %v5219 = vmul.f32 %v4883, %v5145
      %v5220 = vmul.f32 %v4884, %v5147
      %v5221 = vmul.f32 %v4885, %v5149
      %v5222 = vmul.f32 %v4886, %v5151
      %v5223 = vmul.f32 %v4887, %v5153
      %v5224 = vmul.f32 %v4888, %v5155
      %v5225 = vmul.f32 %v4889, %v5157
      %v5226 = vmul.f32 %v4890, %v5159
      %v5227 = vmul.f32 %v4891, %v5161
      %v5228 = vmul.f32 %v4892, %v5163
      %v5229 = vmul.f32 %v4893, %v5165
      %v5230 = vmul.f32 %v4894, %v5167
      %v5231 = vmul.f32 %v4895, %v5169
      %v5232 = vmul.f32 %v4896, %v5171
      %v5233 = vmul.f32 %v4897, %v5173
      %v5234 = vmul.f32 %v4898, %v5175
      %v5235 = vmul.f32 %v4899, %v5177
      %v5236 = vmul.f32 %v4900, %v5179
      %v5237 = vmul.f32 %v4901, %v5181
      %v5238 = vmul.f32 %v4902, %v5183
      %v5239 = vmul.f32 %v4903, %v5185
      %v5240 = vmul.f32 %v4904, %v5187
      %v5241 = vmul.f32 %v4905, %v5189
      %v5242 = vmul.f32 %v4906, %v5191
      %v5243 = vmul.f32 %v4907, %v5193
      %v5244 = vmul.f32 %v4908, %v5195
      %v5245 = vmul.f32 %v4909, %v5197
      %v5246 = vpack.c.bf16 %v5199, %v5198
      %v5247 = vpack.c.bf16 %v5201, %v5200
      %v5248 = vpack.c.bf16 %v5203, %v5202
      %v5249 = vpack.c.bf16 %v5205, %v5204
      %v5250 = vpack.c.bf16 %v5207, %v5206
      %v5251 = vpack.c.bf16 %v5209, %v5208
      %v5252 = vpack.c.bf16 %v5211, %v5210
      %v5253 = vpack.c.bf16 %v5213, %v5212
      %v5254 = vpack.c.bf16 %v5215, %v5214
      %v5255 = vpack.c.bf16 %v5217, %v5216
      %v5256 = vpack.c.bf16 %v5219, %v5218
      %v5257 = vpack.c.bf16 %v5221, %v5220
      %v5258 = vpack.c.bf16 %v5223, %v5222
      %v5259 = vpack.c.bf16 %v5225, %v5224
      %v5260 = vpack.c.bf16 %v5227, %v5226
      %v5261 = vpack.c.bf16 %v5229, %v5228
      %v5262 = vpack.c.bf16 %v5231, %v5230
      %v5263 = vpack.c.bf16 %v5233, %v5232
      %v5264 = vpack.c.bf16 %v5235, %v5234
      %v5265 = vpack.c.bf16 %v5237, %v5236
      %v5266 = vpack.c.bf16 %v5239, %v5238
      %v5267 = vpack.c.bf16 %v5241, %v5240
      %v5268 = vpack.c.bf16 %v5243, %v5242
      %v5269 = vpack.c.bf16 %v5245, %v5244
      %v5294 = vunpack.c.l.b16 %v5246
      %v5295 = vunpack.c.h.b16 %v5246
      %v5296 = vunpack.c.l.b16 %v5247
      %v5297 = vunpack.c.h.b16 %v5247
      %v5298 = vunpack.c.l.b16 %v5248
      %v5299 = vunpack.c.h.b16 %v5248
      %v5300 = vunpack.c.l.b16 %v5249
      %v5301 = vunpack.c.h.b16 %v5249
      %v5302 = vunpack.c.l.b16 %v5250
      %v5303 = vunpack.c.h.b16 %v5250
      %v5304 = vunpack.c.l.b16 %v5251
      %v5305 = vunpack.c.h.b16 %v5251
      %v5306 = vunpack.c.l.b16 %v5252
      %v5307 = vunpack.c.h.b16 %v5252
      %v5308 = vunpack.c.l.b16 %v5253
      %v5309 = vunpack.c.h.b16 %v5253
      %v5310 = vunpack.c.l.b16 %v5254
      %v5311 = vunpack.c.h.b16 %v5254
      %v5312 = vunpack.c.l.b16 %v5255
      %v5313 = vunpack.c.h.b16 %v5255
      %v5314 = vunpack.c.l.b16 %v5256
      %v5315 = vunpack.c.h.b16 %v5256
      %v5316 = vunpack.c.l.b16 %v5257
      %v5317 = vunpack.c.h.b16 %v5257
      %v5318 = vunpack.c.l.b16 %v5258
      %v5319 = vunpack.c.h.b16 %v5258
      %v5320 = vunpack.c.l.b16 %v5259
      %v5321 = vunpack.c.h.b16 %v5259
      %v5322 = vunpack.c.l.b16 %v5260
      %v5323 = vunpack.c.h.b16 %v5260
      %v5324 = vunpack.c.l.b16 %v5261
      %v5325 = vunpack.c.h.b16 %v5261
      %v5326 = vunpack.c.l.b16 %v5262
      %v5327 = vunpack.c.h.b16 %v5262
      %v5328 = vunpack.c.l.b16 %v5263
      %v5329 = vunpack.c.h.b16 %v5263
      %v5330 = vunpack.c.l.b16 %v5264
      %v5331 = vunpack.c.h.b16 %v5264
      %v5332 = vunpack.c.l.b16 %v5265
      %v5333 = vunpack.c.h.b16 %v5265
      %v5334 = vunpack.c.l.b16 %v5266
      %v5335 = vunpack.c.h.b16 %v5266
      %v5336 = vunpack.c.l.b16 %v5267
      %v5337 = vunpack.c.h.b16 %v5267
      %v5338 = vunpack.c.l.b16 %v5268
      %v5339 = vunpack.c.h.b16 %v5268
      %v5340 = vunpack.c.l.b16 %v5269
      %v5341 = vunpack.c.h.b16 %v5269
      %v5342 = vpack.c.b16 %v5294, %v5294
      %v5343 = vpack.c.b16 %v5295, %v5295
      %v5344 = vpack.c.b16 %v5296, %v5296
      %v5345 = vpack.c.b16 %v5297, %v5297
      %v5346 = vpack.c.b16 %v5298, %v5298
      %v5347 = vpack.c.b16 %v5299, %v5299
      %v5348 = vpack.c.b16 %v5300, %v5300
      %v5349 = vpack.c.b16 %v5301, %v5301
      %v5350 = vpack.c.b16 %v5302, %v5302
      %v5351 = vpack.c.b16 %v5303, %v5303
      %v5352 = vpack.c.b16 %v5304, %v5304
      %v5353 = vpack.c.b16 %v5305, %v5305
      %v5354 = vpack.c.b16 %v5306, %v5306
      %v5355 = vpack.c.b16 %v5307, %v5307
      %v5356 = vpack.c.b16 %v5308, %v5308
      %v5357 = vpack.c.b16 %v5309, %v5309
      %v5358 = vpack.c.b16 %v5310, %v5310
      %v5359 = vpack.c.b16 %v5311, %v5311
      %v5360 = vpack.c.b16 %v5312, %v5312
      %v5361 = vpack.c.b16 %v5313, %v5313
      %v5362 = vpack.c.b16 %v5314, %v5314
      %v5363 = vpack.c.b16 %v5315, %v5315
      %v5364 = vpack.c.b16 %v5316, %v5316
      %v5365 = vpack.c.b16 %v5317, %v5317
      %v5366 = vpack.c.b16 %v5318, %v5318
      %v5367 = vpack.c.b16 %v5319, %v5319
      %v5368 = vpack.c.b16 %v5320, %v5320
      %v5369 = vpack.c.b16 %v5321, %v5321
      %v5370 = vpack.c.b16 %v5322, %v5322
      %v5371 = vpack.c.b16 %v5323, %v5323
      %v5372 = vpack.c.b16 %v5324, %v5324
      %v5373 = vpack.c.b16 %v5325, %v5325
      %v5374 = vpack.c.b16 %v5326, %v5326
      %v5375 = vpack.c.b16 %v5327, %v5327
      %v5376 = vpack.c.b16 %v5328, %v5328
      %v5377 = vpack.c.b16 %v5329, %v5329
      %v5378 = vpack.c.b16 %v5330, %v5330
      %v5379 = vpack.c.b16 %v5331, %v5331
      %v5380 = vpack.c.b16 %v5332, %v5332
      %v5381 = vpack.c.b16 %v5333, %v5333
      %v5382 = vpack.c.b16 %v5334, %v5334
      %v5383 = vpack.c.b16 %v5335, %v5335
      %v5384 = vpack.c.b16 %v5336, %v5336
      %v5385 = vpack.c.b16 %v5337, %v5337
      %v5386 = vpack.c.b16 %v5338, %v5338
      %v5387 = vpack.c.b16 %v5339, %v5339
      %v5388 = vpack.c.b16 %v5340, %v5340
      %v5389 = vpack.c.b16 %v5341, %v5341
      %5438 = vst [vmem:[%s221] sm:$0xf] %v5342
      %5439 = vst [vmem:[%s221 + $0x4] sm:$0xf] %v5343
      %5440 = vst [vmem:[%s221 + $0x8] sm:$0xf] %v5344
      %5441 = vst [vmem:[%s221 + $0xc] sm:$0xf] %v5345
      %5442 = vst [vmem:[%s221 + $0x10] sm:$0xf] %v5346
      %5443 = vst [vmem:[%s221 + $0x14] sm:$0xf] %v5347
      %5444 = vst [vmem:[%s221 + $0x18] sm:$0xf] %v5348
      %5445 = vst [vmem:[%s221 + $0x1c] sm:$0xf] %v5349
      %5446 = vst [vmem:[%s221 + $0x20] sm:$0xf] %v5350
      %5447 = vst [vmem:[%s221 + $0x24] sm:$0xf] %v5351
      %5448 = vst [vmem:[%s221 + $0x28] sm:$0xf] %v5352
      %5449 = vst [vmem:[%s221 + $0x2c] sm:$0xf] %v5353
      %5450 = vst [vmem:[%s221 + $0x30] sm:$0xf] %v5354
      %5451 = vst [vmem:[%s221 + $0x34] sm:$0xf] %v5355
      %5452 = vst [vmem:[%s221 + $0x38] sm:$0xf] %v5356
      %5453 = vst [vmem:[%s221 + $0x3c] sm:$0xf] %v5357
      %5454 = vst [vmem:[%s221 + $0x40] sm:$0xf] %v5358
      %5455 = vst [vmem:[%s221 + $0x44] sm:$0xf] %v5359
      %5456 = vst [vmem:[%s221 + $0x48] sm:$0xf] %v5360
      %5457 = vst [vmem:[%s221 + $0x4c] sm:$0xf] %v5361
      %5458 = vst [vmem:[%s221 + $0x50] sm:$0xf] %v5362
      %5459 = vst [vmem:[%s221 + $0x54] sm:$0xf] %v5363
      %5460 = vst [vmem:[%s221 + $0x58] sm:$0xf] %v5364
      %5461 = vst [vmem:[%s221 + $0x5c] sm:$0xf] %v5365
      %5462 = vst [vmem:[%s221 + $0x60] sm:$0xf] %v5366
      %5463 = vst [vmem:[%s221 + $0x64] sm:$0xf] %v5367
      %5464 = vst [vmem:[%s221 + $0x68] sm:$0xf] %v5368
      %5465 = vst [vmem:[%s221 + $0x6c] sm:$0xf] %v5369
      %5466 = vst [vmem:[%s221 + $0x70] sm:$0xf] %v5370
      %5467 = vst [vmem:[%s221 + $0x74] sm:$0xf] %v5371
      %5468 = vst [vmem:[%s221 + $0x78] sm:$0xf] %v5372
      %5469 = vst [vmem:[%s221 + $0x7c] sm:$0xf] %v5373
      %5470 = vst [vmem:[%s221 + $0x80] sm:$0xf] %v5374
      %5471 = vst [vmem:[%s221 + $0x84] sm:$0xf] %v5375
      %5472 = vst [vmem:[%s221 + $0x88] sm:$0xf] %v5376
      %5473 = vst [vmem:[%s221 + $0x8c] sm:$0xf] %v5377
      %5474 = vst [vmem:[%s221 + $0x90] sm:$0xf] %v5378
      %5475 = vst [vmem:[%s221 + $0x94] sm:$0xf] %v5379
      %5476 = vst [vmem:[%s221 + $0x98] sm:$0xf] %v5380
      %5477 = vst [vmem:[%s221 + $0x9c] sm:$0xf] %v5381
      %5478 = vst [vmem:[%s221 + $0xa0] sm:$0xf] %v5382
      %5479 = vst [vmem:[%s221 + $0xa4] sm:$0xf] %v5383
      %5480 = vst [vmem:[%s221 + $0xa8] sm:$0xf] %v5384
      %5481 = vst [vmem:[%s221 + $0xac] sm:$0xf] %v5385
      %5482 = vst [vmem:[%s221 + $0xb0] sm:$0xf] %v5386
      %5483 = vst [vmem:[%s221 + $0xb4] sm:$0xf] %v5387
      %5484 = vst [vmem:[%s221 + $0xb8] sm:$0xf] %v5388
      %5485 = vst [vmem:[%s221 + $0xbc] sm:$0xf] %v5389
      %p5486 = scmp.lt.s32.totalorder %s18, 1
      %s5487 = scalar_select %p5486, %s18, 1
      %p5488 = scmp.lt.s32.totalorder %s19, 0
      %s5489 = scalar_select %p5488, %s19, 0
      %s5490 = smul.addr %s5487, 48
      %s5491 = sadd.s32 %s5489, %s5490
      %s5492 = smul.addr %s5491, 4
      %s5493 = scalar_lea.vmem %s3, %s5492
      // Predicated region
      $region33: #{elan_forward.7} parent=31 // pred_check
        %p5494 = pneg %p124
      $region34: #{elan_forward.7} parent=31 // pred_check_branch
        %5496 = sbr.rel (%p5494) target = $region36
      $region35: #{elan_forward.7} parent=31 // pred_region
        _
      $region36: #{elan_forward.7} parent=31 // pred_fallthru
        _
    $region32: #{elan_forward.7} parent=5 // pred_fallthru
      _
    %p5497 = scmp.le.s32.totalorder 2, %s9
    // Predicated region
    $region37: #{elan_forward.7} parent=5 // pred_check
      %p5498 = pneg %p5497
    $region38: #{elan_forward.7} parent=5 // pred_check_branch
      %5500 = sbr.rel (%p5498) target = $region40
    $region39: #{elan_forward.7} parent=5 // pred_region
      %s5501 = ssub.s32 %s9, 2
      // Predicated region
      $region41: #{elan_forward.7} parent=39 // pred_check
        %p5502 = pneg %p130
      $region42: #{elan_forward.7} parent=39 // pred_check_branch
        %5504 = sbr.rel (%p5502) target = $region44
      $region43: #{elan_forward.7} parent=39 // pred_region
        %p5505 = scmp.lt.s32.totalorder %s20, 1
        %s5506 = scalar_select %p5505, %s20, 1
        %p5507 = scmp.lt.s32.totalorder %s21, 0
        %s5508 = scalar_select %p5507, %s21, 0
        %s5509 = smul.addr %s5506, 48
        %s5510 = sadd.s32 %s5508, %s5509
        %s5511 = smul.addr %s5510, 4
        %s5512 = scalar_lea.vmem %s3, %s5511
      $region44: #{elan_forward.7} parent=39 // pred_fallthru
        _
    $region40: #{elan_forward.7} parent=5 // pred_fallthru
      _
  $region6: #{elan_forward.7} parent=0 // loop_footer
    %s13 = sadd.s32 1, %s9
  $region7: #{elan_forward.7} parent=0 // loop_footer_branch
    %8 = sbr.rel target = $region3
  $region8: #{elan_forward.7} parent=0 // loop_exit
    _

</llo_original>
